<compile_context>
chip_gen: v7x
topology: tpu7x:2x2x1
jax: 0.10.0
libtpu: 0.0.40
codegen_flags: <defaults>
</compile_context>

<pallas_src>
import functools

import jax
import jax.numpy as jnp
from jax.experimental import pallas as pl
from jax.experimental.pallas import tpu as pltpu

N_POINTS = 1024   # MaxPool1d(1024) in the reference module hard-codes this pool size.
LANE = 128


def _round_up(x, m):
    return (x + m - 1) // m * m


# ---------------------------------------------------------------------------
# Kernel 1: per-point MLP + max-pool over all 1024 points.
# grid = (batch, channel-split); one step handles the whole point dimension.
# ---------------------------------------------------------------------------
def point_mlp_max_kernel(x_ref,
                         w1_ref, b1_ref, w2_ref, b2_ref, w3_ref, b3_ref,
                         g_ref):
    f32, bf16 = jnp.float32, jnp.bfloat16

    x = x_ref[...]                                    # (N, 3)  f32
    w1 = w1_ref[...]                                  # (3, 64) f32

    # Layer 1 has K=3: three VPU broadcast FMAs instead of a badly-utilized MXU pass.
    h = (x[:, 0:1] * w1[0:1, :]
         + x[:, 1:2] * w1[1:2, :]
         + x[:, 2:3] * w1[2:3, :]
         + b1_ref[...])
    h = jnp.maximum(h, 0.0)                           # (N, 64)  f32

    # Layer 2: bf16 MXU matmul, f32 accumulation (BN folded into W/b).
    h = jnp.dot(h.astype(bf16), w2_ref[...], preferred_element_type=f32) + b2_ref[...]
    h = jnp.maximum(h, 0.0)                           # (N, 128) f32

    # Layer 3: raw matmul only; bias + ReLU are applied AFTER the max (exact,
    # since +const and ReLU commute with max), avoiding two full (N, c_blk)
    # f32 VPU passes.  Output is stored in bf16 for kernel 2.
    raw = jnp.dot(h.astype(bf16), w3_ref[...], preferred_element_type=f32)  # (N, c_blk)
    part = jnp.max(raw, axis=0, keepdims=True)        # (1, c_blk)
    g_ref[...] = jnp.maximum(part + b3_ref[...], 0.0).astype(bf16)


# ---------------------------------------------------------------------------
# Kernel 2: batched head MLP on the pooled globals (Linear+BN+ReLU x2, Linear)
# ---------------------------------------------------------------------------
def head_mlp_kernel(g_ref, w4_ref, b4_ref, w5_ref, b5_ref, w6_ref, b6_ref,
                    o_ref):
    f32, bf16 = jnp.float32, jnp.bfloat16
    g = g_ref[...]                                     # (Bt, 1024) bf16 already
    h = jnp.dot(g, w4_ref[...], preferred_element_type=f32) + b4_ref[...]
    h = jnp.maximum(h, 0.0)                            # (Bt, 512)
    h = jnp.dot(h.astype(bf16), w5_ref[...], preferred_element_type=f32) + b5_ref[...]
    h = jnp.maximum(h, 0.0)                            # (Bt, 256)
    o_ref[...] = (jnp.dot(h.astype(bf16), w6_ref[...], preferred_element_type=f32)
                  + b6_ref[...])                       # (Bt, 128) lane-dense


@functools.partial(jax.jit, static_argnames=("k",))
def tnet_forward(x_ncw, params, k=3):
    """x_ncw: (B, 3, N) float32, exactly like the PyTorch module's input."""
    B, c_in, N = x_ncw.shape
    assert c_in == 3
    # TODO(synk): general N > 1024 would need strided MaxPool1d(1024) windows;
    # the standard PointNet setting (N == 1024) reduces the pool to a full max.
    assert N == N_POINTS

    f32, bf16 = jnp.float32, jnp.bfloat16
    x = jnp.transpose(x_ncw, (0, 2, 1)).astype(f32)          # (B, N, 3)

    (w1, b1), (w2, b2), (w3, b3), (w4, b4), (w5, b5), (w6, b6) = params
    # MXU-facing weights in bf16 (halves weight DMA/VMEM); biases stay f32.
    w2, w3, w4, w5 = (w.astype(bf16) for w in (w2, w3, w4, w5))
    # Pad the final 256 -> k*k layer to 128 output lanes so the store is
    # lane-dense (masked vst avoided); extra columns are zero, sliced off below.
    kk = k * k
    w6p = jnp.zeros((w6.shape[0], LANE), bf16).at[:, :kk].set(w6.astype(bf16))
    b6p = jnp.zeros((1, LANE), f32).at[:, :kk].set(b6)

    # ---- kernel 1: per-point MLP + max over points -> (B, 1, 1024) bf16 ----
    # With grid=(B,) and B == 1 one v7x TensorCore would idle, so split layer
    # 3's 1024 output channels into two parallel 512-wide halves in that case.
    n_csplit = 2 if B == 1 else 1
    c_blk = 1024 // n_csplit

    g = pl.pallas_call(
        point_mlp_max_kernel,
        out_shape=jax.ShapeDtypeStruct((B, 1, 1024), bf16),
        grid_spec=pltpu.PrefetchScalarGridSpec(
            num_scalar_prefetch=0,
            grid=(B, n_csplit),
            in_specs=[
                pl.BlockSpec((None, N_POINTS, 3), lambda b, c: (b, 0, 0)),
                pl.BlockSpec(w1.shape, lambda b, c: (0, 0)),
                pl.BlockSpec(b1.shape, lambda b, c: (0, 0)),
                pl.BlockSpec(w2.shape, lambda b, c: (0, 0)),
                pl.BlockSpec(b2.shape, lambda b, c: (0, 0)),
                pl.BlockSpec((128, c_blk), lambda b, c: (0, c)),
                pl.BlockSpec((1, c_blk), lambda b, c: (0, c)),
            ],
            out_specs=pl.BlockSpec((None, 1, c_blk), lambda b, c: (b, 0, c)),
        ),
        compiler_params=pltpu.CompilerParams(
            dimension_semantics=("parallel", "parallel"),
            vmem_limit_bytes=32 * 1024 * 1024,   # ~6-8 MiB actual; fits all gens
        ),
    )(x, w1, b1, w2, b2, w3, b3)
    g = g.reshape(B, 1024)                              # bf16

    # ---- kernel 2: batched head MLP -> (B_pad, 128), slice to (B, k*k) ----
    # TODO(synk): for B <= ~8 the head MLP could be fused into kernel 1's
    # epilogue to drop the second dispatch + g round-trip; kept separate so
    # larger batches get fully-tiled MXU head matmuls.
    if B <= 128:
        Bt = _round_up(B, 8)
    else:
        Bt = 256   # v6e/v7x: 256-deep MXU weight tiles; 128 is equally fine on v5e
    B_pad = _round_up(B, Bt)
    g_pad = jnp.pad(g, ((0, B_pad - B), (0, 0)))

    flat2 = [w4, b4, w5, b5, w6p, b6p]
    wspecs2 = [pl.BlockSpec(p.shape, lambda i: (0, 0)) for p in flat2]
    out = pl.pallas_call(
        head_mlp_kernel,
        out_shape=jax.ShapeDtypeStruct((B_pad, LANE), f32),
        grid_spec=pltpu.PrefetchScalarGridSpec(
            num_scalar_prefetch=0,
            grid=(B_pad // Bt,),
            in_specs=[pl.BlockSpec((Bt, 1024), lambda i: (i, 0))] + wspecs2,
            out_specs=pl.BlockSpec((Bt, LANE), lambda i: (i, 0)),
        ),
        compiler_params=pltpu.CompilerParams(
            dimension_semantics=("parallel",),
            vmem_limit_bytes=32 * 1024 * 1024,
        ),
    )(g_pad, *flat2)

    return out[:B, :kk].reshape(B, k, k)


def init_params(key, k=3):
    """Deterministic synthetic params; BN (inference form) folded into W/b. f32."""
    eps = 1e-5
    dims = [(3, 64), (64, 128), (128, 1024), (1024, 512), (512, 256), (256, k * k)]
    has_bn = [True, True, True, True, True, False]
    params = []
    for (cin, cout), bn in zip(dims, has_bn):
        key, kw, kb, kg, kbe, km, kv = jax.random.split(key, 7)
        w = jax.random.normal(kw, (cin, cout), jnp.float32) / jnp.sqrt(float(cin))
        b = 0.01 * jax.random.normal(kb, (cout,), jnp.float32)
        if bn:
            gamma = 1.0 + 0.1 * jax.random.normal(kg, (cout,), jnp.float32)
            beta = 0.1 * jax.random.normal(kbe, (cout,), jnp.float32)
            mean = 0.1 * jax.random.normal(km, (cout,), jnp.float32)
            var = jnp.abs(jax.random.normal(kv, (cout,), jnp.float32)) + 0.5
            scale = gamma / jnp.sqrt(var + eps)
            w = w * scale[None, :]
            b = (b - mean) * scale + beta
        params.append((w, b.reshape(1, cout)))
    return params


def tnet_reference(x_ncw, params, k=3):
    """Pure-JAX reference with the same numerics recipe as the kernels
    (layer-1 exact f32 FMA, bf16 MXU inputs with f32 accumulation)."""
    f32, bf16 = jnp.float32, jnp.bfloat16
    x = jnp.transpose(x_ncw, (0, 2, 1)).astype(f32)           # (B, N, 3)
    (w1, b1), (w2, b2), (w3, b3), (w4, b4), (w5, b5), (w6, b6) = params

    h = (x[..., 0:1] * w1[0, :] + x[..., 1:2] * w1[1, :]
         + x[..., 2:3] * w1[2, :] + b1)
    h = jnp.maximum(h, 0.0)                                   # (B, N, 64)
    for w, b in ((w2, b2), (w3, b3)):
        h = jnp.einsum("bnc,cd->bnd", h.astype(bf16), w.astype(bf16),
                       preferred_element_type=f32) + b
        h = jnp.maximum(h, 0.0)
    g = jnp.max(h, axis=1)                                    # (B, 1024)
    for w, b in ((w4, b4), (w5, b5)):
        g = jnp.maximum(jnp.dot(g.astype(bf16), w.astype(bf16),
                                preferred_element_type=f32) + b[0], 0.0)
    g = jnp.dot(g.astype(bf16), w6.astype(bf16), preferred_element_type=f32) + b6[0]
    return g.reshape(-1, k, k)


if __name__ == "__main__":
    key = jax.random.PRNGKey(0)
    kx, kp = jax.random.split(key)
    B, k = 2, 3
    x = jax.random.normal(kx, (B, 3, N_POINTS), jnp.float32)   # PyTorch NCW input
    params = init_params(kp, k=k)

    out = jax.block_until_ready(tnet_forward(x, params, k=k))
    ref = tnet_reference(x, params, k=k)

    assert out.shape == (B, k, k), out.shape
    assert jnp.allclose(out, ref, atol=2e-3, rtol=2e-3), float(jnp.max(jnp.abs(out - ref)))
    print("KERNEL_OK")
</pallas_src>

<mosaic_0001>
module attributes {stable_mosaic.version = 11 : i64} {
  func.func @head_mlp_kernel(%arg0: i32, %arg1: memref<8x1024xbf16, #tpu.memory_space<vmem>>, %arg2: memref<1024x512xbf16, #tpu.memory_space<vmem>>, %arg3: memref<1x512xf32, #tpu.memory_space<vmem>>, %arg4: memref<512x256xbf16, #tpu.memory_space<vmem>>, %arg5: memref<1x256xf32, #tpu.memory_space<vmem>>, %arg6: memref<256x128xbf16, #tpu.memory_space<vmem>>, %arg7: memref<1x128xf32, #tpu.memory_space<vmem>>, %arg8: memref<8x128xf32, #tpu.memory_space<vmem>>) attributes {dimension_semantics = [#tpu.dimension_semantics<parallel>], iteration_bounds = array<i64: 1>, scalar_prefetch = 0 : i64, scratch_operands = 0 : i64, tpu.core_type = #tpu.core_type<tc>, window_params = [{transform_indices = @transform_0, window_bounds = array<i64: 8, 1024>}, {pipeline_mode = #tpu.pipeline_mode<synchronous>, transform_indices = @transform_1, window_bounds = array<i64: 1024, 512>}, {pipeline_mode = #tpu.pipeline_mode<synchronous>, transform_indices = @transform_2, window_bounds = array<i64: 1, 512>}, {pipeline_mode = #tpu.pipeline_mode<synchronous>, transform_indices = @transform_3, window_bounds = array<i64: 512, 256>}, {pipeline_mode = #tpu.pipeline_mode<synchronous>, transform_indices = @transform_4, window_bounds = array<i64: 1, 256>}, {pipeline_mode = #tpu.pipeline_mode<synchronous>, transform_indices = @transform_5, window_bounds = array<i64: 256, 128>}, {pipeline_mode = #tpu.pipeline_mode<synchronous>, transform_indices = @transform_6, window_bounds = array<i64: 1, 128>}, {transform_indices = @transform_7, window_bounds = array<i64: 8, 128>}]} {
    %c0 = arith.constant 0 : index
    %c0_0 = arith.constant 0 : index
    %0 = vector.load %arg1[%c0, %c0_0] : memref<8x1024xbf16, #tpu.memory_space<vmem>>, vector<8x1024xbf16>
    %c0_1 = arith.constant 0 : index
    %c0_2 = arith.constant 0 : index
    %1 = vector.load %arg2[%c0_1, %c0_2] : memref<1024x512xbf16, #tpu.memory_space<vmem>>, vector<1024x512xbf16>
    %cst = arith.constant dense<0.000000e+00> : vector<8x512xf32>
    %2 = tpu.matmul %0, %1, %cst {dimension_numbers = #tpu.dot_dimension_numbers<[1], [0], [0], [1], [0, 0, 1, 1], [], []>} : vector<8x1024xbf16>, vector<1024x512xbf16>, vector<8x512xf32> -> vector<8x512xf32>
    %c0_3 = arith.constant 0 : index
    %c0_4 = arith.constant 0 : index
    %3 = vector.load %arg3[%c0_3, %c0_4] : memref<1x512xf32, #tpu.memory_space<vmem>>, vector<1x512xf32>
    %4 = vector.broadcast %3 : vector<1x512xf32> to vector<8x512xf32>
    %5 = arith.addf %2, %4 : vector<8x512xf32>
    %cst_5 = arith.constant 0.000000e+00 : f32
    %6 = vector.broadcast %cst_5 : f32 to vector<8x512xf32>
    %7 = arith.maximumf %5, %6 : vector<8x512xf32>
    %8 = arith.truncf %7 : vector<8x512xf32> to vector<8x512xbf16>
    %c0_6 = arith.constant 0 : index
    %c0_7 = arith.constant 0 : index
    %9 = vector.load %arg4[%c0_6, %c0_7] : memref<512x256xbf16, #tpu.memory_space<vmem>>, vector<512x256xbf16>
    %cst_8 = arith.constant dense<0.000000e+00> : vector<8x256xf32>
    %10 = tpu.matmul %8, %9, %cst_8 {dimension_numbers = #tpu.dot_dimension_numbers<[1], [0], [0], [1], [0, 0, 1, 1], [], []>} : vector<8x512xbf16>, vector<512x256xbf16>, vector<8x256xf32> -> vector<8x256xf32>
    %c0_9 = arith.constant 0 : index
    %c0_10 = arith.constant 0 : index
    %11 = vector.load %arg5[%c0_9, %c0_10] : memref<1x256xf32, #tpu.memory_space<vmem>>, vector<1x256xf32>
    %12 = vector.broadcast %11 : vector<1x256xf32> to vector<8x256xf32>
    %13 = arith.addf %10, %12 : vector<8x256xf32>
    %cst_11 = arith.constant 0.000000e+00 : f32
    %14 = vector.broadcast %cst_11 : f32 to vector<8x256xf32>
    %15 = arith.maximumf %13, %14 : vector<8x256xf32>
    %16 = arith.truncf %15 : vector<8x256xf32> to vector<8x256xbf16>
    %c0_12 = arith.constant 0 : index
    %c0_13 = arith.constant 0 : index
    %17 = vector.load %arg6[%c0_12, %c0_13] : memref<256x128xbf16, #tpu.memory_space<vmem>>, vector<256x128xbf16>
    %cst_14 = arith.constant dense<0.000000e+00> : vector<8x128xf32>
    %18 = tpu.matmul %16, %17, %cst_14 {dimension_numbers = #tpu.dot_dimension_numbers<[1], [0], [0], [1], [0, 0, 1, 1], [], []>} : vector<8x256xbf16>, vector<256x128xbf16>, vector<8x128xf32> -> vector<8x128xf32>
    %c0_15 = arith.constant 0 : index
    %c0_16 = arith.constant 0 : index
    %19 = vector.load %arg7[%c0_15, %c0_16] : memref<1x128xf32, #tpu.memory_space<vmem>>, vector<1x128xf32>
    %20 = vector.broadcast %19 : vector<1x128xf32> to vector<8x128xf32>
    %21 = arith.addf %18, %20 : vector<8x128xf32>
    %c0_17 = arith.constant 0 : index
    %c0_18 = arith.constant 0 : index
    %22 = vector.load %arg8[%c0_17, %c0_18] : memref<8x128xf32, #tpu.memory_space<vmem>>, vector<8x128xf32>
    tpu.vector_store %arg8[%c0_17, %c0_18], %21 {strides = array<i32>} : memref<8x128xf32, #tpu.memory_space<vmem>>, vector<8x128xf32>,
    return
  }
  func.func @transform_0(%arg0: i32) -> (i32, i32) {
    %c0_i32 = arith.constant 0 : i32
    %c0_i32_0 = arith.constant 0 : i32
    return %arg0, %c0_i32 : i32, i32
  }
  func.func @transform_1(%arg0: i32) -> (i32, i32) {
    %c0_i32 = arith.constant 0 : i32
    %c0_i32_0 = arith.constant 0 : i32
    %c0_i32_1 = arith.constant 0 : i32
    return %c0_i32, %c0_i32_0 : i32, i32
  }
  func.func @transform_2(%arg0: i32) -> (i32, i32) {
    %c0_i32 = arith.constant 0 : i32
    %c0_i32_0 = arith.constant 0 : i32
    %c0_i32_1 = arith.constant 0 : i32
    return %c0_i32, %c0_i32_0 : i32, i32
  }
  func.func @transform_3(%arg0: i32) -> (i32, i32) {
    %c0_i32 = arith.constant 0 : i32
    %c0_i32_0 = arith.constant 0 : i32
    %c0_i32_1 = arith.constant 0 : i32
    return %c0_i32, %c0_i32_0 : i32, i32
  }
  func.func @transform_4(%arg0: i32) -> (i32, i32) {
    %c0_i32 = arith.constant 0 : i32
    %c0_i32_0 = arith.constant 0 : i32
    %c0_i32_1 = arith.constant 0 : i32
    return %c0_i32, %c0_i32_0 : i32, i32
  }
  func.func @transform_5(%arg0: i32) -> (i32, i32) {
    %c0_i32 = arith.constant 0 : i32
    %c0_i32_0 = arith.constant 0 : i32
    %c0_i32_1 = arith.constant 0 : i32
    return %c0_i32, %c0_i32_0 : i32, i32
  }
  func.func @transform_6(%arg0: i32) -> (i32, i32) {
    %c0_i32 = arith.constant 0 : i32
    %c0_i32_0 = arith.constant 0 : i32
    %c0_i32_1 = arith.constant 0 : i32
    return %c0_i32, %c0_i32_0 : i32, i32
  }
  func.func @transform_7(%arg0: i32) -> (i32, i32) {
    %c0_i32 = arith.constant 0 : i32
    %c0_i32_0 = arith.constant 0 : i32
    return %arg0, %c0_i32 : i32, i32
  }
}

module attributes {stable_mosaic.version = 11 : i64} {
  func.func @point_mlp_max_kernel(%arg0: i32, %arg1: i32, %arg2: memref<1x1024x3xf32, #tpu.memory_space<vmem>>, %arg3: memref<3x64xf32, #tpu.memory_space<vmem>>, %arg4: memref<1x64xf32, #tpu.memory_space<vmem>>, %arg5: memref<64x128xbf16, #tpu.memory_space<vmem>>, %arg6: memref<1x128xf32, #tpu.memory_space<vmem>>, %arg7: memref<128x1024xbf16, #tpu.memory_space<vmem>>, %arg8: memref<1x1024xf32, #tpu.memory_space<vmem>>, %arg9: memref<1x1x1024xbf16, #tpu.memory_space<vmem>>) attributes {dimension_semantics = [#tpu.dimension_semantics<parallel>, #tpu.dimension_semantics<parallel>], iteration_bounds = array<i64: 2, 1>, scalar_prefetch = 0 : i64, scratch_operands = 0 : i64, tpu.core_type = #tpu.core_type<tc>, window_params = [{transform_indices = @transform_0, window_bounds = array<i64: 1, 1024, 3>}, {pipeline_mode = #tpu.pipeline_mode<synchronous>, transform_indices = @transform_1, window_bounds = array<i64: 3, 64>}, {pipeline_mode = #tpu.pipeline_mode<synchronous>, transform_indices = @transform_2, window_bounds = array<i64: 1, 64>}, {pipeline_mode = #tpu.pipeline_mode<synchronous>, transform_indices = @transform_3, window_bounds = array<i64: 64, 128>}, {pipeline_mode = #tpu.pipeline_mode<synchronous>, transform_indices = @transform_4, window_bounds = array<i64: 1, 128>}, {transform_indices = @transform_5, window_bounds = array<i64: 128, 1024>}, {transform_indices = @transform_6, window_bounds = array<i64: 1, 1024>}, {transform_indices = @transform_7, window_bounds = array<i64: 1, 1, 1024>}]} {
    %c0 = arith.constant 0 : index
    %c0_0 = arith.constant 0 : index
    %c0_1 = arith.constant 0 : index
    %0 = vector.load %arg2[%c0, %c0_0, %c0_1] : memref<1x1024x3xf32, #tpu.memory_space<vmem>>, vector<1x1024x3xf32>
    %1 = vector.shape_cast %0 : vector<1x1024x3xf32> to vector<1024x3xf32>
    %c0_2 = arith.constant 0 : index
    %c0_3 = arith.constant 0 : index
    %2 = vector.load %arg3[%c0_2, %c0_3] : memref<3x64xf32, #tpu.memory_space<vmem>>, vector<3x64xf32>
    %3 = vector.extract_strided_slice %1 {offsets = [0, 0], sizes = [1024, 1], strides = [1, 1]} : vector<1024x3xf32> to vector<1024x1xf32>
    %4 = vector.extract_strided_slice %2 {offsets = [0, 0], sizes = [1, 64], strides = [1, 1]} : vector<3x64xf32> to vector<1x64xf32>
    %5 = vector.broadcast %3 : vector<1024x1xf32> to vector<1024x64xf32>
    %6 = vector.broadcast %4 : vector<1x64xf32> to vector<1024x64xf32>
    %7 = arith.mulf %5, %6 : vector<1024x64xf32>
    %8 = vector.extract_strided_slice %1 {offsets = [0, 1], sizes = [1024, 1], strides = [1, 1]} : vector<1024x3xf32> to vector<1024x1xf32>
    %9 = vector.extract_strided_slice %2 {offsets = [1, 0], sizes = [1, 64], strides = [1, 1]} : vector<3x64xf32> to vector<1x64xf32>
    %10 = vector.broadcast %8 : vector<1024x1xf32> to vector<1024x64xf32>
    %11 = vector.broadcast %9 : vector<1x64xf32> to vector<1024x64xf32>
    %12 = arith.mulf %10, %11 : vector<1024x64xf32>
    %13 = arith.addf %7, %12 : vector<1024x64xf32>
    %14 = vector.extract_strided_slice %1 {offsets = [0, 2], sizes = [1024, 1], strides = [1, 1]} : vector<1024x3xf32> to vector<1024x1xf32>
    %15 = vector.extract_strided_slice %2 {offsets = [2, 0], sizes = [1, 64], strides = [1, 1]} : vector<3x64xf32> to vector<1x64xf32>
    %16 = vector.broadcast %14 : vector<1024x1xf32> to vector<1024x64xf32>
    %17 = vector.broadcast %15 : vector<1x64xf32> to vector<1024x64xf32>
    %18 = arith.mulf %16, %17 : vector<1024x64xf32>
    %19 = arith.addf %13, %18 : vector<1024x64xf32>
    %c0_4 = arith.constant 0 : index
    %c0_5 = arith.constant 0 : index
    %20 = vector.load %arg4[%c0_4, %c0_5] : memref<1x64xf32, #tpu.memory_space<vmem>>, vector<1x64xf32>
    %21 = vector.broadcast %20 : vector<1x64xf32> to vector<1024x64xf32>
    %22 = arith.addf %19, %21 : vector<1024x64xf32>
    %cst = arith.constant 0.000000e+00 : f32
    %23 = vector.broadcast %cst : f32 to vector<1024x64xf32>
    %24 = arith.maximumf %22, %23 : vector<1024x64xf32>
    %25 = arith.truncf %24 : vector<1024x64xf32> to vector<1024x64xbf16>
    %c0_6 = arith.constant 0 : index
    %c0_7 = arith.constant 0 : index
    %26 = vector.load %arg5[%c0_6, %c0_7] : memref<64x128xbf16, #tpu.memory_space<vmem>>, vector<64x128xbf16>
    %cst_8 = arith.constant dense<0.000000e+00> : vector<1024x128xf32>
    %27 = tpu.matmul %25, %26, %cst_8 {dimension_numbers = #tpu.dot_dimension_numbers<[1], [0], [0], [1], [0, 0, 1, 1], [], []>} : vector<1024x64xbf16>, vector<64x128xbf16>, vector<1024x128xf32> -> vector<1024x128xf32>
    %c0_9 = arith.constant 0 : index
    %c0_10 = arith.constant 0 : index
    %28 = vector.load %arg6[%c0_9, %c0_10] : memref<1x128xf32, #tpu.memory_space<vmem>>, vector<1x128xf32>
    %29 = vector.broadcast %28 : vector<1x128xf32> to vector<1024x128xf32>
    %30 = arith.addf %27, %29 : vector<1024x128xf32>
    %cst_11 = arith.constant 0.000000e+00 : f32
    %31 = vector.broadcast %cst_11 : f32 to vector<1024x128xf32>
    %32 = arith.maximumf %30, %31 : vector<1024x128xf32>
    %33 = arith.truncf %32 : vector<1024x128xf32> to vector<1024x128xbf16>
    %c0_12 = arith.constant 0 : index
    %c0_13 = arith.constant 0 : index
    %34 = vector.load %arg7[%c0_12, %c0_13] : memref<128x1024xbf16, #tpu.memory_space<vmem>>, vector<128x1024xbf16>
    %cst_14 = arith.constant dense<0.000000e+00> : vector<1024x1024xf32>
    %35 = tpu.matmul %33, %34, %cst_14 {dimension_numbers = #tpu.dot_dimension_numbers<[1], [0], [0], [1], [0, 0, 1, 1], [], []>} : vector<1024x128xbf16>, vector<128x1024xbf16>, vector<1024x1024xf32> -> vector<1024x1024xf32>
    %cst_15 = arith.constant dense<0xFF800000> : vector<1024xf32>
    %36 = vector.multi_reduction <maximumf>, %35, %cst_15 [0] : vector<1024x1024xf32> to vector<1024xf32>
    %37 = vector.shape_cast %36 : vector<1024xf32> to vector<1x1024xf32>
    %c0_16 = arith.constant 0 : index
    %c0_17 = arith.constant 0 : index
    %38 = vector.load %arg8[%c0_16, %c0_17] : memref<1x1024xf32, #tpu.memory_space<vmem>>, vector<1x1024xf32>
    %39 = arith.addf %37, %38 : vector<1x1024xf32>
    %cst_18 = arith.constant 0.000000e+00 : f32
    %40 = vector.broadcast %cst_18 : f32 to vector<1x1024xf32>
    %41 = arith.maximumf %39, %40 : vector<1x1024xf32>
    %42 = arith.truncf %41 : vector<1x1024xf32> to vector<1x1024xbf16>
    %c0_19 = arith.constant 0 : index
    %c0_20 = arith.constant 0 : index
    %c0_21 = arith.constant 0 : index
    %43 = vector.load %arg9[%c0_19, %c0_20, %c0_21] : memref<1x1x1024xbf16, #tpu.memory_space<vmem>>, vector<1x1x1024xbf16>
    %44 = vector.shape_cast %43 : vector<1x1x1024xbf16> to vector<1x1024xbf16>
    %45 = vector.shape_cast %42 : vector<1x1024xbf16> to vector<1x1x1024xbf16>
    tpu.vector_store %arg9[%c0_19, %c0_20, %c0_21], %45 {strides = array<i32>} : memref<1x1x1024xbf16, #tpu.memory_space<vmem>>, vector<1x1x1024xbf16>,
    return
  }
  func.func @transform_0(%arg0: i32, %arg1: i32) -> (i32, i32, i32) {
    %c0_i32 = arith.constant 0 : i32
    %c0_i32_0 = arith.constant 0 : i32
    %c0_i32_1 = arith.constant 0 : i32
    return %arg0, %c0_i32, %c0_i32_0 : i32, i32, i32
  }
  func.func @transform_1(%arg0: i32, %arg1: i32) -> (i32, i32) {
    %c0_i32 = arith.constant 0 : i32
    %c0_i32_0 = arith.constant 0 : i32
    %c0_i32_1 = arith.constant 0 : i32
    return %c0_i32, %c0_i32_0 : i32, i32
  }
  func.func @transform_2(%arg0: i32, %arg1: i32) -> (i32, i32) {
    %c0_i32 = arith.constant 0 : i32
    %c0_i32_0 = arith.constant 0 : i32
    %c0_i32_1 = arith.constant 0 : i32
    return %c0_i32, %c0_i32_0 : i32, i32
  }
  func.func @transform_3(%arg0: i32, %arg1: i32) -> (i32, i32) {
    %c0_i32 = arith.constant 0 : i32
    %c0_i32_0 = arith.constant 0 : i32
    %c0_i32_1 = arith.constant 0 : i32
    return %c0_i32, %c0_i32_0 : i32, i32
  }
  func.func @transform_4(%arg0: i32, %arg1: i32) -> (i32, i32) {
    %c0_i32 = arith.constant 0 : i32
    %c0_i32_0 = arith.constant 0 : i32
    %c0_i32_1 = arith.constant 0 : i32
    return %c0_i32, %c0_i32_0 : i32, i32
  }
  func.func @transform_5(%arg0: i32, %arg1: i32) -> (i32, i32) {
    %c0_i32 = arith.constant 0 : i32
    %c0_i32_0 = arith.constant 0 : i32
    return %c0_i32, %arg1 : i32, i32
  }
  func.func @transform_6(%arg0: i32, %arg1: i32) -> (i32, i32) {
    %c0_i32 = arith.constant 0 : i32
    %c0_i32_0 = arith.constant 0 : i32
    return %c0_i32, %arg1 : i32, i32
  }
  func.func @transform_7(%arg0: i32, %arg1: i32) -> (i32, i32, i32) {
    %c0_i32 = arith.constant 0 : i32
    %c0_i32_0 = arith.constant 0 : i32
    return %arg0, %c0_i32, %arg1 : i32, i32, i32
  }
}

</mosaic_0001>

<llo_original>
// kernel: tnet_forward.3
$region0: #{tnet_forward.3}
  #allocation0 [shape = 'u32[]', space=smem, size = 0x4, offset = 0x4, fixed_abs, tag = 'smem constant byte address 0x4 - core index']
  #allocation1 [shape = 'u32[144,128]{1,0:T(1,128)}', space=vmem, size = 0x12000, scoped, tag = 'internal scratch']
  %s0 = inlined_call_operand.vmem [shape: bf16[8,1024], index: 0, kind: input, shape index: {}]
  %s1 = inlined_call_operand.vmem [shape: bf16[1024,512], index: 1, kind: input, shape index: {}]
  %s2 = inlined_call_operand.vmem [shape: f32[1,512], index: 2, kind: input, shape index: {}]
  %s3 = inlined_call_operand.vmem [shape: bf16[512,256], index: 3, kind: input, shape index: {}]
  %s4 = inlined_call_operand.vmem [shape: f32[1,256], index: 4, kind: input, shape index: {}]
  %s5 = inlined_call_operand.vmem [shape: bf16[256,128], index: 5, kind: input, shape index: {}]
  %s6 = inlined_call_operand.vmem [shape: f32[1,128], index: 6, kind: input, shape index: {}]
  %s7 = inlined_call_operand.vmem [shape: f32[8,128], index: 7, kind: output, shape index: {}]
  %s8 = sld [smem:[#allocation0]]
  $region38: #{tnet_forward.3} parent=0
    _
  %s10 = ssub.s32 1, %s8
  %s11 = scalar_select 0, %s10, %s8
  // Predicated region
  $region2: #{tnet_forward.3} parent=0 // pred_check
    _
  $region3: #{tnet_forward.3} parent=0 // pred_check_branch
    %13 = sbr.rel (0) target = $region5
  $region4: #{tnet_forward.3} parent=0 // pred_region
    _
  $region5: #{tnet_forward.3} parent=0 // pred_fallthru
    _
  // Predicated region
  $region6: #{tnet_forward.3} parent=0 // pred_check
    _
  $region7: #{tnet_forward.3} parent=0 // pred_check_branch
    %15 = sbr.rel (0) target = $region9
  $region8: #{tnet_forward.3} parent=0 // pred_region
    _
  $region9: #{tnet_forward.3} parent=0 // pred_fallthru
    _
  // Predicated region
  $region10: #{tnet_forward.3} parent=0 // pred_check
    _
  $region11: #{tnet_forward.3} parent=0 // pred_check_branch
    %17 = sbr.rel (0) target = $region13
  $region12: #{tnet_forward.3} parent=0 // pred_region
    _
  $region13: #{tnet_forward.3} parent=0 // pred_fallthru
    _
  // Predicated region
  $region14: #{tnet_forward.3} parent=0 // pred_check
    _
  $region15: #{tnet_forward.3} parent=0 // pred_check_branch
    %19 = sbr.rel (0) target = $region17
  $region16: #{tnet_forward.3} parent=0 // pred_region
    _
  $region17: #{tnet_forward.3} parent=0 // pred_fallthru
    _
  // Predicated region
  $region18: #{tnet_forward.3} parent=0 // pred_check
    _
  $region19: #{tnet_forward.3} parent=0 // pred_check_branch
    %21 = sbr.rel (0) target = $region21
  $region20: #{tnet_forward.3} parent=0 // pred_region
    _
  $region21: #{tnet_forward.3} parent=0 // pred_fallthru
    _
  // Predicated region
  $region22: #{tnet_forward.3} parent=0 // pred_check
    _
  $region23: #{tnet_forward.3} parent=0 // pred_check_branch
    %23 = sbr.rel (0) target = $region25
  $region24: #{tnet_forward.3} parent=0 // pred_region
    _
  $region25: #{tnet_forward.3} parent=0 // pred_fallthru
    _
  // Predicated region
  $region26: #{tnet_forward.3} parent=0 // pred_check
    _
  $region27: #{tnet_forward.3} parent=0 // pred_check_branch
    %25 = sbr.rel (0) target = $region29
  $region28: #{tnet_forward.3} parent=0 // pred_region
    _
  $region29: #{tnet_forward.3} parent=0 // pred_fallthru
    _
  %v27 = vld [vmem:[%s0] sm:$0xff]
  %v28 = vld [vmem:[%s0 + $0x8] sm:$0xff]
  %v29 = vld [vmem:[%s0 + $0x10] sm:$0xff]
  %v30 = vld [vmem:[%s0 + $0x18] sm:$0xff]
  %v31 = vld [vmem:[%s1] sm:$0xff]
  %v32 = vld [vmem:[%s1 + $0x8] sm:$0xff]
  %v33 = vld [vmem:[%s1 + $0x10] sm:$0xff]
  %v34 = vld [vmem:[%s1 + $0x18] sm:$0xff]
  %v35 = vld [vmem:[%s1 + $0x20] sm:$0xff]
  %v36 = vld [vmem:[%s1 + $0x28] sm:$0xff]
  %v37 = vld [vmem:[%s1 + $0x30] sm:$0xff]
  %v38 = vld [vmem:[%s1 + $0x38] sm:$0xff]
  %v39 = vld [vmem:[%s1 + $0x40] sm:$0xff]
  %v40 = vld [vmem:[%s1 + $0x48] sm:$0xff]
  %v41 = vld [vmem:[%s1 + $0x50] sm:$0xff]
  %v42 = vld [vmem:[%s1 + $0x58] sm:$0xff]
  %v43 = vld [vmem:[%s1 + $0x60] sm:$0xff]
  %v44 = vld [vmem:[%s1 + $0x68] sm:$0xff]
  %v45 = vld [vmem:[%s1 + $0x70] sm:$0xff]
  %v46 = vld [vmem:[%s1 + $0x78] sm:$0xff]
  %v47 = vld [vmem:[%s1 + $0x80] sm:$0xff]
  %v48 = vld [vmem:[%s1 + $0x88] sm:$0xff]
  %v49 = vld [vmem:[%s1 + $0x90] sm:$0xff]
  %v50 = vld [vmem:[%s1 + $0x98] sm:$0xff]
  %v51 = vld [vmem:[%s1 + $0xa0] sm:$0xff]
  %v52 = vld [vmem:[%s1 + $0xa8] sm:$0xff]
  %v53 = vld [vmem:[%s1 + $0xb0] sm:$0xff]
  %v54 = vld [vmem:[%s1 + $0xb8] sm:$0xff]
  %v55 = vld [vmem:[%s1 + $0xc0] sm:$0xff]
  %v56 = vld [vmem:[%s1 + $0xc8] sm:$0xff]
  %v57 = vld [vmem:[%s1 + $0xd0] sm:$0xff]
  %v58 = vld [vmem:[%s1 + $0xd8] sm:$0xff]
  %v59 = vld [vmem:[%s1 + $0xe0] sm:$0xff]
  %v60 = vld [vmem:[%s1 + $0xe8] sm:$0xff]
  %v61 = vld [vmem:[%s1 + $0xf0] sm:$0xff]
  %v62 = vld [vmem:[%s1 + $0xf8] sm:$0xff]
  %v63 = vld [vmem:[%s1 + $0x100] sm:$0xff]
  %v64 = vld [vmem:[%s1 + $0x108] sm:$0xff]
  %v65 = vld [vmem:[%s1 + $0x110] sm:$0xff]
  %v66 = vld [vmem:[%s1 + $0x118] sm:$0xff]
  %v67 = vld [vmem:[%s1 + $0x120] sm:$0xff]
  %v68 = vld [vmem:[%s1 + $0x128] sm:$0xff]
  %v69 = vld [vmem:[%s1 + $0x130] sm:$0xff]
  %v70 = vld [vmem:[%s1 + $0x138] sm:$0xff]
  %v71 = vld [vmem:[%s1 + $0x140] sm:$0xff]
  %v72 = vld [vmem:[%s1 + $0x148] sm:$0xff]
  %v73 = vld [vmem:[%s1 + $0x150] sm:$0xff]
  %v74 = vld [vmem:[%s1 + $0x158] sm:$0xff]
  %v75 = vld [vmem:[%s1 + $0x160] sm:$0xff]
  %v76 = vld [vmem:[%s1 + $0x168] sm:$0xff]
  %v77 = vld [vmem:[%s1 + $0x170] sm:$0xff]
  %v78 = vld [vmem:[%s1 + $0x178] sm:$0xff]
  %v79 = vld [vmem:[%s1 + $0x180] sm:$0xff]
  %v80 = vld [vmem:[%s1 + $0x188] sm:$0xff]
  %v81 = vld [vmem:[%s1 + $0x190] sm:$0xff]
  %v82 = vld [vmem:[%s1 + $0x198] sm:$0xff]
  %v83 = vld [vmem:[%s1 + $0x1a0] sm:$0xff]
  %v84 = vld [vmem:[%s1 + $0x1a8] sm:$0xff]
  %v85 = vld [vmem:[%s1 + $0x1b0] sm:$0xff]
  %v86 = vld [vmem:[%s1 + $0x1b8] sm:$0xff]
  %v87 = vld [vmem:[%s1 + $0x1c0] sm:$0xff]
  %v88 = vld [vmem:[%s1 + $0x1c8] sm:$0xff]
  %v89 = vld [vmem:[%s1 + $0x1d0] sm:$0xff]
  %v90 = vld [vmem:[%s1 + $0x1d8] sm:$0xff]
  %v91 = vld [vmem:[%s1 + $0x1e0] sm:$0xff]
  %v92 = vld [vmem:[%s1 + $0x1e8] sm:$0xff]
  %v93 = vld [vmem:[%s1 + $0x1f0] sm:$0xff]
  %v94 = vld [vmem:[%s1 + $0x1f8] sm:$0xff]
  %v95 = vld [vmem:[%s1 + $0x200] sm:$0xff]
  %v96 = vld [vmem:[%s1 + $0x208] sm:$0xff]
  %v97 = vld [vmem:[%s1 + $0x210] sm:$0xff]
  %v98 = vld [vmem:[%s1 + $0x218] sm:$0xff]
  %v99 = vld [vmem:[%s1 + $0x220] sm:$0xff]
  %v100 = vld [vmem:[%s1 + $0x228] sm:$0xff]
  %v101 = vld [vmem:[%s1 + $0x230] sm:$0xff]
  %v102 = vld [vmem:[%s1 + $0x238] sm:$0xff]
  %v103 = vld [vmem:[%s1 + $0x240] sm:$0xff]
  %v104 = vld [vmem:[%s1 + $0x248] sm:$0xff]
  %v105 = vld [vmem:[%s1 + $0x250] sm:$0xff]
  %v106 = vld [vmem:[%s1 + $0x258] sm:$0xff]
  %v107 = vld [vmem:[%s1 + $0x260] sm:$0xff]
  %v108 = vld [vmem:[%s1 + $0x268] sm:$0xff]
  %v109 = vld [vmem:[%s1 + $0x270] sm:$0xff]
  %v110 = vld [vmem:[%s1 + $0x278] sm:$0xff]
  %v111 = vld [vmem:[%s1 + $0x280] sm:$0xff]
  %v112 = vld [vmem:[%s1 + $0x288] sm:$0xff]
  %v113 = vld [vmem:[%s1 + $0x290] sm:$0xff]
  %v114 = vld [vmem:[%s1 + $0x298] sm:$0xff]
  %v115 = vld [vmem:[%s1 + $0x2a0] sm:$0xff]
  %v116 = vld [vmem:[%s1 + $0x2a8] sm:$0xff]
  %v117 = vld [vmem:[%s1 + $0x2b0] sm:$0xff]
  %v118 = vld [vmem:[%s1 + $0x2b8] sm:$0xff]
  %v119 = vld [vmem:[%s1 + $0x2c0] sm:$0xff]
  %v120 = vld [vmem:[%s1 + $0x2c8] sm:$0xff]
  %v121 = vld [vmem:[%s1 + $0x2d0] sm:$0xff]
  %v122 = vld [vmem:[%s1 + $0x2d8] sm:$0xff]
  %v123 = vld [vmem:[%s1 + $0x2e0] sm:$0xff]
  %v124 = vld [vmem:[%s1 + $0x2e8] sm:$0xff]
  %v125 = vld [vmem:[%s1 + $0x2f0] sm:$0xff]
  %v126 = vld [vmem:[%s1 + $0x2f8] sm:$0xff]
  %v127 = vld [vmem:[%s1 + $0x300] sm:$0xff]
  %v128 = vld [vmem:[%s1 + $0x308] sm:$0xff]
  %v129 = vld [vmem:[%s1 + $0x310] sm:$0xff]
  %v130 = vld [vmem:[%s1 + $0x318] sm:$0xff]
  %v131 = vld [vmem:[%s1 + $0x320] sm:$0xff]
  %v132 = vld [vmem:[%s1 + $0x328] sm:$0xff]
  %v133 = vld [vmem:[%s1 + $0x330] sm:$0xff]
  %v134 = vld [vmem:[%s1 + $0x338] sm:$0xff]
  %v135 = vld [vmem:[%s1 + $0x340] sm:$0xff]
  %v136 = vld [vmem:[%s1 + $0x348] sm:$0xff]
  %v137 = vld [vmem:[%s1 + $0x350] sm:$0xff]
  %v138 = vld [vmem:[%s1 + $0x358] sm:$0xff]
  %v139 = vld [vmem:[%s1 + $0x360] sm:$0xff]
  %v140 = vld [vmem:[%s1 + $0x368] sm:$0xff]
  %v141 = vld [vmem:[%s1 + $0x370] sm:$0xff]
  %v142 = vld [vmem:[%s1 + $0x378] sm:$0xff]
  %v143 = vld [vmem:[%s1 + $0x380] sm:$0xff]
  %v144 = vld [vmem:[%s1 + $0x388] sm:$0xff]
  %v145 = vld [vmem:[%s1 + $0x390] sm:$0xff]
  %v146 = vld [vmem:[%s1 + $0x398] sm:$0xff]
  %v147 = vld [vmem:[%s1 + $0x3a0] sm:$0xff]
  %v148 = vld [vmem:[%s1 + $0x3a8] sm:$0xff]
  %v149 = vld [vmem:[%s1 + $0x3b0] sm:$0xff]
  %v150 = vld [vmem:[%s1 + $0x3b8] sm:$0xff]
  %v151 = vld [vmem:[%s1 + $0x3c0] sm:$0xff]
  %v152 = vld [vmem:[%s1 + $0x3c8] sm:$0xff]
  %v153 = vld [vmem:[%s1 + $0x3d0] sm:$0xff]
  %v154 = vld [vmem:[%s1 + $0x3d8] sm:$0xff]
  %v155 = vld [vmem:[%s1 + $0x3e0] sm:$0xff]
  %v156 = vld [vmem:[%s1 + $0x3e8] sm:$0xff]
  %v157 = vld [vmem:[%s1 + $0x3f0] sm:$0xff]
  %v158 = vld [vmem:[%s1 + $0x3f8] sm:$0xff]
  %v159 = vld [vmem:[%s1 + $0x400] sm:$0xff]
  %v160 = vld [vmem:[%s1 + $0x408] sm:$0xff]
  %v161 = vld [vmem:[%s1 + $0x410] sm:$0xff]
  %v162 = vld [vmem:[%s1 + $0x418] sm:$0xff]
  %v163 = vld [vmem:[%s1 + $0x420] sm:$0xff]
  %v164 = vld [vmem:[%s1 + $0x428] sm:$0xff]
  %v165 = vld [vmem:[%s1 + $0x430] sm:$0xff]
  %v166 = vld [vmem:[%s1 + $0x438] sm:$0xff]
  %v167 = vld [vmem:[%s1 + $0x440] sm:$0xff]
  %v168 = vld [vmem:[%s1 + $0x448] sm:$0xff]
  %v169 = vld [vmem:[%s1 + $0x450] sm:$0xff]
  %v170 = vld [vmem:[%s1 + $0x458] sm:$0xff]
  %v171 = vld [vmem:[%s1 + $0x460] sm:$0xff]
  %v172 = vld [vmem:[%s1 + $0x468] sm:$0xff]
  %v173 = vld [vmem:[%s1 + $0x470] sm:$0xff]
  %v174 = vld [vmem:[%s1 + $0x478] sm:$0xff]
  %v175 = vld [vmem:[%s1 + $0x480] sm:$0xff]
  %v176 = vld [vmem:[%s1 + $0x488] sm:$0xff]
  %v177 = vld [vmem:[%s1 + $0x490] sm:$0xff]
  %v178 = vld [vmem:[%s1 + $0x498] sm:$0xff]
  %v179 = vld [vmem:[%s1 + $0x4a0] sm:$0xff]
  %v180 = vld [vmem:[%s1 + $0x4a8] sm:$0xff]
  %v181 = vld [vmem:[%s1 + $0x4b0] sm:$0xff]
  %v182 = vld [vmem:[%s1 + $0x4b8] sm:$0xff]
  %v183 = vld [vmem:[%s1 + $0x4c0] sm:$0xff]
  %v184 = vld [vmem:[%s1 + $0x4c8] sm:$0xff]
  %v185 = vld [vmem:[%s1 + $0x4d0] sm:$0xff]
  %v186 = vld [vmem:[%s1 + $0x4d8] sm:$0xff]
  %v187 = vld [vmem:[%s1 + $0x4e0] sm:$0xff]
  %v188 = vld [vmem:[%s1 + $0x4e8] sm:$0xff]
  %v189 = vld [vmem:[%s1 + $0x4f0] sm:$0xff]
  %v190 = vld [vmem:[%s1 + $0x4f8] sm:$0xff]
  %v191 = vld [vmem:[%s1 + $0x500] sm:$0xff]
  %v192 = vld [vmem:[%s1 + $0x508] sm:$0xff]
  %v193 = vld [vmem:[%s1 + $0x510] sm:$0xff]
  %v194 = vld [vmem:[%s1 + $0x518] sm:$0xff]
  %v195 = vld [vmem:[%s1 + $0x520] sm:$0xff]
  %v196 = vld [vmem:[%s1 + $0x528] sm:$0xff]
  %v197 = vld [vmem:[%s1 + $0x530] sm:$0xff]
  %v198 = vld [vmem:[%s1 + $0x538] sm:$0xff]
  %v199 = vld [vmem:[%s1 + $0x540] sm:$0xff]
  %v200 = vld [vmem:[%s1 + $0x548] sm:$0xff]
  %v201 = vld [vmem:[%s1 + $0x550] sm:$0xff]
  %v202 = vld [vmem:[%s1 + $0x558] sm:$0xff]
  %v203 = vld [vmem:[%s1 + $0x560] sm:$0xff]
  %v204 = vld [vmem:[%s1 + $0x568] sm:$0xff]
  %v205 = vld [vmem:[%s1 + $0x570] sm:$0xff]
  %v206 = vld [vmem:[%s1 + $0x578] sm:$0xff]
  %v207 = vld [vmem:[%s1 + $0x580] sm:$0xff]
  %v208 = vld [vmem:[%s1 + $0x588] sm:$0xff]
  %v209 = vld [vmem:[%s1 + $0x590] sm:$0xff]
  %v210 = vld [vmem:[%s1 + $0x598] sm:$0xff]
  %v211 = vld [vmem:[%s1 + $0x5a0] sm:$0xff]
  %v212 = vld [vmem:[%s1 + $0x5a8] sm:$0xff]
  %v213 = vld [vmem:[%s1 + $0x5b0] sm:$0xff]
  %v214 = vld [vmem:[%s1 + $0x5b8] sm:$0xff]
  %v215 = vld [vmem:[%s1 + $0x5c0] sm:$0xff]
  %v216 = vld [vmem:[%s1 + $0x5c8] sm:$0xff]
  %v217 = vld [vmem:[%s1 + $0x5d0] sm:$0xff]
  %v218 = vld [vmem:[%s1 + $0x5d8] sm:$0xff]
  %v219 = vld [vmem:[%s1 + $0x5e0] sm:$0xff]
  %v220 = vld [vmem:[%s1 + $0x5e8] sm:$0xff]
  %v221 = vld [vmem:[%s1 + $0x5f0] sm:$0xff]
  %v222 = vld [vmem:[%s1 + $0x5f8] sm:$0xff]
  %v223 = vld [vmem:[%s1 + $0x600] sm:$0xff]
  %v224 = vld [vmem:[%s1 + $0x608] sm:$0xff]
  %v225 = vld [vmem:[%s1 + $0x610] sm:$0xff]
  %v226 = vld [vmem:[%s1 + $0x618] sm:$0xff]
  %v227 = vld [vmem:[%s1 + $0x620] sm:$0xff]
  %v228 = vld [vmem:[%s1 + $0x628] sm:$0xff]
  %v229 = vld [vmem:[%s1 + $0x630] sm:$0xff]
  %v230 = vld [vmem:[%s1 + $0x638] sm:$0xff]
  %v231 = vld [vmem:[%s1 + $0x640] sm:$0xff]
  %v232 = vld [vmem:[%s1 + $0x648] sm:$0xff]
  %v233 = vld [vmem:[%s1 + $0x650] sm:$0xff]
  %v234 = vld [vmem:[%s1 + $0x658] sm:$0xff]
  %v235 = vld [vmem:[%s1 + $0x660] sm:$0xff]
  %v236 = vld [vmem:[%s1 + $0x668] sm:$0xff]
  %v237 = vld [vmem:[%s1 + $0x670] sm:$0xff]
  %v238 = vld [vmem:[%s1 + $0x678] sm:$0xff]
  %v239 = vld [vmem:[%s1 + $0x680] sm:$0xff]
  %v240 = vld [vmem:[%s1 + $0x688] sm:$0xff]
  %v241 = vld [vmem:[%s1 + $0x690] sm:$0xff]
  %v242 = vld [vmem:[%s1 + $0x698] sm:$0xff]
  %v243 = vld [vmem:[%s1 + $0x6a0] sm:$0xff]
  %v244 = vld [vmem:[%s1 + $0x6a8] sm:$0xff]
  %v245 = vld [vmem:[%s1 + $0x6b0] sm:$0xff]
  %v246 = vld [vmem:[%s1 + $0x6b8] sm:$0xff]
  %v247 = vld [vmem:[%s1 + $0x6c0] sm:$0xff]
  %v248 = vld [vmem:[%s1 + $0x6c8] sm:$0xff]
  %v249 = vld [vmem:[%s1 + $0x6d0] sm:$0xff]
  %v250 = vld [vmem:[%s1 + $0x6d8] sm:$0xff]
  %v251 = vld [vmem:[%s1 + $0x6e0] sm:$0xff]
  %v252 = vld [vmem:[%s1 + $0x6e8] sm:$0xff]
  %v253 = vld [vmem:[%s1 + $0x6f0] sm:$0xff]
  %v254 = vld [vmem:[%s1 + $0x6f8] sm:$0xff]
  %v255 = vld [vmem:[%s1 + $0x700] sm:$0xff]
  %v256 = vld [vmem:[%s1 + $0x708] sm:$0xff]
  %v257 = vld [vmem:[%s1 + $0x710] sm:$0xff]
  %v258 = vld [vmem:[%s1 + $0x718] sm:$0xff]
  %v259 = vld [vmem:[%s1 + $0x720] sm:$0xff]
  %v260 = vld [vmem:[%s1 + $0x728] sm:$0xff]
  %v261 = vld [vmem:[%s1 + $0x730] sm:$0xff]
  %v262 = vld [vmem:[%s1 + $0x738] sm:$0xff]
  %v263 = vld [vmem:[%s1 + $0x740] sm:$0xff]
  %v264 = vld [vmem:[%s1 + $0x748] sm:$0xff]
  %v265 = vld [vmem:[%s1 + $0x750] sm:$0xff]
  %v266 = vld [vmem:[%s1 + $0x758] sm:$0xff]
  %v267 = vld [vmem:[%s1 + $0x760] sm:$0xff]
  %v268 = vld [vmem:[%s1 + $0x768] sm:$0xff]
  %v269 = vld [vmem:[%s1 + $0x770] sm:$0xff]
  %v270 = vld [vmem:[%s1 + $0x778] sm:$0xff]
  %v271 = vld [vmem:[%s1 + $0x780] sm:$0xff]
  %v272 = vld [vmem:[%s1 + $0x788] sm:$0xff]
  %v273 = vld [vmem:[%s1 + $0x790] sm:$0xff]
  %v274 = vld [vmem:[%s1 + $0x798] sm:$0xff]
  %v275 = vld [vmem:[%s1 + $0x7a0] sm:$0xff]
  %v276 = vld [vmem:[%s1 + $0x7a8] sm:$0xff]
  %v277 = vld [vmem:[%s1 + $0x7b0] sm:$0xff]
  %v278 = vld [vmem:[%s1 + $0x7b8] sm:$0xff]
  %v279 = vld [vmem:[%s1 + $0x7c0] sm:$0xff]
  %v280 = vld [vmem:[%s1 + $0x7c8] sm:$0xff]
  %v281 = vld [vmem:[%s1 + $0x7d0] sm:$0xff]
  %v282 = vld [vmem:[%s1 + $0x7d8] sm:$0xff]
  %v283 = vld [vmem:[%s1 + $0x7e0] sm:$0xff]
  %v284 = vld [vmem:[%s1 + $0x7e8] sm:$0xff]
  %v285 = vld [vmem:[%s1 + $0x7f0] sm:$0xff]
  %v286 = vld [vmem:[%s1 + $0x7f8] sm:$0xff]
  %v287 = vld [vmem:[%s2] sm:$0xf]
  %v289 = vlaneseq
  %v290 = vshrl.u32 %v289, 7
  %v291 = vsub.s32 0, %v290
  %v292 = vrot.slane %v287, %v291
  %v293 = vlaneseq
  %v294 = vshrl.u32 %v293, 7
  %v295 = vsub.s32 1, %v294
  %v296 = vrot.slane %v287, %v295
  %v297 = vlaneseq
  %v298 = vshrl.u32 %v297, 7
  %v299 = vsub.s32 2, %v298
  %v300 = vrot.slane %v287, %v299
  %v301 = vlaneseq
  %v302 = vshrl.u32 %v301, 7
  %v303 = vsub.s32 3, %v302
  %v304 = vrot.slane %v287, %v303
  %v313 = vunpack.c.l.b16 %v27
  %v314 = vunpack.c.h.b16 %v27
  %v315 = vunpack.c.l.b16 %v28
  %v316 = vunpack.c.h.b16 %v28
  %v317 = vunpack.c.l.b16 %v29
  %v318 = vunpack.c.h.b16 %v29
  %v319 = vunpack.c.l.b16 %v30
  %v320 = vunpack.c.h.b16 %v30
  %v321 = vpack.c.b16 %v313, %v313
  %v322 = vpack.c.b16 %v314, %v314
  %v323 = vpack.c.b16 %v315, %v315
  %v324 = vpack.c.b16 %v316, %v316
  %v325 = vpack.c.b16 %v317, %v317
  %v326 = vpack.c.b16 %v318, %v318
  %v327 = vpack.c.b16 %v319, %v319
  %v328 = vpack.c.b16 %v320, %v320
  %v593 = vunpack.c.l.b16 %v31
  %v594 = vunpack.c.h.b16 %v31
  %v595 = vunpack.c.l.b16 %v32
  %v596 = vunpack.c.h.b16 %v32
  %v597 = vunpack.c.l.b16 %v33
  %v598 = vunpack.c.h.b16 %v33
  %v599 = vunpack.c.l.b16 %v34
  %v600 = vunpack.c.h.b16 %v34
  %v601 = vunpack.c.l.b16 %v35
  %v602 = vunpack.c.h.b16 %v35
  %v603 = vunpack.c.l.b16 %v36
  %v604 = vunpack.c.h.b16 %v36
  %v605 = vunpack.c.l.b16 %v37
  %v606 = vunpack.c.h.b16 %v37
  %v607 = vunpack.c.l.b16 %v38
  %v608 = vunpack.c.h.b16 %v38
  %v609 = vunpack.c.l.b16 %v39
  %v610 = vunpack.c.h.b16 %v39
  %v611 = vunpack.c.l.b16 %v40
  %v612 = vunpack.c.h.b16 %v40
  %v613 = vunpack.c.l.b16 %v41
  %v614 = vunpack.c.h.b16 %v41
  %v615 = vunpack.c.l.b16 %v42
  %v616 = vunpack.c.h.b16 %v42
  %v617 = vunpack.c.l.b16 %v43
  %v618 = vunpack.c.h.b16 %v43
  %v619 = vunpack.c.l.b16 %v44
  %v620 = vunpack.c.h.b16 %v44
  %v621 = vunpack.c.l.b16 %v45
  %v622 = vunpack.c.h.b16 %v45
  %v623 = vunpack.c.l.b16 %v46
  %v624 = vunpack.c.h.b16 %v46
  %v625 = vunpack.c.l.b16 %v47
  %v626 = vunpack.c.h.b16 %v47
  %v627 = vunpack.c.l.b16 %v48
  %v628 = vunpack.c.h.b16 %v48
  %v629 = vunpack.c.l.b16 %v49
  %v630 = vunpack.c.h.b16 %v49
  %v631 = vunpack.c.l.b16 %v50
  %v632 = vunpack.c.h.b16 %v50
  %v633 = vunpack.c.l.b16 %v51
  %v634 = vunpack.c.h.b16 %v51
  %v635 = vunpack.c.l.b16 %v52
  %v636 = vunpack.c.h.b16 %v52
  %v637 = vunpack.c.l.b16 %v53
  %v638 = vunpack.c.h.b16 %v53
  %v639 = vunpack.c.l.b16 %v54
  %v640 = vunpack.c.h.b16 %v54
  %v641 = vunpack.c.l.b16 %v55
  %v642 = vunpack.c.h.b16 %v55
  %v643 = vunpack.c.l.b16 %v56
  %v644 = vunpack.c.h.b16 %v56
  %v645 = vunpack.c.l.b16 %v57
  %v646 = vunpack.c.h.b16 %v57
  %v647 = vunpack.c.l.b16 %v58
  %v648 = vunpack.c.h.b16 %v58
  %v649 = vunpack.c.l.b16 %v59
  %v650 = vunpack.c.h.b16 %v59
  %v651 = vunpack.c.l.b16 %v60
  %v652 = vunpack.c.h.b16 %v60
  %v653 = vunpack.c.l.b16 %v61
  %v654 = vunpack.c.h.b16 %v61
  %v655 = vunpack.c.l.b16 %v62
  %v656 = vunpack.c.h.b16 %v62
  %v657 = vunpack.c.l.b16 %v63
  %v658 = vunpack.c.h.b16 %v63
  %v659 = vunpack.c.l.b16 %v64
  %v660 = vunpack.c.h.b16 %v64
  %v661 = vunpack.c.l.b16 %v65
  %v662 = vunpack.c.h.b16 %v65
  %v663 = vunpack.c.l.b16 %v66
  %v664 = vunpack.c.h.b16 %v66
  %v665 = vunpack.c.l.b16 %v67
  %v666 = vunpack.c.h.b16 %v67
  %v667 = vunpack.c.l.b16 %v68
  %v668 = vunpack.c.h.b16 %v68
  %v669 = vunpack.c.l.b16 %v69
  %v670 = vunpack.c.h.b16 %v69
  %v671 = vunpack.c.l.b16 %v70
  %v672 = vunpack.c.h.b16 %v70
  %v673 = vunpack.c.l.b16 %v71
  %v674 = vunpack.c.h.b16 %v71
  %v675 = vunpack.c.l.b16 %v72
  %v676 = vunpack.c.h.b16 %v72
  %v677 = vunpack.c.l.b16 %v73
  %v678 = vunpack.c.h.b16 %v73
  %v679 = vunpack.c.l.b16 %v74
  %v680 = vunpack.c.h.b16 %v74
  %v681 = vunpack.c.l.b16 %v75
  %v682 = vunpack.c.h.b16 %v75
  %v683 = vunpack.c.l.b16 %v76
  %v684 = vunpack.c.h.b16 %v76
  %v685 = vunpack.c.l.b16 %v77
  %v686 = vunpack.c.h.b16 %v77
  %v687 = vunpack.c.l.b16 %v78
  %v688 = vunpack.c.h.b16 %v78
  %v689 = vunpack.c.l.b16 %v79
  %v690 = vunpack.c.h.b16 %v79
  %v691 = vunpack.c.l.b16 %v80
  %v692 = vunpack.c.h.b16 %v80
  %v693 = vunpack.c.l.b16 %v81
  %v694 = vunpack.c.h.b16 %v81
  %v695 = vunpack.c.l.b16 %v82
  %v696 = vunpack.c.h.b16 %v82
  %v697 = vunpack.c.l.b16 %v83
  %v698 = vunpack.c.h.b16 %v83
  %v699 = vunpack.c.l.b16 %v84
  %v700 = vunpack.c.h.b16 %v84
  %v701 = vunpack.c.l.b16 %v85
  %v702 = vunpack.c.h.b16 %v85
  %v703 = vunpack.c.l.b16 %v86
  %v704 = vunpack.c.h.b16 %v86
  %v705 = vunpack.c.l.b16 %v87
  %v706 = vunpack.c.h.b16 %v87
  %v707 = vunpack.c.l.b16 %v88
  %v708 = vunpack.c.h.b16 %v88
  %v709 = vunpack.c.l.b16 %v89
  %v710 = vunpack.c.h.b16 %v89
  %v711 = vunpack.c.l.b16 %v90
  %v712 = vunpack.c.h.b16 %v90
  %v713 = vunpack.c.l.b16 %v91
  %v714 = vunpack.c.h.b16 %v91
  %v715 = vunpack.c.l.b16 %v92
  %v716 = vunpack.c.h.b16 %v92
  %v717 = vunpack.c.l.b16 %v93
  %v718 = vunpack.c.h.b16 %v93
  %v719 = vunpack.c.l.b16 %v94
  %v720 = vunpack.c.h.b16 %v94
  %v721 = vunpack.c.l.b16 %v95
  %v722 = vunpack.c.h.b16 %v95
  %v723 = vunpack.c.l.b16 %v96
  %v724 = vunpack.c.h.b16 %v96
  %v725 = vunpack.c.l.b16 %v97
  %v726 = vunpack.c.h.b16 %v97
  %v727 = vunpack.c.l.b16 %v98
  %v728 = vunpack.c.h.b16 %v98
  %v729 = vunpack.c.l.b16 %v99
  %v730 = vunpack.c.h.b16 %v99
  %v731 = vunpack.c.l.b16 %v100
  %v732 = vunpack.c.h.b16 %v100
  %v733 = vunpack.c.l.b16 %v101
  %v734 = vunpack.c.h.b16 %v101
  %v735 = vunpack.c.l.b16 %v102
  %v736 = vunpack.c.h.b16 %v102
  %v737 = vunpack.c.l.b16 %v103
  %v738 = vunpack.c.h.b16 %v103
  %v739 = vunpack.c.l.b16 %v104
  %v740 = vunpack.c.h.b16 %v104
  %v741 = vunpack.c.l.b16 %v105
  %v742 = vunpack.c.h.b16 %v105
  %v743 = vunpack.c.l.b16 %v106
  %v744 = vunpack.c.h.b16 %v106
  %v745 = vunpack.c.l.b16 %v107
  %v746 = vunpack.c.h.b16 %v107
  %v747 = vunpack.c.l.b16 %v108
  %v748 = vunpack.c.h.b16 %v108
  %v749 = vunpack.c.l.b16 %v109
  %v750 = vunpack.c.h.b16 %v109
  %v751 = vunpack.c.l.b16 %v110
  %v752 = vunpack.c.h.b16 %v110
  %v753 = vunpack.c.l.b16 %v111
  %v754 = vunpack.c.h.b16 %v111
  %v755 = vunpack.c.l.b16 %v112
  %v756 = vunpack.c.h.b16 %v112
  %v757 = vunpack.c.l.b16 %v113
  %v758 = vunpack.c.h.b16 %v113
  %v759 = vunpack.c.l.b16 %v114
  %v760 = vunpack.c.h.b16 %v114
  %v761 = vunpack.c.l.b16 %v115
  %v762 = vunpack.c.h.b16 %v115
  %v763 = vunpack.c.l.b16 %v116
  %v764 = vunpack.c.h.b16 %v116
  %v765 = vunpack.c.l.b16 %v117
  %v766 = vunpack.c.h.b16 %v117
  %v767 = vunpack.c.l.b16 %v118
  %v768 = vunpack.c.h.b16 %v118
  %v769 = vunpack.c.l.b16 %v119
  %v770 = vunpack.c.h.b16 %v119
  %v771 = vunpack.c.l.b16 %v120
  %v772 = vunpack.c.h.b16 %v120
  %v773 = vunpack.c.l.b16 %v121
  %v774 = vunpack.c.h.b16 %v121
  %v775 = vunpack.c.l.b16 %v122
  %v776 = vunpack.c.h.b16 %v122
  %v777 = vunpack.c.l.b16 %v123
  %v778 = vunpack.c.h.b16 %v123
  %v779 = vunpack.c.l.b16 %v124
  %v780 = vunpack.c.h.b16 %v124
  %v781 = vunpack.c.l.b16 %v125
  %v782 = vunpack.c.h.b16 %v125
  %v783 = vunpack.c.l.b16 %v126
  %v784 = vunpack.c.h.b16 %v126
  %v785 = vunpack.c.l.b16 %v127
  %v786 = vunpack.c.h.b16 %v127
  %v787 = vunpack.c.l.b16 %v128
  %v788 = vunpack.c.h.b16 %v128
  %v789 = vunpack.c.l.b16 %v129
  %v790 = vunpack.c.h.b16 %v129
  %v791 = vunpack.c.l.b16 %v130
  %v792 = vunpack.c.h.b16 %v130
  %v793 = vunpack.c.l.b16 %v131
  %v794 = vunpack.c.h.b16 %v131
  %v795 = vunpack.c.l.b16 %v132
  %v796 = vunpack.c.h.b16 %v132
  %v797 = vunpack.c.l.b16 %v133
  %v798 = vunpack.c.h.b16 %v133
  %v799 = vunpack.c.l.b16 %v134
  %v800 = vunpack.c.h.b16 %v134
  %v801 = vunpack.c.l.b16 %v135
  %v802 = vunpack.c.h.b16 %v135
  %v803 = vunpack.c.l.b16 %v136
  %v804 = vunpack.c.h.b16 %v136
  %v805 = vunpack.c.l.b16 %v137
  %v806 = vunpack.c.h.b16 %v137
  %v807 = vunpack.c.l.b16 %v138
  %v808 = vunpack.c.h.b16 %v138
  %v809 = vunpack.c.l.b16 %v139
  %v810 = vunpack.c.h.b16 %v139
  %v811 = vunpack.c.l.b16 %v140
  %v812 = vunpack.c.h.b16 %v140
  %v813 = vunpack.c.l.b16 %v141
  %v814 = vunpack.c.h.b16 %v141
  %v815 = vunpack.c.l.b16 %v142
  %v816 = vunpack.c.h.b16 %v142
  %v817 = vunpack.c.l.b16 %v143
  %v818 = vunpack.c.h.b16 %v143
  %v819 = vunpack.c.l.b16 %v144
  %v820 = vunpack.c.h.b16 %v144
  %v821 = vunpack.c.l.b16 %v145
  %v822 = vunpack.c.h.b16 %v145
  %v823 = vunpack.c.l.b16 %v146
  %v824 = vunpack.c.h.b16 %v146
  %v825 = vunpack.c.l.b16 %v147
  %v826 = vunpack.c.h.b16 %v147
  %v827 = vunpack.c.l.b16 %v148
  %v828 = vunpack.c.h.b16 %v148
  %v829 = vunpack.c.l.b16 %v149
  %v830 = vunpack.c.h.b16 %v149
  %v831 = vunpack.c.l.b16 %v150
  %v832 = vunpack.c.h.b16 %v150
  %v833 = vunpack.c.l.b16 %v151
  %v834 = vunpack.c.h.b16 %v151
  %v835 = vunpack.c.l.b16 %v152
  %v836 = vunpack.c.h.b16 %v152
  %v837 = vunpack.c.l.b16 %v153
  %v838 = vunpack.c.h.b16 %v153
  %v839 = vunpack.c.l.b16 %v154
  %v840 = vunpack.c.h.b16 %v154
  %v841 = vunpack.c.l.b16 %v155
  %v842 = vunpack.c.h.b16 %v155
  %v843 = vunpack.c.l.b16 %v156
  %v844 = vunpack.c.h.b16 %v156
  %v845 = vunpack.c.l.b16 %v157
  %v846 = vunpack.c.h.b16 %v157
  %v847 = vunpack.c.l.b16 %v158
  %v848 = vunpack.c.h.b16 %v158
  %v849 = vunpack.c.l.b16 %v159
  %v850 = vunpack.c.h.b16 %v159
  %v851 = vunpack.c.l.b16 %v160
  %v852 = vunpack.c.h.b16 %v160
  %v853 = vunpack.c.l.b16 %v161
  %v854 = vunpack.c.h.b16 %v161
  %v855 = vunpack.c.l.b16 %v162
  %v856 = vunpack.c.h.b16 %v162
  %v857 = vunpack.c.l.b16 %v163
  %v858 = vunpack.c.h.b16 %v163
  %v859 = vunpack.c.l.b16 %v164
  %v860 = vunpack.c.h.b16 %v164
  %v861 = vunpack.c.l.b16 %v165
  %v862 = vunpack.c.h.b16 %v165
  %v863 = vunpack.c.l.b16 %v166
  %v864 = vunpack.c.h.b16 %v166
  %v865 = vunpack.c.l.b16 %v167
  %v866 = vunpack.c.h.b16 %v167
  %v867 = vunpack.c.l.b16 %v168
  %v868 = vunpack.c.h.b16 %v168
  %v869 = vunpack.c.l.b16 %v169
  %v870 = vunpack.c.h.b16 %v169
  %v871 = vunpack.c.l.b16 %v170
  %v872 = vunpack.c.h.b16 %v170
  %v873 = vunpack.c.l.b16 %v171
  %v874 = vunpack.c.h.b16 %v171
  %v875 = vunpack.c.l.b16 %v172
  %v876 = vunpack.c.h.b16 %v172
  %v877 = vunpack.c.l.b16 %v173
  %v878 = vunpack.c.h.b16 %v173
  %v879 = vunpack.c.l.b16 %v174
  %v880 = vunpack.c.h.b16 %v174
  %v881 = vunpack.c.l.b16 %v175
  %v882 = vunpack.c.h.b16 %v175
  %v883 = vunpack.c.l.b16 %v176
  %v884 = vunpack.c.h.b16 %v176
  %v885 = vunpack.c.l.b16 %v177
  %v886 = vunpack.c.h.b16 %v177
  %v887 = vunpack.c.l.b16 %v178
  %v888 = vunpack.c.h.b16 %v178
  %v889 = vunpack.c.l.b16 %v179
  %v890 = vunpack.c.h.b16 %v179
  %v891 = vunpack.c.l.b16 %v180
  %v892 = vunpack.c.h.b16 %v180
  %v893 = vunpack.c.l.b16 %v181
  %v894 = vunpack.c.h.b16 %v181
  %v895 = vunpack.c.l.b16 %v182
  %v896 = vunpack.c.h.b16 %v182
  %v897 = vunpack.c.l.b16 %v183
  %v898 = vunpack.c.h.b16 %v183
  %v899 = vunpack.c.l.b16 %v184
  %v900 = vunpack.c.h.b16 %v184
  %v901 = vunpack.c.l.b16 %v185
  %v902 = vunpack.c.h.b16 %v185
  %v903 = vunpack.c.l.b16 %v186
  %v904 = vunpack.c.h.b16 %v186
  %v905 = vunpack.c.l.b16 %v187
  %v906 = vunpack.c.h.b16 %v187
  %v907 = vunpack.c.l.b16 %v188
  %v908 = vunpack.c.h.b16 %v188
  %v909 = vunpack.c.l.b16 %v189
  %v910 = vunpack.c.h.b16 %v189
  %v911 = vunpack.c.l.b16 %v190
  %v912 = vunpack.c.h.b16 %v190
  %v913 = vunpack.c.l.b16 %v191
  %v914 = vunpack.c.h.b16 %v191
  %v915 = vunpack.c.l.b16 %v192
  %v916 = vunpack.c.h.b16 %v192
  %v917 = vunpack.c.l.b16 %v193
  %v918 = vunpack.c.h.b16 %v193
  %v919 = vunpack.c.l.b16 %v194
  %v920 = vunpack.c.h.b16 %v194
  %v921 = vunpack.c.l.b16 %v195
  %v922 = vunpack.c.h.b16 %v195
  %v923 = vunpack.c.l.b16 %v196
  %v924 = vunpack.c.h.b16 %v196
  %v925 = vunpack.c.l.b16 %v197
  %v926 = vunpack.c.h.b16 %v197
  %v927 = vunpack.c.l.b16 %v198
  %v928 = vunpack.c.h.b16 %v198
  %v929 = vunpack.c.l.b16 %v199
  %v930 = vunpack.c.h.b16 %v199
  %v931 = vunpack.c.l.b16 %v200
  %v932 = vunpack.c.h.b16 %v200
  %v933 = vunpack.c.l.b16 %v201
  %v934 = vunpack.c.h.b16 %v201
  %v935 = vunpack.c.l.b16 %v202
  %v936 = vunpack.c.h.b16 %v202
  %v937 = vunpack.c.l.b16 %v203
  %v938 = vunpack.c.h.b16 %v203
  %v939 = vunpack.c.l.b16 %v204
  %v940 = vunpack.c.h.b16 %v204
  %v941 = vunpack.c.l.b16 %v205
  %v942 = vunpack.c.h.b16 %v205
  %v943 = vunpack.c.l.b16 %v206
  %v944 = vunpack.c.h.b16 %v206
  %v945 = vunpack.c.l.b16 %v207
  %v946 = vunpack.c.h.b16 %v207
  %v947 = vunpack.c.l.b16 %v208
  %v948 = vunpack.c.h.b16 %v208
  %v949 = vunpack.c.l.b16 %v209
  %v950 = vunpack.c.h.b16 %v209
  %v951 = vunpack.c.l.b16 %v210
  %v952 = vunpack.c.h.b16 %v210
  %v953 = vunpack.c.l.b16 %v211
  %v954 = vunpack.c.h.b16 %v211
  %v955 = vunpack.c.l.b16 %v212
  %v956 = vunpack.c.h.b16 %v212
  %v957 = vunpack.c.l.b16 %v213
  %v958 = vunpack.c.h.b16 %v213
  %v959 = vunpack.c.l.b16 %v214
  %v960 = vunpack.c.h.b16 %v214
  %v961 = vunpack.c.l.b16 %v215
  %v962 = vunpack.c.h.b16 %v215
  %v963 = vunpack.c.l.b16 %v216
  %v964 = vunpack.c.h.b16 %v216
  %v965 = vunpack.c.l.b16 %v217
  %v966 = vunpack.c.h.b16 %v217
  %v967 = vunpack.c.l.b16 %v218
  %v968 = vunpack.c.h.b16 %v218
  %v969 = vunpack.c.l.b16 %v219
  %v970 = vunpack.c.h.b16 %v219
  %v971 = vunpack.c.l.b16 %v220
  %v972 = vunpack.c.h.b16 %v220
  %v973 = vunpack.c.l.b16 %v221
  %v974 = vunpack.c.h.b16 %v221
  %v975 = vunpack.c.l.b16 %v222
  %v976 = vunpack.c.h.b16 %v222
  %v977 = vunpack.c.l.b16 %v223
  %v978 = vunpack.c.h.b16 %v223
  %v979 = vunpack.c.l.b16 %v224
  %v980 = vunpack.c.h.b16 %v224
  %v981 = vunpack.c.l.b16 %v225
  %v982 = vunpack.c.h.b16 %v225
  %v983 = vunpack.c.l.b16 %v226
  %v984 = vunpack.c.h.b16 %v226
  %v985 = vunpack.c.l.b16 %v227
  %v986 = vunpack.c.h.b16 %v227
  %v987 = vunpack.c.l.b16 %v228
  %v988 = vunpack.c.h.b16 %v228
  %v989 = vunpack.c.l.b16 %v229
  %v990 = vunpack.c.h.b16 %v229
  %v991 = vunpack.c.l.b16 %v230
  %v992 = vunpack.c.h.b16 %v230
  %v993 = vunpack.c.l.b16 %v231
  %v994 = vunpack.c.h.b16 %v231
  %v995 = vunpack.c.l.b16 %v232
  %v996 = vunpack.c.h.b16 %v232
  %v997 = vunpack.c.l.b16 %v233
  %v998 = vunpack.c.h.b16 %v233
  %v999 = vunpack.c.l.b16 %v234
  %v1000 = vunpack.c.h.b16 %v234
  %v1001 = vunpack.c.l.b16 %v235
  %v1002 = vunpack.c.h.b16 %v235
  %v1003 = vunpack.c.l.b16 %v236
  %v1004 = vunpack.c.h.b16 %v236
  %v1005 = vunpack.c.l.b16 %v237
  %v1006 = vunpack.c.h.b16 %v237
  %v1007 = vunpack.c.l.b16 %v238
  %v1008 = vunpack.c.h.b16 %v238
  %v1009 = vunpack.c.l.b16 %v239
  %v1010 = vunpack.c.h.b16 %v239
  %v1011 = vunpack.c.l.b16 %v240
  %v1012 = vunpack.c.h.b16 %v240
  %v1013 = vunpack.c.l.b16 %v241
  %v1014 = vunpack.c.h.b16 %v241
  %v1015 = vunpack.c.l.b16 %v242
  %v1016 = vunpack.c.h.b16 %v242
  %v1017 = vunpack.c.l.b16 %v243
  %v1018 = vunpack.c.h.b16 %v243
  %v1019 = vunpack.c.l.b16 %v244
  %v1020 = vunpack.c.h.b16 %v244
  %v1021 = vunpack.c.l.b16 %v245
  %v1022 = vunpack.c.h.b16 %v245
  %v1023 = vunpack.c.l.b16 %v246
  %v1024 = vunpack.c.h.b16 %v246
  %v1025 = vunpack.c.l.b16 %v247
  %v1026 = vunpack.c.h.b16 %v247
  %v1027 = vunpack.c.l.b16 %v248
  %v1028 = vunpack.c.h.b16 %v248
  %v1029 = vunpack.c.l.b16 %v249
  %v1030 = vunpack.c.h.b16 %v249
  %v1031 = vunpack.c.l.b16 %v250
  %v1032 = vunpack.c.h.b16 %v250
  %v1033 = vunpack.c.l.b16 %v251
  %v1034 = vunpack.c.h.b16 %v251
  %v1035 = vunpack.c.l.b16 %v252
  %v1036 = vunpack.c.h.b16 %v252
  %v1037 = vunpack.c.l.b16 %v253
  %v1038 = vunpack.c.h.b16 %v253
  %v1039 = vunpack.c.l.b16 %v254
  %v1040 = vunpack.c.h.b16 %v254
  %v1041 = vunpack.c.l.b16 %v255
  %v1042 = vunpack.c.h.b16 %v255
  %v1043 = vunpack.c.l.b16 %v256
  %v1044 = vunpack.c.h.b16 %v256
  %v1045 = vunpack.c.l.b16 %v257
  %v1046 = vunpack.c.h.b16 %v257
  %v1047 = vunpack.c.l.b16 %v258
  %v1048 = vunpack.c.h.b16 %v258
  %v1049 = vunpack.c.l.b16 %v259
  %v1050 = vunpack.c.h.b16 %v259
  %v1051 = vunpack.c.l.b16 %v260
  %v1052 = vunpack.c.h.b16 %v260
  %v1053 = vunpack.c.l.b16 %v261
  %v1054 = vunpack.c.h.b16 %v261
  %v1055 = vunpack.c.l.b16 %v262
  %v1056 = vunpack.c.h.b16 %v262
  %v1057 = vunpack.c.l.b16 %v263
  %v1058 = vunpack.c.h.b16 %v263
  %v1059 = vunpack.c.l.b16 %v264
  %v1060 = vunpack.c.h.b16 %v264
  %v1061 = vunpack.c.l.b16 %v265
  %v1062 = vunpack.c.h.b16 %v265
  %v1063 = vunpack.c.l.b16 %v266
  %v1064 = vunpack.c.h.b16 %v266
  %v1065 = vunpack.c.l.b16 %v267
  %v1066 = vunpack.c.h.b16 %v267
  %v1067 = vunpack.c.l.b16 %v268
  %v1068 = vunpack.c.h.b16 %v268
  %v1069 = vunpack.c.l.b16 %v269
  %v1070 = vunpack.c.h.b16 %v269
  %v1071 = vunpack.c.l.b16 %v270
  %v1072 = vunpack.c.h.b16 %v270
  %v1073 = vunpack.c.l.b16 %v271
  %v1074 = vunpack.c.h.b16 %v271
  %v1075 = vunpack.c.l.b16 %v272
  %v1076 = vunpack.c.h.b16 %v272
  %v1077 = vunpack.c.l.b16 %v273
  %v1078 = vunpack.c.h.b16 %v273
  %v1079 = vunpack.c.l.b16 %v274
  %v1080 = vunpack.c.h.b16 %v274
  %v1081 = vunpack.c.l.b16 %v275
  %v1082 = vunpack.c.h.b16 %v275
  %v1083 = vunpack.c.l.b16 %v276
  %v1084 = vunpack.c.h.b16 %v276
  %v1085 = vunpack.c.l.b16 %v277
  %v1086 = vunpack.c.h.b16 %v277
  %v1087 = vunpack.c.l.b16 %v278
  %v1088 = vunpack.c.h.b16 %v278
  %v1089 = vunpack.c.l.b16 %v279
  %v1090 = vunpack.c.h.b16 %v279
  %v1091 = vunpack.c.l.b16 %v280
  %v1092 = vunpack.c.h.b16 %v280
  %v1093 = vunpack.c.l.b16 %v281
  %v1094 = vunpack.c.h.b16 %v281
  %v1095 = vunpack.c.l.b16 %v282
  %v1096 = vunpack.c.h.b16 %v282
  %v1097 = vunpack.c.l.b16 %v283
  %v1098 = vunpack.c.h.b16 %v283
  %v1099 = vunpack.c.l.b16 %v284
  %v1100 = vunpack.c.h.b16 %v284
  %v1101 = vunpack.c.l.b16 %v285
  %v1102 = vunpack.c.h.b16 %v285
  %v1103 = vunpack.c.l.b16 %v286
  %v1104 = vunpack.c.h.b16 %v286
  %v1105 = vpack.c.b16 %v597, %v593
  %v1106 = vpack.c.b16 %v598, %v594
  %v1107 = vpack.c.b16 %v599, %v595
  %v1108 = vpack.c.b16 %v600, %v596
  %v1109 = vpack.c.b16 %v605, %v601
  %v1110 = vpack.c.b16 %v606, %v602
  %v1111 = vpack.c.b16 %v607, %v603
  %v1112 = vpack.c.b16 %v608, %v604
  %v1113 = vpack.c.b16 %v613, %v609
  %v1114 = vpack.c.b16 %v614, %v610
  %v1115 = vpack.c.b16 %v615, %v611
  %v1116 = vpack.c.b16 %v616, %v612
  %v1117 = vpack.c.b16 %v621, %v617
  %v1118 = vpack.c.b16 %v622, %v618
  %v1119 = vpack.c.b16 %v623, %v619
  %v1120 = vpack.c.b16 %v624, %v620
  %v1121 = vpack.c.b16 %v629, %v625
  %v1122 = vpack.c.b16 %v630, %v626
  %v1123 = vpack.c.b16 %v631, %v627
  %v1124 = vpack.c.b16 %v632, %v628
  %v1125 = vpack.c.b16 %v637, %v633
  %v1126 = vpack.c.b16 %v638, %v634
  %v1127 = vpack.c.b16 %v639, %v635
  %v1128 = vpack.c.b16 %v640, %v636
  %v1129 = vpack.c.b16 %v645, %v641
  %v1130 = vpack.c.b16 %v646, %v642
  %v1131 = vpack.c.b16 %v647, %v643
  %v1132 = vpack.c.b16 %v648, %v644
  %v1133 = vpack.c.b16 %v653, %v649
  %v1134 = vpack.c.b16 %v654, %v650
  %v1135 = vpack.c.b16 %v655, %v651
  %v1136 = vpack.c.b16 %v656, %v652
  %v1137 = vpack.c.b16 %v661, %v657
  %v1138 = vpack.c.b16 %v662, %v658
  %v1139 = vpack.c.b16 %v663, %v659
  %v1140 = vpack.c.b16 %v664, %v660
  %v1141 = vpack.c.b16 %v669, %v665
  %v1142 = vpack.c.b16 %v670, %v666
  %v1143 = vpack.c.b16 %v671, %v667
  %v1144 = vpack.c.b16 %v672, %v668
  %v1145 = vpack.c.b16 %v677, %v673
  %v1146 = vpack.c.b16 %v678, %v674
  %v1147 = vpack.c.b16 %v679, %v675
  %v1148 = vpack.c.b16 %v680, %v676
  %v1149 = vpack.c.b16 %v685, %v681
  %v1150 = vpack.c.b16 %v686, %v682
  %v1151 = vpack.c.b16 %v687, %v683
  %v1152 = vpack.c.b16 %v688, %v684
  %v1153 = vpack.c.b16 %v693, %v689
  %v1154 = vpack.c.b16 %v694, %v690
  %v1155 = vpack.c.b16 %v695, %v691
  %v1156 = vpack.c.b16 %v696, %v692
  %v1157 = vpack.c.b16 %v701, %v697
  %v1158 = vpack.c.b16 %v702, %v698
  %v1159 = vpack.c.b16 %v703, %v699
  %v1160 = vpack.c.b16 %v704, %v700
  %v1161 = vpack.c.b16 %v709, %v705
  %v1162 = vpack.c.b16 %v710, %v706
  %v1163 = vpack.c.b16 %v711, %v707
  %v1164 = vpack.c.b16 %v712, %v708
  %v1165 = vpack.c.b16 %v717, %v713
  %v1166 = vpack.c.b16 %v718, %v714
  %v1167 = vpack.c.b16 %v719, %v715
  %v1168 = vpack.c.b16 %v720, %v716
  %v1169 = vpack.c.b16 %v725, %v721
  %v1170 = vpack.c.b16 %v726, %v722
  %v1171 = vpack.c.b16 %v727, %v723
  %v1172 = vpack.c.b16 %v728, %v724
  %v1173 = vpack.c.b16 %v733, %v729
  %v1174 = vpack.c.b16 %v734, %v730
  %v1175 = vpack.c.b16 %v735, %v731
  %v1176 = vpack.c.b16 %v736, %v732
  %v1177 = vpack.c.b16 %v741, %v737
  %v1178 = vpack.c.b16 %v742, %v738
  %v1179 = vpack.c.b16 %v743, %v739
  %v1180 = vpack.c.b16 %v744, %v740
  %v1181 = vpack.c.b16 %v749, %v745
  %v1182 = vpack.c.b16 %v750, %v746
  %v1183 = vpack.c.b16 %v751, %v747
  %v1184 = vpack.c.b16 %v752, %v748
  %v1185 = vpack.c.b16 %v757, %v753
  %v1186 = vpack.c.b16 %v758, %v754
  %v1187 = vpack.c.b16 %v759, %v755
  %v1188 = vpack.c.b16 %v760, %v756
  %v1189 = vpack.c.b16 %v765, %v761
  %v1190 = vpack.c.b16 %v766, %v762
  %v1191 = vpack.c.b16 %v767, %v763
  %v1192 = vpack.c.b16 %v768, %v764
  %v1193 = vpack.c.b16 %v773, %v769
  %v1194 = vpack.c.b16 %v774, %v770
  %v1195 = vpack.c.b16 %v775, %v771
  %v1196 = vpack.c.b16 %v776, %v772
  %v1197 = vpack.c.b16 %v781, %v777
  %v1198 = vpack.c.b16 %v782, %v778
  %v1199 = vpack.c.b16 %v783, %v779
  %v1200 = vpack.c.b16 %v784, %v780
  %v1201 = vpack.c.b16 %v789, %v785
  %v1202 = vpack.c.b16 %v790, %v786
  %v1203 = vpack.c.b16 %v791, %v787
  %v1204 = vpack.c.b16 %v792, %v788
  %v1205 = vpack.c.b16 %v797, %v793
  %v1206 = vpack.c.b16 %v798, %v794
  %v1207 = vpack.c.b16 %v799, %v795
  %v1208 = vpack.c.b16 %v800, %v796
  %v1209 = vpack.c.b16 %v805, %v801
  %v1210 = vpack.c.b16 %v806, %v802
  %v1211 = vpack.c.b16 %v807, %v803
  %v1212 = vpack.c.b16 %v808, %v804
  %v1213 = vpack.c.b16 %v813, %v809
  %v1214 = vpack.c.b16 %v814, %v810
  %v1215 = vpack.c.b16 %v815, %v811
  %v1216 = vpack.c.b16 %v816, %v812
  %v1217 = vpack.c.b16 %v821, %v817
  %v1218 = vpack.c.b16 %v822, %v818
  %v1219 = vpack.c.b16 %v823, %v819
  %v1220 = vpack.c.b16 %v824, %v820
  %v1221 = vpack.c.b16 %v829, %v825
  %v1222 = vpack.c.b16 %v830, %v826
  %v1223 = vpack.c.b16 %v831, %v827
  %v1224 = vpack.c.b16 %v832, %v828
  %v1225 = vpack.c.b16 %v837, %v833
  %v1226 = vpack.c.b16 %v838, %v834
  %v1227 = vpack.c.b16 %v839, %v835
  %v1228 = vpack.c.b16 %v840, %v836
  %v1229 = vpack.c.b16 %v845, %v841
  %v1230 = vpack.c.b16 %v846, %v842
  %v1231 = vpack.c.b16 %v847, %v843
  %v1232 = vpack.c.b16 %v848, %v844
  %v1233 = vpack.c.b16 %v853, %v849
  %v1234 = vpack.c.b16 %v854, %v850
  %v1235 = vpack.c.b16 %v855, %v851
  %v1236 = vpack.c.b16 %v856, %v852
  %v1237 = vpack.c.b16 %v861, %v857
  %v1238 = vpack.c.b16 %v862, %v858
  %v1239 = vpack.c.b16 %v863, %v859
  %v1240 = vpack.c.b16 %v864, %v860
  %v1241 = vpack.c.b16 %v869, %v865
  %v1242 = vpack.c.b16 %v870, %v866
  %v1243 = vpack.c.b16 %v871, %v867
  %v1244 = vpack.c.b16 %v872, %v868
  %v1245 = vpack.c.b16 %v877, %v873
  %v1246 = vpack.c.b16 %v878, %v874
  %v1247 = vpack.c.b16 %v879, %v875
  %v1248 = vpack.c.b16 %v880, %v876
  %v1249 = vpack.c.b16 %v885, %v881
  %v1250 = vpack.c.b16 %v886, %v882
  %v1251 = vpack.c.b16 %v887, %v883
  %v1252 = vpack.c.b16 %v888, %v884
  %v1253 = vpack.c.b16 %v893, %v889
  %v1254 = vpack.c.b16 %v894, %v890
  %v1255 = vpack.c.b16 %v895, %v891
  %v1256 = vpack.c.b16 %v896, %v892
  %v1257 = vpack.c.b16 %v901, %v897
  %v1258 = vpack.c.b16 %v902, %v898
  %v1259 = vpack.c.b16 %v903, %v899
  %v1260 = vpack.c.b16 %v904, %v900
  %v1261 = vpack.c.b16 %v909, %v905
  %v1262 = vpack.c.b16 %v910, %v906
  %v1263 = vpack.c.b16 %v911, %v907
  %v1264 = vpack.c.b16 %v912, %v908
  %v1265 = vpack.c.b16 %v917, %v913
  %v1266 = vpack.c.b16 %v918, %v914
  %v1267 = vpack.c.b16 %v919, %v915
  %v1268 = vpack.c.b16 %v920, %v916
  %v1269 = vpack.c.b16 %v925, %v921
  %v1270 = vpack.c.b16 %v926, %v922
  %v1271 = vpack.c.b16 %v927, %v923
  %v1272 = vpack.c.b16 %v928, %v924
  %v1273 = vpack.c.b16 %v933, %v929
  %v1274 = vpack.c.b16 %v934, %v930
  %v1275 = vpack.c.b16 %v935, %v931
  %v1276 = vpack.c.b16 %v936, %v932
  %v1277 = vpack.c.b16 %v941, %v937
  %v1278 = vpack.c.b16 %v942, %v938
  %v1279 = vpack.c.b16 %v943, %v939
  %v1280 = vpack.c.b16 %v944, %v940
  %v1281 = vpack.c.b16 %v949, %v945
  %v1282 = vpack.c.b16 %v950, %v946
  %v1283 = vpack.c.b16 %v951, %v947
  %v1284 = vpack.c.b16 %v952, %v948
  %v1285 = vpack.c.b16 %v957, %v953
  %v1286 = vpack.c.b16 %v958, %v954
  %v1287 = vpack.c.b16 %v959, %v955
  %v1288 = vpack.c.b16 %v960, %v956
  %v1289 = vpack.c.b16 %v965, %v961
  %v1290 = vpack.c.b16 %v966, %v962
  %v1291 = vpack.c.b16 %v967, %v963
  %v1292 = vpack.c.b16 %v968, %v964
  %v1293 = vpack.c.b16 %v973, %v969
  %v1294 = vpack.c.b16 %v974, %v970
  %v1295 = vpack.c.b16 %v975, %v971
  %v1296 = vpack.c.b16 %v976, %v972
  %v1297 = vpack.c.b16 %v981, %v977
  %v1298 = vpack.c.b16 %v982, %v978
  %v1299 = vpack.c.b16 %v983, %v979
  %v1300 = vpack.c.b16 %v984, %v980
  %v1301 = vpack.c.b16 %v989, %v985
  %v1302 = vpack.c.b16 %v990, %v986
  %v1303 = vpack.c.b16 %v991, %v987
  %v1304 = vpack.c.b16 %v992, %v988
  %v1305 = vpack.c.b16 %v997, %v993
  %v1306 = vpack.c.b16 %v998, %v994
  %v1307 = vpack.c.b16 %v999, %v995
  %v1308 = vpack.c.b16 %v1000, %v996
  %v1309 = vpack.c.b16 %v1005, %v1001
  %v1310 = vpack.c.b16 %v1006, %v1002
  %v1311 = vpack.c.b16 %v1007, %v1003
  %v1312 = vpack.c.b16 %v1008, %v1004
  %v1313 = vpack.c.b16 %v1013, %v1009
  %v1314 = vpack.c.b16 %v1014, %v1010
  %v1315 = vpack.c.b16 %v1015, %v1011
  %v1316 = vpack.c.b16 %v1016, %v1012
  %v1317 = vpack.c.b16 %v1021, %v1017
  %v1318 = vpack.c.b16 %v1022, %v1018
  %v1319 = vpack.c.b16 %v1023, %v1019
  %v1320 = vpack.c.b16 %v1024, %v1020
  %v1321 = vpack.c.b16 %v1029, %v1025
  %v1322 = vpack.c.b16 %v1030, %v1026
  %v1323 = vpack.c.b16 %v1031, %v1027
  %v1324 = vpack.c.b16 %v1032, %v1028
  %v1325 = vpack.c.b16 %v1037, %v1033
  %v1326 = vpack.c.b16 %v1038, %v1034
  %v1327 = vpack.c.b16 %v1039, %v1035
  %v1328 = vpack.c.b16 %v1040, %v1036
  %v1329 = vpack.c.b16 %v1045, %v1041
  %v1330 = vpack.c.b16 %v1046, %v1042
  %v1331 = vpack.c.b16 %v1047, %v1043
  %v1332 = vpack.c.b16 %v1048, %v1044
  %v1333 = vpack.c.b16 %v1053, %v1049
  %v1334 = vpack.c.b16 %v1054, %v1050
  %v1335 = vpack.c.b16 %v1055, %v1051
  %v1336 = vpack.c.b16 %v1056, %v1052
  %v1337 = vpack.c.b16 %v1061, %v1057
  %v1338 = vpack.c.b16 %v1062, %v1058
  %v1339 = vpack.c.b16 %v1063, %v1059
  %v1340 = vpack.c.b16 %v1064, %v1060
  %v1341 = vpack.c.b16 %v1069, %v1065
  %v1342 = vpack.c.b16 %v1070, %v1066
  %v1343 = vpack.c.b16 %v1071, %v1067
  %v1344 = vpack.c.b16 %v1072, %v1068
  %v1345 = vpack.c.b16 %v1077, %v1073
  %v1346 = vpack.c.b16 %v1078, %v1074
  %v1347 = vpack.c.b16 %v1079, %v1075
  %v1348 = vpack.c.b16 %v1080, %v1076
  %v1349 = vpack.c.b16 %v1085, %v1081
  %v1350 = vpack.c.b16 %v1086, %v1082
  %v1351 = vpack.c.b16 %v1087, %v1083
  %v1352 = vpack.c.b16 %v1088, %v1084
  %v1353 = vpack.c.b16 %v1093, %v1089
  %v1354 = vpack.c.b16 %v1094, %v1090
  %v1355 = vpack.c.b16 %v1095, %v1091
  %v1356 = vpack.c.b16 %v1096, %v1092
  %v1357 = vpack.c.b16 %v1101, %v1097
  %v1358 = vpack.c.b16 %v1102, %v1098
  %v1359 = vpack.c.b16 %v1103, %v1099
  %v1360 = vpack.c.b16 %v1104, %v1100
  %1617 = vmatprep.subr.bf16.mxu0 %v1106
  %1618 = vmatpush1.bf16.msra.mxu0 %v1105
  %1619 = vmatprep.subr.bf16.mxu0 %v1110
  %1620 = vmatpush1.bf16.msra.mxu0 %v1109
  %1621 = vmatprep.subr.bf16.mxu0 %v1114
  %1622 = vmatpush1.bf16.msra.mxu0 %v1113
  %1623 = vmatprep.subr.bf16.mxu0 %v1118
  %1624 = vmatpush1.bf16.msra.mxu0 %v1117
  %1625 = vmatprep.subr.bf16.mxu0 %v1122
  %1626 = vmatpush1.bf16.msra.mxu0 %v1121
  %1627 = vmatprep.subr.bf16.mxu0 %v1126
  %1628 = vmatpush1.bf16.msra.mxu0 %v1125
  %1629 = vmatprep.subr.bf16.mxu0 %v1130
  %1630 = vmatpush1.bf16.msra.mxu0 %v1129
  %1631 = vmatprep.subr.bf16.mxu0 %v1134
  %1632 = vmatpush1.bf16.msra.mxu0 %v1133
  %1633 = vmatprep.subr.bf16.mxu0 %v1138
  %1634 = vmatpush1.bf16.msra.mxu0 %v1137
  %1635 = vmatprep.subr.bf16.mxu0 %v1142
  %1636 = vmatpush1.bf16.msra.mxu0 %v1141
  %1637 = vmatprep.subr.bf16.mxu0 %v1146
  %1638 = vmatpush1.bf16.msra.mxu0 %v1145
  %1639 = vmatprep.subr.bf16.mxu0 %v1150
  %1640 = vmatpush1.bf16.msra.mxu0 %v1149
  %1641 = vmatprep.subr.bf16.mxu0 %v1154
  %1642 = vmatpush1.bf16.msra.mxu0 %v1153
  %1643 = vmatprep.subr.bf16.mxu0 %v1158
  %1644 = vmatpush1.bf16.msra.mxu0 %v1157
  %1645 = vmatprep.subr.bf16.mxu0 %v1162
  %1646 = vmatpush1.bf16.msra.mxu0 %v1161
  %1647 = vmatprep.subr.bf16.mxu0 %v1166
  %1648 = vmatpush1.bf16.msra.mxu0 %v1165
  %1649 = vmatprep.mubr.bf16.mxu0 %v322
  %1650 = vmatmul.mubr.bf16.gmra.mrb[0].mxu0 %v321
  %v1651 = vpop.f32.mrb[0].mxu0
  %v1652 = vadd.f32 %v292, %v1651
  %v1653 = vpop.f32.mrb[0].mxu0
  %v1654 = vadd.f32 %v296, %v1653
  %v1655 = vpop.f32.mrb[0].mxu0
  %v1656 = vpop.f32.mrb[0].mxu0
  %1657 = vdwg.mxu0
  %1658 = vmatprep.subr.bf16.mxu0 %v1170
  %1659 = vmatpush1.bf16.msra.mxu0 %v1169
  %1660 = vmatprep.subr.bf16.mxu0 %v1174
  %1661 = vmatpush1.bf16.msra.mxu0 %v1173
  %1662 = vmatprep.subr.bf16.mxu0 %v1178
  %1663 = vmatpush1.bf16.msra.mxu0 %v1177
  %1664 = vmatprep.subr.bf16.mxu0 %v1182
  %1665 = vmatpush1.bf16.msra.mxu0 %v1181
  %1666 = vmatprep.subr.bf16.mxu0 %v1186
  %1667 = vmatpush1.bf16.msra.mxu0 %v1185
  %1668 = vmatprep.subr.bf16.mxu0 %v1190
  %1669 = vmatpush1.bf16.msra.mxu0 %v1189
  %1670 = vmatprep.subr.bf16.mxu0 %v1194
  %1671 = vmatpush1.bf16.msra.mxu0 %v1193
  %1672 = vmatprep.subr.bf16.mxu0 %v1198
  %1673 = vmatpush1.bf16.msra.mxu0 %v1197
  %1674 = vmatprep.subr.bf16.mxu0 %v1202
  %1675 = vmatpush1.bf16.msra.mxu0 %v1201
  %1676 = vmatprep.subr.bf16.mxu0 %v1206
  %1677 = vmatpush1.bf16.msra.mxu0 %v1205
  %1678 = vmatprep.subr.bf16.mxu0 %v1210
  %1679 = vmatpush1.bf16.msra.mxu0 %v1209
  %1680 = vmatprep.subr.bf16.mxu0 %v1214
  %1681 = vmatpush1.bf16.msra.mxu0 %v1213
  %1682 = vmatprep.subr.bf16.mxu0 %v1218
  %1683 = vmatpush1.bf16.msra.mxu0 %v1217
  %1684 = vmatprep.subr.bf16.mxu0 %v1222
  %1685 = vmatpush1.bf16.msra.mxu0 %v1221
  %1686 = vmatprep.subr.bf16.mxu0 %v1226
  %1687 = vmatpush1.bf16.msra.mxu0 %v1225
  %1688 = vmatprep.subr.bf16.mxu0 %v1230
  %1689 = vmatpush1.bf16.msra.mxu0 %v1229
  %1690 = vmatprep.mubr.bf16.mxu0 %v324
  %1691 = vmatmul.mubr.bf16.gmra.mrb[0].mxu0 %v323
  %v1692 = vpop.f32.mrb[0].mxu0
  %v1693 = vadd.f32 %v1652, %v1692
  %v1694 = vpop.f32.mrb[0].mxu0
  %v1695 = vadd.f32 %v1654, %v1694
  %v1696 = vpop.f32.mrb[0].mxu0
  %v1697 = vpop.f32.mrb[0].mxu0
  %1698 = vdwg.mxu0
  %1699 = vmatprep.subr.bf16.mxu0 %v1234
  %1700 = vmatpush1.bf16.msra.mxu0 %v1233
  %1701 = vmatprep.subr.bf16.mxu0 %v1238
  %1702 = vmatpush1.bf16.msra.mxu0 %v1237
  %1703 = vmatprep.subr.bf16.mxu0 %v1242
  %1704 = vmatpush1.bf16.msra.mxu0 %v1241
  %1705 = vmatprep.subr.bf16.mxu0 %v1246
  %1706 = vmatpush1.bf16.msra.mxu0 %v1245
  %1707 = vmatprep.subr.bf16.mxu0 %v1250
  %1708 = vmatpush1.bf16.msra.mxu0 %v1249
  %1709 = vmatprep.subr.bf16.mxu0 %v1254
  %1710 = vmatpush1.bf16.msra.mxu0 %v1253
  %1711 = vmatprep.subr.bf16.mxu0 %v1258
  %1712 = vmatpush1.bf16.msra.mxu0 %v1257
  %1713 = vmatprep.subr.bf16.mxu0 %v1262
  %1714 = vmatpush1.bf16.msra.mxu0 %v1261
  %1715 = vmatprep.subr.bf16.mxu0 %v1266
  %1716 = vmatpush1.bf16.msra.mxu0 %v1265
  %1717 = vmatprep.subr.bf16.mxu0 %v1270
  %1718 = vmatpush1.bf16.msra.mxu0 %v1269
  %1719 = vmatprep.subr.bf16.mxu0 %v1274
  %1720 = vmatpush1.bf16.msra.mxu0 %v1273
  %1721 = vmatprep.subr.bf16.mxu0 %v1278
  %1722 = vmatpush1.bf16.msra.mxu0 %v1277
  %1723 = vmatprep.subr.bf16.mxu0 %v1282
  %1724 = vmatpush1.bf16.msra.mxu0 %v1281
  %1725 = vmatprep.subr.bf16.mxu0 %v1286
  %1726 = vmatpush1.bf16.msra.mxu0 %v1285
  %1727 = vmatprep.subr.bf16.mxu0 %v1290
  %1728 = vmatpush1.bf16.msra.mxu0 %v1289
  %1729 = vmatprep.subr.bf16.mxu0 %v1294
  %1730 = vmatpush1.bf16.msra.mxu0 %v1293
  %1731 = vmatprep.mubr.bf16.mxu0 %v326
  %1732 = vmatmul.mubr.bf16.gmra.mrb[0].mxu0 %v325
  %v1733 = vpop.f32.mrb[0].mxu0
  %v1734 = vadd.f32 %v1693, %v1733
  %v1735 = vpop.f32.mrb[0].mxu0
  %v1736 = vadd.f32 %v1695, %v1735
  %v1737 = vpop.f32.mrb[0].mxu0
  %v1738 = vpop.f32.mrb[0].mxu0
  %1739 = vdwg.mxu0
  %1740 = vmatprep.subr.bf16.mxu0 %v1298
  %1741 = vmatpush1.bf16.msra.mxu0 %v1297
  %1742 = vmatprep.subr.bf16.mxu0 %v1302
  %1743 = vmatpush1.bf16.msra.mxu0 %v1301
  %1744 = vmatprep.subr.bf16.mxu0 %v1306
  %1745 = vmatpush1.bf16.msra.mxu0 %v1305
  %1746 = vmatprep.subr.bf16.mxu0 %v1310
  %1747 = vmatpush1.bf16.msra.mxu0 %v1309
  %1748 = vmatprep.subr.bf16.mxu0 %v1314
  %1749 = vmatpush1.bf16.msra.mxu0 %v1313
  %1750 = vmatprep.subr.bf16.mxu0 %v1318
  %1751 = vmatpush1.bf16.msra.mxu0 %v1317
  %1752 = vmatprep.subr.bf16.mxu0 %v1322
  %1753 = vmatpush1.bf16.msra.mxu0 %v1321
  %1754 = vmatprep.subr.bf16.mxu0 %v1326
  %1755 = vmatpush1.bf16.msra.mxu0 %v1325
  %1756 = vmatprep.subr.bf16.mxu0 %v1330
  %1757 = vmatpush1.bf16.msra.mxu0 %v1329
  %1758 = vmatprep.subr.bf16.mxu0 %v1334
  %1759 = vmatpush1.bf16.msra.mxu0 %v1333
  %1760 = vmatprep.subr.bf16.mxu0 %v1338
  %1761 = vmatpush1.bf16.msra.mxu0 %v1337
  %1762 = vmatprep.subr.bf16.mxu0 %v1342
  %1763 = vmatpush1.bf16.msra.mxu0 %v1341
  %1764 = vmatprep.subr.bf16.mxu0 %v1346
  %1765 = vmatpush1.bf16.msra.mxu0 %v1345
  %1766 = vmatprep.subr.bf16.mxu0 %v1350
  %1767 = vmatpush1.bf16.msra.mxu0 %v1349
  %1768 = vmatprep.subr.bf16.mxu0 %v1354
  %1769 = vmatpush1.bf16.msra.mxu0 %v1353
  %1770 = vmatprep.subr.bf16.mxu0 %v1358
  %1771 = vmatpush1.bf16.msra.mxu0 %v1357
  %1772 = vmatprep.mubr.bf16.mxu0 %v328
  %1773 = vmatmul.mubr.bf16.gmra.mrb[0].mxu0 %v327
  %v1774 = vpop.f32.mrb[0].mxu0
  %v1775 = vadd.f32 %v1734, %v1774
  %v1776 = vpop.f32.mrb[0].mxu0
  %v1777 = vadd.f32 %v1736, %v1776
  %v1778 = vpop.f32.mrb[0].mxu0
  %v1779 = vpop.f32.mrb[0].mxu0
  %1780 = vdwg.mxu0
  %1781 = vmatprep.subr.bf16.mxu0 %v1108
  %1782 = vmatpush1.bf16.msra.mxu0 %v1107
  %1783 = vmatprep.subr.bf16.mxu0 %v1112
  %1784 = vmatpush1.bf16.msra.mxu0 %v1111
  %1785 = vmatprep.subr.bf16.mxu0 %v1116
  %1786 = vmatpush1.bf16.msra.mxu0 %v1115
  %1787 = vmatprep.subr.bf16.mxu0 %v1120
  %1788 = vmatpush1.bf16.msra.mxu0 %v1119
  %1789 = vmatprep.subr.bf16.mxu0 %v1124
  %1790 = vmatpush1.bf16.msra.mxu0 %v1123
  %1791 = vmatprep.subr.bf16.mxu0 %v1128
  %1792 = vmatpush1.bf16.msra.mxu0 %v1127
  %1793 = vmatprep.subr.bf16.mxu0 %v1132
  %1794 = vmatpush1.bf16.msra.mxu0 %v1131
  %1795 = vmatprep.subr.bf16.mxu0 %v1136
  %1796 = vmatpush1.bf16.msra.mxu0 %v1135
  %1797 = vmatprep.subr.bf16.mxu0 %v1140
  %1798 = vmatpush1.bf16.msra.mxu0 %v1139
  %1799 = vmatprep.subr.bf16.mxu0 %v1144
  %1800 = vmatpush1.bf16.msra.mxu0 %v1143
  %1801 = vmatprep.subr.bf16.mxu0 %v1148
  %1802 = vmatpush1.bf16.msra.mxu0 %v1147
  %1803 = vmatprep.subr.bf16.mxu0 %v1152
  %1804 = vmatpush1.bf16.msra.mxu0 %v1151
  %1805 = vmatprep.subr.bf16.mxu0 %v1156
  %1806 = vmatpush1.bf16.msra.mxu0 %v1155
  %1807 = vmatprep.subr.bf16.mxu0 %v1160
  %1808 = vmatpush1.bf16.msra.mxu0 %v1159
  %1809 = vmatprep.subr.bf16.mxu0 %v1164
  %1810 = vmatpush1.bf16.msra.mxu0 %v1163
  %1811 = vmatprep.subr.bf16.mxu0 %v1168
  %1812 = vmatpush1.bf16.msra.mxu0 %v1167
  %1813 = vmatprep.mubr.bf16.mxu0 %v322
  %1814 = vmatmul.mubr.bf16.gmra.mrb[0].mxu0 %v321
  %v1815 = vpop.f32.mrb[0].mxu0
  %v1816 = vadd.f32 %v300, %v1815
  %v1817 = vpop.f32.mrb[0].mxu0
  %v1818 = vadd.f32 %v304, %v1817
  %v1819 = vpop.f32.mrb[0].mxu0
  %v1820 = vpop.f32.mrb[0].mxu0
  %1821 = vdwg.mxu0
  %1822 = vmatprep.subr.bf16.mxu0 %v1172
  %1823 = vmatpush1.bf16.msra.mxu0 %v1171
  %1824 = vmatprep.subr.bf16.mxu0 %v1176
  %1825 = vmatpush1.bf16.msra.mxu0 %v1175
  %1826 = vmatprep.subr.bf16.mxu0 %v1180
  %1827 = vmatpush1.bf16.msra.mxu0 %v1179
  %1828 = vmatprep.subr.bf16.mxu0 %v1184
  %1829 = vmatpush1.bf16.msra.mxu0 %v1183
  %1830 = vmatprep.subr.bf16.mxu0 %v1188
  %1831 = vmatpush1.bf16.msra.mxu0 %v1187
  %1832 = vmatprep.subr.bf16.mxu0 %v1192
  %1833 = vmatpush1.bf16.msra.mxu0 %v1191
  %1834 = vmatprep.subr.bf16.mxu0 %v1196
  %1835 = vmatpush1.bf16.msra.mxu0 %v1195
  %1836 = vmatprep.subr.bf16.mxu0 %v1200
  %1837 = vmatpush1.bf16.msra.mxu0 %v1199
  %1838 = vmatprep.subr.bf16.mxu0 %v1204
  %1839 = vmatpush1.bf16.msra.mxu0 %v1203
  %1840 = vmatprep.subr.bf16.mxu0 %v1208
  %1841 = vmatpush1.bf16.msra.mxu0 %v1207
  %1842 = vmatprep.subr.bf16.mxu0 %v1212
  %1843 = vmatpush1.bf16.msra.mxu0 %v1211
  %1844 = vmatprep.subr.bf16.mxu0 %v1216
  %1845 = vmatpush1.bf16.msra.mxu0 %v1215
  %1846 = vmatprep.subr.bf16.mxu0 %v1220
  %1847 = vmatpush1.bf16.msra.mxu0 %v1219
  %1848 = vmatprep.subr.bf16.mxu0 %v1224
  %1849 = vmatpush1.bf16.msra.mxu0 %v1223
  %1850 = vmatprep.subr.bf16.mxu0 %v1228
  %1851 = vmatpush1.bf16.msra.mxu0 %v1227
  %1852 = vmatprep.subr.bf16.mxu0 %v1232
  %1853 = vmatpush1.bf16.msra.mxu0 %v1231
  %1854 = vmatprep.mubr.bf16.mxu0 %v324
  %1855 = vmatmul.mubr.bf16.gmra.mrb[0].mxu0 %v323
  %v1856 = vpop.f32.mrb[0].mxu0
  %v1857 = vadd.f32 %v1816, %v1856
  %v1858 = vpop.f32.mrb[0].mxu0
  %v1859 = vadd.f32 %v1818, %v1858
  %v1860 = vpop.f32.mrb[0].mxu0
  %v1861 = vpop.f32.mrb[0].mxu0
  %1862 = vdwg.mxu0
  %1863 = vmatprep.subr.bf16.mxu0 %v1236
  %1864 = vmatpush1.bf16.msra.mxu0 %v1235
  %1865 = vmatprep.subr.bf16.mxu0 %v1240
  %1866 = vmatpush1.bf16.msra.mxu0 %v1239
  %1867 = vmatprep.subr.bf16.mxu0 %v1244
  %1868 = vmatpush1.bf16.msra.mxu0 %v1243
  %1869 = vmatprep.subr.bf16.mxu0 %v1248
  %1870 = vmatpush1.bf16.msra.mxu0 %v1247
  %1871 = vmatprep.subr.bf16.mxu0 %v1252
  %1872 = vmatpush1.bf16.msra.mxu0 %v1251
  %1873 = vmatprep.subr.bf16.mxu0 %v1256
  %1874 = vmatpush1.bf16.msra.mxu0 %v1255
  %1875 = vmatprep.subr.bf16.mxu0 %v1260
  %1876 = vmatpush1.bf16.msra.mxu0 %v1259
  %1877 = vmatprep.subr.bf16.mxu0 %v1264
  %1878 = vmatpush1.bf16.msra.mxu0 %v1263
  %1879 = vmatprep.subr.bf16.mxu0 %v1268
  %1880 = vmatpush1.bf16.msra.mxu0 %v1267
  %1881 = vmatprep.subr.bf16.mxu0 %v1272
  %1882 = vmatpush1.bf16.msra.mxu0 %v1271
  %1883 = vmatprep.subr.bf16.mxu0 %v1276
  %1884 = vmatpush1.bf16.msra.mxu0 %v1275
  %1885 = vmatprep.subr.bf16.mxu0 %v1280
  %1886 = vmatpush1.bf16.msra.mxu0 %v1279
  %1887 = vmatprep.subr.bf16.mxu0 %v1284
  %1888 = vmatpush1.bf16.msra.mxu0 %v1283
  %1889 = vmatprep.subr.bf16.mxu0 %v1288
  %1890 = vmatpush1.bf16.msra.mxu0 %v1287
  %1891 = vmatprep.subr.bf16.mxu0 %v1292
  %1892 = vmatpush1.bf16.msra.mxu0 %v1291
  %1893 = vmatprep.subr.bf16.mxu0 %v1296
  %1894 = vmatpush1.bf16.msra.mxu0 %v1295
  %1895 = vmatprep.mubr.bf16.mxu0 %v326
  %1896 = vmatmul.mubr.bf16.gmra.mrb[0].mxu0 %v325
  %v1897 = vpop.f32.mrb[0].mxu0
  %v1898 = vadd.f32 %v1857, %v1897
  %v1899 = vpop.f32.mrb[0].mxu0
  %v1900 = vadd.f32 %v1859, %v1899
  %v1901 = vpop.f32.mrb[0].mxu0
  %v1902 = vpop.f32.mrb[0].mxu0
  %1903 = vdwg.mxu0
  %1904 = vmatprep.subr.bf16.mxu0 %v1300
  %1905 = vmatpush1.bf16.msra.mxu0 %v1299
  %1906 = vmatprep.subr.bf16.mxu0 %v1304
  %1907 = vmatpush1.bf16.msra.mxu0 %v1303
  %1908 = vmatprep.subr.bf16.mxu0 %v1308
  %1909 = vmatpush1.bf16.msra.mxu0 %v1307
  %1910 = vmatprep.subr.bf16.mxu0 %v1312
  %1911 = vmatpush1.bf16.msra.mxu0 %v1311
  %1912 = vmatprep.subr.bf16.mxu0 %v1316
  %1913 = vmatpush1.bf16.msra.mxu0 %v1315
  %1914 = vmatprep.subr.bf16.mxu0 %v1320
  %1915 = vmatpush1.bf16.msra.mxu0 %v1319
  %1916 = vmatprep.subr.bf16.mxu0 %v1324
  %1917 = vmatpush1.bf16.msra.mxu0 %v1323
  %1918 = vmatprep.subr.bf16.mxu0 %v1328
  %1919 = vmatpush1.bf16.msra.mxu0 %v1327
  %1920 = vmatprep.subr.bf16.mxu0 %v1332
  %1921 = vmatpush1.bf16.msra.mxu0 %v1331
  %1922 = vmatprep.subr.bf16.mxu0 %v1336
  %1923 = vmatpush1.bf16.msra.mxu0 %v1335
  %1924 = vmatprep.subr.bf16.mxu0 %v1340
  %1925 = vmatpush1.bf16.msra.mxu0 %v1339
  %1926 = vmatprep.subr.bf16.mxu0 %v1344
  %1927 = vmatpush1.bf16.msra.mxu0 %v1343
  %1928 = vmatprep.subr.bf16.mxu0 %v1348
  %1929 = vmatpush1.bf16.msra.mxu0 %v1347
  %1930 = vmatprep.subr.bf16.mxu0 %v1352
  %1931 = vmatpush1.bf16.msra.mxu0 %v1351
  %1932 = vmatprep.subr.bf16.mxu0 %v1356
  %1933 = vmatpush1.bf16.msra.mxu0 %v1355
  %1934 = vmatprep.subr.bf16.mxu0 %v1360
  %1935 = vmatpush1.bf16.msra.mxu0 %v1359
  %1936 = vmatprep.mubr.bf16.mxu0 %v328
  %1937 = vmatmul.mubr.bf16.gmra.mrb[0].mxu0 %v327
  %v1938 = vpop.f32.mrb[0].mxu0
  %v1939 = vadd.f32 %v1898, %v1938
  %v1940 = vpop.f32.mrb[0].mxu0
  %v1941 = vadd.f32 %v1900, %v1940
  %v1942 = vpop.f32.mrb[0].mxu0
  %v1943 = vpop.f32.mrb[0].mxu0
  %1944 = vdwg.mxu0
  %v1945 = vmax.f32 %v1775, 0.0
  %v1946 = vmax.f32 %v1777, 0.0
  %v1947 = vmax.f32 %v1939, 0.0
  %v1948 = vmax.f32 %v1941, 0.0
  %v1949 = vpack.c.bf16 %v1945, %v1945
  %v1950 = vpack.c.bf16 %v1946, %v1946
  %v1951 = vpack.c.bf16 %v1947, %v1947
  %v1952 = vpack.c.bf16 %v1948, %v1948
  %v1953 = vld [vmem:[%s3] sm:$0xff]
  %v1954 = vld [vmem:[%s3 + $0x8] sm:$0xff]
  %v1955 = vld [vmem:[%s3 + $0x10] sm:$0xff]
  %v1956 = vld [vmem:[%s3 + $0x18] sm:$0xff]
  %v1957 = vld [vmem:[%s3 + $0x20] sm:$0xff]
  %v1958 = vld [vmem:[%s3 + $0x28] sm:$0xff]
  %v1959 = vld [vmem:[%s3 + $0x30] sm:$0xff]
  %v1960 = vld [vmem:[%s3 + $0x38] sm:$0xff]
  %v1961 = vld [vmem:[%s3 + $0x40] sm:$0xff]
  %v1962 = vld [vmem:[%s3 + $0x48] sm:$0xff]
  %v1963 = vld [vmem:[%s3 + $0x50] sm:$0xff]
  %v1964 = vld [vmem:[%s3 + $0x58] sm:$0xff]
  %v1965 = vld [vmem:[%s3 + $0x60] sm:$0xff]
  %v1966 = vld [vmem:[%s3 + $0x68] sm:$0xff]
  %v1967 = vld [vmem:[%s3 + $0x70] sm:$0xff]
  %v1968 = vld [vmem:[%s3 + $0x78] sm:$0xff]
  %v1969 = vld [vmem:[%s3 + $0x80] sm:$0xff]
  %v1970 = vld [vmem:[%s3 + $0x88] sm:$0xff]
  %v1971 = vld [vmem:[%s3 + $0x90] sm:$0xff]
  %v1972 = vld [vmem:[%s3 + $0x98] sm:$0xff]
  %v1973 = vld [vmem:[%s3 + $0xa0] sm:$0xff]
  %v1974 = vld [vmem:[%s3 + $0xa8] sm:$0xff]
  %v1975 = vld [vmem:[%s3 + $0xb0] sm:$0xff]
  %v1976 = vld [vmem:[%s3 + $0xb8] sm:$0xff]
  %v1977 = vld [vmem:[%s3 + $0xc0] sm:$0xff]
  %v1978 = vld [vmem:[%s3 + $0xc8] sm:$0xff]
  %v1979 = vld [vmem:[%s3 + $0xd0] sm:$0xff]
  %v1980 = vld [vmem:[%s3 + $0xd8] sm:$0xff]
  %v1981 = vld [vmem:[%s3 + $0xe0] sm:$0xff]
  %v1982 = vld [vmem:[%s3 + $0xe8] sm:$0xff]
  %v1983 = vld [vmem:[%s3 + $0xf0] sm:$0xff]
  %v1984 = vld [vmem:[%s3 + $0xf8] sm:$0xff]
  %v1985 = vld [vmem:[%s3 + $0x100] sm:$0xff]
  %v1986 = vld [vmem:[%s3 + $0x108] sm:$0xff]
  %v1987 = vld [vmem:[%s3 + $0x110] sm:$0xff]
  %v1988 = vld [vmem:[%s3 + $0x118] sm:$0xff]
  %v1989 = vld [vmem:[%s3 + $0x120] sm:$0xff]
  %v1990 = vld [vmem:[%s3 + $0x128] sm:$0xff]
  %v1991 = vld [vmem:[%s3 + $0x130] sm:$0xff]
  %v1992 = vld [vmem:[%s3 + $0x138] sm:$0xff]
  %v1993 = vld [vmem:[%s3 + $0x140] sm:$0xff]
  %v1994 = vld [vmem:[%s3 + $0x148] sm:$0xff]
  %v1995 = vld [vmem:[%s3 + $0x150] sm:$0xff]
  %v1996 = vld [vmem:[%s3 + $0x158] sm:$0xff]
  %v1997 = vld [vmem:[%s3 + $0x160] sm:$0xff]
  %v1998 = vld [vmem:[%s3 + $0x168] sm:$0xff]
  %v1999 = vld [vmem:[%s3 + $0x170] sm:$0xff]
  %v2000 = vld [vmem:[%s3 + $0x178] sm:$0xff]
  %v2001 = vld [vmem:[%s3 + $0x180] sm:$0xff]
  %v2002 = vld [vmem:[%s3 + $0x188] sm:$0xff]
  %v2003 = vld [vmem:[%s3 + $0x190] sm:$0xff]
  %v2004 = vld [vmem:[%s3 + $0x198] sm:$0xff]
  %v2005 = vld [vmem:[%s3 + $0x1a0] sm:$0xff]
  %v2006 = vld [vmem:[%s3 + $0x1a8] sm:$0xff]
  %v2007 = vld [vmem:[%s3 + $0x1b0] sm:$0xff]
  %v2008 = vld [vmem:[%s3 + $0x1b8] sm:$0xff]
  %v2009 = vld [vmem:[%s3 + $0x1c0] sm:$0xff]
  %v2010 = vld [vmem:[%s3 + $0x1c8] sm:$0xff]
  %v2011 = vld [vmem:[%s3 + $0x1d0] sm:$0xff]
  %v2012 = vld [vmem:[%s3 + $0x1d8] sm:$0xff]
  %v2013 = vld [vmem:[%s3 + $0x1e0] sm:$0xff]
  %v2014 = vld [vmem:[%s3 + $0x1e8] sm:$0xff]
  %v2015 = vld [vmem:[%s3 + $0x1f0] sm:$0xff]
  %v2016 = vld [vmem:[%s3 + $0x1f8] sm:$0xff]
  %v2017 = vld [vmem:[%s4] sm:$0x3]
  %v2019 = vlaneseq
  %v2020 = vshrl.u32 %v2019, 7
  %v2021 = vsub.s32 0, %v2020
  %v2022 = vrot.slane %v2017, %v2021
  %v2023 = vlaneseq
  %v2024 = vshrl.u32 %v2023, 7
  %v2025 = vsub.s32 1, %v2024
  %v2026 = vrot.slane %v2017, %v2025
  %v2093 = vunpack.c.l.b16 %v1953
  %v2094 = vunpack.c.h.b16 %v1953
  %v2095 = vunpack.c.l.b16 %v1954
  %v2096 = vunpack.c.h.b16 %v1954
  %v2097 = vunpack.c.l.b16 %v1955
  %v2098 = vunpack.c.h.b16 %v1955
  %v2099 = vunpack.c.l.b16 %v1956
  %v2100 = vunpack.c.h.b16 %v1956
  %v2101 = vunpack.c.l.b16 %v1957
  %v2102 = vunpack.c.h.b16 %v1957
  %v2103 = vunpack.c.l.b16 %v1958
  %v2104 = vunpack.c.h.b16 %v1958
  %v2105 = vunpack.c.l.b16 %v1959
  %v2106 = vunpack.c.h.b16 %v1959
  %v2107 = vunpack.c.l.b16 %v1960
  %v2108 = vunpack.c.h.b16 %v1960
  %v2109 = vunpack.c.l.b16 %v1961
  %v2110 = vunpack.c.h.b16 %v1961
  %v2111 = vunpack.c.l.b16 %v1962
  %v2112 = vunpack.c.h.b16 %v1962
  %v2113 = vunpack.c.l.b16 %v1963
  %v2114 = vunpack.c.h.b16 %v1963
  %v2115 = vunpack.c.l.b16 %v1964
  %v2116 = vunpack.c.h.b16 %v1964
  %v2117 = vunpack.c.l.b16 %v1965
  %v2118 = vunpack.c.h.b16 %v1965
  %v2119 = vunpack.c.l.b16 %v1966
  %v2120 = vunpack.c.h.b16 %v1966
  %v2121 = vunpack.c.l.b16 %v1967
  %v2122 = vunpack.c.h.b16 %v1967
  %v2123 = vunpack.c.l.b16 %v1968
  %v2124 = vunpack.c.h.b16 %v1968
  %v2125 = vunpack.c.l.b16 %v1969
  %v2126 = vunpack.c.h.b16 %v1969
  %v2127 = vunpack.c.l.b16 %v1970
  %v2128 = vunpack.c.h.b16 %v1970
  %v2129 = vunpack.c.l.b16 %v1971
  %v2130 = vunpack.c.h.b16 %v1971
  %v2131 = vunpack.c.l.b16 %v1972
  %v2132 = vunpack.c.h.b16 %v1972
  %v2133 = vunpack.c.l.b16 %v1973
  %v2134 = vunpack.c.h.b16 %v1973
  %v2135 = vunpack.c.l.b16 %v1974
  %v2136 = vunpack.c.h.b16 %v1974
  %v2137 = vunpack.c.l.b16 %v1975
  %v2138 = vunpack.c.h.b16 %v1975
  %v2139 = vunpack.c.l.b16 %v1976
  %v2140 = vunpack.c.h.b16 %v1976
  %v2141 = vunpack.c.l.b16 %v1977
  %v2142 = vunpack.c.h.b16 %v1977
  %v2143 = vunpack.c.l.b16 %v1978
  %v2144 = vunpack.c.h.b16 %v1978
  %v2145 = vunpack.c.l.b16 %v1979
  %v2146 = vunpack.c.h.b16 %v1979
  %v2147 = vunpack.c.l.b16 %v1980
  %v2148 = vunpack.c.h.b16 %v1980
  %v2149 = vunpack.c.l.b16 %v1981
  %v2150 = vunpack.c.h.b16 %v1981
  %v2151 = vunpack.c.l.b16 %v1982
  %v2152 = vunpack.c.h.b16 %v1982
  %v2153 = vunpack.c.l.b16 %v1983
  %v2154 = vunpack.c.h.b16 %v1983
  %v2155 = vunpack.c.l.b16 %v1984
  %v2156 = vunpack.c.h.b16 %v1984
  %v2157 = vunpack.c.l.b16 %v1985
  %v2158 = vunpack.c.h.b16 %v1985
  %v2159 = vunpack.c.l.b16 %v1986
  %v2160 = vunpack.c.h.b16 %v1986
  %v2161 = vunpack.c.l.b16 %v1987
  %v2162 = vunpack.c.h.b16 %v1987
  %v2163 = vunpack.c.l.b16 %v1988
  %v2164 = vunpack.c.h.b16 %v1988
  %v2165 = vunpack.c.l.b16 %v1989
  %v2166 = vunpack.c.h.b16 %v1989
  %v2167 = vunpack.c.l.b16 %v1990
  %v2168 = vunpack.c.h.b16 %v1990
  %v2169 = vunpack.c.l.b16 %v1991
  %v2170 = vunpack.c.h.b16 %v1991
  %v2171 = vunpack.c.l.b16 %v1992
  %v2172 = vunpack.c.h.b16 %v1992
  %v2173 = vunpack.c.l.b16 %v1993
  %v2174 = vunpack.c.h.b16 %v1993
  %v2175 = vunpack.c.l.b16 %v1994
  %v2176 = vunpack.c.h.b16 %v1994
  %v2177 = vunpack.c.l.b16 %v1995
  %v2178 = vunpack.c.h.b16 %v1995
  %v2179 = vunpack.c.l.b16 %v1996
  %v2180 = vunpack.c.h.b16 %v1996
  %v2181 = vunpack.c.l.b16 %v1997
  %v2182 = vunpack.c.h.b16 %v1997
  %v2183 = vunpack.c.l.b16 %v1998
  %v2184 = vunpack.c.h.b16 %v1998
  %v2185 = vunpack.c.l.b16 %v1999
  %v2186 = vunpack.c.h.b16 %v1999
  %v2187 = vunpack.c.l.b16 %v2000
  %v2188 = vunpack.c.h.b16 %v2000
  %v2189 = vunpack.c.l.b16 %v2001
  %v2190 = vunpack.c.h.b16 %v2001
  %v2191 = vunpack.c.l.b16 %v2002
  %v2192 = vunpack.c.h.b16 %v2002
  %v2193 = vunpack.c.l.b16 %v2003
  %v2194 = vunpack.c.h.b16 %v2003
  %v2195 = vunpack.c.l.b16 %v2004
  %v2196 = vunpack.c.h.b16 %v2004
  %v2197 = vunpack.c.l.b16 %v2005
  %v2198 = vunpack.c.h.b16 %v2005
  %v2199 = vunpack.c.l.b16 %v2006
  %v2200 = vunpack.c.h.b16 %v2006
  %v2201 = vunpack.c.l.b16 %v2007
  %v2202 = vunpack.c.h.b16 %v2007
  %v2203 = vunpack.c.l.b16 %v2008
  %v2204 = vunpack.c.h.b16 %v2008
  %v2205 = vunpack.c.l.b16 %v2009
  %v2206 = vunpack.c.h.b16 %v2009
  %v2207 = vunpack.c.l.b16 %v2010
  %v2208 = vunpack.c.h.b16 %v2010
  %v2209 = vunpack.c.l.b16 %v2011
  %v2210 = vunpack.c.h.b16 %v2011
  %v2211 = vunpack.c.l.b16 %v2012
  %v2212 = vunpack.c.h.b16 %v2012
  %v2213 = vunpack.c.l.b16 %v2013
  %v2214 = vunpack.c.h.b16 %v2013
  %v2215 = vunpack.c.l.b16 %v2014
  %v2216 = vunpack.c.h.b16 %v2014
  %v2217 = vunpack.c.l.b16 %v2015
  %v2218 = vunpack.c.h.b16 %v2015
  %v2219 = vunpack.c.l.b16 %v2016
  %v2220 = vunpack.c.h.b16 %v2016
  %v2221 = vpack.c.b16 %v2095, %v2093
  %v2222 = vpack.c.b16 %v2096, %v2094
  %v2223 = vpack.c.b16 %v2099, %v2097
  %v2224 = vpack.c.b16 %v2100, %v2098
  %v2225 = vpack.c.b16 %v2103, %v2101
  %v2226 = vpack.c.b16 %v2104, %v2102
  %v2227 = vpack.c.b16 %v2107, %v2105
  %v2228 = vpack.c.b16 %v2108, %v2106
  %v2229 = vpack.c.b16 %v2111, %v2109
  %v2230 = vpack.c.b16 %v2112, %v2110
  %v2231 = vpack.c.b16 %v2115, %v2113
  %v2232 = vpack.c.b16 %v2116, %v2114
  %v2233 = vpack.c.b16 %v2119, %v2117
  %v2234 = vpack.c.b16 %v2120, %v2118
  %v2235 = vpack.c.b16 %v2123, %v2121
  %v2236 = vpack.c.b16 %v2124, %v2122
  %v2237 = vpack.c.b16 %v2127, %v2125
  %v2238 = vpack.c.b16 %v2128, %v2126
  %v2239 = vpack.c.b16 %v2131, %v2129
  %v2240 = vpack.c.b16 %v2132, %v2130
  %v2241 = vpack.c.b16 %v2135, %v2133
  %v2242 = vpack.c.b16 %v2136, %v2134
  %v2243 = vpack.c.b16 %v2139, %v2137
  %v2244 = vpack.c.b16 %v2140, %v2138
  %v2245 = vpack.c.b16 %v2143, %v2141
  %v2246 = vpack.c.b16 %v2144, %v2142
  %v2247 = vpack.c.b16 %v2147, %v2145
  %v2248 = vpack.c.b16 %v2148, %v2146
  %v2249 = vpack.c.b16 %v2151, %v2149
  %v2250 = vpack.c.b16 %v2152, %v2150
  %v2251 = vpack.c.b16 %v2155, %v2153
  %v2252 = vpack.c.b16 %v2156, %v2154
  %v2253 = vpack.c.b16 %v2159, %v2157
  %v2254 = vpack.c.b16 %v2160, %v2158
  %v2255 = vpack.c.b16 %v2163, %v2161
  %v2256 = vpack.c.b16 %v2164, %v2162
  %v2257 = vpack.c.b16 %v2167, %v2165
  %v2258 = vpack.c.b16 %v2168, %v2166
  %v2259 = vpack.c.b16 %v2171, %v2169
  %v2260 = vpack.c.b16 %v2172, %v2170
  %v2261 = vpack.c.b16 %v2175, %v2173
  %v2262 = vpack.c.b16 %v2176, %v2174
  %v2263 = vpack.c.b16 %v2179, %v2177
  %v2264 = vpack.c.b16 %v2180, %v2178
  %v2265 = vpack.c.b16 %v2183, %v2181
  %v2266 = vpack.c.b16 %v2184, %v2182
  %v2267 = vpack.c.b16 %v2187, %v2185
  %v2268 = vpack.c.b16 %v2188, %v2186
  %v2269 = vpack.c.b16 %v2191, %v2189
  %v2270 = vpack.c.b16 %v2192, %v2190
  %v2271 = vpack.c.b16 %v2195, %v2193
  %v2272 = vpack.c.b16 %v2196, %v2194
  %v2273 = vpack.c.b16 %v2199, %v2197
  %v2274 = vpack.c.b16 %v2200, %v2198
  %v2275 = vpack.c.b16 %v2203, %v2201
  %v2276 = vpack.c.b16 %v2204, %v2202
  %v2277 = vpack.c.b16 %v2207, %v2205
  %v2278 = vpack.c.b16 %v2208, %v2206
  %v2279 = vpack.c.b16 %v2211, %v2209
  %v2280 = vpack.c.b16 %v2212, %v2210
  %v2281 = vpack.c.b16 %v2215, %v2213
  %v2282 = vpack.c.b16 %v2216, %v2214
  %v2283 = vpack.c.b16 %v2219, %v2217
  %v2284 = vpack.c.b16 %v2220, %v2218
  %2349 = vmatprep.subr.bf16.mxu0 %v2222
  %2350 = vmatpush1.bf16.msra.mxu0 %v2221
  %2351 = vmatprep.subr.bf16.mxu0 %v2224
  %2352 = vmatpush1.bf16.msra.mxu0 %v2223
  %2353 = vmatprep.subr.bf16.mxu0 %v2226
  %2354 = vmatpush1.bf16.msra.mxu0 %v2225
  %2355 = vmatprep.subr.bf16.mxu0 %v2228
  %2356 = vmatpush1.bf16.msra.mxu0 %v2227
  %2357 = vmatprep.subr.bf16.mxu0 %v2230
  %2358 = vmatpush1.bf16.msra.mxu0 %v2229
  %2359 = vmatprep.subr.bf16.mxu0 %v2232
  %2360 = vmatpush1.bf16.msra.mxu0 %v2231
  %2361 = vmatprep.subr.bf16.mxu0 %v2234
  %2362 = vmatpush1.bf16.msra.mxu0 %v2233
  %2363 = vmatprep.subr.bf16.mxu0 %v2236
  %2364 = vmatpush1.bf16.msra.mxu0 %v2235
  %2365 = vmatprep.subr.bf16.mxu0 %v2238
  %2366 = vmatpush1.bf16.msra.mxu0 %v2237
  %2367 = vmatprep.subr.bf16.mxu0 %v2240
  %2368 = vmatpush1.bf16.msra.mxu0 %v2239
  %2369 = vmatprep.subr.bf16.mxu0 %v2242
  %2370 = vmatpush1.bf16.msra.mxu0 %v2241
  %2371 = vmatprep.subr.bf16.mxu0 %v2244
  %2372 = vmatpush1.bf16.msra.mxu0 %v2243
  %2373 = vmatprep.subr.bf16.mxu0 %v2246
  %2374 = vmatpush1.bf16.msra.mxu0 %v2245
  %2375 = vmatprep.subr.bf16.mxu0 %v2248
  %2376 = vmatpush1.bf16.msra.mxu0 %v2247
  %2377 = vmatprep.subr.bf16.mxu0 %v2250
  %2378 = vmatpush1.bf16.msra.mxu0 %v2249
  %2379 = vmatprep.subr.bf16.mxu0 %v2252
  %2380 = vmatpush1.bf16.msra.mxu0 %v2251
  %2381 = vmatprep.mubr.bf16.mxu0 %v1950
  %2382 = vmatmul.mubr.bf16.gmra.mrb[0].mxu0 %v1949
  %v2383 = vpop.f32.mrb[0].mxu0
  %v2384 = vadd.f32 %v2022, %v2383
  %v2385 = vpop.f32.mrb[0].mxu0
  %v2386 = vadd.f32 %v2026, %v2385
  %v2387 = vpop.f32.mrb[0].mxu0
  %v2388 = vpop.f32.mrb[0].mxu0
  %2389 = vdwg.mxu0
  %2390 = vmatprep.subr.bf16.mxu0 %v2254
  %2391 = vmatpush1.bf16.msra.mxu0 %v2253
  %2392 = vmatprep.subr.bf16.mxu0 %v2256
  %2393 = vmatpush1.bf16.msra.mxu0 %v2255
  %2394 = vmatprep.subr.bf16.mxu0 %v2258
  %2395 = vmatpush1.bf16.msra.mxu0 %v2257
  %2396 = vmatprep.subr.bf16.mxu0 %v2260
  %2397 = vmatpush1.bf16.msra.mxu0 %v2259
  %2398 = vmatprep.subr.bf16.mxu0 %v2262
  %2399 = vmatpush1.bf16.msra.mxu0 %v2261
  %2400 = vmatprep.subr.bf16.mxu0 %v2264
  %2401 = vmatpush1.bf16.msra.mxu0 %v2263
  %2402 = vmatprep.subr.bf16.mxu0 %v2266
  %2403 = vmatpush1.bf16.msra.mxu0 %v2265
  %2404 = vmatprep.subr.bf16.mxu0 %v2268
  %2405 = vmatpush1.bf16.msra.mxu0 %v2267
  %2406 = vmatprep.subr.bf16.mxu0 %v2270
  %2407 = vmatpush1.bf16.msra.mxu0 %v2269
  %2408 = vmatprep.subr.bf16.mxu0 %v2272
  %2409 = vmatpush1.bf16.msra.mxu0 %v2271
  %2410 = vmatprep.subr.bf16.mxu0 %v2274
  %2411 = vmatpush1.bf16.msra.mxu0 %v2273
  %2412 = vmatprep.subr.bf16.mxu0 %v2276
  %2413 = vmatpush1.bf16.msra.mxu0 %v2275
  %2414 = vmatprep.subr.bf16.mxu0 %v2278
  %2415 = vmatpush1.bf16.msra.mxu0 %v2277
  %2416 = vmatprep.subr.bf16.mxu0 %v2280
  %2417 = vmatpush1.bf16.msra.mxu0 %v2279
  %2418 = vmatprep.subr.bf16.mxu0 %v2282
  %2419 = vmatpush1.bf16.msra.mxu0 %v2281
  %2420 = vmatprep.subr.bf16.mxu0 %v2284
  %2421 = vmatpush1.bf16.msra.mxu0 %v2283
  %2422 = vmatprep.mubr.bf16.mxu0 %v1952
  %2423 = vmatmul.mubr.bf16.gmra.mrb[0].mxu0 %v1951
  %v2424 = vpop.f32.mrb[0].mxu0
  %v2425 = vadd.f32 %v2384, %v2424
  %v2426 = vpop.f32.mrb[0].mxu0
  %v2427 = vadd.f32 %v2386, %v2426
  %v2428 = vpop.f32.mrb[0].mxu0
  %v2429 = vpop.f32.mrb[0].mxu0
  %2430 = vdwg.mxu0
  %v2431 = vmax.f32 %v2425, 0.0
  %v2432 = vmax.f32 %v2427, 0.0
  %v2433 = vpack.c.bf16 %v2431, %v2431
  %v2434 = vpack.c.bf16 %v2432, %v2432
  %v2435 = vld [vmem:[%s5] sm:$0xf]
  %v2436 = vld [vmem:[%s5 + $0x4] sm:$0xf]
  %v2437 = vld [vmem:[%s5 + $0x8] sm:$0xf]
  %v2438 = vld [vmem:[%s5 + $0xc] sm:$0xf]
  %v2439 = vld [vmem:[%s5 + $0x10] sm:$0xf]
  %v2440 = vld [vmem:[%s5 + $0x14] sm:$0xf]
  %v2441 = vld [vmem:[%s5 + $0x18] sm:$0xf]
  %v2442 = vld [vmem:[%s5 + $0x1c] sm:$0xf]
  %v2443 = vld [vmem:[%s5 + $0x20] sm:$0xf]
  %v2444 = vld [vmem:[%s5 + $0x24] sm:$0xf]
  %v2445 = vld [vmem:[%s5 + $0x28] sm:$0xf]
  %v2446 = vld [vmem:[%s5 + $0x2c] sm:$0xf]
  %v2447 = vld [vmem:[%s5 + $0x30] sm:$0xf]
  %v2448 = vld [vmem:[%s5 + $0x34] sm:$0xf]
  %v2449 = vld [vmem:[%s5 + $0x38] sm:$0xf]
  %v2450 = vld [vmem:[%s5 + $0x3c] sm:$0xf]
  %v2451 = vld [vmem:[%s5 + $0x40] sm:$0xf]
  %v2452 = vld [vmem:[%s5 + $0x44] sm:$0xf]
  %v2453 = vld [vmem:[%s5 + $0x48] sm:$0xf]
  %v2454 = vld [vmem:[%s5 + $0x4c] sm:$0xf]
  %v2455 = vld [vmem:[%s5 + $0x50] sm:$0xf]
  %v2456 = vld [vmem:[%s5 + $0x54] sm:$0xf]
  %v2457 = vld [vmem:[%s5 + $0x58] sm:$0xf]
  %v2458 = vld [vmem:[%s5 + $0x5c] sm:$0xf]
  %v2459 = vld [vmem:[%s5 + $0x60] sm:$0xf]
  %v2460 = vld [vmem:[%s5 + $0x64] sm:$0xf]
  %v2461 = vld [vmem:[%s5 + $0x68] sm:$0xf]
  %v2462 = vld [vmem:[%s5 + $0x6c] sm:$0xf]
  %v2463 = vld [vmem:[%s5 + $0x70] sm:$0xf]
  %v2464 = vld [vmem:[%s5 + $0x74] sm:$0xf]
  %v2465 = vld [vmem:[%s5 + $0x78] sm:$0xf]
  %v2466 = vld [vmem:[%s5 + $0x7c] sm:$0xf]
  %v2467 = vld [vmem:[%s6] sm:$0x1]
  %v2469 = vlaneseq
  %v2470 = vshrl.u32 %v2469, 7
  %v2471 = vsub.s32 0, %v2470
  %v2472 = vrot.slane %v2467, %v2471
  %v2506 = vunpack.c.l.b16 %v2435
  %v2507 = vunpack.c.l.b16 %v2436
  %v2508 = vunpack.c.l.b16 %v2437
  %v2509 = vunpack.c.l.b16 %v2438
  %v2510 = vunpack.c.l.b16 %v2439
  %v2511 = vunpack.c.l.b16 %v2440
  %v2512 = vunpack.c.l.b16 %v2441
  %v2513 = vunpack.c.l.b16 %v2442
  %v2514 = vunpack.c.l.b16 %v2443
  %v2515 = vunpack.c.l.b16 %v2444
  %v2516 = vunpack.c.l.b16 %v2445
  %v2517 = vunpack.c.l.b16 %v2446
  %v2518 = vunpack.c.l.b16 %v2447
  %v2519 = vunpack.c.l.b16 %v2448
  %v2520 = vunpack.c.l.b16 %v2449
  %v2521 = vunpack.c.l.b16 %v2450
  %v2522 = vunpack.c.l.b16 %v2451
  %v2523 = vunpack.c.l.b16 %v2452
  %v2524 = vunpack.c.l.b16 %v2453
  %v2525 = vunpack.c.l.b16 %v2454
  %v2526 = vunpack.c.l.b16 %v2455
  %v2527 = vunpack.c.l.b16 %v2456
  %v2528 = vunpack.c.l.b16 %v2457
  %v2529 = vunpack.c.l.b16 %v2458
  %v2530 = vunpack.c.l.b16 %v2459
  %v2531 = vunpack.c.l.b16 %v2460
  %v2532 = vunpack.c.l.b16 %v2461
  %v2533 = vunpack.c.l.b16 %v2462
  %v2534 = vunpack.c.l.b16 %v2463
  %v2535 = vunpack.c.l.b16 %v2464
  %v2536 = vunpack.c.l.b16 %v2465
  %v2537 = vunpack.c.l.b16 %v2466
  %v2538 = vpack.c.b16 %v2507, %v2506
  %v2539 = vpack.c.b16 %v2509, %v2508
  %v2540 = vpack.c.b16 %v2511, %v2510
  %v2541 = vpack.c.b16 %v2513, %v2512
  %v2542 = vpack.c.b16 %v2515, %v2514
  %v2543 = vpack.c.b16 %v2517, %v2516
  %v2544 = vpack.c.b16 %v2519, %v2518
  %v2545 = vpack.c.b16 %v2521, %v2520
  %v2546 = vpack.c.b16 %v2523, %v2522
  %v2547 = vpack.c.b16 %v2525, %v2524
  %v2548 = vpack.c.b16 %v2527, %v2526
  %v2549 = vpack.c.b16 %v2529, %v2528
  %v2550 = vpack.c.b16 %v2531, %v2530
  %v2551 = vpack.c.b16 %v2533, %v2532
  %v2552 = vpack.c.b16 %v2535, %v2534
  %v2553 = vpack.c.b16 %v2537, %v2536
  %2570 = vmatprep.subr.bf16.mxu0 0
  %2571 = vmatpush1.bf16.msra.mxu0 %v2538
  %2572 = vmatprep.subr.bf16.mxu0 0
  %2573 = vmatpush1.bf16.msra.mxu0 %v2539
  %2574 = vmatprep.subr.bf16.mxu0 0
  %2575 = vmatpush1.bf16.msra.mxu0 %v2540
  %2576 = vmatprep.subr.bf16.mxu0 0
  %2577 = vmatpush1.bf16.msra.mxu0 %v2541
  %2578 = vmatprep.subr.bf16.mxu0 0
  %2579 = vmatpush1.bf16.msra.mxu0 %v2542
  %2580 = vmatprep.subr.bf16.mxu0 0
  %2581 = vmatpush1.bf16.msra.mxu0 %v2543
  %2582 = vmatprep.subr.bf16.mxu0 0
  %2583 = vmatpush1.bf16.msra.mxu0 %v2544
  %2584 = vmatprep.subr.bf16.mxu0 0
  %2585 = vmatpush1.bf16.msra.mxu0 %v2545
  %2586 = vmatprep.subr.bf16.mxu0 0
  %2587 = vmatpush1.bf16.msra.mxu0 %v2546
  %2588 = vmatprep.subr.bf16.mxu0 0
  %2589 = vmatpush1.bf16.msra.mxu0 %v2547
  %2590 = vmatprep.subr.bf16.mxu0 0
  %2591 = vmatpush1.bf16.msra.mxu0 %v2548
  %2592 = vmatprep.subr.bf16.mxu0 0
  %2593 = vmatpush1.bf16.msra.mxu0 %v2549
  %2594 = vmatprep.subr.bf16.mxu0 0
  %2595 = vmatpush1.bf16.msra.mxu0 %v2550
  %2596 = vmatprep.subr.bf16.mxu0 0
  %2597 = vmatpush1.bf16.msra.mxu0 %v2551
  %2598 = vmatprep.subr.bf16.mxu0 0
  %2599 = vmatpush1.bf16.msra.mxu0 %v2552
  %2600 = vmatprep.subr.bf16.mxu0 0
  %2601 = vmatpush1.bf16.msra.mxu0 %v2553
  %2602 = vmatprep.mubr.bf16.mxu0 %v2434
  %2603 = vmatmul.mubr.bf16.gmra.mrb[0].mxu0 %v2433
  %v2604 = vpop.f32.mrb[0].mxu0
  %v2605 = vadd.f32 %v2472, %v2604
  %v2606 = vpop.f32.mrb[0].mxu0
  %v2607 = vpop.f32.mrb[0].mxu0
  %v2608 = vpop.f32.mrb[0].mxu0
  %2609 = vdwg.mxu0
  %2610 = vst [vmem:[%s7] sm:$0xff] %v2605
  // Predicated region
  $region30: #{tnet_forward.3} parent=0 // pred_check
    _
  $region31: #{tnet_forward.3} parent=0 // pred_check_branch
    %2612 = sbr.rel (0) target = $region33
  $region32: #{tnet_forward.3} parent=0 // pred_region
    _
  $region33: #{tnet_forward.3} parent=0 // pred_fallthru
    _
  // Predicated region
  $region34: #{tnet_forward.3} parent=0 // pred_check
    _
  $region35: #{tnet_forward.3} parent=0 // pred_check_branch
    %2614 = sbr.rel (0) target = $region37
  $region36: #{tnet_forward.3} parent=0 // pred_region
    _
  $region37: #{tnet_forward.3} parent=0 // pred_fallthru
    _

// kernel: tnet_forward.2
$region0: #{tnet_forward.2}
  #allocation0 [shape = 'u32[]', space=smem, size = 0x4, offset = 0x4, fixed_abs, tag = 'smem constant byte address 0x4 - core index']
  #allocation1 [shape = 'u32[144,128]{1,0:T(1,128)}', space=vmem, size = 0x12000, scoped, tag = 'internal scratch']
  %s0 = inlined_call_operand.vmem [shape: f32[2,1024,3], index: 0, kind: input, shape index: {}]
  %s1 = inlined_call_operand.vmem [shape: f32[3,64], index: 1, kind: input, shape index: {}]
  %s2 = inlined_call_operand.vmem [shape: f32[1,64], index: 2, kind: input, shape index: {}]
  %s3 = inlined_call_operand.vmem [shape: bf16[64,128], index: 3, kind: input, shape index: {}]
  %s4 = inlined_call_operand.vmem [shape: f32[1,128], index: 4, kind: input, shape index: {}]
  %s5 = inlined_call_operand.vmem [shape: bf16[128,1024], index: 5, kind: input, shape index: {}]
  %s6 = inlined_call_operand.vmem [shape: f32[1,1024], index: 6, kind: input, shape index: {}]
  %s7 = inlined_call_operand.vmem [shape: bf16[2,1,1024], index: 7, kind: output, shape index: {}]
  %s8 = sld [smem:[#allocation0]]
  $region61: #{tnet_forward.2} parent=0
    _
  %s10 = ssub.s32 1, %s8
  %s11 = scalar_select 0, %s10, %s8
  loop: start=0, step=1, limit=4
  $region2: #{tnet_forward.2} parent=0 // loop_pre_header
    _
  $region3: #{tnet_forward.2} parent=0 // loop_header
    %s13 = sphi 0, %s17
    %p14 = scmp.ge.s32.totalorder %s13, 4
    %s20 = sphi 0, %s32
    %s21 = sphi 0, %s28
    %s22 = sphi 0, %s20
    %s23 = sphi 0, %s21
    %s24 = sphi 0, %s22
    %s25 = sphi 0, %s23
    %s35 = sphi 0, %s37
    %s38 = sphi 0, %s35
    %s39 = sphi 0, %s38
    %s55 = sphi 0, %s39
    %s59 = sphi 0, %s59
    %s61 = sphi 0, %s59
    %s62 = sphi 0, %s61
    %s76 = sphi 0, %s62
    %s80 = sphi 0, %s80
    %s82 = sphi 0, %s80
    %s83 = sphi 0, %s82
    %s97 = sphi 0, %s83
    %s101 = sphi 0, %s101
    %s103 = sphi 0, %s101
    %s104 = sphi 0, %s103
    %s118 = sphi 0, %s104
    %s122 = sphi 0, %s122
    %s124 = sphi 0, %s122
    %s125 = sphi 0, %s124
    %s139 = sphi 0, %s125
    %s145 = sphi 0, %s147
    %s148 = sphi 0, %s145
    %s149 = sphi 0, %s148
    %s165 = sphi 0, %s149
    %s171 = sphi 0, %s173
    %s174 = sphi 0, %s171
    %s175 = sphi 0, %s174
    %s191 = sphi 0, %s175
    %s199 = sphi 0, %s201
    %s202 = sphi 0, %s199
    %s203 = sphi 0, %s202
    %s219 = sphi 0, %s203
  $region4: #{tnet_forward.2} parent=0 // loop_header_branch
    %16 = sbr.rel (%p14) target = $region8
  $region5: #{tnet_forward.2} parent=0 // loop_body
    %s18 = ssub.s32 %s13, 1
    %s19 = ssub.s32 %s13, 2
    %s26 = sadd.s32 1, %s21
    %p27 = scmp.ge.s32.totalorder %s26, 1
    %s28 = scalar_select %p27, 0, %s26
    %s29 = sadd.s32 1, %s20
    %s30 = scalar_select %p27, %s29, %s20
    %p31 = scmp.ge.s32.totalorder %s30, 2
    %s32 = scalar_select %p31, 0, %s30
    %s33 = ssub.s32 %s20, %s32
    %p34 = scmp.eq.s32.totalorder %s33, 0
    %s36 = sadd.s32 %s35, 1
    %s37 = scalar_select %p34, %s35, %s36
    %p40 = pneg %p34
    %p41 = scmp.eq.s32.totalorder %s13, 1
    %p42 = por %p40, %p41
    %p43 = scmp.ne.s32.totalorder %s35, %s38
    %p44 = scmp.eq.s32.totalorder %s13, 0
    %p45 = por %p43, %p44
    %p46 = scmp.ne.s32.totalorder %s35, %s38
    %p47 = scmp.eq.s32.totalorder %s18, 1
    %p48 = por %p46, %p47
    %p49 = scmp.ne.s32.totalorder %s38, %s39
    %p50 = scmp.eq.s32.totalorder %s18, 0
    %p51 = por %p49, %p50
    %p52 = scmp.ne.s32.totalorder %s38, %s39
    %p53 = scmp.eq.s32.totalorder %s19, 1
    %p54 = por %p52, %p53
    %p56 = scmp.ne.s32.totalorder %s39, %s55
    %p57 = scmp.eq.s32.totalorder %s19, 0
    %p58 = por %p56, %p57
    %s60 = sadd.s32 %s59, 1
    %p63 = scmp.eq.s32.totalorder %s13, 1
    %p64 = scmp.ne.s32.totalorder %s59, %s61
    %p65 = scmp.eq.s32.totalorder %s13, 0
    %p66 = por %p64, %p65
    %p67 = scmp.ne.s32.totalorder %s59, %s61
    %p68 = scmp.eq.s32.totalorder %s18, 1
    %p69 = por %p67, %p68
    %p70 = scmp.ne.s32.totalorder %s61, %s62
    %p71 = scmp.eq.s32.totalorder %s18, 0
    %p72 = por %p70, %p71
    %p73 = scmp.ne.s32.totalorder %s61, %s62
    %p74 = scmp.eq.s32.totalorder %s19, 1
    %p75 = por %p73, %p74
    %p77 = scmp.ne.s32.totalorder %s62, %s76
    %p78 = scmp.eq.s32.totalorder %s19, 0
    %p79 = por %p77, %p78
    %s81 = sadd.s32 %s80, 1
    %p84 = scmp.eq.s32.totalorder %s13, 1
    %p85 = scmp.ne.s32.totalorder %s80, %s82
    %p86 = scmp.eq.s32.totalorder %s13, 0
    %p87 = por %p85, %p86
    %p88 = scmp.ne.s32.totalorder %s80, %s82
    %p89 = scmp.eq.s32.totalorder %s18, 1
    %p90 = por %p88, %p89
    %p91 = scmp.ne.s32.totalorder %s82, %s83
    %p92 = scmp.eq.s32.totalorder %s18, 0
    %p93 = por %p91, %p92
    %p94 = scmp.ne.s32.totalorder %s82, %s83
    %p95 = scmp.eq.s32.totalorder %s19, 1
    %p96 = por %p94, %p95
    %p98 = scmp.ne.s32.totalorder %s83, %s97
    %p99 = scmp.eq.s32.totalorder %s19, 0
    %p100 = por %p98, %p99
    %s102 = sadd.s32 %s101, 1
    %p105 = scmp.eq.s32.totalorder %s13, 1
    %p106 = scmp.ne.s32.totalorder %s101, %s103
    %p107 = scmp.eq.s32.totalorder %s13, 0
    %p108 = por %p106, %p107
    %p109 = scmp.ne.s32.totalorder %s101, %s103
    %p110 = scmp.eq.s32.totalorder %s18, 1
    %p111 = por %p109, %p110
    %p112 = scmp.ne.s32.totalorder %s103, %s104
    %p113 = scmp.eq.s32.totalorder %s18, 0
    %p114 = por %p112, %p113
    %p115 = scmp.ne.s32.totalorder %s103, %s104
    %p116 = scmp.eq.s32.totalorder %s19, 1
    %p117 = por %p115, %p116
    %p119 = scmp.ne.s32.totalorder %s104, %s118
    %p120 = scmp.eq.s32.totalorder %s19, 0
    %p121 = por %p119, %p120
    %s123 = sadd.s32 %s122, 1
    %p126 = scmp.eq.s32.totalorder %s13, 1
    %p127 = scmp.ne.s32.totalorder %s122, %s124
    %p128 = scmp.eq.s32.totalorder %s13, 0
    %p129 = por %p127, %p128
    %p130 = scmp.ne.s32.totalorder %s122, %s124
    %p131 = scmp.eq.s32.totalorder %s18, 1
    %p132 = por %p130, %p131
    %p133 = scmp.ne.s32.totalorder %s124, %s125
    %p134 = scmp.eq.s32.totalorder %s18, 0
    %p135 = por %p133, %p134
    %p136 = scmp.ne.s32.totalorder %s124, %s125
    %p137 = scmp.eq.s32.totalorder %s19, 1
    %p138 = por %p136, %p137
    %p140 = scmp.ne.s32.totalorder %s125, %s139
    %p141 = scmp.eq.s32.totalorder %s19, 0
    %p142 = por %p140, %p141
    %s143 = ssub.s32 %s21, %s28
    %p144 = scmp.eq.s32.totalorder %s143, 0
    %s146 = sadd.s32 %s145, 1
    %s147 = scalar_select %p144, %s145, %s146
    %p150 = pneg %p144
    %p151 = scmp.eq.s32.totalorder %s13, 1
    %p152 = por %p150, %p151
    %p153 = scmp.ne.s32.totalorder %s145, %s148
    %p154 = scmp.eq.s32.totalorder %s13, 0
    %p155 = por %p153, %p154
    %p156 = scmp.ne.s32.totalorder %s145, %s148
    %p157 = scmp.eq.s32.totalorder %s18, 1
    %p158 = por %p156, %p157
    %p159 = scmp.ne.s32.totalorder %s148, %s149
    %p160 = scmp.eq.s32.totalorder %s18, 0
    %p161 = por %p159, %p160
    %p162 = scmp.ne.s32.totalorder %s148, %s149
    %p163 = scmp.eq.s32.totalorder %s19, 1
    %p164 = por %p162, %p163
    %p166 = scmp.ne.s32.totalorder %s149, %s165
    %p167 = scmp.eq.s32.totalorder %s19, 0
    %p168 = por %p166, %p167
    %s169 = ssub.s32 %s21, %s28
    %p170 = scmp.eq.s32.totalorder %s169, 0
    %s172 = sadd.s32 %s171, 1
    %s173 = scalar_select %p170, %s171, %s172
    %p176 = pneg %p170
    %p177 = scmp.eq.s32.totalorder %s13, 1
    %p178 = por %p176, %p177
    %p179 = scmp.ne.s32.totalorder %s171, %s174
    %p180 = scmp.eq.s32.totalorder %s13, 0
    %p181 = por %p179, %p180
    %p182 = scmp.ne.s32.totalorder %s171, %s174
    %p183 = scmp.eq.s32.totalorder %s18, 1
    %p184 = por %p182, %p183
    %p185 = scmp.ne.s32.totalorder %s174, %s175
    %p186 = scmp.eq.s32.totalorder %s18, 0
    %p187 = por %p185, %p186
    %p188 = scmp.ne.s32.totalorder %s174, %s175
    %p189 = scmp.eq.s32.totalorder %s19, 1
    %p190 = por %p188, %p189
    %p192 = scmp.ne.s32.totalorder %s175, %s191
    %p193 = scmp.eq.s32.totalorder %s19, 0
    %p194 = por %p192, %p193
    %s195 = ssub.s32 %s20, %s32
    %s196 = ssub.s32 %s21, %s28
    %s197 = sor.u32 %s195, %s196
    %p198 = scmp.eq.s32.totalorder %s197, 0
    %s200 = sadd.s32 %s199, 1
    %s201 = scalar_select %p198, %s199, %s200
    %p204 = pneg %p198
    %p205 = scmp.eq.s32.totalorder %s13, 1
    %p206 = por %p204, %p205
    %p207 = scmp.ne.s32.totalorder %s199, %s202
    %p208 = scmp.eq.s32.totalorder %s13, 0
    %p209 = por %p207, %p208
    %p210 = scmp.ne.s32.totalorder %s199, %s202
    %p211 = scmp.eq.s32.totalorder %s18, 1
    %p212 = por %p210, %p211
    %p213 = scmp.ne.s32.totalorder %s202, %s203
    %p214 = scmp.eq.s32.totalorder %s18, 0
    %p215 = por %p213, %p214
    %p216 = scmp.ne.s32.totalorder %s202, %s203
    %p217 = scmp.eq.s32.totalorder %s19, 1
    %p218 = por %p216, %p217
    %p220 = scmp.ne.s32.totalorder %s203, %s219
    %p221 = scmp.eq.s32.totalorder %s19, 0
    %p222 = por %p220, %p221
    %p223 = scmp.le.s32.totalorder 1, %s13
    %p224 = scmp.lt.s32.totalorder %s13, 3
    %p225 = pnand %p223, %p224
    %p226 = pneg %p225
    // Predicated region
    $region9: #{tnet_forward.2} parent=5 // pred_check
      _
    $region10: #{tnet_forward.2} parent=5 // pred_check_branch
      %228 = sbr.rel (%p225) target = $region12
    $region11: #{tnet_forward.2} parent=5 // pred_region
      %s229 = ssub.s32 %s13, 1
      // Predicated region
      $region13: #{tnet_forward.2} parent=11 // pred_check
        %p230 = pneg %p72
      $region14: #{tnet_forward.2} parent=11 // pred_check_branch
        %232 = sbr.rel (%p230) target = $region16
      $region15: #{tnet_forward.2} parent=11 // pred_region
        _
      $region16: #{tnet_forward.2} parent=11 // pred_fallthru
        _
      // Predicated region
      $region17: #{tnet_forward.2} parent=11 // pred_check
        %p233 = pneg %p93
      $region18: #{tnet_forward.2} parent=11 // pred_check_branch
        %235 = sbr.rel (%p233) target = $region20
      $region19: #{tnet_forward.2} parent=11 // pred_region
        _
      $region20: #{tnet_forward.2} parent=11 // pred_fallthru
        _
      // Predicated region
      $region21: #{tnet_forward.2} parent=11 // pred_check
        %p236 = pneg %p114
      $region22: #{tnet_forward.2} parent=11 // pred_check_branch
        %238 = sbr.rel (%p236) target = $region24
      $region23: #{tnet_forward.2} parent=11 // pred_region
        _
      $region24: #{tnet_forward.2} parent=11 // pred_fallthru
        _
      // Predicated region
      $region25: #{tnet_forward.2} parent=11 // pred_check
        %p239 = pneg %p135
      $region26: #{tnet_forward.2} parent=11 // pred_check_branch
        %241 = sbr.rel (%p239) target = $region28
      $region27: #{tnet_forward.2} parent=11 // pred_region
        _
      $region28: #{tnet_forward.2} parent=11 // pred_fallthru
        _
      // Predicated region
      $region29: #{tnet_forward.2} parent=11 // pred_check
        %p242 = pneg %p161
      $region30: #{tnet_forward.2} parent=11 // pred_check_branch
        %244 = sbr.rel (%p242) target = $region32
      $region31: #{tnet_forward.2} parent=11 // pred_region
        %s245 = smul.u32 8, %s23
        %p246 = scmp.lt.s32.totalorder %s245, 7
        %s247 = scalar_select %p246, %s245, 7
        %s248 = smul.addr %s247, 4
        %s249 = scalar_lea.vmem %s5, %s248
        %s250 = smul.u32 8, %s23
      $region32: #{tnet_forward.2} parent=11 // pred_fallthru
        _
      // Predicated region
      $region33: #{tnet_forward.2} parent=11 // pred_check
        %p251 = pneg %p187
      $region34: #{tnet_forward.2} parent=11 // pred_check_branch
        %253 = sbr.rel (%p251) target = $region36
      $region35: #{tnet_forward.2} parent=11 // pred_region
        %s254 = smul.u32 8, %s23
        %p255 = scmp.lt.s32.totalorder %s254, 7
        %s256 = scalar_select %p255, %s254, 7
        %s257 = scalar_lea.vmem %s6, %s256
        %s258 = smul.u32 8, %s23
      $region36: #{tnet_forward.2} parent=11 // pred_fallthru
        _
    $region12: #{tnet_forward.2} parent=5 // pred_fallthru
      _
    %p259 = scmp.lt.s32.totalorder %s13, 2
    // Predicated region
    $region37: #{tnet_forward.2} parent=5 // pred_check
      %p260 = pneg %p259
    $region38: #{tnet_forward.2} parent=5 // pred_check_branch
      %262 = sbr.rel (%p260) target = $region40
    $region39: #{tnet_forward.2} parent=5 // pred_region
      // Predicated region
      $region41: #{tnet_forward.2} parent=39 // pred_check
        %p263 = pneg %p45
      $region42: #{tnet_forward.2} parent=39 // pred_check_branch
        %265 = sbr.rel (%p263) target = $region44
      $region43: #{tnet_forward.2} parent=39 // pred_region
        %p266 = scmp.lt.s32.totalorder %s20, 1
        %s267 = scalar_select %p266, %s20, 1
        %s268 = smul.addr %s267, 128
        %s269 = smul.addr %s268, 8
        %s270 = scalar_lea.vmem %s0, %s269
      $region44: #{tnet_forward.2} parent=39 // pred_fallthru
        _
    $region40: #{tnet_forward.2} parent=5 // pred_fallthru
      _
    %p271 = scmp.le.s32.totalorder 1, %s13
    %p272 = scmp.lt.s32.totalorder %s13, 3
    %p273 = pnand %p271, %p272
    %p274 = pneg %p273
    // Predicated region
    $region45: #{tnet_forward.2} parent=5 // pred_check
      _
    $region46: #{tnet_forward.2} parent=5 // pred_check_branch
      %276 = sbr.rel (%p273) target = $region48
    $region47: #{tnet_forward.2} parent=5 // pred_region
      %s277 = ssub.s32 %s13, 1
      %p278 = scmp.lt.s32.totalorder %s22, 1
      %s279 = scalar_select %p278, %s22, 1
      %s280 = smul.addr %s279, 128
      %s281 = smul.addr %s280, 8
      %s282 = scalar_lea.vmem %s0, %s281
      %p283 = pneg %p51
      %p284 = pneg %p48
      %p285 = pneg %p72
      %p286 = pneg %p69
      %p287 = pneg %p93
      %p288 = pneg %p90
      %p289 = pneg %p114
      %p290 = pneg %p111
      %p291 = pneg %p135
      %p292 = pneg %p132
      %s293 = smul.u32 8, %s23
      %p294 = scmp.lt.s32.totalorder %s293, 7
      %s295 = scalar_select %p294, %s293, 7
      %s296 = smul.addr %s295, 4
      %s297 = scalar_lea.vmem %s5, %s296
      %p298 = pneg %p161
      %p299 = pneg %p158
      %s300 = smul.u32 8, %s23
      %p301 = scmp.lt.s32.totalorder %s300, 7
      %s302 = scalar_select %p301, %s300, 7
      %s303 = scalar_lea.vmem %s6, %s302
      %p304 = pneg %p187
      %p305 = pneg %p184
      %p306 = pneg %p215
      %p307 = pneg %p212
      %s308 = smul.u32 8, %s23
      %p309 = scmp.lt.s32.totalorder %s22, 1
      %s310 = scalar_select %p309, %s22, 1
      %p311 = scmp.lt.s32.totalorder %s308, 7
      %s312 = scalar_select %p311, %s308, 7
      %s313 = smul.addr %s310, 8
      %s314 = sadd.s32 %s312, %s313
      %s315 = scalar_lea.vmem %s7, %s314
      %p316 = scmp.lt.s32.totalorder %s22, 1
      %s317 = scalar_select %p316, %s22, 1
      %s318 = smul.addr %s317, 128
      %s319 = smul.addr %s318, 8
      %s320 = scalar_lea.vmem %s0, %s319
      %s321 = smul.u32 8, %s23
      %p322 = scmp.lt.s32.totalorder %s321, 7
      %s323 = scalar_select %p322, %s321, 7
      %s324 = smul.addr %s323, 4
      %s325 = scalar_lea.vmem %s5, %s324
      %s326 = smul.u32 8, %s23
      %s327 = smul.u32 8, %s23
      %p328 = scmp.lt.s32.totalorder %s327, 7
      %s329 = scalar_select %p328, %s327, 7
      %s330 = scalar_lea.vmem %s6, %s329
      %s331 = smul.u32 8, %s23
      %s332 = smul.u32 8, %s23
      %p333 = scmp.lt.s32.totalorder %s22, 1
      %s334 = scalar_select %p333, %s22, 1
      %p335 = scmp.lt.s32.totalorder %s332, 7
      %s336 = scalar_select %p335, %s332, 7
      %s337 = smul.addr %s334, 8
      %s338 = sadd.s32 %s336, %s337
      %s339 = scalar_lea.vmem %s7, %s338
      %s340 = smul.u32 8, %s23
      %v342 = vld [vmem:[%s320] sm:$0xff]
      %v343 = vld [vmem:[%s320 + $0x8] sm:$0xff]
      %v344 = vld [vmem:[%s320 + $0x10] sm:$0xff]
      %v345 = vld [vmem:[%s320 + $0x18] sm:$0xff]
      %v346 = vld [vmem:[%s320 + $0x20] sm:$0xff]
      %v347 = vld [vmem:[%s320 + $0x28] sm:$0xff]
      %v348 = vld [vmem:[%s320 + $0x30] sm:$0xff]
      %v349 = vld [vmem:[%s320 + $0x38] sm:$0xff]
      %v350 = vld [vmem:[%s320 + $0x40] sm:$0xff]
      %v351 = vld [vmem:[%s320 + $0x48] sm:$0xff]
      %v352 = vld [vmem:[%s320 + $0x50] sm:$0xff]
      %v353 = vld [vmem:[%s320 + $0x58] sm:$0xff]
      %v354 = vld [vmem:[%s320 + $0x60] sm:$0xff]
      %v355 = vld [vmem:[%s320 + $0x68] sm:$0xff]
      %v356 = vld [vmem:[%s320 + $0x70] sm:$0xff]
      %v357 = vld [vmem:[%s320 + $0x78] sm:$0xff]
      %v358 = vld [vmem:[%s320 + $0x80] sm:$0xff]
      %v359 = vld [vmem:[%s320 + $0x88] sm:$0xff]
      %v360 = vld [vmem:[%s320 + $0x90] sm:$0xff]
      %v361 = vld [vmem:[%s320 + $0x98] sm:$0xff]
      %v362 = vld [vmem:[%s320 + $0xa0] sm:$0xff]
      %v363 = vld [vmem:[%s320 + $0xa8] sm:$0xff]
      %v364 = vld [vmem:[%s320 + $0xb0] sm:$0xff]
      %v365 = vld [vmem:[%s320 + $0xb8] sm:$0xff]
      %v366 = vld [vmem:[%s320 + $0xc0] sm:$0xff]
      %v367 = vld [vmem:[%s320 + $0xc8] sm:$0xff]
      %v368 = vld [vmem:[%s320 + $0xd0] sm:$0xff]
      %v369 = vld [vmem:[%s320 + $0xd8] sm:$0xff]
      %v370 = vld [vmem:[%s320 + $0xe0] sm:$0xff]
      %v371 = vld [vmem:[%s320 + $0xe8] sm:$0xff]
      %v372 = vld [vmem:[%s320 + $0xf0] sm:$0xff]
      %v373 = vld [vmem:[%s320 + $0xf8] sm:$0xff]
      %v374 = vld [vmem:[%s320 + $0x100] sm:$0xff]
      %v375 = vld [vmem:[%s320 + $0x108] sm:$0xff]
      %v376 = vld [vmem:[%s320 + $0x110] sm:$0xff]
      %v377 = vld [vmem:[%s320 + $0x118] sm:$0xff]
      %v378 = vld [vmem:[%s320 + $0x120] sm:$0xff]
      %v379 = vld [vmem:[%s320 + $0x128] sm:$0xff]
      %v380 = vld [vmem:[%s320 + $0x130] sm:$0xff]
      %v381 = vld [vmem:[%s320 + $0x138] sm:$0xff]
      %v382 = vld [vmem:[%s320 + $0x140] sm:$0xff]
      %v383 = vld [vmem:[%s320 + $0x148] sm:$0xff]
      %v384 = vld [vmem:[%s320 + $0x150] sm:$0xff]
      %v385 = vld [vmem:[%s320 + $0x158] sm:$0xff]
      %v386 = vld [vmem:[%s320 + $0x160] sm:$0xff]
      %v387 = vld [vmem:[%s320 + $0x168] sm:$0xff]
      %v388 = vld [vmem:[%s320 + $0x170] sm:$0xff]
      %v389 = vld [vmem:[%s320 + $0x178] sm:$0xff]
      %v390 = vld [vmem:[%s320 + $0x180] sm:$0xff]
      %v391 = vld [vmem:[%s320 + $0x188] sm:$0xff]
      %v392 = vld [vmem:[%s320 + $0x190] sm:$0xff]
      %v393 = vld [vmem:[%s320 + $0x198] sm:$0xff]
      %v394 = vld [vmem:[%s320 + $0x1a0] sm:$0xff]
      %v395 = vld [vmem:[%s320 + $0x1a8] sm:$0xff]
      %v396 = vld [vmem:[%s320 + $0x1b0] sm:$0xff]
      %v397 = vld [vmem:[%s320 + $0x1b8] sm:$0xff]
      %v398 = vld [vmem:[%s320 + $0x1c0] sm:$0xff]
      %v399 = vld [vmem:[%s320 + $0x1c8] sm:$0xff]
      %v400 = vld [vmem:[%s320 + $0x1d0] sm:$0xff]
      %v401 = vld [vmem:[%s320 + $0x1d8] sm:$0xff]
      %v402 = vld [vmem:[%s320 + $0x1e0] sm:$0xff]
      %v403 = vld [vmem:[%s320 + $0x1e8] sm:$0xff]
      %v404 = vld [vmem:[%s320 + $0x1f0] sm:$0xff]
      %v405 = vld [vmem:[%s320 + $0x1f8] sm:$0xff]
      %v406 = vld [vmem:[%s320 + $0x200] sm:$0xff]
      %v407 = vld [vmem:[%s320 + $0x208] sm:$0xff]
      %v408 = vld [vmem:[%s320 + $0x210] sm:$0xff]
      %v409 = vld [vmem:[%s320 + $0x218] sm:$0xff]
      %v410 = vld [vmem:[%s320 + $0x220] sm:$0xff]
      %v411 = vld [vmem:[%s320 + $0x228] sm:$0xff]
      %v412 = vld [vmem:[%s320 + $0x230] sm:$0xff]
      %v413 = vld [vmem:[%s320 + $0x238] sm:$0xff]
      %v414 = vld [vmem:[%s320 + $0x240] sm:$0xff]
      %v415 = vld [vmem:[%s320 + $0x248] sm:$0xff]
      %v416 = vld [vmem:[%s320 + $0x250] sm:$0xff]
      %v417 = vld [vmem:[%s320 + $0x258] sm:$0xff]
      %v418 = vld [vmem:[%s320 + $0x260] sm:$0xff]
      %v419 = vld [vmem:[%s320 + $0x268] sm:$0xff]
      %v420 = vld [vmem:[%s320 + $0x270] sm:$0xff]
      %v421 = vld [vmem:[%s320 + $0x278] sm:$0xff]
      %v422 = vld [vmem:[%s320 + $0x280] sm:$0xff]
      %v423 = vld [vmem:[%s320 + $0x288] sm:$0xff]
      %v424 = vld [vmem:[%s320 + $0x290] sm:$0xff]
      %v425 = vld [vmem:[%s320 + $0x298] sm:$0xff]
      %v426 = vld [vmem:[%s320 + $0x2a0] sm:$0xff]
      %v427 = vld [vmem:[%s320 + $0x2a8] sm:$0xff]
      %v428 = vld [vmem:[%s320 + $0x2b0] sm:$0xff]
      %v429 = vld [vmem:[%s320 + $0x2b8] sm:$0xff]
      %v430 = vld [vmem:[%s320 + $0x2c0] sm:$0xff]
      %v431 = vld [vmem:[%s320 + $0x2c8] sm:$0xff]
      %v432 = vld [vmem:[%s320 + $0x2d0] sm:$0xff]
      %v433 = vld [vmem:[%s320 + $0x2d8] sm:$0xff]
      %v434 = vld [vmem:[%s320 + $0x2e0] sm:$0xff]
      %v435 = vld [vmem:[%s320 + $0x2e8] sm:$0xff]
      %v436 = vld [vmem:[%s320 + $0x2f0] sm:$0xff]
      %v437 = vld [vmem:[%s320 + $0x2f8] sm:$0xff]
      %v438 = vld [vmem:[%s320 + $0x300] sm:$0xff]
      %v439 = vld [vmem:[%s320 + $0x308] sm:$0xff]
      %v440 = vld [vmem:[%s320 + $0x310] sm:$0xff]
      %v441 = vld [vmem:[%s320 + $0x318] sm:$0xff]
      %v442 = vld [vmem:[%s320 + $0x320] sm:$0xff]
      %v443 = vld [vmem:[%s320 + $0x328] sm:$0xff]
      %v444 = vld [vmem:[%s320 + $0x330] sm:$0xff]
      %v445 = vld [vmem:[%s320 + $0x338] sm:$0xff]
      %v446 = vld [vmem:[%s320 + $0x340] sm:$0xff]
      %v447 = vld [vmem:[%s320 + $0x348] sm:$0xff]
      %v448 = vld [vmem:[%s320 + $0x350] sm:$0xff]
      %v449 = vld [vmem:[%s320 + $0x358] sm:$0xff]
      %v450 = vld [vmem:[%s320 + $0x360] sm:$0xff]
      %v451 = vld [vmem:[%s320 + $0x368] sm:$0xff]
      %v452 = vld [vmem:[%s320 + $0x370] sm:$0xff]
      %v453 = vld [vmem:[%s320 + $0x378] sm:$0xff]
      %v454 = vld [vmem:[%s320 + $0x380] sm:$0xff]
      %v455 = vld [vmem:[%s320 + $0x388] sm:$0xff]
      %v456 = vld [vmem:[%s320 + $0x390] sm:$0xff]
      %v457 = vld [vmem:[%s320 + $0x398] sm:$0xff]
      %v458 = vld [vmem:[%s320 + $0x3a0] sm:$0xff]
      %v459 = vld [vmem:[%s320 + $0x3a8] sm:$0xff]
      %v460 = vld [vmem:[%s320 + $0x3b0] sm:$0xff]
      %v461 = vld [vmem:[%s320 + $0x3b8] sm:$0xff]
      %v462 = vld [vmem:[%s320 + $0x3c0] sm:$0xff]
      %v463 = vld [vmem:[%s320 + $0x3c8] sm:$0xff]
      %v464 = vld [vmem:[%s320 + $0x3d0] sm:$0xff]
      %v465 = vld [vmem:[%s320 + $0x3d8] sm:$0xff]
      %v466 = vld [vmem:[%s320 + $0x3e0] sm:$0xff]
      %v467 = vld [vmem:[%s320 + $0x3e8] sm:$0xff]
      %v468 = vld [vmem:[%s320 + $0x3f0] sm:$0xff]
      %v469 = vld [vmem:[%s320 + $0x3f8] sm:$0xff]
      %v470 = vld [vmem:[%s1] sm:$0x7]
      %472 = vset.pattern.permute.xlu0 0
      %473 = vperm.xlu0 %472, %v342
      %v474 = vpop.permute.xlu0 %473
      %477 = vset.pattern.permute.xlu0 0
      %478 = vperm.xlu0 %477, %v343
      %v479 = vpop.permute.xlu0 %478
      %482 = vset.pattern.permute.xlu0 0
      %483 = vperm.xlu0 %482, %v344
      %v484 = vpop.permute.xlu0 %483
      %487 = vset.pattern.permute.xlu0 0
      %488 = vperm.xlu0 %487, %v345
      %v489 = vpop.permute.xlu0 %488
      %492 = vset.pattern.permute.xlu0 0
      %493 = vperm.xlu0 %492, %v346
      %v494 = vpop.permute.xlu0 %493
      %497 = vset.pattern.permute.xlu0 0
      %498 = vperm.xlu0 %497, %v347
      %v499 = vpop.permute.xlu0 %498
      %502 = vset.pattern.permute.xlu0 0
      %503 = vperm.xlu0 %502, %v348
      %v504 = vpop.permute.xlu0 %503
      %507 = vset.pattern.permute.xlu0 0
      %508 = vperm.xlu0 %507, %v349
      %v509 = vpop.permute.xlu0 %508
      %512 = vset.pattern.permute.xlu0 0
      %513 = vperm.xlu0 %512, %v350
      %v514 = vpop.permute.xlu0 %513
      %517 = vset.pattern.permute.xlu0 0
      %518 = vperm.xlu0 %517, %v351
      %v519 = vpop.permute.xlu0 %518
      %522 = vset.pattern.permute.xlu0 0
      %523 = vperm.xlu0 %522, %v352
      %v524 = vpop.permute.xlu0 %523
      %527 = vset.pattern.permute.xlu0 0
      %528 = vperm.xlu0 %527, %v353
      %v529 = vpop.permute.xlu0 %528
      %532 = vset.pattern.permute.xlu0 0
      %533 = vperm.xlu0 %532, %v354
      %v534 = vpop.permute.xlu0 %533
      %537 = vset.pattern.permute.xlu0 0
      %538 = vperm.xlu0 %537, %v355
      %v539 = vpop.permute.xlu0 %538
      %542 = vset.pattern.permute.xlu0 0
      %543 = vperm.xlu0 %542, %v356
      %v544 = vpop.permute.xlu0 %543
      %547 = vset.pattern.permute.xlu0 0
      %548 = vperm.xlu0 %547, %v357
      %v549 = vpop.permute.xlu0 %548
      %552 = vset.pattern.permute.xlu0 0
      %553 = vperm.xlu0 %552, %v358
      %v554 = vpop.permute.xlu0 %553
      %557 = vset.pattern.permute.xlu0 0
      %558 = vperm.xlu0 %557, %v359
      %v559 = vpop.permute.xlu0 %558
      %562 = vset.pattern.permute.xlu0 0
      %563 = vperm.xlu0 %562, %v360
      %v564 = vpop.permute.xlu0 %563
      %567 = vset.pattern.permute.xlu0 0
      %568 = vperm.xlu0 %567, %v361
      %v569 = vpop.permute.xlu0 %568
      %572 = vset.pattern.permute.xlu0 0
      %573 = vperm.xlu0 %572, %v362
      %v574 = vpop.permute.xlu0 %573
      %577 = vset.pattern.permute.xlu0 0
      %578 = vperm.xlu0 %577, %v363
      %v579 = vpop.permute.xlu0 %578
      %582 = vset.pattern.permute.xlu0 0
      %583 = vperm.xlu0 %582, %v364
      %v584 = vpop.permute.xlu0 %583
      %587 = vset.pattern.permute.xlu0 0
      %588 = vperm.xlu0 %587, %v365
      %v589 = vpop.permute.xlu0 %588
      %592 = vset.pattern.permute.xlu0 0
      %593 = vperm.xlu0 %592, %v366
      %v594 = vpop.permute.xlu0 %593
      %597 = vset.pattern.permute.xlu0 0
      %598 = vperm.xlu0 %597, %v367
      %v599 = vpop.permute.xlu0 %598
      %602 = vset.pattern.permute.xlu0 0
      %603 = vperm.xlu0 %602, %v368
      %v604 = vpop.permute.xlu0 %603
      %607 = vset.pattern.permute.xlu0 0
      %608 = vperm.xlu0 %607, %v369
      %v609 = vpop.permute.xlu0 %608
      %612 = vset.pattern.permute.xlu0 0
      %613 = vperm.xlu0 %612, %v370
      %v614 = vpop.permute.xlu0 %613
      %617 = vset.pattern.permute.xlu0 0
      %618 = vperm.xlu0 %617, %v371
      %v619 = vpop.permute.xlu0 %618
      %622 = vset.pattern.permute.xlu0 0
      %623 = vperm.xlu0 %622, %v372
      %v624 = vpop.permute.xlu0 %623
      %627 = vset.pattern.permute.xlu0 0
      %628 = vperm.xlu0 %627, %v373
      %v629 = vpop.permute.xlu0 %628
      %632 = vset.pattern.permute.xlu0 0
      %633 = vperm.xlu0 %632, %v374
      %v634 = vpop.permute.xlu0 %633
      %637 = vset.pattern.permute.xlu0 0
      %638 = vperm.xlu0 %637, %v375
      %v639 = vpop.permute.xlu0 %638
      %642 = vset.pattern.permute.xlu0 0
      %643 = vperm.xlu0 %642, %v376
      %v644 = vpop.permute.xlu0 %643
      %647 = vset.pattern.permute.xlu0 0
      %648 = vperm.xlu0 %647, %v377
      %v649 = vpop.permute.xlu0 %648
      %652 = vset.pattern.permute.xlu0 0
      %653 = vperm.xlu0 %652, %v378
      %v654 = vpop.permute.xlu0 %653
      %657 = vset.pattern.permute.xlu0 0
      %658 = vperm.xlu0 %657, %v379
      %v659 = vpop.permute.xlu0 %658
      %662 = vset.pattern.permute.xlu0 0
      %663 = vperm.xlu0 %662, %v380
      %v664 = vpop.permute.xlu0 %663
      %667 = vset.pattern.permute.xlu0 0
      %668 = vperm.xlu0 %667, %v381
      %v669 = vpop.permute.xlu0 %668
      %672 = vset.pattern.permute.xlu0 0
      %673 = vperm.xlu0 %672, %v382
      %v674 = vpop.permute.xlu0 %673
      %677 = vset.pattern.permute.xlu0 0
      %678 = vperm.xlu0 %677, %v383
      %v679 = vpop.permute.xlu0 %678
      %682 = vset.pattern.permute.xlu0 0
      %683 = vperm.xlu0 %682, %v384
      %v684 = vpop.permute.xlu0 %683
      %687 = vset.pattern.permute.xlu0 0
      %688 = vperm.xlu0 %687, %v385
      %v689 = vpop.permute.xlu0 %688
      %692 = vset.pattern.permute.xlu0 0
      %693 = vperm.xlu0 %692, %v386
      %v694 = vpop.permute.xlu0 %693
      %697 = vset.pattern.permute.xlu0 0
      %698 = vperm.xlu0 %697, %v387
      %v699 = vpop.permute.xlu0 %698
      %702 = vset.pattern.permute.xlu0 0
      %703 = vperm.xlu0 %702, %v388
      %v704 = vpop.permute.xlu0 %703
      %707 = vset.pattern.permute.xlu0 0
      %708 = vperm.xlu0 %707, %v389
      %v709 = vpop.permute.xlu0 %708
      %712 = vset.pattern.permute.xlu0 0
      %713 = vperm.xlu0 %712, %v390
      %v714 = vpop.permute.xlu0 %713
      %717 = vset.pattern.permute.xlu0 0
      %718 = vperm.xlu0 %717, %v391
      %v719 = vpop.permute.xlu0 %718
      %722 = vset.pattern.permute.xlu0 0
      %723 = vperm.xlu0 %722, %v392
      %v724 = vpop.permute.xlu0 %723
      %727 = vset.pattern.permute.xlu0 0
      %728 = vperm.xlu0 %727, %v393
      %v729 = vpop.permute.xlu0 %728
      %732 = vset.pattern.permute.xlu0 0
      %733 = vperm.xlu0 %732, %v394
      %v734 = vpop.permute.xlu0 %733
      %737 = vset.pattern.permute.xlu0 0
      %738 = vperm.xlu0 %737, %v395
      %v739 = vpop.permute.xlu0 %738
      %742 = vset.pattern.permute.xlu0 0
      %743 = vperm.xlu0 %742, %v396
      %v744 = vpop.permute.xlu0 %743
      %747 = vset.pattern.permute.xlu0 0
      %748 = vperm.xlu0 %747, %v397
      %v749 = vpop.permute.xlu0 %748
      %752 = vset.pattern.permute.xlu0 0
      %753 = vperm.xlu0 %752, %v398
      %v754 = vpop.permute.xlu0 %753
      %757 = vset.pattern.permute.xlu0 0
      %758 = vperm.xlu0 %757, %v399
      %v759 = vpop.permute.xlu0 %758
      %762 = vset.pattern.permute.xlu0 0
      %763 = vperm.xlu0 %762, %v400
      %v764 = vpop.permute.xlu0 %763
      %767 = vset.pattern.permute.xlu0 0
      %768 = vperm.xlu0 %767, %v401
      %v769 = vpop.permute.xlu0 %768
      %772 = vset.pattern.permute.xlu0 0
      %773 = vperm.xlu0 %772, %v402
      %v774 = vpop.permute.xlu0 %773
      %777 = vset.pattern.permute.xlu0 0
      %778 = vperm.xlu0 %777, %v403
      %v779 = vpop.permute.xlu0 %778
      %782 = vset.pattern.permute.xlu0 0
      %783 = vperm.xlu0 %782, %v404
      %v784 = vpop.permute.xlu0 %783
      %787 = vset.pattern.permute.xlu0 0
      %788 = vperm.xlu0 %787, %v405
      %v789 = vpop.permute.xlu0 %788
      %792 = vset.pattern.permute.xlu0 0
      %793 = vperm.xlu0 %792, %v406
      %v794 = vpop.permute.xlu0 %793
      %797 = vset.pattern.permute.xlu0 0
      %798 = vperm.xlu0 %797, %v407
      %v799 = vpop.permute.xlu0 %798
      %802 = vset.pattern.permute.xlu0 0
      %803 = vperm.xlu0 %802, %v408
      %v804 = vpop.permute.xlu0 %803
      %807 = vset.pattern.permute.xlu0 0
      %808 = vperm.xlu0 %807, %v409
      %v809 = vpop.permute.xlu0 %808
      %812 = vset.pattern.permute.xlu0 0
      %813 = vperm.xlu0 %812, %v410
      %v814 = vpop.permute.xlu0 %813
      %817 = vset.pattern.permute.xlu0 0
      %818 = vperm.xlu0 %817, %v411
      %v819 = vpop.permute.xlu0 %818
      %822 = vset.pattern.permute.xlu0 0
      %823 = vperm.xlu0 %822, %v412
      %v824 = vpop.permute.xlu0 %823
      %827 = vset.pattern.permute.xlu0 0
      %828 = vperm.xlu0 %827, %v413
      %v829 = vpop.permute.xlu0 %828
      %832 = vset.pattern.permute.xlu0 0
      %833 = vperm.xlu0 %832, %v414
      %v834 = vpop.permute.xlu0 %833
      %837 = vset.pattern.permute.xlu0 0
      %838 = vperm.xlu0 %837, %v415
      %v839 = vpop.permute.xlu0 %838
      %842 = vset.pattern.permute.xlu0 0
      %843 = vperm.xlu0 %842, %v416
      %v844 = vpop.permute.xlu0 %843
      %847 = vset.pattern.permute.xlu0 0
      %848 = vperm.xlu0 %847, %v417
      %v849 = vpop.permute.xlu0 %848
      %852 = vset.pattern.permute.xlu0 0
      %853 = vperm.xlu0 %852, %v418
      %v854 = vpop.permute.xlu0 %853
      %857 = vset.pattern.permute.xlu0 0
      %858 = vperm.xlu0 %857, %v419
      %v859 = vpop.permute.xlu0 %858
      %862 = vset.pattern.permute.xlu0 0
      %863 = vperm.xlu0 %862, %v420
      %v864 = vpop.permute.xlu0 %863
      %867 = vset.pattern.permute.xlu0 0
      %868 = vperm.xlu0 %867, %v421
      %v869 = vpop.permute.xlu0 %868
      %872 = vset.pattern.permute.xlu0 0
      %873 = vperm.xlu0 %872, %v422
      %v874 = vpop.permute.xlu0 %873
      %877 = vset.pattern.permute.xlu0 0
      %878 = vperm.xlu0 %877, %v423
      %v879 = vpop.permute.xlu0 %878
      %882 = vset.pattern.permute.xlu0 0
      %883 = vperm.xlu0 %882, %v424
      %v884 = vpop.permute.xlu0 %883
      %887 = vset.pattern.permute.xlu0 0
      %888 = vperm.xlu0 %887, %v425
      %v889 = vpop.permute.xlu0 %888
      %892 = vset.pattern.permute.xlu0 0
      %893 = vperm.xlu0 %892, %v426
      %v894 = vpop.permute.xlu0 %893
      %897 = vset.pattern.permute.xlu0 0
      %898 = vperm.xlu0 %897, %v427
      %v899 = vpop.permute.xlu0 %898
      %902 = vset.pattern.permute.xlu0 0
      %903 = vperm.xlu0 %902, %v428
      %v904 = vpop.permute.xlu0 %903
      %907 = vset.pattern.permute.xlu0 0
      %908 = vperm.xlu0 %907, %v429
      %v909 = vpop.permute.xlu0 %908
      %912 = vset.pattern.permute.xlu0 0
      %913 = vperm.xlu0 %912, %v430
      %v914 = vpop.permute.xlu0 %913
      %917 = vset.pattern.permute.xlu0 0
      %918 = vperm.xlu0 %917, %v431
      %v919 = vpop.permute.xlu0 %918
      %922 = vset.pattern.permute.xlu0 0
      %923 = vperm.xlu0 %922, %v432
      %v924 = vpop.permute.xlu0 %923
      %927 = vset.pattern.permute.xlu0 0
      %928 = vperm.xlu0 %927, %v433
      %v929 = vpop.permute.xlu0 %928
      %932 = vset.pattern.permute.xlu0 0
      %933 = vperm.xlu0 %932, %v434
      %v934 = vpop.permute.xlu0 %933
      %937 = vset.pattern.permute.xlu0 0
      %938 = vperm.xlu0 %937, %v435
      %v939 = vpop.permute.xlu0 %938
      %942 = vset.pattern.permute.xlu0 0
      %943 = vperm.xlu0 %942, %v436
      %v944 = vpop.permute.xlu0 %943
      %947 = vset.pattern.permute.xlu0 0
      %948 = vperm.xlu0 %947, %v437
      %v949 = vpop.permute.xlu0 %948
      %952 = vset.pattern.permute.xlu0 0
      %953 = vperm.xlu0 %952, %v438
      %v954 = vpop.permute.xlu0 %953
      %957 = vset.pattern.permute.xlu0 0
      %958 = vperm.xlu0 %957, %v439
      %v959 = vpop.permute.xlu0 %958
      %962 = vset.pattern.permute.xlu0 0
      %963 = vperm.xlu0 %962, %v440
      %v964 = vpop.permute.xlu0 %963
      %967 = vset.pattern.permute.xlu0 0
      %968 = vperm.xlu0 %967, %v441
      %v969 = vpop.permute.xlu0 %968
      %972 = vset.pattern.permute.xlu0 0
      %973 = vperm.xlu0 %972, %v442
      %v974 = vpop.permute.xlu0 %973
      %977 = vset.pattern.permute.xlu0 0
      %978 = vperm.xlu0 %977, %v443
      %v979 = vpop.permute.xlu0 %978
      %982 = vset.pattern.permute.xlu0 0
      %983 = vperm.xlu0 %982, %v444
      %v984 = vpop.permute.xlu0 %983
      %987 = vset.pattern.permute.xlu0 0
      %988 = vperm.xlu0 %987, %v445
      %v989 = vpop.permute.xlu0 %988
      %992 = vset.pattern.permute.xlu0 0
      %993 = vperm.xlu0 %992, %v446
      %v994 = vpop.permute.xlu0 %993
      %997 = vset.pattern.permute.xlu0 0
      %998 = vperm.xlu0 %997, %v447
      %v999 = vpop.permute.xlu0 %998
      %1002 = vset.pattern.permute.xlu0 0
      %1003 = vperm.xlu0 %1002, %v448
      %v1004 = vpop.permute.xlu0 %1003
      %1007 = vset.pattern.permute.xlu0 0
      %1008 = vperm.xlu0 %1007, %v449
      %v1009 = vpop.permute.xlu0 %1008
      %1012 = vset.pattern.permute.xlu0 0
      %1013 = vperm.xlu0 %1012, %v450
      %v1014 = vpop.permute.xlu0 %1013
      %1017 = vset.pattern.permute.xlu0 0
      %1018 = vperm.xlu0 %1017, %v451
      %v1019 = vpop.permute.xlu0 %1018
      %1022 = vset.pattern.permute.xlu0 0
      %1023 = vperm.xlu0 %1022, %v452
      %v1024 = vpop.permute.xlu0 %1023
      %1027 = vset.pattern.permute.xlu0 0
      %1028 = vperm.xlu0 %1027, %v453
      %v1029 = vpop.permute.xlu0 %1028
      %1032 = vset.pattern.permute.xlu0 0
      %1033 = vperm.xlu0 %1032, %v454
      %v1034 = vpop.permute.xlu0 %1033
      %1037 = vset.pattern.permute.xlu0 0
      %1038 = vperm.xlu0 %1037, %v455
      %v1039 = vpop.permute.xlu0 %1038
      %1042 = vset.pattern.permute.xlu0 0
      %1043 = vperm.xlu0 %1042, %v456
      %v1044 = vpop.permute.xlu0 %1043
      %1047 = vset.pattern.permute.xlu0 0
      %1048 = vperm.xlu0 %1047, %v457
      %v1049 = vpop.permute.xlu0 %1048
      %1052 = vset.pattern.permute.xlu0 0
      %1053 = vperm.xlu0 %1052, %v458
      %v1054 = vpop.permute.xlu0 %1053
      %1057 = vset.pattern.permute.xlu0 0
      %1058 = vperm.xlu0 %1057, %v459
      %v1059 = vpop.permute.xlu0 %1058
      %1062 = vset.pattern.permute.xlu0 0
      %1063 = vperm.xlu0 %1062, %v460
      %v1064 = vpop.permute.xlu0 %1063
      %1067 = vset.pattern.permute.xlu0 0
      %1068 = vperm.xlu0 %1067, %v461
      %v1069 = vpop.permute.xlu0 %1068
      %1072 = vset.pattern.permute.xlu0 0
      %1073 = vperm.xlu0 %1072, %v462
      %v1074 = vpop.permute.xlu0 %1073
      %1077 = vset.pattern.permute.xlu0 0
      %1078 = vperm.xlu0 %1077, %v463
      %v1079 = vpop.permute.xlu0 %1078
      %1082 = vset.pattern.permute.xlu0 0
      %1083 = vperm.xlu0 %1082, %v464
      %v1084 = vpop.permute.xlu0 %1083
      %1087 = vset.pattern.permute.xlu0 0
      %1088 = vperm.xlu0 %1087, %v465
      %v1089 = vpop.permute.xlu0 %1088
      %1092 = vset.pattern.permute.xlu0 0
      %1093 = vperm.xlu0 %1092, %v466
      %v1094 = vpop.permute.xlu0 %1093
      %1097 = vset.pattern.permute.xlu0 0
      %1098 = vperm.xlu0 %1097, %v467
      %v1099 = vpop.permute.xlu0 %1098
      %1102 = vset.pattern.permute.xlu0 0
      %1103 = vperm.xlu0 %1102, %v468
      %v1104 = vpop.permute.xlu0 %1103
      %1107 = vset.pattern.permute.xlu0 0
      %1108 = vperm.xlu0 %1107, %v469
      %v1109 = vpop.permute.xlu0 %1108
      %v1111 = vlaneseq
      %v1112 = vshrl.u32 %v1111, 7
      %v1113 = vsub.s32 0, %v1112
      %v1114 = vrot.slane %v470, %v1113
      %v1115 = vmul.f32 %v474, %v1114
      %v1116 = vmul.f32 %v479, %v1114
      %v1117 = vmul.f32 %v484, %v1114
      %v1118 = vmul.f32 %v489, %v1114
      %v1119 = vmul.f32 %v494, %v1114
      %v1120 = vmul.f32 %v499, %v1114
      %v1121 = vmul.f32 %v504, %v1114
      %v1122 = vmul.f32 %v509, %v1114
      %v1123 = vmul.f32 %v514, %v1114
      %v1124 = vmul.f32 %v519, %v1114
      %v1125 = vmul.f32 %v524, %v1114
      %v1126 = vmul.f32 %v529, %v1114
      %v1127 = vmul.f32 %v534, %v1114
      %v1128 = vmul.f32 %v539, %v1114
      %v1129 = vmul.f32 %v544, %v1114
      %v1130 = vmul.f32 %v549, %v1114
      %v1131 = vmul.f32 %v554, %v1114
      %v1132 = vmul.f32 %v559, %v1114
      %v1133 = vmul.f32 %v564, %v1114
      %v1134 = vmul.f32 %v569, %v1114
      %v1135 = vmul.f32 %v574, %v1114
      %v1136 = vmul.f32 %v579, %v1114
      %v1137 = vmul.f32 %v584, %v1114
      %v1138 = vmul.f32 %v589, %v1114
      %v1139 = vmul.f32 %v594, %v1114
      %v1140 = vmul.f32 %v599, %v1114
      %v1141 = vmul.f32 %v604, %v1114
      %v1142 = vmul.f32 %v609, %v1114
      %v1143 = vmul.f32 %v614, %v1114
      %v1144 = vmul.f32 %v619, %v1114
      %v1145 = vmul.f32 %v624, %v1114
      %v1146 = vmul.f32 %v629, %v1114
      %v1147 = vmul.f32 %v634, %v1114
      %v1148 = vmul.f32 %v639, %v1114
      %v1149 = vmul.f32 %v644, %v1114
      %v1150 = vmul.f32 %v649, %v1114
      %v1151 = vmul.f32 %v654, %v1114
      %v1152 = vmul.f32 %v659, %v1114
      %v1153 = vmul.f32 %v664, %v1114
      %v1154 = vmul.f32 %v669, %v1114
      %v1155 = vmul.f32 %v674, %v1114
      %v1156 = vmul.f32 %v679, %v1114
      %v1157 = vmul.f32 %v684, %v1114
      %v1158 = vmul.f32 %v689, %v1114
      %v1159 = vmul.f32 %v694, %v1114
      %v1160 = vmul.f32 %v699, %v1114
      %v1161 = vmul.f32 %v704, %v1114
      %v1162 = vmul.f32 %v709, %v1114
      %v1163 = vmul.f32 %v714, %v1114
      %v1164 = vmul.f32 %v719, %v1114
      %v1165 = vmul.f32 %v724, %v1114
      %v1166 = vmul.f32 %v729, %v1114
      %v1167 = vmul.f32 %v734, %v1114
      %v1168 = vmul.f32 %v739, %v1114
      %v1169 = vmul.f32 %v744, %v1114
      %v1170 = vmul.f32 %v749, %v1114
      %v1171 = vmul.f32 %v754, %v1114
      %v1172 = vmul.f32 %v759, %v1114
      %v1173 = vmul.f32 %v764, %v1114
      %v1174 = vmul.f32 %v769, %v1114
      %v1175 = vmul.f32 %v774, %v1114
      %v1176 = vmul.f32 %v779, %v1114
      %v1177 = vmul.f32 %v784, %v1114
      %v1178 = vmul.f32 %v789, %v1114
      %v1179 = vmul.f32 %v794, %v1114
      %v1180 = vmul.f32 %v799, %v1114
      %v1181 = vmul.f32 %v804, %v1114
      %v1182 = vmul.f32 %v809, %v1114
      %v1183 = vmul.f32 %v814, %v1114
      %v1184 = vmul.f32 %v819, %v1114
      %v1185 = vmul.f32 %v824, %v1114
      %v1186 = vmul.f32 %v829, %v1114
      %v1187 = vmul.f32 %v834, %v1114
      %v1188 = vmul.f32 %v839, %v1114
      %v1189 = vmul.f32 %v844, %v1114
      %v1190 = vmul.f32 %v849, %v1114
      %v1191 = vmul.f32 %v854, %v1114
      %v1192 = vmul.f32 %v859, %v1114
      %v1193 = vmul.f32 %v864, %v1114
      %v1194 = vmul.f32 %v869, %v1114
      %v1195 = vmul.f32 %v874, %v1114
      %v1196 = vmul.f32 %v879, %v1114
      %v1197 = vmul.f32 %v884, %v1114
      %v1198 = vmul.f32 %v889, %v1114
      %v1199 = vmul.f32 %v894, %v1114
      %v1200 = vmul.f32 %v899, %v1114
      %v1201 = vmul.f32 %v904, %v1114
      %v1202 = vmul.f32 %v909, %v1114
      %v1203 = vmul.f32 %v914, %v1114
      %v1204 = vmul.f32 %v919, %v1114
      %v1205 = vmul.f32 %v924, %v1114
      %v1206 = vmul.f32 %v929, %v1114
      %v1207 = vmul.f32 %v934, %v1114
      %v1208 = vmul.f32 %v939, %v1114
      %v1209 = vmul.f32 %v944, %v1114
      %v1210 = vmul.f32 %v949, %v1114
      %v1211 = vmul.f32 %v954, %v1114
      %v1212 = vmul.f32 %v959, %v1114
      %v1213 = vmul.f32 %v964, %v1114
      %v1214 = vmul.f32 %v969, %v1114
      %v1215 = vmul.f32 %v974, %v1114
      %v1216 = vmul.f32 %v979, %v1114
      %v1217 = vmul.f32 %v984, %v1114
      %v1218 = vmul.f32 %v989, %v1114
      %v1219 = vmul.f32 %v994, %v1114
      %v1220 = vmul.f32 %v999, %v1114
      %v1221 = vmul.f32 %v1004, %v1114
      %v1222 = vmul.f32 %v1009, %v1114
      %v1223 = vmul.f32 %v1014, %v1114
      %v1224 = vmul.f32 %v1019, %v1114
      %v1225 = vmul.f32 %v1024, %v1114
      %v1226 = vmul.f32 %v1029, %v1114
      %v1227 = vmul.f32 %v1034, %v1114
      %v1228 = vmul.f32 %v1039, %v1114
      %v1229 = vmul.f32 %v1044, %v1114
      %v1230 = vmul.f32 %v1049, %v1114
      %v1231 = vmul.f32 %v1054, %v1114
      %v1232 = vmul.f32 %v1059, %v1114
      %v1233 = vmul.f32 %v1064, %v1114
      %v1234 = vmul.f32 %v1069, %v1114
      %v1235 = vmul.f32 %v1074, %v1114
      %v1236 = vmul.f32 %v1079, %v1114
      %v1237 = vmul.f32 %v1084, %v1114
      %v1238 = vmul.f32 %v1089, %v1114
      %v1239 = vmul.f32 %v1094, %v1114
      %v1240 = vmul.f32 %v1099, %v1114
      %v1241 = vmul.f32 %v1104, %v1114
      %v1242 = vmul.f32 %v1109, %v1114
      %1243 = vset.pattern.permute.xlu0 1
      %1244 = vperm.xlu0 %1243, %v342
      %v1245 = vpop.permute.xlu0 %1244
      %1247 = vset.pattern.permute.xlu0 1
      %1248 = vperm.xlu0 %1247, %v343
      %v1249 = vpop.permute.xlu0 %1248
      %1251 = vset.pattern.permute.xlu0 1
      %1252 = vperm.xlu0 %1251, %v344
      %v1253 = vpop.permute.xlu0 %1252
      %1255 = vset.pattern.permute.xlu0 1
      %1256 = vperm.xlu0 %1255, %v345
      %v1257 = vpop.permute.xlu0 %1256
      %1259 = vset.pattern.permute.xlu0 1
      %1260 = vperm.xlu0 %1259, %v346
      %v1261 = vpop.permute.xlu0 %1260
      %1263 = vset.pattern.permute.xlu0 1
      %1264 = vperm.xlu0 %1263, %v347
      %v1265 = vpop.permute.xlu0 %1264
      %1267 = vset.pattern.permute.xlu0 1
      %1268 = vperm.xlu0 %1267, %v348
      %v1269 = vpop.permute.xlu0 %1268
      %1271 = vset.pattern.permute.xlu0 1
      %1272 = vperm.xlu0 %1271, %v349
      %v1273 = vpop.permute.xlu0 %1272
      %1275 = vset.pattern.permute.xlu0 1
      %1276 = vperm.xlu0 %1275, %v350
      %v1277 = vpop.permute.xlu0 %1276
      %1279 = vset.pattern.permute.xlu0 1
      %1280 = vperm.xlu0 %1279, %v351
      %v1281 = vpop.permute.xlu0 %1280
      %1283 = vset.pattern.permute.xlu0 1
      %1284 = vperm.xlu0 %1283, %v352
      %v1285 = vpop.permute.xlu0 %1284
      %1287 = vset.pattern.permute.xlu0 1
      %1288 = vperm.xlu0 %1287, %v353
      %v1289 = vpop.permute.xlu0 %1288
      %1291 = vset.pattern.permute.xlu0 1
      %1292 = vperm.xlu0 %1291, %v354
      %v1293 = vpop.permute.xlu0 %1292
      %1295 = vset.pattern.permute.xlu0 1
      %1296 = vperm.xlu0 %1295, %v355
      %v1297 = vpop.permute.xlu0 %1296
      %1299 = vset.pattern.permute.xlu0 1
      %1300 = vperm.xlu0 %1299, %v356
      %v1301 = vpop.permute.xlu0 %1300
      %1303 = vset.pattern.permute.xlu0 1
      %1304 = vperm.xlu0 %1303, %v357
      %v1305 = vpop.permute.xlu0 %1304
      %1307 = vset.pattern.permute.xlu0 1
      %1308 = vperm.xlu0 %1307, %v358
      %v1309 = vpop.permute.xlu0 %1308
      %1311 = vset.pattern.permute.xlu0 1
      %1312 = vperm.xlu0 %1311, %v359
      %v1313 = vpop.permute.xlu0 %1312
      %1315 = vset.pattern.permute.xlu0 1
      %1316 = vperm.xlu0 %1315, %v360
      %v1317 = vpop.permute.xlu0 %1316
      %1319 = vset.pattern.permute.xlu0 1
      %1320 = vperm.xlu0 %1319, %v361
      %v1321 = vpop.permute.xlu0 %1320
      %1323 = vset.pattern.permute.xlu0 1
      %1324 = vperm.xlu0 %1323, %v362
      %v1325 = vpop.permute.xlu0 %1324
      %1327 = vset.pattern.permute.xlu0 1
      %1328 = vperm.xlu0 %1327, %v363
      %v1329 = vpop.permute.xlu0 %1328
      %1331 = vset.pattern.permute.xlu0 1
      %1332 = vperm.xlu0 %1331, %v364
      %v1333 = vpop.permute.xlu0 %1332
      %1335 = vset.pattern.permute.xlu0 1
      %1336 = vperm.xlu0 %1335, %v365
      %v1337 = vpop.permute.xlu0 %1336
      %1339 = vset.pattern.permute.xlu0 1
      %1340 = vperm.xlu0 %1339, %v366
      %v1341 = vpop.permute.xlu0 %1340
      %1343 = vset.pattern.permute.xlu0 1
      %1344 = vperm.xlu0 %1343, %v367
      %v1345 = vpop.permute.xlu0 %1344
      %1347 = vset.pattern.permute.xlu0 1
      %1348 = vperm.xlu0 %1347, %v368
      %v1349 = vpop.permute.xlu0 %1348
      %1351 = vset.pattern.permute.xlu0 1
      %1352 = vperm.xlu0 %1351, %v369
      %v1353 = vpop.permute.xlu0 %1352
      %1355 = vset.pattern.permute.xlu0 1
      %1356 = vperm.xlu0 %1355, %v370
      %v1357 = vpop.permute.xlu0 %1356
      %1359 = vset.pattern.permute.xlu0 1
      %1360 = vperm.xlu0 %1359, %v371
      %v1361 = vpop.permute.xlu0 %1360
      %1363 = vset.pattern.permute.xlu0 1
      %1364 = vperm.xlu0 %1363, %v372
      %v1365 = vpop.permute.xlu0 %1364
      %1367 = vset.pattern.permute.xlu0 1
      %1368 = vperm.xlu0 %1367, %v373
      %v1369 = vpop.permute.xlu0 %1368
      %1371 = vset.pattern.permute.xlu0 1
      %1372 = vperm.xlu0 %1371, %v374
      %v1373 = vpop.permute.xlu0 %1372
      %1375 = vset.pattern.permute.xlu0 1
      %1376 = vperm.xlu0 %1375, %v375
      %v1377 = vpop.permute.xlu0 %1376
      %1379 = vset.pattern.permute.xlu0 1
      %1380 = vperm.xlu0 %1379, %v376
      %v1381 = vpop.permute.xlu0 %1380
      %1383 = vset.pattern.permute.xlu0 1
      %1384 = vperm.xlu0 %1383, %v377
      %v1385 = vpop.permute.xlu0 %1384
      %1387 = vset.pattern.permute.xlu0 1
      %1388 = vperm.xlu0 %1387, %v378
      %v1389 = vpop.permute.xlu0 %1388
      %1391 = vset.pattern.permute.xlu0 1
      %1392 = vperm.xlu0 %1391, %v379
      %v1393 = vpop.permute.xlu0 %1392
      %1395 = vset.pattern.permute.xlu0 1
      %1396 = vperm.xlu0 %1395, %v380
      %v1397 = vpop.permute.xlu0 %1396
      %1399 = vset.pattern.permute.xlu0 1
      %1400 = vperm.xlu0 %1399, %v381
      %v1401 = vpop.permute.xlu0 %1400
      %1403 = vset.pattern.permute.xlu0 1
      %1404 = vperm.xlu0 %1403, %v382
      %v1405 = vpop.permute.xlu0 %1404
      %1407 = vset.pattern.permute.xlu0 1
      %1408 = vperm.xlu0 %1407, %v383
      %v1409 = vpop.permute.xlu0 %1408
      %1411 = vset.pattern.permute.xlu0 1
      %1412 = vperm.xlu0 %1411, %v384
      %v1413 = vpop.permute.xlu0 %1412
      %1415 = vset.pattern.permute.xlu0 1
      %1416 = vperm.xlu0 %1415, %v385
      %v1417 = vpop.permute.xlu0 %1416
      %1419 = vset.pattern.permute.xlu0 1
      %1420 = vperm.xlu0 %1419, %v386
      %v1421 = vpop.permute.xlu0 %1420
      %1423 = vset.pattern.permute.xlu0 1
      %1424 = vperm.xlu0 %1423, %v387
      %v1425 = vpop.permute.xlu0 %1424
      %1427 = vset.pattern.permute.xlu0 1
      %1428 = vperm.xlu0 %1427, %v388
      %v1429 = vpop.permute.xlu0 %1428
      %1431 = vset.pattern.permute.xlu0 1
      %1432 = vperm.xlu0 %1431, %v389
      %v1433 = vpop.permute.xlu0 %1432
      %1435 = vset.pattern.permute.xlu0 1
      %1436 = vperm.xlu0 %1435, %v390
      %v1437 = vpop.permute.xlu0 %1436
      %1439 = vset.pattern.permute.xlu0 1
      %1440 = vperm.xlu0 %1439, %v391
      %v1441 = vpop.permute.xlu0 %1440
      %1443 = vset.pattern.permute.xlu0 1
      %1444 = vperm.xlu0 %1443, %v392
      %v1445 = vpop.permute.xlu0 %1444
      %1447 = vset.pattern.permute.xlu0 1
      %1448 = vperm.xlu0 %1447, %v393
      %v1449 = vpop.permute.xlu0 %1448
      %1451 = vset.pattern.permute.xlu0 1
      %1452 = vperm.xlu0 %1451, %v394
      %v1453 = vpop.permute.xlu0 %1452
      %1455 = vset.pattern.permute.xlu0 1
      %1456 = vperm.xlu0 %1455, %v395
      %v1457 = vpop.permute.xlu0 %1456
      %1459 = vset.pattern.permute.xlu0 1
      %1460 = vperm.xlu0 %1459, %v396
      %v1461 = vpop.permute.xlu0 %1460
      %1463 = vset.pattern.permute.xlu0 1
      %1464 = vperm.xlu0 %1463, %v397
      %v1465 = vpop.permute.xlu0 %1464
      %1467 = vset.pattern.permute.xlu0 1
      %1468 = vperm.xlu0 %1467, %v398
      %v1469 = vpop.permute.xlu0 %1468
      %1471 = vset.pattern.permute.xlu0 1
      %1472 = vperm.xlu0 %1471, %v399
      %v1473 = vpop.permute.xlu0 %1472
      %1475 = vset.pattern.permute.xlu0 1
      %1476 = vperm.xlu0 %1475, %v400
      %v1477 = vpop.permute.xlu0 %1476
      %1479 = vset.pattern.permute.xlu0 1
      %1480 = vperm.xlu0 %1479, %v401
      %v1481 = vpop.permute.xlu0 %1480
      %1483 = vset.pattern.permute.xlu0 1
      %1484 = vperm.xlu0 %1483, %v402
      %v1485 = vpop.permute.xlu0 %1484
      %1487 = vset.pattern.permute.xlu0 1
      %1488 = vperm.xlu0 %1487, %v403
      %v1489 = vpop.permute.xlu0 %1488
      %1491 = vset.pattern.permute.xlu0 1
      %1492 = vperm.xlu0 %1491, %v404
      %v1493 = vpop.permute.xlu0 %1492
      %1495 = vset.pattern.permute.xlu0 1
      %1496 = vperm.xlu0 %1495, %v405
      %v1497 = vpop.permute.xlu0 %1496
      %1499 = vset.pattern.permute.xlu0 1
      %1500 = vperm.xlu0 %1499, %v406
      %v1501 = vpop.permute.xlu0 %1500
      %1503 = vset.pattern.permute.xlu0 1
      %1504 = vperm.xlu0 %1503, %v407
      %v1505 = vpop.permute.xlu0 %1504
      %1507 = vset.pattern.permute.xlu0 1
      %1508 = vperm.xlu0 %1507, %v408
      %v1509 = vpop.permute.xlu0 %1508
      %1511 = vset.pattern.permute.xlu0 1
      %1512 = vperm.xlu0 %1511, %v409
      %v1513 = vpop.permute.xlu0 %1512
      %1515 = vset.pattern.permute.xlu0 1
      %1516 = vperm.xlu0 %1515, %v410
      %v1517 = vpop.permute.xlu0 %1516
      %1519 = vset.pattern.permute.xlu0 1
      %1520 = vperm.xlu0 %1519, %v411
      %v1521 = vpop.permute.xlu0 %1520
      %1523 = vset.pattern.permute.xlu0 1
      %1524 = vperm.xlu0 %1523, %v412
      %v1525 = vpop.permute.xlu0 %1524
      %1527 = vset.pattern.permute.xlu0 1
      %1528 = vperm.xlu0 %1527, %v413
      %v1529 = vpop.permute.xlu0 %1528
      %1531 = vset.pattern.permute.xlu0 1
      %1532 = vperm.xlu0 %1531, %v414
      %v1533 = vpop.permute.xlu0 %1532
      %1535 = vset.pattern.permute.xlu0 1
      %1536 = vperm.xlu0 %1535, %v415
      %v1537 = vpop.permute.xlu0 %1536
      %1539 = vset.pattern.permute.xlu0 1
      %1540 = vperm.xlu0 %1539, %v416
      %v1541 = vpop.permute.xlu0 %1540
      %1543 = vset.pattern.permute.xlu0 1
      %1544 = vperm.xlu0 %1543, %v417
      %v1545 = vpop.permute.xlu0 %1544
      %1547 = vset.pattern.permute.xlu0 1
      %1548 = vperm.xlu0 %1547, %v418
      %v1549 = vpop.permute.xlu0 %1548
      %1551 = vset.pattern.permute.xlu0 1
      %1552 = vperm.xlu0 %1551, %v419
      %v1553 = vpop.permute.xlu0 %1552
      %1555 = vset.pattern.permute.xlu0 1
      %1556 = vperm.xlu0 %1555, %v420
      %v1557 = vpop.permute.xlu0 %1556
      %1559 = vset.pattern.permute.xlu0 1
      %1560 = vperm.xlu0 %1559, %v421
      %v1561 = vpop.permute.xlu0 %1560
      %1563 = vset.pattern.permute.xlu0 1
      %1564 = vperm.xlu0 %1563, %v422
      %v1565 = vpop.permute.xlu0 %1564
      %1567 = vset.pattern.permute.xlu0 1
      %1568 = vperm.xlu0 %1567, %v423
      %v1569 = vpop.permute.xlu0 %1568
      %1571 = vset.pattern.permute.xlu0 1
      %1572 = vperm.xlu0 %1571, %v424
      %v1573 = vpop.permute.xlu0 %1572
      %1575 = vset.pattern.permute.xlu0 1
      %1576 = vperm.xlu0 %1575, %v425
      %v1577 = vpop.permute.xlu0 %1576
      %1579 = vset.pattern.permute.xlu0 1
      %1580 = vperm.xlu0 %1579, %v426
      %v1581 = vpop.permute.xlu0 %1580
      %1583 = vset.pattern.permute.xlu0 1
      %1584 = vperm.xlu0 %1583, %v427
      %v1585 = vpop.permute.xlu0 %1584
      %1587 = vset.pattern.permute.xlu0 1
      %1588 = vperm.xlu0 %1587, %v428
      %v1589 = vpop.permute.xlu0 %1588
      %1591 = vset.pattern.permute.xlu0 1
      %1592 = vperm.xlu0 %1591, %v429
      %v1593 = vpop.permute.xlu0 %1592
      %1595 = vset.pattern.permute.xlu0 1
      %1596 = vperm.xlu0 %1595, %v430
      %v1597 = vpop.permute.xlu0 %1596
      %1599 = vset.pattern.permute.xlu0 1
      %1600 = vperm.xlu0 %1599, %v431
      %v1601 = vpop.permute.xlu0 %1600
      %1603 = vset.pattern.permute.xlu0 1
      %1604 = vperm.xlu0 %1603, %v432
      %v1605 = vpop.permute.xlu0 %1604
      %1607 = vset.pattern.permute.xlu0 1
      %1608 = vperm.xlu0 %1607, %v433
      %v1609 = vpop.permute.xlu0 %1608
      %1611 = vset.pattern.permute.xlu0 1
      %1612 = vperm.xlu0 %1611, %v434
      %v1613 = vpop.permute.xlu0 %1612
      %1615 = vset.pattern.permute.xlu0 1
      %1616 = vperm.xlu0 %1615, %v435
      %v1617 = vpop.permute.xlu0 %1616
      %1619 = vset.pattern.permute.xlu0 1
      %1620 = vperm.xlu0 %1619, %v436
      %v1621 = vpop.permute.xlu0 %1620
      %1623 = vset.pattern.permute.xlu0 1
      %1624 = vperm.xlu0 %1623, %v437
      %v1625 = vpop.permute.xlu0 %1624
      %1627 = vset.pattern.permute.xlu0 1
      %1628 = vperm.xlu0 %1627, %v438
      %v1629 = vpop.permute.xlu0 %1628
      %1631 = vset.pattern.permute.xlu0 1
      %1632 = vperm.xlu0 %1631, %v439
      %v1633 = vpop.permute.xlu0 %1632
      %1635 = vset.pattern.permute.xlu0 1
      %1636 = vperm.xlu0 %1635, %v440
      %v1637 = vpop.permute.xlu0 %1636
      %1639 = vset.pattern.permute.xlu0 1
      %1640 = vperm.xlu0 %1639, %v441
      %v1641 = vpop.permute.xlu0 %1640
      %1643 = vset.pattern.permute.xlu0 1
      %1644 = vperm.xlu0 %1643, %v442
      %v1645 = vpop.permute.xlu0 %1644
      %1647 = vset.pattern.permute.xlu0 1
      %1648 = vperm.xlu0 %1647, %v443
      %v1649 = vpop.permute.xlu0 %1648
      %1651 = vset.pattern.permute.xlu0 1
      %1652 = vperm.xlu0 %1651, %v444
      %v1653 = vpop.permute.xlu0 %1652
      %1655 = vset.pattern.permute.xlu0 1
      %1656 = vperm.xlu0 %1655, %v445
      %v1657 = vpop.permute.xlu0 %1656
      %1659 = vset.pattern.permute.xlu0 1
      %1660 = vperm.xlu0 %1659, %v446
      %v1661 = vpop.permute.xlu0 %1660
      %1663 = vset.pattern.permute.xlu0 1
      %1664 = vperm.xlu0 %1663, %v447
      %v1665 = vpop.permute.xlu0 %1664
      %1667 = vset.pattern.permute.xlu0 1
      %1668 = vperm.xlu0 %1667, %v448
      %v1669 = vpop.permute.xlu0 %1668
      %1671 = vset.pattern.permute.xlu0 1
      %1672 = vperm.xlu0 %1671, %v449
      %v1673 = vpop.permute.xlu0 %1672
      %1675 = vset.pattern.permute.xlu0 1
      %1676 = vperm.xlu0 %1675, %v450
      %v1677 = vpop.permute.xlu0 %1676
      %1679 = vset.pattern.permute.xlu0 1
      %1680 = vperm.xlu0 %1679, %v451
      %v1681 = vpop.permute.xlu0 %1680
      %1683 = vset.pattern.permute.xlu0 1
      %1684 = vperm.xlu0 %1683, %v452
      %v1685 = vpop.permute.xlu0 %1684
      %1687 = vset.pattern.permute.xlu0 1
      %1688 = vperm.xlu0 %1687, %v453
      %v1689 = vpop.permute.xlu0 %1688
      %1691 = vset.pattern.permute.xlu0 1
      %1692 = vperm.xlu0 %1691, %v454
      %v1693 = vpop.permute.xlu0 %1692
      %1695 = vset.pattern.permute.xlu0 1
      %1696 = vperm.xlu0 %1695, %v455
      %v1697 = vpop.permute.xlu0 %1696
      %1699 = vset.pattern.permute.xlu0 1
      %1700 = vperm.xlu0 %1699, %v456
      %v1701 = vpop.permute.xlu0 %1700
      %1703 = vset.pattern.permute.xlu0 1
      %1704 = vperm.xlu0 %1703, %v457
      %v1705 = vpop.permute.xlu0 %1704
      %1707 = vset.pattern.permute.xlu0 1
      %1708 = vperm.xlu0 %1707, %v458
      %v1709 = vpop.permute.xlu0 %1708
      %1711 = vset.pattern.permute.xlu0 1
      %1712 = vperm.xlu0 %1711, %v459
      %v1713 = vpop.permute.xlu0 %1712
      %1715 = vset.pattern.permute.xlu0 1
      %1716 = vperm.xlu0 %1715, %v460
      %v1717 = vpop.permute.xlu0 %1716
      %1719 = vset.pattern.permute.xlu0 1
      %1720 = vperm.xlu0 %1719, %v461
      %v1721 = vpop.permute.xlu0 %1720
      %1723 = vset.pattern.permute.xlu0 1
      %1724 = vperm.xlu0 %1723, %v462
      %v1725 = vpop.permute.xlu0 %1724
      %1727 = vset.pattern.permute.xlu0 1
      %1728 = vperm.xlu0 %1727, %v463
      %v1729 = vpop.permute.xlu0 %1728
      %1731 = vset.pattern.permute.xlu0 1
      %1732 = vperm.xlu0 %1731, %v464
      %v1733 = vpop.permute.xlu0 %1732
      %1735 = vset.pattern.permute.xlu0 1
      %1736 = vperm.xlu0 %1735, %v465
      %v1737 = vpop.permute.xlu0 %1736
      %1739 = vset.pattern.permute.xlu0 1
      %1740 = vperm.xlu0 %1739, %v466
      %v1741 = vpop.permute.xlu0 %1740
      %1743 = vset.pattern.permute.xlu0 1
      %1744 = vperm.xlu0 %1743, %v467
      %v1745 = vpop.permute.xlu0 %1744
      %1747 = vset.pattern.permute.xlu0 1
      %1748 = vperm.xlu0 %1747, %v468
      %v1749 = vpop.permute.xlu0 %1748
      %1751 = vset.pattern.permute.xlu0 1
      %1752 = vperm.xlu0 %1751, %v469
      %v1753 = vpop.permute.xlu0 %1752
      %v1755 = vlaneseq
      %v1756 = vshrl.u32 %v1755, 7
      %v1757 = vsub.s32 1, %v1756
      %v1758 = vrot.slane %v470, %v1757
      %v1759 = vmul.f32 %v1245, %v1758
      %v1760 = vmul.f32 %v1249, %v1758
      %v1761 = vmul.f32 %v1253, %v1758
      %v1762 = vmul.f32 %v1257, %v1758
      %v1763 = vmul.f32 %v1261, %v1758
      %v1764 = vmul.f32 %v1265, %v1758
      %v1765 = vmul.f32 %v1269, %v1758
      %v1766 = vmul.f32 %v1273, %v1758
      %v1767 = vmul.f32 %v1277, %v1758
      %v1768 = vmul.f32 %v1281, %v1758
      %v1769 = vmul.f32 %v1285, %v1758
      %v1770 = vmul.f32 %v1289, %v1758
      %v1771 = vmul.f32 %v1293, %v1758
      %v1772 = vmul.f32 %v1297, %v1758
      %v1773 = vmul.f32 %v1301, %v1758
      %v1774 = vmul.f32 %v1305, %v1758
      %v1775 = vmul.f32 %v1309, %v1758
      %v1776 = vmul.f32 %v1313, %v1758
      %v1777 = vmul.f32 %v1317, %v1758
      %v1778 = vmul.f32 %v1321, %v1758
      %v1779 = vmul.f32 %v1325, %v1758
      %v1780 = vmul.f32 %v1329, %v1758
      %v1781 = vmul.f32 %v1333, %v1758
      %v1782 = vmul.f32 %v1337, %v1758
      %v1783 = vmul.f32 %v1341, %v1758
      %v1784 = vmul.f32 %v1345, %v1758
      %v1785 = vmul.f32 %v1349, %v1758
      %v1786 = vmul.f32 %v1353, %v1758
      %v1787 = vmul.f32 %v1357, %v1758
      %v1788 = vmul.f32 %v1361, %v1758
      %v1789 = vmul.f32 %v1365, %v1758
      %v1790 = vmul.f32 %v1369, %v1758
      %v1791 = vmul.f32 %v1373, %v1758
      %v1792 = vmul.f32 %v1377, %v1758
      %v1793 = vmul.f32 %v1381, %v1758
      %v1794 = vmul.f32 %v1385, %v1758
      %v1795 = vmul.f32 %v1389, %v1758
      %v1796 = vmul.f32 %v1393, %v1758
      %v1797 = vmul.f32 %v1397, %v1758
      %v1798 = vmul.f32 %v1401, %v1758
      %v1799 = vmul.f32 %v1405, %v1758
      %v1800 = vmul.f32 %v1409, %v1758
      %v1801 = vmul.f32 %v1413, %v1758
      %v1802 = vmul.f32 %v1417, %v1758
      %v1803 = vmul.f32 %v1421, %v1758
      %v1804 = vmul.f32 %v1425, %v1758
      %v1805 = vmul.f32 %v1429, %v1758
      %v1806 = vmul.f32 %v1433, %v1758
      %v1807 = vmul.f32 %v1437, %v1758
      %v1808 = vmul.f32 %v1441, %v1758
      %v1809 = vmul.f32 %v1445, %v1758
      %v1810 = vmul.f32 %v1449, %v1758
      %v1811 = vmul.f32 %v1453, %v1758
      %v1812 = vmul.f32 %v1457, %v1758
      %v1813 = vmul.f32 %v1461, %v1758
      %v1814 = vmul.f32 %v1465, %v1758
      %v1815 = vmul.f32 %v1469, %v1758
      %v1816 = vmul.f32 %v1473, %v1758
      %v1817 = vmul.f32 %v1477, %v1758
      %v1818 = vmul.f32 %v1481, %v1758
      %v1819 = vmul.f32 %v1485, %v1758
      %v1820 = vmul.f32 %v1489, %v1758
      %v1821 = vmul.f32 %v1493, %v1758
      %v1822 = vmul.f32 %v1497, %v1758
      %v1823 = vmul.f32 %v1501, %v1758
      %v1824 = vmul.f32 %v1505, %v1758
      %v1825 = vmul.f32 %v1509, %v1758
      %v1826 = vmul.f32 %v1513, %v1758
      %v1827 = vmul.f32 %v1517, %v1758
      %v1828 = vmul.f32 %v1521, %v1758
      %v1829 = vmul.f32 %v1525, %v1758
      %v1830 = vmul.f32 %v1529, %v1758
      %v1831 = vmul.f32 %v1533, %v1758
      %v1832 = vmul.f32 %v1537, %v1758
      %v1833 = vmul.f32 %v1541, %v1758
      %v1834 = vmul.f32 %v1545, %v1758
      %v1835 = vmul.f32 %v1549, %v1758
      %v1836 = vmul.f32 %v1553, %v1758
      %v1837 = vmul.f32 %v1557, %v1758
      %v1838 = vmul.f32 %v1561, %v1758
      %v1839 = vmul.f32 %v1565, %v1758
      %v1840 = vmul.f32 %v1569, %v1758
      %v1841 = vmul.f32 %v1573, %v1758
      %v1842 = vmul.f32 %v1577, %v1758
      %v1843 = vmul.f32 %v1581, %v1758
      %v1844 = vmul.f32 %v1585, %v1758
      %v1845 = vmul.f32 %v1589, %v1758
      %v1846 = vmul.f32 %v1593, %v1758
      %v1847 = vmul.f32 %v1597, %v1758
      %v1848 = vmul.f32 %v1601, %v1758
      %v1849 = vmul.f32 %v1605, %v1758
      %v1850 = vmul.f32 %v1609, %v1758
      %v1851 = vmul.f32 %v1613, %v1758
      %v1852 = vmul.f32 %v1617, %v1758
      %v1853 = vmul.f32 %v1621, %v1758
      %v1854 = vmul.f32 %v1625, %v1758
      %v1855 = vmul.f32 %v1629, %v1758
      %v1856 = vmul.f32 %v1633, %v1758
      %v1857 = vmul.f32 %v1637, %v1758
      %v1858 = vmul.f32 %v1641, %v1758
      %v1859 = vmul.f32 %v1645, %v1758
      %v1860 = vmul.f32 %v1649, %v1758
      %v1861 = vmul.f32 %v1653, %v1758
      %v1862 = vmul.f32 %v1657, %v1758
      %v1863 = vmul.f32 %v1661, %v1758
      %v1864 = vmul.f32 %v1665, %v1758
      %v1865 = vmul.f32 %v1669, %v1758
      %v1866 = vmul.f32 %v1673, %v1758
      %v1867 = vmul.f32 %v1677, %v1758
      %v1868 = vmul.f32 %v1681, %v1758
      %v1869 = vmul.f32 %v1685, %v1758
      %v1870 = vmul.f32 %v1689, %v1758
      %v1871 = vmul.f32 %v1693, %v1758
      %v1872 = vmul.f32 %v1697, %v1758
      %v1873 = vmul.f32 %v1701, %v1758
      %v1874 = vmul.f32 %v1705, %v1758
      %v1875 = vmul.f32 %v1709, %v1758
      %v1876 = vmul.f32 %v1713, %v1758
      %v1877 = vmul.f32 %v1717, %v1758
      %v1878 = vmul.f32 %v1721, %v1758
      %v1879 = vmul.f32 %v1725, %v1758
      %v1880 = vmul.f32 %v1729, %v1758
      %v1881 = vmul.f32 %v1733, %v1758
      %v1882 = vmul.f32 %v1737, %v1758
      %v1883 = vmul.f32 %v1741, %v1758
      %v1884 = vmul.f32 %v1745, %v1758
      %v1885 = vmul.f32 %v1749, %v1758
      %v1886 = vmul.f32 %v1753, %v1758
      %v1887 = vadd.f32 %v1115, %v1759
      %v1888 = vadd.f32 %v1116, %v1760
      %v1889 = vadd.f32 %v1117, %v1761
      %v1890 = vadd.f32 %v1118, %v1762
      %v1891 = vadd.f32 %v1119, %v1763
      %v1892 = vadd.f32 %v1120, %v1764
      %v1893 = vadd.f32 %v1121, %v1765
      %v1894 = vadd.f32 %v1122, %v1766
      %v1895 = vadd.f32 %v1123, %v1767
      %v1896 = vadd.f32 %v1124, %v1768
      %v1897 = vadd.f32 %v1125, %v1769
      %v1898 = vadd.f32 %v1126, %v1770
      %v1899 = vadd.f32 %v1127, %v1771
      %v1900 = vadd.f32 %v1128, %v1772
      %v1901 = vadd.f32 %v1129, %v1773
      %v1902 = vadd.f32 %v1130, %v1774
      %v1903 = vadd.f32 %v1131, %v1775
      %v1904 = vadd.f32 %v1132, %v1776
      %v1905 = vadd.f32 %v1133, %v1777
      %v1906 = vadd.f32 %v1134, %v1778
      %v1907 = vadd.f32 %v1135, %v1779
      %v1908 = vadd.f32 %v1136, %v1780
      %v1909 = vadd.f32 %v1137, %v1781
      %v1910 = vadd.f32 %v1138, %v1782
      %v1911 = vadd.f32 %v1139, %v1783
      %v1912 = vadd.f32 %v1140, %v1784
      %v1913 = vadd.f32 %v1141, %v1785
      %v1914 = vadd.f32 %v1142, %v1786
      %v1915 = vadd.f32 %v1143, %v1787
      %v1916 = vadd.f32 %v1144, %v1788
      %v1917 = vadd.f32 %v1145, %v1789
      %v1918 = vadd.f32 %v1146, %v1790
      %v1919 = vadd.f32 %v1147, %v1791
      %v1920 = vadd.f32 %v1148, %v1792
      %v1921 = vadd.f32 %v1149, %v1793
      %v1922 = vadd.f32 %v1150, %v1794
      %v1923 = vadd.f32 %v1151, %v1795
      %v1924 = vadd.f32 %v1152, %v1796
      %v1925 = vadd.f32 %v1153, %v1797
      %v1926 = vadd.f32 %v1154, %v1798
      %v1927 = vadd.f32 %v1155, %v1799
      %v1928 = vadd.f32 %v1156, %v1800
      %v1929 = vadd.f32 %v1157, %v1801
      %v1930 = vadd.f32 %v1158, %v1802
      %v1931 = vadd.f32 %v1159, %v1803
      %v1932 = vadd.f32 %v1160, %v1804
      %v1933 = vadd.f32 %v1161, %v1805
      %v1934 = vadd.f32 %v1162, %v1806
      %v1935 = vadd.f32 %v1163, %v1807
      %v1936 = vadd.f32 %v1164, %v1808
      %v1937 = vadd.f32 %v1165, %v1809
      %v1938 = vadd.f32 %v1166, %v1810
      %v1939 = vadd.f32 %v1167, %v1811
      %v1940 = vadd.f32 %v1168, %v1812
      %v1941 = vadd.f32 %v1169, %v1813
      %v1942 = vadd.f32 %v1170, %v1814
      %v1943 = vadd.f32 %v1171, %v1815
      %v1944 = vadd.f32 %v1172, %v1816
      %v1945 = vadd.f32 %v1173, %v1817
      %v1946 = vadd.f32 %v1174, %v1818
      %v1947 = vadd.f32 %v1175, %v1819
      %v1948 = vadd.f32 %v1176, %v1820
      %v1949 = vadd.f32 %v1177, %v1821
      %v1950 = vadd.f32 %v1178, %v1822
      %v1951 = vadd.f32 %v1179, %v1823
      %v1952 = vadd.f32 %v1180, %v1824
      %v1953 = vadd.f32 %v1181, %v1825
      %v1954 = vadd.f32 %v1182, %v1826
      %v1955 = vadd.f32 %v1183, %v1827
      %v1956 = vadd.f32 %v1184, %v1828
      %v1957 = vadd.f32 %v1185, %v1829
      %v1958 = vadd.f32 %v1186, %v1830
      %v1959 = vadd.f32 %v1187, %v1831
      %v1960 = vadd.f32 %v1188, %v1832
      %v1961 = vadd.f32 %v1189, %v1833
      %v1962 = vadd.f32 %v1190, %v1834
      %v1963 = vadd.f32 %v1191, %v1835
      %v1964 = vadd.f32 %v1192, %v1836
      %v1965 = vadd.f32 %v1193, %v1837
      %v1966 = vadd.f32 %v1194, %v1838
      %v1967 = vadd.f32 %v1195, %v1839
      %v1968 = vadd.f32 %v1196, %v1840
      %v1969 = vadd.f32 %v1197, %v1841
      %v1970 = vadd.f32 %v1198, %v1842
      %v1971 = vadd.f32 %v1199, %v1843
      %v1972 = vadd.f32 %v1200, %v1844
      %v1973 = vadd.f32 %v1201, %v1845
      %v1974 = vadd.f32 %v1202, %v1846
      %v1975 = vadd.f32 %v1203, %v1847
      %v1976 = vadd.f32 %v1204, %v1848
      %v1977 = vadd.f32 %v1205, %v1849
      %v1978 = vadd.f32 %v1206, %v1850
      %v1979 = vadd.f32 %v1207, %v1851
      %v1980 = vadd.f32 %v1208, %v1852
      %v1981 = vadd.f32 %v1209, %v1853
      %v1982 = vadd.f32 %v1210, %v1854
      %v1983 = vadd.f32 %v1211, %v1855
      %v1984 = vadd.f32 %v1212, %v1856
      %v1985 = vadd.f32 %v1213, %v1857
      %v1986 = vadd.f32 %v1214, %v1858
      %v1987 = vadd.f32 %v1215, %v1859
      %v1988 = vadd.f32 %v1216, %v1860
      %v1989 = vadd.f32 %v1217, %v1861
      %v1990 = vadd.f32 %v1218, %v1862
      %v1991 = vadd.f32 %v1219, %v1863
      %v1992 = vadd.f32 %v1220, %v1864
      %v1993 = vadd.f32 %v1221, %v1865
      %v1994 = vadd.f32 %v1222, %v1866
      %v1995 = vadd.f32 %v1223, %v1867
      %v1996 = vadd.f32 %v1224, %v1868
      %v1997 = vadd.f32 %v1225, %v1869
      %v1998 = vadd.f32 %v1226, %v1870
      %v1999 = vadd.f32 %v1227, %v1871
      %v2000 = vadd.f32 %v1228, %v1872
      %v2001 = vadd.f32 %v1229, %v1873
      %v2002 = vadd.f32 %v1230, %v1874
      %v2003 = vadd.f32 %v1231, %v1875
      %v2004 = vadd.f32 %v1232, %v1876
      %v2005 = vadd.f32 %v1233, %v1877
      %v2006 = vadd.f32 %v1234, %v1878
      %v2007 = vadd.f32 %v1235, %v1879
      %v2008 = vadd.f32 %v1236, %v1880
      %v2009 = vadd.f32 %v1237, %v1881
      %v2010 = vadd.f32 %v1238, %v1882
      %v2011 = vadd.f32 %v1239, %v1883
      %v2012 = vadd.f32 %v1240, %v1884
      %v2013 = vadd.f32 %v1241, %v1885
      %v2014 = vadd.f32 %v1242, %v1886
      %2015 = vset.pattern.permute.xlu0 2
      %2016 = vperm.xlu0 %2015, %v342
      %v2017 = vpop.permute.xlu0 %2016
      %2019 = vset.pattern.permute.xlu0 2
      %2020 = vperm.xlu0 %2019, %v343
      %v2021 = vpop.permute.xlu0 %2020
      %2023 = vset.pattern.permute.xlu0 2
      %2024 = vperm.xlu0 %2023, %v344
      %v2025 = vpop.permute.xlu0 %2024
      %2027 = vset.pattern.permute.xlu0 2
      %2028 = vperm.xlu0 %2027, %v345
      %v2029 = vpop.permute.xlu0 %2028
      %2031 = vset.pattern.permute.xlu0 2
      %2032 = vperm.xlu0 %2031, %v346
      %v2033 = vpop.permute.xlu0 %2032
      %2035 = vset.pattern.permute.xlu0 2
      %2036 = vperm.xlu0 %2035, %v347
      %v2037 = vpop.permute.xlu0 %2036
      %2039 = vset.pattern.permute.xlu0 2
      %2040 = vperm.xlu0 %2039, %v348
      %v2041 = vpop.permute.xlu0 %2040
      %2043 = vset.pattern.permute.xlu0 2
      %2044 = vperm.xlu0 %2043, %v349
      %v2045 = vpop.permute.xlu0 %2044
      %2047 = vset.pattern.permute.xlu0 2
      %2048 = vperm.xlu0 %2047, %v350
      %v2049 = vpop.permute.xlu0 %2048
      %2051 = vset.pattern.permute.xlu0 2
      %2052 = vperm.xlu0 %2051, %v351
      %v2053 = vpop.permute.xlu0 %2052
      %2055 = vset.pattern.permute.xlu0 2
      %2056 = vperm.xlu0 %2055, %v352
      %v2057 = vpop.permute.xlu0 %2056
      %2059 = vset.pattern.permute.xlu0 2
      %2060 = vperm.xlu0 %2059, %v353
      %v2061 = vpop.permute.xlu0 %2060
      %2063 = vset.pattern.permute.xlu0 2
      %2064 = vperm.xlu0 %2063, %v354
      %v2065 = vpop.permute.xlu0 %2064
      %2067 = vset.pattern.permute.xlu0 2
      %2068 = vperm.xlu0 %2067, %v355
      %v2069 = vpop.permute.xlu0 %2068
      %2071 = vset.pattern.permute.xlu0 2
      %2072 = vperm.xlu0 %2071, %v356
      %v2073 = vpop.permute.xlu0 %2072
      %2075 = vset.pattern.permute.xlu0 2
      %2076 = vperm.xlu0 %2075, %v357
      %v2077 = vpop.permute.xlu0 %2076
      %2079 = vset.pattern.permute.xlu0 2
      %2080 = vperm.xlu0 %2079, %v358
      %v2081 = vpop.permute.xlu0 %2080
      %2083 = vset.pattern.permute.xlu0 2
      %2084 = vperm.xlu0 %2083, %v359
      %v2085 = vpop.permute.xlu0 %2084
      %2087 = vset.pattern.permute.xlu0 2
      %2088 = vperm.xlu0 %2087, %v360
      %v2089 = vpop.permute.xlu0 %2088
      %2091 = vset.pattern.permute.xlu0 2
      %2092 = vperm.xlu0 %2091, %v361
      %v2093 = vpop.permute.xlu0 %2092
      %2095 = vset.pattern.permute.xlu0 2
      %2096 = vperm.xlu0 %2095, %v362
      %v2097 = vpop.permute.xlu0 %2096
      %2099 = vset.pattern.permute.xlu0 2
      %2100 = vperm.xlu0 %2099, %v363
      %v2101 = vpop.permute.xlu0 %2100
      %2103 = vset.pattern.permute.xlu0 2
      %2104 = vperm.xlu0 %2103, %v364
      %v2105 = vpop.permute.xlu0 %2104
      %2107 = vset.pattern.permute.xlu0 2
      %2108 = vperm.xlu0 %2107, %v365
      %v2109 = vpop.permute.xlu0 %2108
      %2111 = vset.pattern.permute.xlu0 2
      %2112 = vperm.xlu0 %2111, %v366
      %v2113 = vpop.permute.xlu0 %2112
      %2115 = vset.pattern.permute.xlu0 2
      %2116 = vperm.xlu0 %2115, %v367
      %v2117 = vpop.permute.xlu0 %2116
      %2119 = vset.pattern.permute.xlu0 2
      %2120 = vperm.xlu0 %2119, %v368
      %v2121 = vpop.permute.xlu0 %2120
      %2123 = vset.pattern.permute.xlu0 2
      %2124 = vperm.xlu0 %2123, %v369
      %v2125 = vpop.permute.xlu0 %2124
      %2127 = vset.pattern.permute.xlu0 2
      %2128 = vperm.xlu0 %2127, %v370
      %v2129 = vpop.permute.xlu0 %2128
      %2131 = vset.pattern.permute.xlu0 2
      %2132 = vperm.xlu0 %2131, %v371
      %v2133 = vpop.permute.xlu0 %2132
      %2135 = vset.pattern.permute.xlu0 2
      %2136 = vperm.xlu0 %2135, %v372
      %v2137 = vpop.permute.xlu0 %2136
      %2139 = vset.pattern.permute.xlu0 2
      %2140 = vperm.xlu0 %2139, %v373
      %v2141 = vpop.permute.xlu0 %2140
      %2143 = vset.pattern.permute.xlu0 2
      %2144 = vperm.xlu0 %2143, %v374
      %v2145 = vpop.permute.xlu0 %2144
      %2147 = vset.pattern.permute.xlu0 2
      %2148 = vperm.xlu0 %2147, %v375
      %v2149 = vpop.permute.xlu0 %2148
      %2151 = vset.pattern.permute.xlu0 2
      %2152 = vperm.xlu0 %2151, %v376
      %v2153 = vpop.permute.xlu0 %2152
      %2155 = vset.pattern.permute.xlu0 2
      %2156 = vperm.xlu0 %2155, %v377
      %v2157 = vpop.permute.xlu0 %2156
      %2159 = vset.pattern.permute.xlu0 2
      %2160 = vperm.xlu0 %2159, %v378
      %v2161 = vpop.permute.xlu0 %2160
      %2163 = vset.pattern.permute.xlu0 2
      %2164 = vperm.xlu0 %2163, %v379
      %v2165 = vpop.permute.xlu0 %2164
      %2167 = vset.pattern.permute.xlu0 2
      %2168 = vperm.xlu0 %2167, %v380
      %v2169 = vpop.permute.xlu0 %2168
      %2171 = vset.pattern.permute.xlu0 2
      %2172 = vperm.xlu0 %2171, %v381
      %v2173 = vpop.permute.xlu0 %2172
      %2175 = vset.pattern.permute.xlu0 2
      %2176 = vperm.xlu0 %2175, %v382
      %v2177 = vpop.permute.xlu0 %2176
      %2179 = vset.pattern.permute.xlu0 2
      %2180 = vperm.xlu0 %2179, %v383
      %v2181 = vpop.permute.xlu0 %2180
      %2183 = vset.pattern.permute.xlu0 2
      %2184 = vperm.xlu0 %2183, %v384
      %v2185 = vpop.permute.xlu0 %2184
      %2187 = vset.pattern.permute.xlu0 2
      %2188 = vperm.xlu0 %2187, %v385
      %v2189 = vpop.permute.xlu0 %2188
      %2191 = vset.pattern.permute.xlu0 2
      %2192 = vperm.xlu0 %2191, %v386
      %v2193 = vpop.permute.xlu0 %2192
      %2195 = vset.pattern.permute.xlu0 2
      %2196 = vperm.xlu0 %2195, %v387
      %v2197 = vpop.permute.xlu0 %2196
      %2199 = vset.pattern.permute.xlu0 2
      %2200 = vperm.xlu0 %2199, %v388
      %v2201 = vpop.permute.xlu0 %2200
      %2203 = vset.pattern.permute.xlu0 2
      %2204 = vperm.xlu0 %2203, %v389
      %v2205 = vpop.permute.xlu0 %2204
      %2207 = vset.pattern.permute.xlu0 2
      %2208 = vperm.xlu0 %2207, %v390
      %v2209 = vpop.permute.xlu0 %2208
      %2211 = vset.pattern.permute.xlu0 2
      %2212 = vperm.xlu0 %2211, %v391
      %v2213 = vpop.permute.xlu0 %2212
      %2215 = vset.pattern.permute.xlu0 2
      %2216 = vperm.xlu0 %2215, %v392
      %v2217 = vpop.permute.xlu0 %2216
      %2219 = vset.pattern.permute.xlu0 2
      %2220 = vperm.xlu0 %2219, %v393
      %v2221 = vpop.permute.xlu0 %2220
      %2223 = vset.pattern.permute.xlu0 2
      %2224 = vperm.xlu0 %2223, %v394
      %v2225 = vpop.permute.xlu0 %2224
      %2227 = vset.pattern.permute.xlu0 2
      %2228 = vperm.xlu0 %2227, %v395
      %v2229 = vpop.permute.xlu0 %2228
      %2231 = vset.pattern.permute.xlu0 2
      %2232 = vperm.xlu0 %2231, %v396
      %v2233 = vpop.permute.xlu0 %2232
      %2235 = vset.pattern.permute.xlu0 2
      %2236 = vperm.xlu0 %2235, %v397
      %v2237 = vpop.permute.xlu0 %2236
      %2239 = vset.pattern.permute.xlu0 2
      %2240 = vperm.xlu0 %2239, %v398
      %v2241 = vpop.permute.xlu0 %2240
      %2243 = vset.pattern.permute.xlu0 2
      %2244 = vperm.xlu0 %2243, %v399
      %v2245 = vpop.permute.xlu0 %2244
      %2247 = vset.pattern.permute.xlu0 2
      %2248 = vperm.xlu0 %2247, %v400
      %v2249 = vpop.permute.xlu0 %2248
      %2251 = vset.pattern.permute.xlu0 2
      %2252 = vperm.xlu0 %2251, %v401
      %v2253 = vpop.permute.xlu0 %2252
      %2255 = vset.pattern.permute.xlu0 2
      %2256 = vperm.xlu0 %2255, %v402
      %v2257 = vpop.permute.xlu0 %2256
      %2259 = vset.pattern.permute.xlu0 2
      %2260 = vperm.xlu0 %2259, %v403
      %v2261 = vpop.permute.xlu0 %2260
      %2263 = vset.pattern.permute.xlu0 2
      %2264 = vperm.xlu0 %2263, %v404
      %v2265 = vpop.permute.xlu0 %2264
      %2267 = vset.pattern.permute.xlu0 2
      %2268 = vperm.xlu0 %2267, %v405
      %v2269 = vpop.permute.xlu0 %2268
      %2271 = vset.pattern.permute.xlu0 2
      %2272 = vperm.xlu0 %2271, %v406
      %v2273 = vpop.permute.xlu0 %2272
      %2275 = vset.pattern.permute.xlu0 2
      %2276 = vperm.xlu0 %2275, %v407
      %v2277 = vpop.permute.xlu0 %2276
      %2279 = vset.pattern.permute.xlu0 2
      %2280 = vperm.xlu0 %2279, %v408
      %v2281 = vpop.permute.xlu0 %2280
      %2283 = vset.pattern.permute.xlu0 2
      %2284 = vperm.xlu0 %2283, %v409
      %v2285 = vpop.permute.xlu0 %2284
      %2287 = vset.pattern.permute.xlu0 2
      %2288 = vperm.xlu0 %2287, %v410
      %v2289 = vpop.permute.xlu0 %2288
      %2291 = vset.pattern.permute.xlu0 2
      %2292 = vperm.xlu0 %2291, %v411
      %v2293 = vpop.permute.xlu0 %2292
      %2295 = vset.pattern.permute.xlu0 2
      %2296 = vperm.xlu0 %2295, %v412
      %v2297 = vpop.permute.xlu0 %2296
      %2299 = vset.pattern.permute.xlu0 2
      %2300 = vperm.xlu0 %2299, %v413
      %v2301 = vpop.permute.xlu0 %2300
      %2303 = vset.pattern.permute.xlu0 2
      %2304 = vperm.xlu0 %2303, %v414
      %v2305 = vpop.permute.xlu0 %2304
      %2307 = vset.pattern.permute.xlu0 2
      %2308 = vperm.xlu0 %2307, %v415
      %v2309 = vpop.permute.xlu0 %2308
      %2311 = vset.pattern.permute.xlu0 2
      %2312 = vperm.xlu0 %2311, %v416
      %v2313 = vpop.permute.xlu0 %2312
      %2315 = vset.pattern.permute.xlu0 2
      %2316 = vperm.xlu0 %2315, %v417
      %v2317 = vpop.permute.xlu0 %2316
      %2319 = vset.pattern.permute.xlu0 2
      %2320 = vperm.xlu0 %2319, %v418
      %v2321 = vpop.permute.xlu0 %2320
      %2323 = vset.pattern.permute.xlu0 2
      %2324 = vperm.xlu0 %2323, %v419
      %v2325 = vpop.permute.xlu0 %2324
      %2327 = vset.pattern.permute.xlu0 2
      %2328 = vperm.xlu0 %2327, %v420
      %v2329 = vpop.permute.xlu0 %2328
      %2331 = vset.pattern.permute.xlu0 2
      %2332 = vperm.xlu0 %2331, %v421
      %v2333 = vpop.permute.xlu0 %2332
      %2335 = vset.pattern.permute.xlu0 2
      %2336 = vperm.xlu0 %2335, %v422
      %v2337 = vpop.permute.xlu0 %2336
      %2339 = vset.pattern.permute.xlu0 2
      %2340 = vperm.xlu0 %2339, %v423
      %v2341 = vpop.permute.xlu0 %2340
      %2343 = vset.pattern.permute.xlu0 2
      %2344 = vperm.xlu0 %2343, %v424
      %v2345 = vpop.permute.xlu0 %2344
      %2347 = vset.pattern.permute.xlu0 2
      %2348 = vperm.xlu0 %2347, %v425
      %v2349 = vpop.permute.xlu0 %2348
      %2351 = vset.pattern.permute.xlu0 2
      %2352 = vperm.xlu0 %2351, %v426
      %v2353 = vpop.permute.xlu0 %2352
      %2355 = vset.pattern.permute.xlu0 2
      %2356 = vperm.xlu0 %2355, %v427
      %v2357 = vpop.permute.xlu0 %2356
      %2359 = vset.pattern.permute.xlu0 2
      %2360 = vperm.xlu0 %2359, %v428
      %v2361 = vpop.permute.xlu0 %2360
      %2363 = vset.pattern.permute.xlu0 2
      %2364 = vperm.xlu0 %2363, %v429
      %v2365 = vpop.permute.xlu0 %2364
      %2367 = vset.pattern.permute.xlu0 2
      %2368 = vperm.xlu0 %2367, %v430
      %v2369 = vpop.permute.xlu0 %2368
      %2371 = vset.pattern.permute.xlu0 2
      %2372 = vperm.xlu0 %2371, %v431
      %v2373 = vpop.permute.xlu0 %2372
      %2375 = vset.pattern.permute.xlu0 2
      %2376 = vperm.xlu0 %2375, %v432
      %v2377 = vpop.permute.xlu0 %2376
      %2379 = vset.pattern.permute.xlu0 2
      %2380 = vperm.xlu0 %2379, %v433
      %v2381 = vpop.permute.xlu0 %2380
      %2383 = vset.pattern.permute.xlu0 2
      %2384 = vperm.xlu0 %2383, %v434
      %v2385 = vpop.permute.xlu0 %2384
      %2387 = vset.pattern.permute.xlu0 2
      %2388 = vperm.xlu0 %2387, %v435
      %v2389 = vpop.permute.xlu0 %2388
      %2391 = vset.pattern.permute.xlu0 2
      %2392 = vperm.xlu0 %2391, %v436
      %v2393 = vpop.permute.xlu0 %2392
      %2395 = vset.pattern.permute.xlu0 2
      %2396 = vperm.xlu0 %2395, %v437
      %v2397 = vpop.permute.xlu0 %2396
      %2399 = vset.pattern.permute.xlu0 2
      %2400 = vperm.xlu0 %2399, %v438
      %v2401 = vpop.permute.xlu0 %2400
      %2403 = vset.pattern.permute.xlu0 2
      %2404 = vperm.xlu0 %2403, %v439
      %v2405 = vpop.permute.xlu0 %2404
      %2407 = vset.pattern.permute.xlu0 2
      %2408 = vperm.xlu0 %2407, %v440
      %v2409 = vpop.permute.xlu0 %2408
      %2411 = vset.pattern.permute.xlu0 2
      %2412 = vperm.xlu0 %2411, %v441
      %v2413 = vpop.permute.xlu0 %2412
      %2415 = vset.pattern.permute.xlu0 2
      %2416 = vperm.xlu0 %2415, %v442
      %v2417 = vpop.permute.xlu0 %2416
      %2419 = vset.pattern.permute.xlu0 2
      %2420 = vperm.xlu0 %2419, %v443
      %v2421 = vpop.permute.xlu0 %2420
      %2423 = vset.pattern.permute.xlu0 2
      %2424 = vperm.xlu0 %2423, %v444
      %v2425 = vpop.permute.xlu0 %2424
      %2427 = vset.pattern.permute.xlu0 2
      %2428 = vperm.xlu0 %2427, %v445
      %v2429 = vpop.permute.xlu0 %2428
      %2431 = vset.pattern.permute.xlu0 2
      %2432 = vperm.xlu0 %2431, %v446
      %v2433 = vpop.permute.xlu0 %2432
      %2435 = vset.pattern.permute.xlu0 2
      %2436 = vperm.xlu0 %2435, %v447
      %v2437 = vpop.permute.xlu0 %2436
      %2439 = vset.pattern.permute.xlu0 2
      %2440 = vperm.xlu0 %2439, %v448
      %v2441 = vpop.permute.xlu0 %2440
      %2443 = vset.pattern.permute.xlu0 2
      %2444 = vperm.xlu0 %2443, %v449
      %v2445 = vpop.permute.xlu0 %2444
      %2447 = vset.pattern.permute.xlu0 2
      %2448 = vperm.xlu0 %2447, %v450
      %v2449 = vpop.permute.xlu0 %2448
      %2451 = vset.pattern.permute.xlu0 2
      %2452 = vperm.xlu0 %2451, %v451
      %v2453 = vpop.permute.xlu0 %2452
      %2455 = vset.pattern.permute.xlu0 2
      %2456 = vperm.xlu0 %2455, %v452
      %v2457 = vpop.permute.xlu0 %2456
      %2459 = vset.pattern.permute.xlu0 2
      %2460 = vperm.xlu0 %2459, %v453
      %v2461 = vpop.permute.xlu0 %2460
      %2463 = vset.pattern.permute.xlu0 2
      %2464 = vperm.xlu0 %2463, %v454
      %v2465 = vpop.permute.xlu0 %2464
      %2467 = vset.pattern.permute.xlu0 2
      %2468 = vperm.xlu0 %2467, %v455
      %v2469 = vpop.permute.xlu0 %2468
      %2471 = vset.pattern.permute.xlu0 2
      %2472 = vperm.xlu0 %2471, %v456
      %v2473 = vpop.permute.xlu0 %2472
      %2475 = vset.pattern.permute.xlu0 2
      %2476 = vperm.xlu0 %2475, %v457
      %v2477 = vpop.permute.xlu0 %2476
      %2479 = vset.pattern.permute.xlu0 2
      %2480 = vperm.xlu0 %2479, %v458
      %v2481 = vpop.permute.xlu0 %2480
      %2483 = vset.pattern.permute.xlu0 2
      %2484 = vperm.xlu0 %2483, %v459
      %v2485 = vpop.permute.xlu0 %2484
      %2487 = vset.pattern.permute.xlu0 2
      %2488 = vperm.xlu0 %2487, %v460
      %v2489 = vpop.permute.xlu0 %2488
      %2491 = vset.pattern.permute.xlu0 2
      %2492 = vperm.xlu0 %2491, %v461
      %v2493 = vpop.permute.xlu0 %2492
      %2495 = vset.pattern.permute.xlu0 2
      %2496 = vperm.xlu0 %2495, %v462
      %v2497 = vpop.permute.xlu0 %2496
      %2499 = vset.pattern.permute.xlu0 2
      %2500 = vperm.xlu0 %2499, %v463
      %v2501 = vpop.permute.xlu0 %2500
      %2503 = vset.pattern.permute.xlu0 2
      %2504 = vperm.xlu0 %2503, %v464
      %v2505 = vpop.permute.xlu0 %2504
      %2507 = vset.pattern.permute.xlu0 2
      %2508 = vperm.xlu0 %2507, %v465
      %v2509 = vpop.permute.xlu0 %2508
      %2511 = vset.pattern.permute.xlu0 2
      %2512 = vperm.xlu0 %2511, %v466
      %v2513 = vpop.permute.xlu0 %2512
      %2515 = vset.pattern.permute.xlu0 2
      %2516 = vperm.xlu0 %2515, %v467
      %v2517 = vpop.permute.xlu0 %2516
      %2519 = vset.pattern.permute.xlu0 2
      %2520 = vperm.xlu0 %2519, %v468
      %v2521 = vpop.permute.xlu0 %2520
      %2523 = vset.pattern.permute.xlu0 2
      %2524 = vperm.xlu0 %2523, %v469
      %v2525 = vpop.permute.xlu0 %2524
      %v2527 = vlaneseq
      %v2528 = vshrl.u32 %v2527, 7
      %v2529 = vsub.s32 2, %v2528
      %v2530 = vrot.slane %v470, %v2529
      %v2531 = vmul.f32 %v2017, %v2530
      %v2532 = vmul.f32 %v2021, %v2530
      %v2533 = vmul.f32 %v2025, %v2530
      %v2534 = vmul.f32 %v2029, %v2530
      %v2535 = vmul.f32 %v2033, %v2530
      %v2536 = vmul.f32 %v2037, %v2530
      %v2537 = vmul.f32 %v2041, %v2530
      %v2538 = vmul.f32 %v2045, %v2530
      %v2539 = vmul.f32 %v2049, %v2530
      %v2540 = vmul.f32 %v2053, %v2530
      %v2541 = vmul.f32 %v2057, %v2530
      %v2542 = vmul.f32 %v2061, %v2530
      %v2543 = vmul.f32 %v2065, %v2530
      %v2544 = vmul.f32 %v2069, %v2530
      %v2545 = vmul.f32 %v2073, %v2530
      %v2546 = vmul.f32 %v2077, %v2530
      %v2547 = vmul.f32 %v2081, %v2530
      %v2548 = vmul.f32 %v2085, %v2530
      %v2549 = vmul.f32 %v2089, %v2530
      %v2550 = vmul.f32 %v2093, %v2530
      %v2551 = vmul.f32 %v2097, %v2530
      %v2552 = vmul.f32 %v2101, %v2530
      %v2553 = vmul.f32 %v2105, %v2530
      %v2554 = vmul.f32 %v2109, %v2530
      %v2555 = vmul.f32 %v2113, %v2530
      %v2556 = vmul.f32 %v2117, %v2530
      %v2557 = vmul.f32 %v2121, %v2530
      %v2558 = vmul.f32 %v2125, %v2530
      %v2559 = vmul.f32 %v2129, %v2530
      %v2560 = vmul.f32 %v2133, %v2530
      %v2561 = vmul.f32 %v2137, %v2530
      %v2562 = vmul.f32 %v2141, %v2530
      %v2563 = vmul.f32 %v2145, %v2530
      %v2564 = vmul.f32 %v2149, %v2530
      %v2565 = vmul.f32 %v2153, %v2530
      %v2566 = vmul.f32 %v2157, %v2530
      %v2567 = vmul.f32 %v2161, %v2530
      %v2568 = vmul.f32 %v2165, %v2530
      %v2569 = vmul.f32 %v2169, %v2530
      %v2570 = vmul.f32 %v2173, %v2530
      %v2571 = vmul.f32 %v2177, %v2530
      %v2572 = vmul.f32 %v2181, %v2530
      %v2573 = vmul.f32 %v2185, %v2530
      %v2574 = vmul.f32 %v2189, %v2530
      %v2575 = vmul.f32 %v2193, %v2530
      %v2576 = vmul.f32 %v2197, %v2530
      %v2577 = vmul.f32 %v2201, %v2530
      %v2578 = vmul.f32 %v2205, %v2530
      %v2579 = vmul.f32 %v2209, %v2530
      %v2580 = vmul.f32 %v2213, %v2530
      %v2581 = vmul.f32 %v2217, %v2530
      %v2582 = vmul.f32 %v2221, %v2530
      %v2583 = vmul.f32 %v2225, %v2530
      %v2584 = vmul.f32 %v2229, %v2530
      %v2585 = vmul.f32 %v2233, %v2530
      %v2586 = vmul.f32 %v2237, %v2530
      %v2587 = vmul.f32 %v2241, %v2530
      %v2588 = vmul.f32 %v2245, %v2530
      %v2589 = vmul.f32 %v2249, %v2530
      %v2590 = vmul.f32 %v2253, %v2530
      %v2591 = vmul.f32 %v2257, %v2530
      %v2592 = vmul.f32 %v2261, %v2530
      %v2593 = vmul.f32 %v2265, %v2530
      %v2594 = vmul.f32 %v2269, %v2530
      %v2595 = vmul.f32 %v2273, %v2530
      %v2596 = vmul.f32 %v2277, %v2530
      %v2597 = vmul.f32 %v2281, %v2530
      %v2598 = vmul.f32 %v2285, %v2530
      %v2599 = vmul.f32 %v2289, %v2530
      %v2600 = vmul.f32 %v2293, %v2530
      %v2601 = vmul.f32 %v2297, %v2530
      %v2602 = vmul.f32 %v2301, %v2530
      %v2603 = vmul.f32 %v2305, %v2530
      %v2604 = vmul.f32 %v2309, %v2530
      %v2605 = vmul.f32 %v2313, %v2530
      %v2606 = vmul.f32 %v2317, %v2530
      %v2607 = vmul.f32 %v2321, %v2530
      %v2608 = vmul.f32 %v2325, %v2530
      %v2609 = vmul.f32 %v2329, %v2530
      %v2610 = vmul.f32 %v2333, %v2530
      %v2611 = vmul.f32 %v2337, %v2530
      %v2612 = vmul.f32 %v2341, %v2530
      %v2613 = vmul.f32 %v2345, %v2530
      %v2614 = vmul.f32 %v2349, %v2530
      %v2615 = vmul.f32 %v2353, %v2530
      %v2616 = vmul.f32 %v2357, %v2530
      %v2617 = vmul.f32 %v2361, %v2530
      %v2618 = vmul.f32 %v2365, %v2530
      %v2619 = vmul.f32 %v2369, %v2530
      %v2620 = vmul.f32 %v2373, %v2530
      %v2621 = vmul.f32 %v2377, %v2530
      %v2622 = vmul.f32 %v2381, %v2530
      %v2623 = vmul.f32 %v2385, %v2530
      %v2624 = vmul.f32 %v2389, %v2530
      %v2625 = vmul.f32 %v2393, %v2530
      %v2626 = vmul.f32 %v2397, %v2530
      %v2627 = vmul.f32 %v2401, %v2530
      %v2628 = vmul.f32 %v2405, %v2530
      %v2629 = vmul.f32 %v2409, %v2530
      %v2630 = vmul.f32 %v2413, %v2530
      %v2631 = vmul.f32 %v2417, %v2530
      %v2632 = vmul.f32 %v2421, %v2530
      %v2633 = vmul.f32 %v2425, %v2530
      %v2634 = vmul.f32 %v2429, %v2530
      %v2635 = vmul.f32 %v2433, %v2530
      %v2636 = vmul.f32 %v2437, %v2530
      %v2637 = vmul.f32 %v2441, %v2530
      %v2638 = vmul.f32 %v2445, %v2530
      %v2639 = vmul.f32 %v2449, %v2530
      %v2640 = vmul.f32 %v2453, %v2530
      %v2641 = vmul.f32 %v2457, %v2530
      %v2642 = vmul.f32 %v2461, %v2530
      %v2643 = vmul.f32 %v2465, %v2530
      %v2644 = vmul.f32 %v2469, %v2530
      %v2645 = vmul.f32 %v2473, %v2530
      %v2646 = vmul.f32 %v2477, %v2530
      %v2647 = vmul.f32 %v2481, %v2530
      %v2648 = vmul.f32 %v2485, %v2530
      %v2649 = vmul.f32 %v2489, %v2530
      %v2650 = vmul.f32 %v2493, %v2530
      %v2651 = vmul.f32 %v2497, %v2530
      %v2652 = vmul.f32 %v2501, %v2530
      %v2653 = vmul.f32 %v2505, %v2530
      %v2654 = vmul.f32 %v2509, %v2530
      %v2655 = vmul.f32 %v2513, %v2530
      %v2656 = vmul.f32 %v2517, %v2530
      %v2657 = vmul.f32 %v2521, %v2530
      %v2658 = vmul.f32 %v2525, %v2530
      %v2659 = vadd.f32 %v1887, %v2531
      %v2660 = vadd.f32 %v1888, %v2532
      %v2661 = vadd.f32 %v1889, %v2533
      %v2662 = vadd.f32 %v1890, %v2534
      %v2663 = vadd.f32 %v1891, %v2535
      %v2664 = vadd.f32 %v1892, %v2536
      %v2665 = vadd.f32 %v1893, %v2537
      %v2666 = vadd.f32 %v1894, %v2538
      %v2667 = vadd.f32 %v1895, %v2539
      %v2668 = vadd.f32 %v1896, %v2540
      %v2669 = vadd.f32 %v1897, %v2541
      %v2670 = vadd.f32 %v1898, %v2542
      %v2671 = vadd.f32 %v1899, %v2543
      %v2672 = vadd.f32 %v1900, %v2544
      %v2673 = vadd.f32 %v1901, %v2545
      %v2674 = vadd.f32 %v1902, %v2546
      %v2675 = vadd.f32 %v1903, %v2547
      %v2676 = vadd.f32 %v1904, %v2548
      %v2677 = vadd.f32 %v1905, %v2549
      %v2678 = vadd.f32 %v1906, %v2550
      %v2679 = vadd.f32 %v1907, %v2551
      %v2680 = vadd.f32 %v1908, %v2552
      %v2681 = vadd.f32 %v1909, %v2553
      %v2682 = vadd.f32 %v1910, %v2554
      %v2683 = vadd.f32 %v1911, %v2555
      %v2684 = vadd.f32 %v1912, %v2556
      %v2685 = vadd.f32 %v1913, %v2557
      %v2686 = vadd.f32 %v1914, %v2558
      %v2687 = vadd.f32 %v1915, %v2559
      %v2688 = vadd.f32 %v1916, %v2560
      %v2689 = vadd.f32 %v1917, %v2561
      %v2690 = vadd.f32 %v1918, %v2562
      %v2691 = vadd.f32 %v1919, %v2563
      %v2692 = vadd.f32 %v1920, %v2564
      %v2693 = vadd.f32 %v1921, %v2565
      %v2694 = vadd.f32 %v1922, %v2566
      %v2695 = vadd.f32 %v1923, %v2567
      %v2696 = vadd.f32 %v1924, %v2568
      %v2697 = vadd.f32 %v1925, %v2569
      %v2698 = vadd.f32 %v1926, %v2570
      %v2699 = vadd.f32 %v1927, %v2571
      %v2700 = vadd.f32 %v1928, %v2572
      %v2701 = vadd.f32 %v1929, %v2573
      %v2702 = vadd.f32 %v1930, %v2574
      %v2703 = vadd.f32 %v1931, %v2575
      %v2704 = vadd.f32 %v1932, %v2576
      %v2705 = vadd.f32 %v1933, %v2577
      %v2706 = vadd.f32 %v1934, %v2578
      %v2707 = vadd.f32 %v1935, %v2579
      %v2708 = vadd.f32 %v1936, %v2580
      %v2709 = vadd.f32 %v1937, %v2581
      %v2710 = vadd.f32 %v1938, %v2582
      %v2711 = vadd.f32 %v1939, %v2583
      %v2712 = vadd.f32 %v1940, %v2584
      %v2713 = vadd.f32 %v1941, %v2585
      %v2714 = vadd.f32 %v1942, %v2586
      %v2715 = vadd.f32 %v1943, %v2587
      %v2716 = vadd.f32 %v1944, %v2588
      %v2717 = vadd.f32 %v1945, %v2589
      %v2718 = vadd.f32 %v1946, %v2590
      %v2719 = vadd.f32 %v1947, %v2591
      %v2720 = vadd.f32 %v1948, %v2592
      %v2721 = vadd.f32 %v1949, %v2593
      %v2722 = vadd.f32 %v1950, %v2594
      %v2723 = vadd.f32 %v1951, %v2595
      %v2724 = vadd.f32 %v1952, %v2596
      %v2725 = vadd.f32 %v1953, %v2597
      %v2726 = vadd.f32 %v1954, %v2598
      %v2727 = vadd.f32 %v1955, %v2599
      %v2728 = vadd.f32 %v1956, %v2600
      %v2729 = vadd.f32 %v1957, %v2601
      %v2730 = vadd.f32 %v1958, %v2602
      %v2731 = vadd.f32 %v1959, %v2603
      %v2732 = vadd.f32 %v1960, %v2604
      %v2733 = vadd.f32 %v1961, %v2605
      %v2734 = vadd.f32 %v1962, %v2606
      %v2735 = vadd.f32 %v1963, %v2607
      %v2736 = vadd.f32 %v1964, %v2608
      %v2737 = vadd.f32 %v1965, %v2609
      %v2738 = vadd.f32 %v1966, %v2610
      %v2739 = vadd.f32 %v1967, %v2611
      %v2740 = vadd.f32 %v1968, %v2612
      %v2741 = vadd.f32 %v1969, %v2613
      %v2742 = vadd.f32 %v1970, %v2614
      %v2743 = vadd.f32 %v1971, %v2615
      %v2744 = vadd.f32 %v1972, %v2616
      %v2745 = vadd.f32 %v1973, %v2617
      %v2746 = vadd.f32 %v1974, %v2618
      %v2747 = vadd.f32 %v1975, %v2619
      %v2748 = vadd.f32 %v1976, %v2620
      %v2749 = vadd.f32 %v1977, %v2621
      %v2750 = vadd.f32 %v1978, %v2622
      %v2751 = vadd.f32 %v1979, %v2623
      %v2752 = vadd.f32 %v1980, %v2624
      %v2753 = vadd.f32 %v1981, %v2625
      %v2754 = vadd.f32 %v1982, %v2626
      %v2755 = vadd.f32 %v1983, %v2627
      %v2756 = vadd.f32 %v1984, %v2628
      %v2757 = vadd.f32 %v1985, %v2629
      %v2758 = vadd.f32 %v1986, %v2630
      %v2759 = vadd.f32 %v1987, %v2631
      %v2760 = vadd.f32 %v1988, %v2632
      %v2761 = vadd.f32 %v1989, %v2633
      %v2762 = vadd.f32 %v1990, %v2634
      %v2763 = vadd.f32 %v1991, %v2635
      %v2764 = vadd.f32 %v1992, %v2636
      %v2765 = vadd.f32 %v1993, %v2637
      %v2766 = vadd.f32 %v1994, %v2638
      %v2767 = vadd.f32 %v1995, %v2639
      %v2768 = vadd.f32 %v1996, %v2640
      %v2769 = vadd.f32 %v1997, %v2641
      %v2770 = vadd.f32 %v1998, %v2642
      %v2771 = vadd.f32 %v1999, %v2643
      %v2772 = vadd.f32 %v2000, %v2644
      %v2773 = vadd.f32 %v2001, %v2645
      %v2774 = vadd.f32 %v2002, %v2646
      %v2775 = vadd.f32 %v2003, %v2647
      %v2776 = vadd.f32 %v2004, %v2648
      %v2777 = vadd.f32 %v2005, %v2649
      %v2778 = vadd.f32 %v2006, %v2650
      %v2779 = vadd.f32 %v2007, %v2651
      %v2780 = vadd.f32 %v2008, %v2652
      %v2781 = vadd.f32 %v2009, %v2653
      %v2782 = vadd.f32 %v2010, %v2654
      %v2783 = vadd.f32 %v2011, %v2655
      %v2784 = vadd.f32 %v2012, %v2656
      %v2785 = vadd.f32 %v2013, %v2657
      %v2786 = vadd.f32 %v2014, %v2658
      %v2787 = vld [vmem:[%s2] sm:$0x1]
      %v2789 = vlaneseq
      %v2790 = vshrl.u32 %v2789, 7
      %v2791 = vsub.s32 0, %v2790
      %v2792 = vrot.slane %v2787, %v2791
      %v2794 = vadd.f32 %v2659, %v2792
      %v2795 = vadd.f32 %v2660, %v2792
      %v2796 = vadd.f32 %v2661, %v2792
      %v2797 = vadd.f32 %v2662, %v2792
      %v2798 = vadd.f32 %v2663, %v2792
      %v2799 = vadd.f32 %v2664, %v2792
      %v2800 = vadd.f32 %v2665, %v2792
      %v2801 = vadd.f32 %v2666, %v2792
      %v2802 = vadd.f32 %v2667, %v2792
      %v2803 = vadd.f32 %v2668, %v2792
      %v2804 = vadd.f32 %v2669, %v2792
      %v2805 = vadd.f32 %v2670, %v2792
      %v2806 = vadd.f32 %v2671, %v2792
      %v2807 = vadd.f32 %v2672, %v2792
      %v2808 = vadd.f32 %v2673, %v2792
      %v2809 = vadd.f32 %v2674, %v2792
      %v2810 = vadd.f32 %v2675, %v2792
      %v2811 = vadd.f32 %v2676, %v2792
      %v2812 = vadd.f32 %v2677, %v2792
      %v2813 = vadd.f32 %v2678, %v2792
      %v2814 = vadd.f32 %v2679, %v2792
      %v2815 = vadd.f32 %v2680, %v2792
      %v2816 = vadd.f32 %v2681, %v2792
      %v2817 = vadd.f32 %v2682, %v2792
      %v2818 = vadd.f32 %v2683, %v2792
      %v2819 = vadd.f32 %v2684, %v2792
      %v2820 = vadd.f32 %v2685, %v2792
      %v2821 = vadd.f32 %v2686, %v2792
      %v2822 = vadd.f32 %v2687, %v2792
      %v2823 = vadd.f32 %v2688, %v2792
      %v2824 = vadd.f32 %v2689, %v2792
      %v2825 = vadd.f32 %v2690, %v2792
      %v2826 = vadd.f32 %v2691, %v2792
      %v2827 = vadd.f32 %v2692, %v2792
      %v2828 = vadd.f32 %v2693, %v2792
      %v2829 = vadd.f32 %v2694, %v2792
      %v2830 = vadd.f32 %v2695, %v2792
      %v2831 = vadd.f32 %v2696, %v2792
      %v2832 = vadd.f32 %v2697, %v2792
      %v2833 = vadd.f32 %v2698, %v2792
      %v2834 = vadd.f32 %v2699, %v2792
      %v2835 = vadd.f32 %v2700, %v2792
      %v2836 = vadd.f32 %v2701, %v2792
      %v2837 = vadd.f32 %v2702, %v2792
      %v2838 = vadd.f32 %v2703, %v2792
      %v2839 = vadd.f32 %v2704, %v2792
      %v2840 = vadd.f32 %v2705, %v2792
      %v2841 = vadd.f32 %v2706, %v2792
      %v2842 = vadd.f32 %v2707, %v2792
      %v2843 = vadd.f32 %v2708, %v2792
      %v2844 = vadd.f32 %v2709, %v2792
      %v2845 = vadd.f32 %v2710, %v2792
      %v2846 = vadd.f32 %v2711, %v2792
      %v2847 = vadd.f32 %v2712, %v2792
      %v2848 = vadd.f32 %v2713, %v2792
      %v2849 = vadd.f32 %v2714, %v2792
      %v2850 = vadd.f32 %v2715, %v2792
      %v2851 = vadd.f32 %v2716, %v2792
      %v2852 = vadd.f32 %v2717, %v2792
      %v2853 = vadd.f32 %v2718, %v2792
      %v2854 = vadd.f32 %v2719, %v2792
      %v2855 = vadd.f32 %v2720, %v2792
      %v2856 = vadd.f32 %v2721, %v2792
      %v2857 = vadd.f32 %v2722, %v2792
      %v2858 = vadd.f32 %v2723, %v2792
      %v2859 = vadd.f32 %v2724, %v2792
      %v2860 = vadd.f32 %v2725, %v2792
      %v2861 = vadd.f32 %v2726, %v2792
      %v2862 = vadd.f32 %v2727, %v2792
      %v2863 = vadd.f32 %v2728, %v2792
      %v2864 = vadd.f32 %v2729, %v2792
      %v2865 = vadd.f32 %v2730, %v2792
      %v2866 = vadd.f32 %v2731, %v2792
      %v2867 = vadd.f32 %v2732, %v2792
      %v2868 = vadd.f32 %v2733, %v2792
      %v2869 = vadd.f32 %v2734, %v2792
      %v2870 = vadd.f32 %v2735, %v2792
      %v2871 = vadd.f32 %v2736, %v2792
      %v2872 = vadd.f32 %v2737, %v2792
      %v2873 = vadd.f32 %v2738, %v2792
      %v2874 = vadd.f32 %v2739, %v2792
      %v2875 = vadd.f32 %v2740, %v2792
      %v2876 = vadd.f32 %v2741, %v2792
      %v2877 = vadd.f32 %v2742, %v2792
      %v2878 = vadd.f32 %v2743, %v2792
      %v2879 = vadd.f32 %v2744, %v2792
      %v2880 = vadd.f32 %v2745, %v2792
      %v2881 = vadd.f32 %v2746, %v2792
      %v2882 = vadd.f32 %v2747, %v2792
      %v2883 = vadd.f32 %v2748, %v2792
      %v2884 = vadd.f32 %v2749, %v2792
      %v2885 = vadd.f32 %v2750, %v2792
      %v2886 = vadd.f32 %v2751, %v2792
      %v2887 = vadd.f32 %v2752, %v2792
      %v2888 = vadd.f32 %v2753, %v2792
      %v2889 = vadd.f32 %v2754, %v2792
      %v2890 = vadd.f32 %v2755, %v2792
      %v2891 = vadd.f32 %v2756, %v2792
      %v2892 = vadd.f32 %v2757, %v2792
      %v2893 = vadd.f32 %v2758, %v2792
      %v2894 = vadd.f32 %v2759, %v2792
      %v2895 = vadd.f32 %v2760, %v2792
      %v2896 = vadd.f32 %v2761, %v2792
      %v2897 = vadd.f32 %v2762, %v2792
      %v2898 = vadd.f32 %v2763, %v2792
      %v2899 = vadd.f32 %v2764, %v2792
      %v2900 = vadd.f32 %v2765, %v2792
      %v2901 = vadd.f32 %v2766, %v2792
      %v2902 = vadd.f32 %v2767, %v2792
      %v2903 = vadd.f32 %v2768, %v2792
      %v2904 = vadd.f32 %v2769, %v2792
      %v2905 = vadd.f32 %v2770, %v2792
      %v2906 = vadd.f32 %v2771, %v2792
      %v2907 = vadd.f32 %v2772, %v2792
      %v2908 = vadd.f32 %v2773, %v2792
      %v2909 = vadd.f32 %v2774, %v2792
      %v2910 = vadd.f32 %v2775, %v2792
      %v2911 = vadd.f32 %v2776, %v2792
      %v2912 = vadd.f32 %v2777, %v2792
      %v2913 = vadd.f32 %v2778, %v2792
      %v2914 = vadd.f32 %v2779, %v2792
      %v2915 = vadd.f32 %v2780, %v2792
      %v2916 = vadd.f32 %v2781, %v2792
      %v2917 = vadd.f32 %v2782, %v2792
      %v2918 = vadd.f32 %v2783, %v2792
      %v2919 = vadd.f32 %v2784, %v2792
      %v2920 = vadd.f32 %v2785, %v2792
      %v2921 = vadd.f32 %v2786, %v2792
      %v2922 = vmax.f32 %v2794, 0.0
      %v2923 = vmax.f32 %v2795, 0.0
      %v2924 = vmax.f32 %v2796, 0.0
      %v2925 = vmax.f32 %v2797, 0.0
      %v2926 = vmax.f32 %v2798, 0.0
      %v2927 = vmax.f32 %v2799, 0.0
      %v2928 = vmax.f32 %v2800, 0.0
      %v2929 = vmax.f32 %v2801, 0.0
      %v2930 = vmax.f32 %v2802, 0.0
      %v2931 = vmax.f32 %v2803, 0.0
      %v2932 = vmax.f32 %v2804, 0.0
      %v2933 = vmax.f32 %v2805, 0.0
      %v2934 = vmax.f32 %v2806, 0.0
      %v2935 = vmax.f32 %v2807, 0.0
      %v2936 = vmax.f32 %v2808, 0.0
      %v2937 = vmax.f32 %v2809, 0.0
      %v2938 = vmax.f32 %v2810, 0.0
      %v2939 = vmax.f32 %v2811, 0.0
      %v2940 = vmax.f32 %v2812, 0.0
      %v2941 = vmax.f32 %v2813, 0.0
      %v2942 = vmax.f32 %v2814, 0.0
      %v2943 = vmax.f32 %v2815, 0.0
      %v2944 = vmax.f32 %v2816, 0.0
      %v2945 = vmax.f32 %v2817, 0.0
      %v2946 = vmax.f32 %v2818, 0.0
      %v2947 = vmax.f32 %v2819, 0.0
      %v2948 = vmax.f32 %v2820, 0.0
      %v2949 = vmax.f32 %v2821, 0.0
      %v2950 = vmax.f32 %v2822, 0.0
      %v2951 = vmax.f32 %v2823, 0.0
      %v2952 = vmax.f32 %v2824, 0.0
      %v2953 = vmax.f32 %v2825, 0.0
      %v2954 = vmax.f32 %v2826, 0.0
      %v2955 = vmax.f32 %v2827, 0.0
      %v2956 = vmax.f32 %v2828, 0.0
      %v2957 = vmax.f32 %v2829, 0.0
      %v2958 = vmax.f32 %v2830, 0.0
      %v2959 = vmax.f32 %v2831, 0.0
      %v2960 = vmax.f32 %v2832, 0.0
      %v2961 = vmax.f32 %v2833, 0.0
      %v2962 = vmax.f32 %v2834, 0.0
      %v2963 = vmax.f32 %v2835, 0.0
      %v2964 = vmax.f32 %v2836, 0.0
      %v2965 = vmax.f32 %v2837, 0.0
      %v2966 = vmax.f32 %v2838, 0.0
      %v2967 = vmax.f32 %v2839, 0.0
      %v2968 = vmax.f32 %v2840, 0.0
      %v2969 = vmax.f32 %v2841, 0.0
      %v2970 = vmax.f32 %v2842, 0.0
      %v2971 = vmax.f32 %v2843, 0.0
      %v2972 = vmax.f32 %v2844, 0.0
      %v2973 = vmax.f32 %v2845, 0.0
      %v2974 = vmax.f32 %v2846, 0.0
      %v2975 = vmax.f32 %v2847, 0.0
      %v2976 = vmax.f32 %v2848, 0.0
      %v2977 = vmax.f32 %v2849, 0.0
      %v2978 = vmax.f32 %v2850, 0.0
      %v2979 = vmax.f32 %v2851, 0.0
      %v2980 = vmax.f32 %v2852, 0.0
      %v2981 = vmax.f32 %v2853, 0.0
      %v2982 = vmax.f32 %v2854, 0.0
      %v2983 = vmax.f32 %v2855, 0.0
      %v2984 = vmax.f32 %v2856, 0.0
      %v2985 = vmax.f32 %v2857, 0.0
      %v2986 = vmax.f32 %v2858, 0.0
      %v2987 = vmax.f32 %v2859, 0.0
      %v2988 = vmax.f32 %v2860, 0.0
      %v2989 = vmax.f32 %v2861, 0.0
      %v2990 = vmax.f32 %v2862, 0.0
      %v2991 = vmax.f32 %v2863, 0.0
      %v2992 = vmax.f32 %v2864, 0.0
      %v2993 = vmax.f32 %v2865, 0.0
      %v2994 = vmax.f32 %v2866, 0.0
      %v2995 = vmax.f32 %v2867, 0.0
      %v2996 = vmax.f32 %v2868, 0.0
      %v2997 = vmax.f32 %v2869, 0.0
      %v2998 = vmax.f32 %v2870, 0.0
      %v2999 = vmax.f32 %v2871, 0.0
      %v3000 = vmax.f32 %v2872, 0.0
      %v3001 = vmax.f32 %v2873, 0.0
      %v3002 = vmax.f32 %v2874, 0.0
      %v3003 = vmax.f32 %v2875, 0.0
      %v3004 = vmax.f32 %v2876, 0.0
      %v3005 = vmax.f32 %v2877, 0.0
      %v3006 = vmax.f32 %v2878, 0.0
      %v3007 = vmax.f32 %v2879, 0.0
      %v3008 = vmax.f32 %v2880, 0.0
      %v3009 = vmax.f32 %v2881, 0.0
      %v3010 = vmax.f32 %v2882, 0.0
      %v3011 = vmax.f32 %v2883, 0.0
      %v3012 = vmax.f32 %v2884, 0.0
      %v3013 = vmax.f32 %v2885, 0.0
      %v3014 = vmax.f32 %v2886, 0.0
      %v3015 = vmax.f32 %v2887, 0.0
      %v3016 = vmax.f32 %v2888, 0.0
      %v3017 = vmax.f32 %v2889, 0.0
      %v3018 = vmax.f32 %v2890, 0.0
      %v3019 = vmax.f32 %v2891, 0.0
      %v3020 = vmax.f32 %v2892, 0.0
      %v3021 = vmax.f32 %v2893, 0.0
      %v3022 = vmax.f32 %v2894, 0.0
      %v3023 = vmax.f32 %v2895, 0.0
      %v3024 = vmax.f32 %v2896, 0.0
      %v3025 = vmax.f32 %v2897, 0.0
      %v3026 = vmax.f32 %v2898, 0.0
      %v3027 = vmax.f32 %v2899, 0.0
      %v3028 = vmax.f32 %v2900, 0.0
      %v3029 = vmax.f32 %v2901, 0.0
      %v3030 = vmax.f32 %v2902, 0.0
      %v3031 = vmax.f32 %v2903, 0.0
      %v3032 = vmax.f32 %v2904, 0.0
      %v3033 = vmax.f32 %v2905, 0.0
      %v3034 = vmax.f32 %v2906, 0.0
      %v3035 = vmax.f32 %v2907, 0.0
      %v3036 = vmax.f32 %v2908, 0.0
      %v3037 = vmax.f32 %v2909, 0.0
      %v3038 = vmax.f32 %v2910, 0.0
      %v3039 = vmax.f32 %v2911, 0.0
      %v3040 = vmax.f32 %v2912, 0.0
      %v3041 = vmax.f32 %v2913, 0.0
      %v3042 = vmax.f32 %v2914, 0.0
      %v3043 = vmax.f32 %v2915, 0.0
      %v3044 = vmax.f32 %v2916, 0.0
      %v3045 = vmax.f32 %v2917, 0.0
      %v3046 = vmax.f32 %v2918, 0.0
      %v3047 = vmax.f32 %v2919, 0.0
      %v3048 = vmax.f32 %v2920, 0.0
      %v3049 = vmax.f32 %v2921, 0.0
      %v3050 = vpack.c.bf16 %v2923, %v2922
      %v3051 = vpack.c.bf16 %v2925, %v2924
      %v3052 = vpack.c.bf16 %v2927, %v2926
      %v3053 = vpack.c.bf16 %v2929, %v2928
      %v3054 = vpack.c.bf16 %v2931, %v2930
      %v3055 = vpack.c.bf16 %v2933, %v2932
      %v3056 = vpack.c.bf16 %v2935, %v2934
      %v3057 = vpack.c.bf16 %v2937, %v2936
      %v3058 = vpack.c.bf16 %v2939, %v2938
      %v3059 = vpack.c.bf16 %v2941, %v2940
      %v3060 = vpack.c.bf16 %v2943, %v2942
      %v3061 = vpack.c.bf16 %v2945, %v2944
      %v3062 = vpack.c.bf16 %v2947, %v2946
      %v3063 = vpack.c.bf16 %v2949, %v2948
      %v3064 = vpack.c.bf16 %v2951, %v2950
      %v3065 = vpack.c.bf16 %v2953, %v2952
      %v3066 = vpack.c.bf16 %v2955, %v2954
      %v3067 = vpack.c.bf16 %v2957, %v2956
      %v3068 = vpack.c.bf16 %v2959, %v2958
      %v3069 = vpack.c.bf16 %v2961, %v2960
      %v3070 = vpack.c.bf16 %v2963, %v2962
      %v3071 = vpack.c.bf16 %v2965, %v2964
      %v3072 = vpack.c.bf16 %v2967, %v2966
      %v3073 = vpack.c.bf16 %v2969, %v2968
      %v3074 = vpack.c.bf16 %v2971, %v2970
      %v3075 = vpack.c.bf16 %v2973, %v2972
      %v3076 = vpack.c.bf16 %v2975, %v2974
      %v3077 = vpack.c.bf16 %v2977, %v2976
      %v3078 = vpack.c.bf16 %v2979, %v2978
      %v3079 = vpack.c.bf16 %v2981, %v2980
      %v3080 = vpack.c.bf16 %v2983, %v2982
      %v3081 = vpack.c.bf16 %v2985, %v2984
      %v3082 = vpack.c.bf16 %v2987, %v2986
      %v3083 = vpack.c.bf16 %v2989, %v2988
      %v3084 = vpack.c.bf16 %v2991, %v2990
      %v3085 = vpack.c.bf16 %v2993, %v2992
      %v3086 = vpack.c.bf16 %v2995, %v2994
      %v3087 = vpack.c.bf16 %v2997, %v2996
      %v3088 = vpack.c.bf16 %v2999, %v2998
      %v3089 = vpack.c.bf16 %v3001, %v3000
      %v3090 = vpack.c.bf16 %v3003, %v3002
      %v3091 = vpack.c.bf16 %v3005, %v3004
      %v3092 = vpack.c.bf16 %v3007, %v3006
      %v3093 = vpack.c.bf16 %v3009, %v3008
      %v3094 = vpack.c.bf16 %v3011, %v3010
      %v3095 = vpack.c.bf16 %v3013, %v3012
      %v3096 = vpack.c.bf16 %v3015, %v3014
      %v3097 = vpack.c.bf16 %v3017, %v3016
      %v3098 = vpack.c.bf16 %v3019, %v3018
      %v3099 = vpack.c.bf16 %v3021, %v3020
      %v3100 = vpack.c.bf16 %v3023, %v3022
      %v3101 = vpack.c.bf16 %v3025, %v3024
      %v3102 = vpack.c.bf16 %v3027, %v3026
      %v3103 = vpack.c.bf16 %v3029, %v3028
      %v3104 = vpack.c.bf16 %v3031, %v3030
      %v3105 = vpack.c.bf16 %v3033, %v3032
      %v3106 = vpack.c.bf16 %v3035, %v3034
      %v3107 = vpack.c.bf16 %v3037, %v3036
      %v3108 = vpack.c.bf16 %v3039, %v3038
      %v3109 = vpack.c.bf16 %v3041, %v3040
      %v3110 = vpack.c.bf16 %v3043, %v3042
      %v3111 = vpack.c.bf16 %v3045, %v3044
      %v3112 = vpack.c.bf16 %v3047, %v3046
      %v3113 = vpack.c.bf16 %v3049, %v3048
      %v3114 = vld [vmem:[%s3] sm:$0xf]
      %v3115 = vld [vmem:[%s3 + $0x4] sm:$0xf]
      %v3116 = vld [vmem:[%s3 + $0x8] sm:$0xf]
      %v3117 = vld [vmem:[%s3 + $0xc] sm:$0xf]
      %v3118 = vld [vmem:[%s3 + $0x10] sm:$0xf]
      %v3119 = vld [vmem:[%s3 + $0x14] sm:$0xf]
      %v3120 = vld [vmem:[%s3 + $0x18] sm:$0xf]
      %v3121 = vld [vmem:[%s3 + $0x1c] sm:$0xf]
      %v3122 = vld [vmem:[%s4] sm:$0x1]
      %v3124 = vlaneseq
      %v3125 = vshrl.u32 %v3124, 7
      %v3126 = vsub.s32 0, %v3125
      %v3127 = vrot.slane %v3122, %v3126
      %v3137 = vunpack.c.l.b16 %v3114
      %v3138 = vunpack.c.l.b16 %v3115
      %v3139 = vunpack.c.l.b16 %v3116
      %v3140 = vunpack.c.l.b16 %v3117
      %v3141 = vunpack.c.l.b16 %v3118
      %v3142 = vunpack.c.l.b16 %v3119
      %v3143 = vunpack.c.l.b16 %v3120
      %v3144 = vunpack.c.l.b16 %v3121
      %v3145 = vpack.c.b16 %v3138, %v3137
      %v3146 = vpack.c.b16 %v3140, %v3139
      %v3147 = vpack.c.b16 %v3142, %v3141
      %v3148 = vpack.c.b16 %v3144, %v3143
      %vm3153 = vcmask 523264
      %v3155 = vsel %vm3153, %v3050, 0
      %v3158 = vsel %vm3153, %v3051, 0
      %v3161 = vsel %vm3153, %v3052, 0
      %v3164 = vsel %vm3153, %v3053, 0
      %v3167 = vsel %vm3153, %v3054, 0
      %v3170 = vsel %vm3153, %v3055, 0
      %v3173 = vsel %vm3153, %v3056, 0
      %v3176 = vsel %vm3153, %v3057, 0
      %v3179 = vsel %vm3153, %v3058, 0
      %v3182 = vsel %vm3153, %v3059, 0
      %v3185 = vsel %vm3153, %v3060, 0
      %v3188 = vsel %vm3153, %v3061, 0
      %v3191 = vsel %vm3153, %v3062, 0
      %v3194 = vsel %vm3153, %v3063, 0
      %v3197 = vsel %vm3153, %v3064, 0
      %v3200 = vsel %vm3153, %v3065, 0
      %v3203 = vsel %vm3153, %v3066, 0
      %v3206 = vsel %vm3153, %v3067, 0
      %v3209 = vsel %vm3153, %v3068, 0
      %v3212 = vsel %vm3153, %v3069, 0
      %v3215 = vsel %vm3153, %v3070, 0
      %v3218 = vsel %vm3153, %v3071, 0
      %v3221 = vsel %vm3153, %v3072, 0
      %v3224 = vsel %vm3153, %v3073, 0
      %v3227 = vsel %vm3153, %v3074, 0
      %v3230 = vsel %vm3153, %v3075, 0
      %v3233 = vsel %vm3153, %v3076, 0
      %v3236 = vsel %vm3153, %v3077, 0
      %v3239 = vsel %vm3153, %v3078, 0
      %v3242 = vsel %vm3153, %v3079, 0
      %v3245 = vsel %vm3153, %v3080, 0
      %v3248 = vsel %vm3153, %v3081, 0
      %v3251 = vsel %vm3153, %v3082, 0
      %v3254 = vsel %vm3153, %v3083, 0
      %v3257 = vsel %vm3153, %v3084, 0
      %v3260 = vsel %vm3153, %v3085, 0
      %v3263 = vsel %vm3153, %v3086, 0
      %v3266 = vsel %vm3153, %v3087, 0
      %v3269 = vsel %vm3153, %v3088, 0
      %v3272 = vsel %vm3153, %v3089, 0
      %v3275 = vsel %vm3153, %v3090, 0
      %v3278 = vsel %vm3153, %v3091, 0
      %v3281 = vsel %vm3153, %v3092, 0
      %v3284 = vsel %vm3153, %v3093, 0
      %v3287 = vsel %vm3153, %v3094, 0
      %v3290 = vsel %vm3153, %v3095, 0
      %v3293 = vsel %vm3153, %v3096, 0
      %v3296 = vsel %vm3153, %v3097, 0
      %v3299 = vsel %vm3153, %v3098, 0
      %v3302 = vsel %vm3153, %v3099, 0
      %v3305 = vsel %vm3153, %v3100, 0
      %v3308 = vsel %vm3153, %v3101, 0
      %v3311 = vsel %vm3153, %v3102, 0
      %v3314 = vsel %vm3153, %v3103, 0
      %v3317 = vsel %vm3153, %v3104, 0
      %v3320 = vsel %vm3153, %v3105, 0
      %v3323 = vsel %vm3153, %v3106, 0
      %v3326 = vsel %vm3153, %v3107, 0
      %v3329 = vsel %vm3153, %v3108, 0
      %v3332 = vsel %vm3153, %v3109, 0
      %v3335 = vsel %vm3153, %v3110, 0
      %v3338 = vsel %vm3153, %v3111, 0
      %v3341 = vsel %vm3153, %v3112, 0
      %v3344 = vsel %vm3153, %v3113, 0
      %3346 = vmatprep.subr.bf16.mxu0 0
      %3347 = vmatpush1.bf16.msra.mxu0 %v3145
      %3348 = vmatprep.subr.bf16.mxu0 0
      %3349 = vmatpush1.bf16.msra.mxu0 %v3146
      %3350 = vmatprep.subr.bf16.mxu0 0
      %3351 = vmatpush1.bf16.msra.mxu0 %v3147
      %3352 = vmatprep.subr.bf16.mxu0 0
      %3353 = vmatpush1.bf16.msra.mxu0 %v3148
      %3354 = vmatprep.subr.bf16.mxu0 0
      %3355 = vmatpush1.bf16.msra.mxu0 0
      %3356 = vmatprep.subr.bf16.mxu0 0
      %3357 = vmatpush1.bf16.msra.mxu0 0
      %3358 = vmatprep.subr.bf16.mxu0 0
      %3359 = vmatpush1.bf16.msra.mxu0 0
      %3360 = vmatprep.subr.bf16.mxu0 0
      %3361 = vmatpush1.bf16.msra.mxu0 0
      %3362 = vmatprep.subr.bf16.mxu0 0
      %3363 = vmatpush1.bf16.msra.mxu0 0
      %3364 = vmatprep.subr.bf16.mxu0 0
      %3365 = vmatpush1.bf16.msra.mxu0 0
      %3366 = vmatprep.subr.bf16.mxu0 0
      %3367 = vmatpush1.bf16.msra.mxu0 0
      %3368 = vmatprep.subr.bf16.mxu0 0
      %3369 = vmatpush1.bf16.msra.mxu0 0
      %3370 = vmatprep.subr.bf16.mxu0 0
      %3371 = vmatpush1.bf16.msra.mxu0 0
      %3372 = vmatprep.subr.bf16.mxu0 0
      %3373 = vmatpush1.bf16.msra.mxu0 0
      %3374 = vmatprep.subr.bf16.mxu0 0
      %3375 = vmatpush1.bf16.msra.mxu0 0
      %3376 = vmatprep.subr.bf16.mxu0 0
      %3377 = vmatpush1.bf16.msra.mxu0 0
      %3378 = vmatprep.mubr.bf16.mxu0 0
      %3379 = vmatmul.mubr.bf16.gmra.mrb[0].mxu0 %v3155
      %v3380 = vpop.f32.mrb[0].mxu0
      %v3381 = vadd.f32 %v3127, %v3380
      %v3382 = vpop.f32.mrb[0].mxu0
      %v3383 = vpop.f32.mrb[0].mxu0
      %v3384 = vadd.f32 %v3127, %v3383
      %v3385 = vpop.f32.mrb[0].mxu0
      %3386 = vmatprep.mubr.bf16.mxu0 0
      %3387 = vmatmul.mubr.bf16.gmra.mrb[0].mxu0 %v3158
      %v3388 = vpop.f32.mrb[0].mxu0
      %v3389 = vadd.f32 %v3127, %v3388
      %v3390 = vpop.f32.mrb[0].mxu0
      %v3391 = vpop.f32.mrb[0].mxu0
      %v3392 = vadd.f32 %v3127, %v3391
      %v3393 = vpop.f32.mrb[0].mxu0
      %3394 = vmatprep.mubr.bf16.mxu0 0
      %3395 = vmatmul.mubr.bf16.gmra.mrb[0].mxu0 %v3161
      %v3396 = vpop.f32.mrb[0].mxu0
      %v3397 = vadd.f32 %v3127, %v3396
      %v3398 = vpop.f32.mrb[0].mxu0
      %v3399 = vpop.f32.mrb[0].mxu0
      %v3400 = vadd.f32 %v3127, %v3399
      %v3401 = vpop.f32.mrb[0].mxu0
      %3402 = vmatprep.mubr.bf16.mxu0 0
      %3403 = vmatmul.mubr.bf16.gmra.mrb[0].mxu0 %v3164
      %v3404 = vpop.f32.mrb[0].mxu0
      %v3405 = vadd.f32 %v3127, %v3404
      %v3406 = vpop.f32.mrb[0].mxu0
      %v3407 = vpop.f32.mrb[0].mxu0
      %v3408 = vadd.f32 %v3127, %v3407
      %v3409 = vpop.f32.mrb[0].mxu0
      %3410 = vmatprep.mubr.bf16.mxu0 0
      %3411 = vmatmul.mubr.bf16.gmra.mrb[0].mxu0 %v3167
      %v3412 = vpop.f32.mrb[0].mxu0
      %v3413 = vadd.f32 %v3127, %v3412
      %v3414 = vpop.f32.mrb[0].mxu0
      %v3415 = vpop.f32.mrb[0].mxu0
      %v3416 = vadd.f32 %v3127, %v3415
      %v3417 = vpop.f32.mrb[0].mxu0
      %3418 = vmatprep.mubr.bf16.mxu0 0
      %3419 = vmatmul.mubr.bf16.gmra.mrb[0].mxu0 %v3170
      %v3420 = vpop.f32.mrb[0].mxu0
      %v3421 = vadd.f32 %v3127, %v3420
      %v3422 = vpop.f32.mrb[0].mxu0
      %v3423 = vpop.f32.mrb[0].mxu0
      %v3424 = vadd.f32 %v3127, %v3423
      %v3425 = vpop.f32.mrb[0].mxu0
      %3426 = vmatprep.mubr.bf16.mxu0 0
      %3427 = vmatmul.mubr.bf16.gmra.mrb[0].mxu0 %v3173
      %v3428 = vpop.f32.mrb[0].mxu0
      %v3429 = vadd.f32 %v3127, %v3428
      %v3430 = vpop.f32.mrb[0].mxu0
      %v3431 = vpop.f32.mrb[0].mxu0
      %v3432 = vadd.f32 %v3127, %v3431
      %v3433 = vpop.f32.mrb[0].mxu0
      %3434 = vmatprep.mubr.bf16.mxu0 0
      %3435 = vmatmul.mubr.bf16.gmra.mrb[0].mxu0 %v3176
      %v3436 = vpop.f32.mrb[0].mxu0
      %v3437 = vadd.f32 %v3127, %v3436
      %v3438 = vpop.f32.mrb[0].mxu0
      %v3439 = vpop.f32.mrb[0].mxu0
      %v3440 = vadd.f32 %v3127, %v3439
      %v3441 = vpop.f32.mrb[0].mxu0
      %3442 = vmatprep.mubr.bf16.mxu0 0
      %3443 = vmatmul.mubr.bf16.gmra.mrb[0].mxu0 %v3179
      %v3444 = vpop.f32.mrb[0].mxu0
      %v3445 = vadd.f32 %v3127, %v3444
      %v3446 = vpop.f32.mrb[0].mxu0
      %v3447 = vpop.f32.mrb[0].mxu0
      %v3448 = vadd.f32 %v3127, %v3447
      %v3449 = vpop.f32.mrb[0].mxu0
      %3450 = vmatprep.mubr.bf16.mxu0 0
      %3451 = vmatmul.mubr.bf16.gmra.mrb[0].mxu0 %v3182
      %v3452 = vpop.f32.mrb[0].mxu0
      %v3453 = vadd.f32 %v3127, %v3452
      %v3454 = vpop.f32.mrb[0].mxu0
      %v3455 = vpop.f32.mrb[0].mxu0
      %v3456 = vadd.f32 %v3127, %v3455
      %v3457 = vpop.f32.mrb[0].mxu0
      %3458 = vmatprep.mubr.bf16.mxu0 0
      %3459 = vmatmul.mubr.bf16.gmra.mrb[0].mxu0 %v3185
      %v3460 = vpop.f32.mrb[0].mxu0
      %v3461 = vadd.f32 %v3127, %v3460
      %v3462 = vpop.f32.mrb[0].mxu0
      %v3463 = vpop.f32.mrb[0].mxu0
      %v3464 = vadd.f32 %v3127, %v3463
      %v3465 = vpop.f32.mrb[0].mxu0
      %3466 = vmatprep.mubr.bf16.mxu0 0
      %3467 = vmatmul.mubr.bf16.gmra.mrb[0].mxu0 %v3188
      %v3468 = vpop.f32.mrb[0].mxu0
      %v3469 = vadd.f32 %v3127, %v3468
      %v3470 = vpop.f32.mrb[0].mxu0
      %v3471 = vpop.f32.mrb[0].mxu0
      %v3472 = vadd.f32 %v3127, %v3471
      %v3473 = vpop.f32.mrb[0].mxu0
      %3474 = vmatprep.mubr.bf16.mxu0 0
      %3475 = vmatmul.mubr.bf16.gmra.mrb[0].mxu0 %v3191
      %v3476 = vpop.f32.mrb[0].mxu0
      %v3477 = vadd.f32 %v3127, %v3476
      %v3478 = vpop.f32.mrb[0].mxu0
      %v3479 = vpop.f32.mrb[0].mxu0
      %v3480 = vadd.f32 %v3127, %v3479
      %v3481 = vpop.f32.mrb[0].mxu0
      %3482 = vmatprep.mubr.bf16.mxu0 0
      %3483 = vmatmul.mubr.bf16.gmra.mrb[0].mxu0 %v3194
      %v3484 = vpop.f32.mrb[0].mxu0
      %v3485 = vadd.f32 %v3127, %v3484
      %v3486 = vpop.f32.mrb[0].mxu0
      %v3487 = vpop.f32.mrb[0].mxu0
      %v3488 = vadd.f32 %v3127, %v3487
      %v3489 = vpop.f32.mrb[0].mxu0
      %3490 = vmatprep.mubr.bf16.mxu0 0
      %3491 = vmatmul.mubr.bf16.gmra.mrb[0].mxu0 %v3197
      %v3492 = vpop.f32.mrb[0].mxu0
      %v3493 = vadd.f32 %v3127, %v3492
      %v3494 = vpop.f32.mrb[0].mxu0
      %v3495 = vpop.f32.mrb[0].mxu0
      %v3496 = vadd.f32 %v3127, %v3495
      %v3497 = vpop.f32.mrb[0].mxu0
      %3498 = vmatprep.mubr.bf16.mxu0 0
      %3499 = vmatmul.mubr.bf16.gmra.mrb[0].mxu0 %v3200
      %v3500 = vpop.f32.mrb[0].mxu0
      %v3501 = vadd.f32 %v3127, %v3500
      %v3502 = vpop.f32.mrb[0].mxu0
      %v3503 = vpop.f32.mrb[0].mxu0
      %v3504 = vadd.f32 %v3127, %v3503
      %v3505 = vpop.f32.mrb[0].mxu0
      %3506 = vmatprep.mubr.bf16.mxu0 0
      %3507 = vmatmul.mubr.bf16.gmra.mrb[0].mxu0 %v3203
      %v3508 = vpop.f32.mrb[0].mxu0
      %v3509 = vadd.f32 %v3127, %v3508
      %v3510 = vpop.f32.mrb[0].mxu0
      %v3511 = vpop.f32.mrb[0].mxu0
      %v3512 = vadd.f32 %v3127, %v3511
      %v3513 = vpop.f32.mrb[0].mxu0
      %3514 = vmatprep.mubr.bf16.mxu0 0
      %3515 = vmatmul.mubr.bf16.gmra.mrb[0].mxu0 %v3206
      %v3516 = vpop.f32.mrb[0].mxu0
      %v3517 = vadd.f32 %v3127, %v3516
      %v3518 = vpop.f32.mrb[0].mxu0
      %v3519 = vpop.f32.mrb[0].mxu0
      %v3520 = vadd.f32 %v3127, %v3519
      %v3521 = vpop.f32.mrb[0].mxu0
      %3522 = vmatprep.mubr.bf16.mxu0 0
      %3523 = vmatmul.mubr.bf16.gmra.mrb[0].mxu0 %v3209
      %v3524 = vpop.f32.mrb[0].mxu0
      %v3525 = vadd.f32 %v3127, %v3524
      %v3526 = vpop.f32.mrb[0].mxu0
      %v3527 = vpop.f32.mrb[0].mxu0
      %v3528 = vadd.f32 %v3127, %v3527
      %v3529 = vpop.f32.mrb[0].mxu0
      %3530 = vmatprep.mubr.bf16.mxu0 0
      %3531 = vmatmul.mubr.bf16.gmra.mrb[0].mxu0 %v3212
      %v3532 = vpop.f32.mrb[0].mxu0
      %v3533 = vadd.f32 %v3127, %v3532
      %v3534 = vpop.f32.mrb[0].mxu0
      %v3535 = vpop.f32.mrb[0].mxu0
      %v3536 = vadd.f32 %v3127, %v3535
      %v3537 = vpop.f32.mrb[0].mxu0
      %3538 = vmatprep.mubr.bf16.mxu0 0
      %3539 = vmatmul.mubr.bf16.gmra.mrb[0].mxu0 %v3215
      %v3540 = vpop.f32.mrb[0].mxu0
      %v3541 = vadd.f32 %v3127, %v3540
      %v3542 = vpop.f32.mrb[0].mxu0
      %v3543 = vpop.f32.mrb[0].mxu0
      %v3544 = vadd.f32 %v3127, %v3543
      %v3545 = vpop.f32.mrb[0].mxu0
      %3546 = vmatprep.mubr.bf16.mxu0 0
      %3547 = vmatmul.mubr.bf16.gmra.mrb[0].mxu0 %v3218
      %v3548 = vpop.f32.mrb[0].mxu0
      %v3549 = vadd.f32 %v3127, %v3548
      %v3550 = vpop.f32.mrb[0].mxu0
      %v3551 = vpop.f32.mrb[0].mxu0
      %v3552 = vadd.f32 %v3127, %v3551
      %v3553 = vpop.f32.mrb[0].mxu0
      %3554 = vmatprep.mubr.bf16.mxu0 0
      %3555 = vmatmul.mubr.bf16.gmra.mrb[0].mxu0 %v3221
      %v3556 = vpop.f32.mrb[0].mxu0
      %v3557 = vadd.f32 %v3127, %v3556
      %v3558 = vpop.f32.mrb[0].mxu0
      %v3559 = vpop.f32.mrb[0].mxu0
      %v3560 = vadd.f32 %v3127, %v3559
      %v3561 = vpop.f32.mrb[0].mxu0
      %3562 = vmatprep.mubr.bf16.mxu0 0
      %3563 = vmatmul.mubr.bf16.gmra.mrb[0].mxu0 %v3224
      %v3564 = vpop.f32.mrb[0].mxu0
      %v3565 = vadd.f32 %v3127, %v3564
      %v3566 = vpop.f32.mrb[0].mxu0
      %v3567 = vpop.f32.mrb[0].mxu0
      %v3568 = vadd.f32 %v3127, %v3567
      %v3569 = vpop.f32.mrb[0].mxu0
      %3570 = vmatprep.mubr.bf16.mxu0 0
      %3571 = vmatmul.mubr.bf16.gmra.mrb[0].mxu0 %v3227
      %v3572 = vpop.f32.mrb[0].mxu0
      %v3573 = vadd.f32 %v3127, %v3572
      %v3574 = vpop.f32.mrb[0].mxu0
      %v3575 = vpop.f32.mrb[0].mxu0
      %v3576 = vadd.f32 %v3127, %v3575
      %v3577 = vpop.f32.mrb[0].mxu0
      %3578 = vmatprep.mubr.bf16.mxu0 0
      %3579 = vmatmul.mubr.bf16.gmra.mrb[0].mxu0 %v3230
      %v3580 = vpop.f32.mrb[0].mxu0
      %v3581 = vadd.f32 %v3127, %v3580
      %v3582 = vpop.f32.mrb[0].mxu0
      %v3583 = vpop.f32.mrb[0].mxu0
      %v3584 = vadd.f32 %v3127, %v3583
      %v3585 = vpop.f32.mrb[0].mxu0
      %3586 = vmatprep.mubr.bf16.mxu0 0
      %3587 = vmatmul.mubr.bf16.gmra.mrb[0].mxu0 %v3233
      %v3588 = vpop.f32.mrb[0].mxu0
      %v3589 = vadd.f32 %v3127, %v3588
      %v3590 = vpop.f32.mrb[0].mxu0
      %v3591 = vpop.f32.mrb[0].mxu0
      %v3592 = vadd.f32 %v3127, %v3591
      %v3593 = vpop.f32.mrb[0].mxu0
      %3594 = vmatprep.mubr.bf16.mxu0 0
      %3595 = vmatmul.mubr.bf16.gmra.mrb[0].mxu0 %v3236
      %v3596 = vpop.f32.mrb[0].mxu0
      %v3597 = vadd.f32 %v3127, %v3596
      %v3598 = vpop.f32.mrb[0].mxu0
      %v3599 = vpop.f32.mrb[0].mxu0
      %v3600 = vadd.f32 %v3127, %v3599
      %v3601 = vpop.f32.mrb[0].mxu0
      %3602 = vmatprep.mubr.bf16.mxu0 0
      %3603 = vmatmul.mubr.bf16.gmra.mrb[0].mxu0 %v3239
      %v3604 = vpop.f32.mrb[0].mxu0
      %v3605 = vadd.f32 %v3127, %v3604
      %v3606 = vpop.f32.mrb[0].mxu0
      %v3607 = vpop.f32.mrb[0].mxu0
      %v3608 = vadd.f32 %v3127, %v3607
      %v3609 = vpop.f32.mrb[0].mxu0
      %3610 = vmatprep.mubr.bf16.mxu0 0
      %3611 = vmatmul.mubr.bf16.gmra.mrb[0].mxu0 %v3242
      %v3612 = vpop.f32.mrb[0].mxu0
      %v3613 = vadd.f32 %v3127, %v3612
      %v3614 = vpop.f32.mrb[0].mxu0
      %v3615 = vpop.f32.mrb[0].mxu0
      %v3616 = vadd.f32 %v3127, %v3615
      %v3617 = vpop.f32.mrb[0].mxu0
      %3618 = vmatprep.mubr.bf16.mxu0 0
      %3619 = vmatmul.mubr.bf16.gmra.mrb[0].mxu0 %v3245
      %v3620 = vpop.f32.mrb[0].mxu0
      %v3621 = vadd.f32 %v3127, %v3620
      %v3622 = vpop.f32.mrb[0].mxu0
      %v3623 = vpop.f32.mrb[0].mxu0
      %v3624 = vadd.f32 %v3127, %v3623
      %v3625 = vpop.f32.mrb[0].mxu0
      %3626 = vmatprep.mubr.bf16.mxu0 0
      %3627 = vmatmul.mubr.bf16.gmra.mrb[0].mxu0 %v3248
      %v3628 = vpop.f32.mrb[0].mxu0
      %v3629 = vadd.f32 %v3127, %v3628
      %v3630 = vpop.f32.mrb[0].mxu0
      %v3631 = vpop.f32.mrb[0].mxu0
      %v3632 = vadd.f32 %v3127, %v3631
      %v3633 = vpop.f32.mrb[0].mxu0
      %3634 = vmatprep.mubr.bf16.mxu0 0
      %3635 = vmatmul.mubr.bf16.gmra.mrb[0].mxu0 %v3251
      %v3636 = vpop.f32.mrb[0].mxu0
      %v3637 = vadd.f32 %v3127, %v3636
      %v3638 = vpop.f32.mrb[0].mxu0
      %v3639 = vpop.f32.mrb[0].mxu0
      %v3640 = vadd.f32 %v3127, %v3639
      %v3641 = vpop.f32.mrb[0].mxu0
      %3642 = vmatprep.mubr.bf16.mxu0 0
      %3643 = vmatmul.mubr.bf16.gmra.mrb[0].mxu0 %v3254
      %v3644 = vpop.f32.mrb[0].mxu0
      %v3645 = vadd.f32 %v3127, %v3644
      %v3646 = vpop.f32.mrb[0].mxu0
      %v3647 = vpop.f32.mrb[0].mxu0
      %v3648 = vadd.f32 %v3127, %v3647
      %v3649 = vpop.f32.mrb[0].mxu0
      %3650 = vmatprep.mubr.bf16.mxu0 0
      %3651 = vmatmul.mubr.bf16.gmra.mrb[0].mxu0 %v3257
      %v3652 = vpop.f32.mrb[0].mxu0
      %v3653 = vadd.f32 %v3127, %v3652
      %v3654 = vpop.f32.mrb[0].mxu0
      %v3655 = vpop.f32.mrb[0].mxu0
      %v3656 = vadd.f32 %v3127, %v3655
      %v3657 = vpop.f32.mrb[0].mxu0
      %3658 = vmatprep.mubr.bf16.mxu0 0
      %3659 = vmatmul.mubr.bf16.gmra.mrb[0].mxu0 %v3260
      %v3660 = vpop.f32.mrb[0].mxu0
      %v3661 = vadd.f32 %v3127, %v3660
      %v3662 = vpop.f32.mrb[0].mxu0
      %v3663 = vpop.f32.mrb[0].mxu0
      %v3664 = vadd.f32 %v3127, %v3663
      %v3665 = vpop.f32.mrb[0].mxu0
      %3666 = vmatprep.mubr.bf16.mxu0 0
      %3667 = vmatmul.mubr.bf16.gmra.mrb[0].mxu0 %v3263
      %v3668 = vpop.f32.mrb[0].mxu0
      %v3669 = vadd.f32 %v3127, %v3668
      %v3670 = vpop.f32.mrb[0].mxu0
      %v3671 = vpop.f32.mrb[0].mxu0
      %v3672 = vadd.f32 %v3127, %v3671
      %v3673 = vpop.f32.mrb[0].mxu0
      %3674 = vmatprep.mubr.bf16.mxu0 0
      %3675 = vmatmul.mubr.bf16.gmra.mrb[0].mxu0 %v3266
      %v3676 = vpop.f32.mrb[0].mxu0
      %v3677 = vadd.f32 %v3127, %v3676
      %v3678 = vpop.f32.mrb[0].mxu0
      %v3679 = vpop.f32.mrb[0].mxu0
      %v3680 = vadd.f32 %v3127, %v3679
      %v3681 = vpop.f32.mrb[0].mxu0
      %3682 = vmatprep.mubr.bf16.mxu0 0
      %3683 = vmatmul.mubr.bf16.gmra.mrb[0].mxu0 %v3269
      %v3684 = vpop.f32.mrb[0].mxu0
      %v3685 = vadd.f32 %v3127, %v3684
      %v3686 = vpop.f32.mrb[0].mxu0
      %v3687 = vpop.f32.mrb[0].mxu0
      %v3688 = vadd.f32 %v3127, %v3687
      %v3689 = vpop.f32.mrb[0].mxu0
      %3690 = vmatprep.mubr.bf16.mxu0 0
      %3691 = vmatmul.mubr.bf16.gmra.mrb[0].mxu0 %v3272
      %v3692 = vpop.f32.mrb[0].mxu0
      %v3693 = vadd.f32 %v3127, %v3692
      %v3694 = vpop.f32.mrb[0].mxu0
      %v3695 = vpop.f32.mrb[0].mxu0
      %v3696 = vadd.f32 %v3127, %v3695
      %v3697 = vpop.f32.mrb[0].mxu0
      %3698 = vmatprep.mubr.bf16.mxu0 0
      %3699 = vmatmul.mubr.bf16.gmra.mrb[0].mxu0 %v3275
      %v3700 = vpop.f32.mrb[0].mxu0
      %v3701 = vadd.f32 %v3127, %v3700
      %v3702 = vpop.f32.mrb[0].mxu0
      %v3703 = vpop.f32.mrb[0].mxu0
      %v3704 = vadd.f32 %v3127, %v3703
      %v3705 = vpop.f32.mrb[0].mxu0
      %3706 = vmatprep.mubr.bf16.mxu0 0
      %3707 = vmatmul.mubr.bf16.gmra.mrb[0].mxu0 %v3278
      %v3708 = vpop.f32.mrb[0].mxu0
      %v3709 = vadd.f32 %v3127, %v3708
      %v3710 = vpop.f32.mrb[0].mxu0
      %v3711 = vpop.f32.mrb[0].mxu0
      %v3712 = vadd.f32 %v3127, %v3711
      %v3713 = vpop.f32.mrb[0].mxu0
      %3714 = vmatprep.mubr.bf16.mxu0 0
      %3715 = vmatmul.mubr.bf16.gmra.mrb[0].mxu0 %v3281
      %v3716 = vpop.f32.mrb[0].mxu0
      %v3717 = vadd.f32 %v3127, %v3716
      %v3718 = vpop.f32.mrb[0].mxu0
      %v3719 = vpop.f32.mrb[0].mxu0
      %v3720 = vadd.f32 %v3127, %v3719
      %v3721 = vpop.f32.mrb[0].mxu0
      %3722 = vmatprep.mubr.bf16.mxu0 0
      %3723 = vmatmul.mubr.bf16.gmra.mrb[0].mxu0 %v3284
      %v3724 = vpop.f32.mrb[0].mxu0
      %v3725 = vadd.f32 %v3127, %v3724
      %v3726 = vpop.f32.mrb[0].mxu0
      %v3727 = vpop.f32.mrb[0].mxu0
      %v3728 = vadd.f32 %v3127, %v3727
      %v3729 = vpop.f32.mrb[0].mxu0
      %3730 = vmatprep.mubr.bf16.mxu0 0
      %3731 = vmatmul.mubr.bf16.gmra.mrb[0].mxu0 %v3287
      %v3732 = vpop.f32.mrb[0].mxu0
      %v3733 = vadd.f32 %v3127, %v3732
      %v3734 = vpop.f32.mrb[0].mxu0
      %v3735 = vpop.f32.mrb[0].mxu0
      %v3736 = vadd.f32 %v3127, %v3735
      %v3737 = vpop.f32.mrb[0].mxu0
      %3738 = vmatprep.mubr.bf16.mxu0 0
      %3739 = vmatmul.mubr.bf16.gmra.mrb[0].mxu0 %v3290
      %v3740 = vpop.f32.mrb[0].mxu0
      %v3741 = vadd.f32 %v3127, %v3740
      %v3742 = vpop.f32.mrb[0].mxu0
      %v3743 = vpop.f32.mrb[0].mxu0
      %v3744 = vadd.f32 %v3127, %v3743
      %v3745 = vpop.f32.mrb[0].mxu0
      %3746 = vmatprep.mubr.bf16.mxu0 0
      %3747 = vmatmul.mubr.bf16.gmra.mrb[0].mxu0 %v3293
      %v3748 = vpop.f32.mrb[0].mxu0
      %v3749 = vadd.f32 %v3127, %v3748
      %v3750 = vpop.f32.mrb[0].mxu0
      %v3751 = vpop.f32.mrb[0].mxu0
      %v3752 = vadd.f32 %v3127, %v3751
      %v3753 = vpop.f32.mrb[0].mxu0
      %3754 = vmatprep.mubr.bf16.mxu0 0
      %3755 = vmatmul.mubr.bf16.gmra.mrb[0].mxu0 %v3296
      %v3756 = vpop.f32.mrb[0].mxu0
      %v3757 = vadd.f32 %v3127, %v3756
      %v3758 = vpop.f32.mrb[0].mxu0
      %v3759 = vpop.f32.mrb[0].mxu0
      %v3760 = vadd.f32 %v3127, %v3759
      %v3761 = vpop.f32.mrb[0].mxu0
      %3762 = vmatprep.mubr.bf16.mxu0 0
      %3763 = vmatmul.mubr.bf16.gmra.mrb[0].mxu0 %v3299
      %v3764 = vpop.f32.mrb[0].mxu0
      %v3765 = vadd.f32 %v3127, %v3764
      %v3766 = vpop.f32.mrb[0].mxu0
      %v3767 = vpop.f32.mrb[0].mxu0
      %v3768 = vadd.f32 %v3127, %v3767
      %v3769 = vpop.f32.mrb[0].mxu0
      %3770 = vmatprep.mubr.bf16.mxu0 0
      %3771 = vmatmul.mubr.bf16.gmra.mrb[0].mxu0 %v3302
      %v3772 = vpop.f32.mrb[0].mxu0
      %v3773 = vadd.f32 %v3127, %v3772
      %v3774 = vpop.f32.mrb[0].mxu0
      %v3775 = vpop.f32.mrb[0].mxu0
      %v3776 = vadd.f32 %v3127, %v3775
      %v3777 = vpop.f32.mrb[0].mxu0
      %3778 = vmatprep.mubr.bf16.mxu0 0
      %3779 = vmatmul.mubr.bf16.gmra.mrb[0].mxu0 %v3305
      %v3780 = vpop.f32.mrb[0].mxu0
      %v3781 = vadd.f32 %v3127, %v3780
      %v3782 = vpop.f32.mrb[0].mxu0
      %v3783 = vpop.f32.mrb[0].mxu0
      %v3784 = vadd.f32 %v3127, %v3783
      %v3785 = vpop.f32.mrb[0].mxu0
      %3786 = vmatprep.mubr.bf16.mxu0 0
      %3787 = vmatmul.mubr.bf16.gmra.mrb[0].mxu0 %v3308
      %v3788 = vpop.f32.mrb[0].mxu0
      %v3789 = vadd.f32 %v3127, %v3788
      %v3790 = vpop.f32.mrb[0].mxu0
      %v3791 = vpop.f32.mrb[0].mxu0
      %v3792 = vadd.f32 %v3127, %v3791
      %v3793 = vpop.f32.mrb[0].mxu0
      %3794 = vmatprep.mubr.bf16.mxu0 0
      %3795 = vmatmul.mubr.bf16.gmra.mrb[0].mxu0 %v3311
      %v3796 = vpop.f32.mrb[0].mxu0
      %v3797 = vadd.f32 %v3127, %v3796
      %v3798 = vpop.f32.mrb[0].mxu0
      %v3799 = vpop.f32.mrb[0].mxu0
      %v3800 = vadd.f32 %v3127, %v3799
      %v3801 = vpop.f32.mrb[0].mxu0
      %3802 = vmatprep.mubr.bf16.mxu0 0
      %3803 = vmatmul.mubr.bf16.gmra.mrb[0].mxu0 %v3314
      %v3804 = vpop.f32.mrb[0].mxu0
      %v3805 = vadd.f32 %v3127, %v3804
      %v3806 = vpop.f32.mrb[0].mxu0
      %v3807 = vpop.f32.mrb[0].mxu0
      %v3808 = vadd.f32 %v3127, %v3807
      %v3809 = vpop.f32.mrb[0].mxu0
      %3810 = vmatprep.mubr.bf16.mxu0 0
      %3811 = vmatmul.mubr.bf16.gmra.mrb[0].mxu0 %v3317
      %v3812 = vpop.f32.mrb[0].mxu0
      %v3813 = vadd.f32 %v3127, %v3812
      %v3814 = vpop.f32.mrb[0].mxu0
      %v3815 = vpop.f32.mrb[0].mxu0
      %v3816 = vadd.f32 %v3127, %v3815
      %v3817 = vpop.f32.mrb[0].mxu0
      %3818 = vmatprep.mubr.bf16.mxu0 0
      %3819 = vmatmul.mubr.bf16.gmra.mrb[0].mxu0 %v3320
      %v3820 = vpop.f32.mrb[0].mxu0
      %v3821 = vadd.f32 %v3127, %v3820
      %v3822 = vpop.f32.mrb[0].mxu0
      %v3823 = vpop.f32.mrb[0].mxu0
      %v3824 = vadd.f32 %v3127, %v3823
      %v3825 = vpop.f32.mrb[0].mxu0
      %3826 = vmatprep.mubr.bf16.mxu0 0
      %3827 = vmatmul.mubr.bf16.gmra.mrb[0].mxu0 %v3323
      %v3828 = vpop.f32.mrb[0].mxu0
      %v3829 = vadd.f32 %v3127, %v3828
      %v3830 = vpop.f32.mrb[0].mxu0
      %v3831 = vpop.f32.mrb[0].mxu0
      %v3832 = vadd.f32 %v3127, %v3831
      %v3833 = vpop.f32.mrb[0].mxu0
      %3834 = vmatprep.mubr.bf16.mxu0 0
      %3835 = vmatmul.mubr.bf16.gmra.mrb[0].mxu0 %v3326
      %v3836 = vpop.f32.mrb[0].mxu0
      %v3837 = vadd.f32 %v3127, %v3836
      %v3838 = vpop.f32.mrb[0].mxu0
      %v3839 = vpop.f32.mrb[0].mxu0
      %v3840 = vadd.f32 %v3127, %v3839
      %v3841 = vpop.f32.mrb[0].mxu0
      %3842 = vmatprep.mubr.bf16.mxu0 0
      %3843 = vmatmul.mubr.bf16.gmra.mrb[0].mxu0 %v3329
      %v3844 = vpop.f32.mrb[0].mxu0
      %v3845 = vadd.f32 %v3127, %v3844
      %v3846 = vpop.f32.mrb[0].mxu0
      %v3847 = vpop.f32.mrb[0].mxu0
      %v3848 = vadd.f32 %v3127, %v3847
      %v3849 = vpop.f32.mrb[0].mxu0
      %3850 = vmatprep.mubr.bf16.mxu0 0
      %3851 = vmatmul.mubr.bf16.gmra.mrb[0].mxu0 %v3332
      %v3852 = vpop.f32.mrb[0].mxu0
      %v3853 = vadd.f32 %v3127, %v3852
      %v3854 = vpop.f32.mrb[0].mxu0
      %v3855 = vpop.f32.mrb[0].mxu0
      %v3856 = vadd.f32 %v3127, %v3855
      %v3857 = vpop.f32.mrb[0].mxu0
      %3858 = vmatprep.mubr.bf16.mxu0 0
      %3859 = vmatmul.mubr.bf16.gmra.mrb[0].mxu0 %v3335
      %v3860 = vpop.f32.mrb[0].mxu0
      %v3861 = vadd.f32 %v3127, %v3860
      %v3862 = vpop.f32.mrb[0].mxu0
      %v3863 = vpop.f32.mrb[0].mxu0
      %v3864 = vadd.f32 %v3127, %v3863
      %v3865 = vpop.f32.mrb[0].mxu0
      %3866 = vmatprep.mubr.bf16.mxu0 0
      %3867 = vmatmul.mubr.bf16.gmra.mrb[0].mxu0 %v3338
      %v3868 = vpop.f32.mrb[0].mxu0
      %v3869 = vadd.f32 %v3127, %v3868
      %v3870 = vpop.f32.mrb[0].mxu0
      %v3871 = vpop.f32.mrb[0].mxu0
      %v3872 = vadd.f32 %v3127, %v3871
      %v3873 = vpop.f32.mrb[0].mxu0
      %3874 = vmatprep.mubr.bf16.mxu0 0
      %3875 = vmatmul.mubr.bf16.gmra.mrb[0].mxu0 %v3341
      %v3876 = vpop.f32.mrb[0].mxu0
      %v3877 = vadd.f32 %v3127, %v3876
      %v3878 = vpop.f32.mrb[0].mxu0
      %v3879 = vpop.f32.mrb[0].mxu0
      %v3880 = vadd.f32 %v3127, %v3879
      %v3881 = vpop.f32.mrb[0].mxu0
      %3882 = vmatprep.mubr.bf16.mxu0 0
      %3883 = vmatmul.mubr.bf16.gmra.mrb[0].mxu0 %v3344
      %v3884 = vpop.f32.mrb[0].mxu0
      %v3885 = vadd.f32 %v3127, %v3884
      %v3886 = vpop.f32.mrb[0].mxu0
      %v3887 = vpop.f32.mrb[0].mxu0
      %v3888 = vadd.f32 %v3127, %v3887
      %v3889 = vpop.f32.mrb[0].mxu0
      %3890 = vdwg.mxu0
      %v3891 = vmax.f32 %v3381, 0.0
      %v3892 = vmax.f32 %v3384, 0.0
      %v3893 = vmax.f32 %v3389, 0.0
      %v3894 = vmax.f32 %v3392, 0.0
      %v3895 = vmax.f32 %v3397, 0.0
      %v3896 = vmax.f32 %v3400, 0.0
      %v3897 = vmax.f32 %v3405, 0.0
      %v3898 = vmax.f32 %v3408, 0.0
      %v3899 = vmax.f32 %v3413, 0.0
      %v3900 = vmax.f32 %v3416, 0.0
      %v3901 = vmax.f32 %v3421, 0.0
      %v3902 = vmax.f32 %v3424, 0.0
      %v3903 = vmax.f32 %v3429, 0.0
      %v3904 = vmax.f32 %v3432, 0.0
      %v3905 = vmax.f32 %v3437, 0.0
      %v3906 = vmax.f32 %v3440, 0.0
      %v3907 = vmax.f32 %v3445, 0.0
      %v3908 = vmax.f32 %v3448, 0.0
      %v3909 = vmax.f32 %v3453, 0.0
      %v3910 = vmax.f32 %v3456, 0.0
      %v3911 = vmax.f32 %v3461, 0.0
      %v3912 = vmax.f32 %v3464, 0.0
      %v3913 = vmax.f32 %v3469, 0.0
      %v3914 = vmax.f32 %v3472, 0.0
      %v3915 = vmax.f32 %v3477, 0.0
      %v3916 = vmax.f32 %v3480, 0.0
      %v3917 = vmax.f32 %v3485, 0.0
      %v3918 = vmax.f32 %v3488, 0.0
      %v3919 = vmax.f32 %v3493, 0.0
      %v3920 = vmax.f32 %v3496, 0.0
      %v3921 = vmax.f32 %v3501, 0.0
      %v3922 = vmax.f32 %v3504, 0.0
      %v3923 = vmax.f32 %v3509, 0.0
      %v3924 = vmax.f32 %v3512, 0.0
      %v3925 = vmax.f32 %v3517, 0.0
      %v3926 = vmax.f32 %v3520, 0.0
      %v3927 = vmax.f32 %v3525, 0.0
      %v3928 = vmax.f32 %v3528, 0.0
      %v3929 = vmax.f32 %v3533, 0.0
      %v3930 = vmax.f32 %v3536, 0.0
      %v3931 = vmax.f32 %v3541, 0.0
      %v3932 = vmax.f32 %v3544, 0.0
      %v3933 = vmax.f32 %v3549, 0.0
      %v3934 = vmax.f32 %v3552, 0.0
      %v3935 = vmax.f32 %v3557, 0.0
      %v3936 = vmax.f32 %v3560, 0.0
      %v3937 = vmax.f32 %v3565, 0.0
      %v3938 = vmax.f32 %v3568, 0.0
      %v3939 = vmax.f32 %v3573, 0.0
      %v3940 = vmax.f32 %v3576, 0.0
      %v3941 = vmax.f32 %v3581, 0.0
      %v3942 = vmax.f32 %v3584, 0.0
      %v3943 = vmax.f32 %v3589, 0.0
      %v3944 = vmax.f32 %v3592, 0.0
      %v3945 = vmax.f32 %v3597, 0.0
      %v3946 = vmax.f32 %v3600, 0.0
      %v3947 = vmax.f32 %v3605, 0.0
      %v3948 = vmax.f32 %v3608, 0.0
      %v3949 = vmax.f32 %v3613, 0.0
      %v3950 = vmax.f32 %v3616, 0.0
      %v3951 = vmax.f32 %v3621, 0.0
      %v3952 = vmax.f32 %v3624, 0.0
      %v3953 = vmax.f32 %v3629, 0.0
      %v3954 = vmax.f32 %v3632, 0.0
      %v3955 = vmax.f32 %v3637, 0.0
      %v3956 = vmax.f32 %v3640, 0.0
      %v3957 = vmax.f32 %v3645, 0.0
      %v3958 = vmax.f32 %v3648, 0.0
      %v3959 = vmax.f32 %v3653, 0.0
      %v3960 = vmax.f32 %v3656, 0.0
      %v3961 = vmax.f32 %v3661, 0.0
      %v3962 = vmax.f32 %v3664, 0.0
      %v3963 = vmax.f32 %v3669, 0.0
      %v3964 = vmax.f32 %v3672, 0.0
      %v3965 = vmax.f32 %v3677, 0.0
      %v3966 = vmax.f32 %v3680, 0.0
      %v3967 = vmax.f32 %v3685, 0.0
      %v3968 = vmax.f32 %v3688, 0.0
      %v3969 = vmax.f32 %v3693, 0.0
      %v3970 = vmax.f32 %v3696, 0.0
      %v3971 = vmax.f32 %v3701, 0.0
      %v3972 = vmax.f32 %v3704, 0.0
      %v3973 = vmax.f32 %v3709, 0.0
      %v3974 = vmax.f32 %v3712, 0.0
      %v3975 = vmax.f32 %v3717, 0.0
      %v3976 = vmax.f32 %v3720, 0.0
      %v3977 = vmax.f32 %v3725, 0.0
      %v3978 = vmax.f32 %v3728, 0.0
      %v3979 = vmax.f32 %v3733, 0.0
      %v3980 = vmax.f32 %v3736, 0.0
      %v3981 = vmax.f32 %v3741, 0.0
      %v3982 = vmax.f32 %v3744, 0.0
      %v3983 = vmax.f32 %v3749, 0.0
      %v3984 = vmax.f32 %v3752, 0.0
      %v3985 = vmax.f32 %v3757, 0.0
      %v3986 = vmax.f32 %v3760, 0.0
      %v3987 = vmax.f32 %v3765, 0.0
      %v3988 = vmax.f32 %v3768, 0.0
      %v3989 = vmax.f32 %v3773, 0.0
      %v3990 = vmax.f32 %v3776, 0.0
      %v3991 = vmax.f32 %v3781, 0.0
      %v3992 = vmax.f32 %v3784, 0.0
      %v3993 = vmax.f32 %v3789, 0.0
      %v3994 = vmax.f32 %v3792, 0.0
      %v3995 = vmax.f32 %v3797, 0.0
      %v3996 = vmax.f32 %v3800, 0.0
      %v3997 = vmax.f32 %v3805, 0.0
      %v3998 = vmax.f32 %v3808, 0.0
      %v3999 = vmax.f32 %v3813, 0.0
      %v4000 = vmax.f32 %v3816, 0.0
      %v4001 = vmax.f32 %v3821, 0.0
      %v4002 = vmax.f32 %v3824, 0.0
      %v4003 = vmax.f32 %v3829, 0.0
      %v4004 = vmax.f32 %v3832, 0.0
      %v4005 = vmax.f32 %v3837, 0.0
      %v4006 = vmax.f32 %v3840, 0.0
      %v4007 = vmax.f32 %v3845, 0.0
      %v4008 = vmax.f32 %v3848, 0.0
      %v4009 = vmax.f32 %v3853, 0.0
      %v4010 = vmax.f32 %v3856, 0.0
      %v4011 = vmax.f32 %v3861, 0.0
      %v4012 = vmax.f32 %v3864, 0.0
      %v4013 = vmax.f32 %v3869, 0.0
      %v4014 = vmax.f32 %v3872, 0.0
      %v4015 = vmax.f32 %v3877, 0.0
      %v4016 = vmax.f32 %v3880, 0.0
      %v4017 = vmax.f32 %v3885, 0.0
      %v4018 = vmax.f32 %v3888, 0.0
      %v4019 = vpack.c.bf16 %v3892, %v3891
      %v4020 = vpack.c.bf16 %v3894, %v3893
      %v4021 = vpack.c.bf16 %v3896, %v3895
      %v4022 = vpack.c.bf16 %v3898, %v3897
      %v4023 = vpack.c.bf16 %v3900, %v3899
      %v4024 = vpack.c.bf16 %v3902, %v3901
      %v4025 = vpack.c.bf16 %v3904, %v3903
      %v4026 = vpack.c.bf16 %v3906, %v3905
      %v4027 = vpack.c.bf16 %v3908, %v3907
      %v4028 = vpack.c.bf16 %v3910, %v3909
      %v4029 = vpack.c.bf16 %v3912, %v3911
      %v4030 = vpack.c.bf16 %v3914, %v3913
      %v4031 = vpack.c.bf16 %v3916, %v3915
      %v4032 = vpack.c.bf16 %v3918, %v3917
      %v4033 = vpack.c.bf16 %v3920, %v3919
      %v4034 = vpack.c.bf16 %v3922, %v3921
      %v4035 = vpack.c.bf16 %v3924, %v3923
      %v4036 = vpack.c.bf16 %v3926, %v3925
      %v4037 = vpack.c.bf16 %v3928, %v3927
      %v4038 = vpack.c.bf16 %v3930, %v3929
      %v4039 = vpack.c.bf16 %v3932, %v3931
      %v4040 = vpack.c.bf16 %v3934, %v3933
      %v4041 = vpack.c.bf16 %v3936, %v3935
      %v4042 = vpack.c.bf16 %v3938, %v3937
      %v4043 = vpack.c.bf16 %v3940, %v3939
      %v4044 = vpack.c.bf16 %v3942, %v3941
      %v4045 = vpack.c.bf16 %v3944, %v3943
      %v4046 = vpack.c.bf16 %v3946, %v3945
      %v4047 = vpack.c.bf16 %v3948, %v3947
      %v4048 = vpack.c.bf16 %v3950, %v3949
      %v4049 = vpack.c.bf16 %v3952, %v3951
      %v4050 = vpack.c.bf16 %v3954, %v3953
      %v4051 = vpack.c.bf16 %v3956, %v3955
      %v4052 = vpack.c.bf16 %v3958, %v3957
      %v4053 = vpack.c.bf16 %v3960, %v3959
      %v4054 = vpack.c.bf16 %v3962, %v3961
      %v4055 = vpack.c.bf16 %v3964, %v3963
      %v4056 = vpack.c.bf16 %v3966, %v3965
      %v4057 = vpack.c.bf16 %v3968, %v3967
      %v4058 = vpack.c.bf16 %v3970, %v3969
      %v4059 = vpack.c.bf16 %v3972, %v3971
      %v4060 = vpack.c.bf16 %v3974, %v3973
      %v4061 = vpack.c.bf16 %v3976, %v3975
      %v4062 = vpack.c.bf16 %v3978, %v3977
      %v4063 = vpack.c.bf16 %v3980, %v3979
      %v4064 = vpack.c.bf16 %v3982, %v3981
      %v4065 = vpack.c.bf16 %v3984, %v3983
      %v4066 = vpack.c.bf16 %v3986, %v3985
      %v4067 = vpack.c.bf16 %v3988, %v3987
      %v4068 = vpack.c.bf16 %v3990, %v3989
      %v4069 = vpack.c.bf16 %v3992, %v3991
      %v4070 = vpack.c.bf16 %v3994, %v3993
      %v4071 = vpack.c.bf16 %v3996, %v3995
      %v4072 = vpack.c.bf16 %v3998, %v3997
      %v4073 = vpack.c.bf16 %v4000, %v3999
      %v4074 = vpack.c.bf16 %v4002, %v4001
      %v4075 = vpack.c.bf16 %v4004, %v4003
      %v4076 = vpack.c.bf16 %v4006, %v4005
      %v4077 = vpack.c.bf16 %v4008, %v4007
      %v4078 = vpack.c.bf16 %v4010, %v4009
      %v4079 = vpack.c.bf16 %v4012, %v4011
      %v4080 = vpack.c.bf16 %v4014, %v4013
      %v4081 = vpack.c.bf16 %v4016, %v4015
      %v4082 = vpack.c.bf16 %v4018, %v4017
      %v4083 = vld [vmem:[%s325] sm:$0xff]
      %v4084 = vld [vmem:[%s325 + $0x8] sm:$0xff]
      %v4085 = vld [vmem:[%s325 + $0x10] sm:$0xff]
      %v4086 = vld [vmem:[%s325 + $0x18] sm:$0xff]
      %v4087 = vld [vmem:[%s325 + $0x20] sm:$0xff]
      %v4088 = vld [vmem:[%s325 + $0x28] sm:$0xff]
      %v4089 = vld [vmem:[%s325 + $0x30] sm:$0xff]
      %v4090 = vld [vmem:[%s325 + $0x38] sm:$0xff]
      %v4091 = vld [vmem:[%s325 + $0x40] sm:$0xff]
      %v4092 = vld [vmem:[%s325 + $0x48] sm:$0xff]
      %v4093 = vld [vmem:[%s325 + $0x50] sm:$0xff]
      %v4094 = vld [vmem:[%s325 + $0x58] sm:$0xff]
      %v4095 = vld [vmem:[%s325 + $0x60] sm:$0xff]
      %v4096 = vld [vmem:[%s325 + $0x68] sm:$0xff]
      %v4097 = vld [vmem:[%s325 + $0x70] sm:$0xff]
      %v4098 = vld [vmem:[%s325 + $0x78] sm:$0xff]
      %v4099 = vld [vmem:[%s325 + $0x80] sm:$0xff]
      %v4100 = vld [vmem:[%s325 + $0x88] sm:$0xff]
      %v4101 = vld [vmem:[%s325 + $0x90] sm:$0xff]
      %v4102 = vld [vmem:[%s325 + $0x98] sm:$0xff]
      %v4103 = vld [vmem:[%s325 + $0xa0] sm:$0xff]
      %v4104 = vld [vmem:[%s325 + $0xa8] sm:$0xff]
      %v4105 = vld [vmem:[%s325 + $0xb0] sm:$0xff]
      %v4106 = vld [vmem:[%s325 + $0xb8] sm:$0xff]
      %v4107 = vld [vmem:[%s325 + $0xc0] sm:$0xff]
      %v4108 = vld [vmem:[%s325 + $0xc8] sm:$0xff]
      %v4109 = vld [vmem:[%s325 + $0xd0] sm:$0xff]
      %v4110 = vld [vmem:[%s325 + $0xd8] sm:$0xff]
      %v4111 = vld [vmem:[%s325 + $0xe0] sm:$0xff]
      %v4112 = vld [vmem:[%s325 + $0xe8] sm:$0xff]
      %v4113 = vld [vmem:[%s325 + $0xf0] sm:$0xff]
      %v4114 = vld [vmem:[%s325 + $0xf8] sm:$0xff]
      %v4115 = vld [vmem:[%s325 + $0x100] sm:$0xff]
      %v4116 = vld [vmem:[%s325 + $0x108] sm:$0xff]
      %v4117 = vld [vmem:[%s325 + $0x110] sm:$0xff]
      %v4118 = vld [vmem:[%s325 + $0x118] sm:$0xff]
      %v4119 = vld [vmem:[%s325 + $0x120] sm:$0xff]
      %v4120 = vld [vmem:[%s325 + $0x128] sm:$0xff]
      %v4121 = vld [vmem:[%s325 + $0x130] sm:$0xff]
      %v4122 = vld [vmem:[%s325 + $0x138] sm:$0xff]
      %v4123 = vld [vmem:[%s325 + $0x140] sm:$0xff]
      %v4124 = vld [vmem:[%s325 + $0x148] sm:$0xff]
      %v4125 = vld [vmem:[%s325 + $0x150] sm:$0xff]
      %v4126 = vld [vmem:[%s325 + $0x158] sm:$0xff]
      %v4127 = vld [vmem:[%s325 + $0x160] sm:$0xff]
      %v4128 = vld [vmem:[%s325 + $0x168] sm:$0xff]
      %v4129 = vld [vmem:[%s325 + $0x170] sm:$0xff]
      %v4130 = vld [vmem:[%s325 + $0x178] sm:$0xff]
      %v4131 = vld [vmem:[%s325 + $0x180] sm:$0xff]
      %v4132 = vld [vmem:[%s325 + $0x188] sm:$0xff]
      %v4133 = vld [vmem:[%s325 + $0x190] sm:$0xff]
      %v4134 = vld [vmem:[%s325 + $0x198] sm:$0xff]
      %v4135 = vld [vmem:[%s325 + $0x1a0] sm:$0xff]
      %v4136 = vld [vmem:[%s325 + $0x1a8] sm:$0xff]
      %v4137 = vld [vmem:[%s325 + $0x1b0] sm:$0xff]
      %v4138 = vld [vmem:[%s325 + $0x1b8] sm:$0xff]
      %v4139 = vld [vmem:[%s325 + $0x1c0] sm:$0xff]
      %v4140 = vld [vmem:[%s325 + $0x1c8] sm:$0xff]
      %v4141 = vld [vmem:[%s325 + $0x1d0] sm:$0xff]
      %v4142 = vld [vmem:[%s325 + $0x1d8] sm:$0xff]
      %v4143 = vld [vmem:[%s325 + $0x1e0] sm:$0xff]
      %v4144 = vld [vmem:[%s325 + $0x1e8] sm:$0xff]
      %v4145 = vld [vmem:[%s325 + $0x1f0] sm:$0xff]
      %v4146 = vld [vmem:[%s325 + $0x1f8] sm:$0xff]
      %v4211 = vunpack.c.l.b16 %v4083
      %v4212 = vunpack.c.h.b16 %v4083
      %v4213 = vunpack.c.l.b16 %v4084
      %v4214 = vunpack.c.h.b16 %v4084
      %v4215 = vunpack.c.l.b16 %v4085
      %v4216 = vunpack.c.h.b16 %v4085
      %v4217 = vunpack.c.l.b16 %v4086
      %v4218 = vunpack.c.h.b16 %v4086
      %v4219 = vunpack.c.l.b16 %v4087
      %v4220 = vunpack.c.h.b16 %v4087
      %v4221 = vunpack.c.l.b16 %v4088
      %v4222 = vunpack.c.h.b16 %v4088
      %v4223 = vunpack.c.l.b16 %v4089
      %v4224 = vunpack.c.h.b16 %v4089
      %v4225 = vunpack.c.l.b16 %v4090
      %v4226 = vunpack.c.h.b16 %v4090
      %v4227 = vunpack.c.l.b16 %v4091
      %v4228 = vunpack.c.h.b16 %v4091
      %v4229 = vunpack.c.l.b16 %v4092
      %v4230 = vunpack.c.h.b16 %v4092
      %v4231 = vunpack.c.l.b16 %v4093
      %v4232 = vunpack.c.h.b16 %v4093
      %v4233 = vunpack.c.l.b16 %v4094
      %v4234 = vunpack.c.h.b16 %v4094
      %v4235 = vunpack.c.l.b16 %v4095
      %v4236 = vunpack.c.h.b16 %v4095
      %v4237 = vunpack.c.l.b16 %v4096
      %v4238 = vunpack.c.h.b16 %v4096
      %v4239 = vunpack.c.l.b16 %v4097
      %v4240 = vunpack.c.h.b16 %v4097
      %v4241 = vunpack.c.l.b16 %v4098
      %v4242 = vunpack.c.h.b16 %v4098
      %v4243 = vunpack.c.l.b16 %v4099
      %v4244 = vunpack.c.h.b16 %v4099
      %v4245 = vunpack.c.l.b16 %v4100
      %v4246 = vunpack.c.h.b16 %v4100
      %v4247 = vunpack.c.l.b16 %v4101
      %v4248 = vunpack.c.h.b16 %v4101
      %v4249 = vunpack.c.l.b16 %v4102
      %v4250 = vunpack.c.h.b16 %v4102
      %v4251 = vunpack.c.l.b16 %v4103
      %v4252 = vunpack.c.h.b16 %v4103
      %v4253 = vunpack.c.l.b16 %v4104
      %v4254 = vunpack.c.h.b16 %v4104
      %v4255 = vunpack.c.l.b16 %v4105
      %v4256 = vunpack.c.h.b16 %v4105
      %v4257 = vunpack.c.l.b16 %v4106
      %v4258 = vunpack.c.h.b16 %v4106
      %v4259 = vunpack.c.l.b16 %v4107
      %v4260 = vunpack.c.h.b16 %v4107
      %v4261 = vunpack.c.l.b16 %v4108
      %v4262 = vunpack.c.h.b16 %v4108
      %v4263 = vunpack.c.l.b16 %v4109
      %v4264 = vunpack.c.h.b16 %v4109
      %v4265 = vunpack.c.l.b16 %v4110
      %v4266 = vunpack.c.h.b16 %v4110
      %v4267 = vunpack.c.l.b16 %v4111
      %v4268 = vunpack.c.h.b16 %v4111
      %v4269 = vunpack.c.l.b16 %v4112
      %v4270 = vunpack.c.h.b16 %v4112
      %v4271 = vunpack.c.l.b16 %v4113
      %v4272 = vunpack.c.h.b16 %v4113
      %v4273 = vunpack.c.l.b16 %v4114
      %v4274 = vunpack.c.h.b16 %v4114
      %v4275 = vunpack.c.l.b16 %v4115
      %v4276 = vunpack.c.h.b16 %v4115
      %v4277 = vunpack.c.l.b16 %v4116
      %v4278 = vunpack.c.h.b16 %v4116
      %v4279 = vunpack.c.l.b16 %v4117
      %v4280 = vunpack.c.h.b16 %v4117
      %v4281 = vunpack.c.l.b16 %v4118
      %v4282 = vunpack.c.h.b16 %v4118
      %v4283 = vunpack.c.l.b16 %v4119
      %v4284 = vunpack.c.h.b16 %v4119
      %v4285 = vunpack.c.l.b16 %v4120
      %v4286 = vunpack.c.h.b16 %v4120
      %v4287 = vunpack.c.l.b16 %v4121
      %v4288 = vunpack.c.h.b16 %v4121
      %v4289 = vunpack.c.l.b16 %v4122
      %v4290 = vunpack.c.h.b16 %v4122
      %v4291 = vunpack.c.l.b16 %v4123
      %v4292 = vunpack.c.h.b16 %v4123
      %v4293 = vunpack.c.l.b16 %v4124
      %v4294 = vunpack.c.h.b16 %v4124
      %v4295 = vunpack.c.l.b16 %v4125
      %v4296 = vunpack.c.h.b16 %v4125
      %v4297 = vunpack.c.l.b16 %v4126
      %v4298 = vunpack.c.h.b16 %v4126
      %v4299 = vunpack.c.l.b16 %v4127
      %v4300 = vunpack.c.h.b16 %v4127
      %v4301 = vunpack.c.l.b16 %v4128
      %v4302 = vunpack.c.h.b16 %v4128
      %v4303 = vunpack.c.l.b16 %v4129
      %v4304 = vunpack.c.h.b16 %v4129
      %v4305 = vunpack.c.l.b16 %v4130
      %v4306 = vunpack.c.h.b16 %v4130
      %v4307 = vunpack.c.l.b16 %v4131
      %v4308 = vunpack.c.h.b16 %v4131
      %v4309 = vunpack.c.l.b16 %v4132
      %v4310 = vunpack.c.h.b16 %v4132
      %v4311 = vunpack.c.l.b16 %v4133
      %v4312 = vunpack.c.h.b16 %v4133
      %v4313 = vunpack.c.l.b16 %v4134
      %v4314 = vunpack.c.h.b16 %v4134
      %v4315 = vunpack.c.l.b16 %v4135
      %v4316 = vunpack.c.h.b16 %v4135
      %v4317 = vunpack.c.l.b16 %v4136
      %v4318 = vunpack.c.h.b16 %v4136
      %v4319 = vunpack.c.l.b16 %v4137
      %v4320 = vunpack.c.h.b16 %v4137
      %v4321 = vunpack.c.l.b16 %v4138
      %v4322 = vunpack.c.h.b16 %v4138
      %v4323 = vunpack.c.l.b16 %v4139
      %v4324 = vunpack.c.h.b16 %v4139
      %v4325 = vunpack.c.l.b16 %v4140
      %v4326 = vunpack.c.h.b16 %v4140
      %v4327 = vunpack.c.l.b16 %v4141
      %v4328 = vunpack.c.h.b16 %v4141
      %v4329 = vunpack.c.l.b16 %v4142
      %v4330 = vunpack.c.h.b16 %v4142
      %v4331 = vunpack.c.l.b16 %v4143
      %v4332 = vunpack.c.h.b16 %v4143
      %v4333 = vunpack.c.l.b16 %v4144
      %v4334 = vunpack.c.h.b16 %v4144
      %v4335 = vunpack.c.l.b16 %v4145
      %v4336 = vunpack.c.h.b16 %v4145
      %v4337 = vunpack.c.l.b16 %v4146
      %v4338 = vunpack.c.h.b16 %v4146
      %v4339 = vpack.c.b16 %v4219, %v4211
      %v4340 = vpack.c.b16 %v4220, %v4212
      %v4341 = vpack.c.b16 %v4221, %v4213
      %v4342 = vpack.c.b16 %v4222, %v4214
      %v4343 = vpack.c.b16 %v4223, %v4215
      %v4344 = vpack.c.b16 %v4224, %v4216
      %v4345 = vpack.c.b16 %v4225, %v4217
      %v4346 = vpack.c.b16 %v4226, %v4218
      %v4347 = vpack.c.b16 %v4235, %v4227
      %v4348 = vpack.c.b16 %v4236, %v4228
      %v4349 = vpack.c.b16 %v4237, %v4229
      %v4350 = vpack.c.b16 %v4238, %v4230
      %v4351 = vpack.c.b16 %v4239, %v4231
      %v4352 = vpack.c.b16 %v4240, %v4232
      %v4353 = vpack.c.b16 %v4241, %v4233
      %v4354 = vpack.c.b16 %v4242, %v4234
      %v4355 = vpack.c.b16 %v4251, %v4243
      %v4356 = vpack.c.b16 %v4252, %v4244
      %v4357 = vpack.c.b16 %v4253, %v4245
      %v4358 = vpack.c.b16 %v4254, %v4246
      %v4359 = vpack.c.b16 %v4255, %v4247
      %v4360 = vpack.c.b16 %v4256, %v4248
      %v4361 = vpack.c.b16 %v4257, %v4249
      %v4362 = vpack.c.b16 %v4258, %v4250
      %v4363 = vpack.c.b16 %v4267, %v4259
      %v4364 = vpack.c.b16 %v4268, %v4260
      %v4365 = vpack.c.b16 %v4269, %v4261
      %v4366 = vpack.c.b16 %v4270, %v4262
      %v4367 = vpack.c.b16 %v4271, %v4263
      %v4368 = vpack.c.b16 %v4272, %v4264
      %v4369 = vpack.c.b16 %v4273, %v4265
      %v4370 = vpack.c.b16 %v4274, %v4266
      %v4371 = vpack.c.b16 %v4283, %v4275
      %v4372 = vpack.c.b16 %v4284, %v4276
      %v4373 = vpack.c.b16 %v4285, %v4277
      %v4374 = vpack.c.b16 %v4286, %v4278
      %v4375 = vpack.c.b16 %v4287, %v4279
      %v4376 = vpack.c.b16 %v4288, %v4280
      %v4377 = vpack.c.b16 %v4289, %v4281
      %v4378 = vpack.c.b16 %v4290, %v4282
      %v4379 = vpack.c.b16 %v4299, %v4291
      %v4380 = vpack.c.b16 %v4300, %v4292
      %v4381 = vpack.c.b16 %v4301, %v4293
      %v4382 = vpack.c.b16 %v4302, %v4294
      %v4383 = vpack.c.b16 %v4303, %v4295
      %v4384 = vpack.c.b16 %v4304, %v4296
      %v4385 = vpack.c.b16 %v4305, %v4297
      %v4386 = vpack.c.b16 %v4306, %v4298
      %v4387 = vpack.c.b16 %v4315, %v4307
      %v4388 = vpack.c.b16 %v4316, %v4308
      %v4389 = vpack.c.b16 %v4317, %v4309
      %v4390 = vpack.c.b16 %v4318, %v4310
      %v4391 = vpack.c.b16 %v4319, %v4311
      %v4392 = vpack.c.b16 %v4320, %v4312
      %v4393 = vpack.c.b16 %v4321, %v4313
      %v4394 = vpack.c.b16 %v4322, %v4314
      %v4395 = vpack.c.b16 %v4331, %v4323
      %v4396 = vpack.c.b16 %v4332, %v4324
      %v4397 = vpack.c.b16 %v4333, %v4325
      %v4398 = vpack.c.b16 %v4334, %v4326
      %v4399 = vpack.c.b16 %v4335, %v4327
      %v4400 = vpack.c.b16 %v4336, %v4328
      %v4401 = vpack.c.b16 %v4337, %v4329
      %v4402 = vpack.c.b16 %v4338, %v4330
      %4467 = vmatprep.subr.bf16.mxu0 %v4340
      %4468 = vmatpush1.bf16.msra.mxu0 %v4339
      %4469 = vmatprep.subr.bf16.mxu0 %v4348
      %4470 = vmatpush1.bf16.msra.mxu0 %v4347
      %4471 = vmatprep.subr.bf16.mxu0 %v4356
      %4472 = vmatpush1.bf16.msra.mxu0 %v4355
      %4473 = vmatprep.subr.bf16.mxu0 %v4364
      %4474 = vmatpush1.bf16.msra.mxu0 %v4363
      %4475 = vmatprep.subr.bf16.mxu0 %v4372
      %4476 = vmatpush1.bf16.msra.mxu0 %v4371
      %4477 = vmatprep.subr.bf16.mxu0 %v4380
      %4478 = vmatpush1.bf16.msra.mxu0 %v4379
      %4479 = vmatprep.subr.bf16.mxu0 %v4388
      %4480 = vmatpush1.bf16.msra.mxu0 %v4387
      %4481 = vmatprep.subr.bf16.mxu0 %v4396
      %4482 = vmatpush1.bf16.msra.mxu0 %v4395
      %4483 = vmatprep.subr.bf16.mxu0 0
      %4484 = vmatpush1.bf16.msra.mxu0 0
      %4485 = vmatprep.subr.bf16.mxu0 0
      %4486 = vmatpush1.bf16.msra.mxu0 0
      %4487 = vmatprep.subr.bf16.mxu0 0
      %4488 = vmatpush1.bf16.msra.mxu0 0
      %4489 = vmatprep.subr.bf16.mxu0 0
      %4490 = vmatpush1.bf16.msra.mxu0 0
      %4491 = vmatprep.subr.bf16.mxu0 0
      %4492 = vmatpush1.bf16.msra.mxu0 0
      %4493 = vmatprep.subr.bf16.mxu0 0
      %4494 = vmatpush1.bf16.msra.mxu0 0
      %4495 = vmatprep.subr.bf16.mxu0 0
      %4496 = vmatpush1.bf16.msra.mxu0 0
      %4497 = vmatprep.subr.bf16.mxu0 0
      %4498 = vmatpush1.bf16.msra.mxu0 0
      %4499 = vmatprep.mubr.bf16.mxu0 0
      %4500 = vmatmul.mubr.bf16.gmra.mrb[0].mxu0 %v4019
      %v4501 = vpop.f32.mrb[0].mxu0
      %v4502 = vadd.f32 0.0, %v4501
      %v4503 = vpop.f32.mrb[0].mxu0
      %v4504 = vadd.f32 0.0, %v4503
      %v4505 = vpop.f32.mrb[0].mxu0
      %v4506 = vadd.f32 0.0, %v4505
      %v4507 = vpop.f32.mrb[0].mxu0
      %v4508 = vadd.f32 0.0, %v4507
      %4509 = vmatprep.mubr.bf16.mxu0 0
      %4510 = vmatmul.mubr.bf16.gmra.mrb[0].mxu0 %v4020
      %v4511 = vpop.f32.mrb[0].mxu0
      %v4512 = vadd.f32 0.0, %v4511
      %v4513 = vpop.f32.mrb[0].mxu0
      %v4514 = vadd.f32 0.0, %v4513
      %v4515 = vpop.f32.mrb[0].mxu0
      %v4516 = vadd.f32 0.0, %v4515
      %v4517 = vpop.f32.mrb[0].mxu0
      %v4518 = vadd.f32 0.0, %v4517
      %4519 = vmatprep.mubr.bf16.mxu0 0
      %4520 = vmatmul.mubr.bf16.gmra.mrb[0].mxu0 %v4021
      %v4521 = vpop.f32.mrb[0].mxu0
      %v4522 = vadd.f32 0.0, %v4521
      %v4523 = vpop.f32.mrb[0].mxu0
      %v4524 = vadd.f32 0.0, %v4523
      %v4525 = vpop.f32.mrb[0].mxu0
      %v4526 = vadd.f32 0.0, %v4525
      %v4527 = vpop.f32.mrb[0].mxu0
      %v4528 = vadd.f32 0.0, %v4527
      %4529 = vmatprep.mubr.bf16.mxu0 0
      %4530 = vmatmul.mubr.bf16.gmra.mrb[0].mxu0 %v4022
      %v4531 = vpop.f32.mrb[0].mxu0
      %v4532 = vadd.f32 0.0, %v4531
      %v4533 = vpop.f32.mrb[0].mxu0
      %v4534 = vadd.f32 0.0, %v4533
      %v4535 = vpop.f32.mrb[0].mxu0
      %v4536 = vadd.f32 0.0, %v4535
      %v4537 = vpop.f32.mrb[0].mxu0
      %v4538 = vadd.f32 0.0, %v4537
      %4539 = vmatprep.mubr.bf16.mxu0 0
      %4540 = vmatmul.mubr.bf16.gmra.mrb[0].mxu0 %v4023
      %v4541 = vpop.f32.mrb[0].mxu0
      %v4542 = vadd.f32 0.0, %v4541
      %v4543 = vpop.f32.mrb[0].mxu0
      %v4544 = vadd.f32 0.0, %v4543
      %v4545 = vpop.f32.mrb[0].mxu0
      %v4546 = vadd.f32 0.0, %v4545
      %v4547 = vpop.f32.mrb[0].mxu0
      %v4548 = vadd.f32 0.0, %v4547
      %4549 = vmatprep.mubr.bf16.mxu0 0
      %4550 = vmatmul.mubr.bf16.gmra.mrb[0].mxu0 %v4024
      %v4551 = vpop.f32.mrb[0].mxu0
      %v4552 = vadd.f32 0.0, %v4551
      %v4553 = vpop.f32.mrb[0].mxu0
      %v4554 = vadd.f32 0.0, %v4553
      %v4555 = vpop.f32.mrb[0].mxu0
      %v4556 = vadd.f32 0.0, %v4555
      %v4557 = vpop.f32.mrb[0].mxu0
      %v4558 = vadd.f32 0.0, %v4557
      %4559 = vmatprep.mubr.bf16.mxu0 0
      %4560 = vmatmul.mubr.bf16.gmra.mrb[0].mxu0 %v4025
      %v4561 = vpop.f32.mrb[0].mxu0
      %v4562 = vadd.f32 0.0, %v4561
      %v4563 = vpop.f32.mrb[0].mxu0
      %v4564 = vadd.f32 0.0, %v4563
      %v4565 = vpop.f32.mrb[0].mxu0
      %v4566 = vadd.f32 0.0, %v4565
      %v4567 = vpop.f32.mrb[0].mxu0
      %v4568 = vadd.f32 0.0, %v4567
      %4569 = vmatprep.mubr.bf16.mxu0 0
      %4570 = vmatmul.mubr.bf16.gmra.mrb[0].mxu0 %v4026
      %v4571 = vpop.f32.mrb[0].mxu0
      %v4572 = vadd.f32 0.0, %v4571
      %v4573 = vpop.f32.mrb[0].mxu0
      %v4574 = vadd.f32 0.0, %v4573
      %v4575 = vpop.f32.mrb[0].mxu0
      %v4576 = vadd.f32 0.0, %v4575
      %v4577 = vpop.f32.mrb[0].mxu0
      %v4578 = vadd.f32 0.0, %v4577
      %4579 = vmatprep.mubr.bf16.mxu0 0
      %4580 = vmatmul.mubr.bf16.gmra.mrb[0].mxu0 %v4027
      %v4581 = vpop.f32.mrb[0].mxu0
      %v4582 = vadd.f32 0.0, %v4581
      %v4583 = vpop.f32.mrb[0].mxu0
      %v4584 = vadd.f32 0.0, %v4583
      %v4585 = vpop.f32.mrb[0].mxu0
      %v4586 = vadd.f32 0.0, %v4585
      %v4587 = vpop.f32.mrb[0].mxu0
      %v4588 = vadd.f32 0.0, %v4587
      %4589 = vmatprep.mubr.bf16.mxu0 0
      %4590 = vmatmul.mubr.bf16.gmra.mrb[0].mxu0 %v4028
      %v4591 = vpop.f32.mrb[0].mxu0
      %v4592 = vadd.f32 0.0, %v4591
      %v4593 = vpop.f32.mrb[0].mxu0
      %v4594 = vadd.f32 0.0, %v4593
      %v4595 = vpop.f32.mrb[0].mxu0
      %v4596 = vadd.f32 0.0, %v4595
      %v4597 = vpop.f32.mrb[0].mxu0
      %v4598 = vadd.f32 0.0, %v4597
      %4599 = vmatprep.mubr.bf16.mxu0 0
      %4600 = vmatmul.mubr.bf16.gmra.mrb[0].mxu0 %v4029
      %v4601 = vpop.f32.mrb[0].mxu0
      %v4602 = vadd.f32 0.0, %v4601
      %v4603 = vpop.f32.mrb[0].mxu0
      %v4604 = vadd.f32 0.0, %v4603
      %v4605 = vpop.f32.mrb[0].mxu0
      %v4606 = vadd.f32 0.0, %v4605
      %v4607 = vpop.f32.mrb[0].mxu0
      %v4608 = vadd.f32 0.0, %v4607
      %4609 = vmatprep.mubr.bf16.mxu0 0
      %4610 = vmatmul.mubr.bf16.gmra.mrb[0].mxu0 %v4030
      %v4611 = vpop.f32.mrb[0].mxu0
      %v4612 = vadd.f32 0.0, %v4611
      %v4613 = vpop.f32.mrb[0].mxu0
      %v4614 = vadd.f32 0.0, %v4613
      %v4615 = vpop.f32.mrb[0].mxu0
      %v4616 = vadd.f32 0.0, %v4615
      %v4617 = vpop.f32.mrb[0].mxu0
      %v4618 = vadd.f32 0.0, %v4617
      %4619 = vmatprep.mubr.bf16.mxu0 0
      %4620 = vmatmul.mubr.bf16.gmra.mrb[0].mxu0 %v4031
      %v4621 = vpop.f32.mrb[0].mxu0
      %v4622 = vadd.f32 0.0, %v4621
      %v4623 = vpop.f32.mrb[0].mxu0
      %v4624 = vadd.f32 0.0, %v4623
      %v4625 = vpop.f32.mrb[0].mxu0
      %v4626 = vadd.f32 0.0, %v4625
      %v4627 = vpop.f32.mrb[0].mxu0
      %v4628 = vadd.f32 0.0, %v4627
      %4629 = vmatprep.mubr.bf16.mxu0 0
      %4630 = vmatmul.mubr.bf16.gmra.mrb[0].mxu0 %v4032
      %v4631 = vpop.f32.mrb[0].mxu0
      %v4632 = vadd.f32 0.0, %v4631
      %v4633 = vpop.f32.mrb[0].mxu0
      %v4634 = vadd.f32 0.0, %v4633
      %v4635 = vpop.f32.mrb[0].mxu0
      %v4636 = vadd.f32 0.0, %v4635
      %v4637 = vpop.f32.mrb[0].mxu0
      %v4638 = vadd.f32 0.0, %v4637
      %4639 = vmatprep.mubr.bf16.mxu0 0
      %4640 = vmatmul.mubr.bf16.gmra.mrb[0].mxu0 %v4033
      %v4641 = vpop.f32.mrb[0].mxu0
      %v4642 = vadd.f32 0.0, %v4641
      %v4643 = vpop.f32.mrb[0].mxu0
      %v4644 = vadd.f32 0.0, %v4643
      %v4645 = vpop.f32.mrb[0].mxu0
      %v4646 = vadd.f32 0.0, %v4645
      %v4647 = vpop.f32.mrb[0].mxu0
      %v4648 = vadd.f32 0.0, %v4647
      %4649 = vmatprep.mubr.bf16.mxu0 0
      %4650 = vmatmul.mubr.bf16.gmra.mrb[0].mxu0 %v4034
      %v4651 = vpop.f32.mrb[0].mxu0
      %v4652 = vadd.f32 0.0, %v4651
      %v4653 = vpop.f32.mrb[0].mxu0
      %v4654 = vadd.f32 0.0, %v4653
      %v4655 = vpop.f32.mrb[0].mxu0
      %v4656 = vadd.f32 0.0, %v4655
      %v4657 = vpop.f32.mrb[0].mxu0
      %v4658 = vadd.f32 0.0, %v4657
      %4659 = vmatprep.mubr.bf16.mxu0 0
      %4660 = vmatmul.mubr.bf16.gmra.mrb[0].mxu0 %v4035
      %v4661 = vpop.f32.mrb[0].mxu0
      %v4662 = vadd.f32 0.0, %v4661
      %v4663 = vpop.f32.mrb[0].mxu0
      %v4664 = vadd.f32 0.0, %v4663
      %v4665 = vpop.f32.mrb[0].mxu0
      %v4666 = vadd.f32 0.0, %v4665
      %v4667 = vpop.f32.mrb[0].mxu0
      %v4668 = vadd.f32 0.0, %v4667
      %4669 = vmatprep.mubr.bf16.mxu0 0
      %4670 = vmatmul.mubr.bf16.gmra.mrb[0].mxu0 %v4036
      %v4671 = vpop.f32.mrb[0].mxu0
      %v4672 = vadd.f32 0.0, %v4671
      %v4673 = vpop.f32.mrb[0].mxu0
      %v4674 = vadd.f32 0.0, %v4673
      %v4675 = vpop.f32.mrb[0].mxu0
      %v4676 = vadd.f32 0.0, %v4675
      %v4677 = vpop.f32.mrb[0].mxu0
      %v4678 = vadd.f32 0.0, %v4677
      %4679 = vmatprep.mubr.bf16.mxu0 0
      %4680 = vmatmul.mubr.bf16.gmra.mrb[0].mxu0 %v4037
      %v4681 = vpop.f32.mrb[0].mxu0
      %v4682 = vadd.f32 0.0, %v4681
      %v4683 = vpop.f32.mrb[0].mxu0
      %v4684 = vadd.f32 0.0, %v4683
      %v4685 = vpop.f32.mrb[0].mxu0
      %v4686 = vadd.f32 0.0, %v4685
      %v4687 = vpop.f32.mrb[0].mxu0
      %v4688 = vadd.f32 0.0, %v4687
      %4689 = vmatprep.mubr.bf16.mxu0 0
      %4690 = vmatmul.mubr.bf16.gmra.mrb[0].mxu0 %v4038
      %v4691 = vpop.f32.mrb[0].mxu0
      %v4692 = vadd.f32 0.0, %v4691
      %v4693 = vpop.f32.mrb[0].mxu0
      %v4694 = vadd.f32 0.0, %v4693
      %v4695 = vpop.f32.mrb[0].mxu0
      %v4696 = vadd.f32 0.0, %v4695
      %v4697 = vpop.f32.mrb[0].mxu0
      %v4698 = vadd.f32 0.0, %v4697
      %4699 = vmatprep.mubr.bf16.mxu0 0
      %4700 = vmatmul.mubr.bf16.gmra.mrb[0].mxu0 %v4039
      %v4701 = vpop.f32.mrb[0].mxu0
      %v4702 = vadd.f32 0.0, %v4701
      %v4703 = vpop.f32.mrb[0].mxu0
      %v4704 = vadd.f32 0.0, %v4703
      %v4705 = vpop.f32.mrb[0].mxu0
      %v4706 = vadd.f32 0.0, %v4705
      %v4707 = vpop.f32.mrb[0].mxu0
      %v4708 = vadd.f32 0.0, %v4707
      %4709 = vmatprep.mubr.bf16.mxu0 0
      %4710 = vmatmul.mubr.bf16.gmra.mrb[0].mxu0 %v4040
      %v4711 = vpop.f32.mrb[0].mxu0
      %v4712 = vadd.f32 0.0, %v4711
      %v4713 = vpop.f32.mrb[0].mxu0
      %v4714 = vadd.f32 0.0, %v4713
      %v4715 = vpop.f32.mrb[0].mxu0
      %v4716 = vadd.f32 0.0, %v4715
      %v4717 = vpop.f32.mrb[0].mxu0
      %v4718 = vadd.f32 0.0, %v4717
      %4719 = vmatprep.mubr.bf16.mxu0 0
      %4720 = vmatmul.mubr.bf16.gmra.mrb[0].mxu0 %v4041
      %v4721 = vpop.f32.mrb[0].mxu0
      %v4722 = vadd.f32 0.0, %v4721
      %v4723 = vpop.f32.mrb[0].mxu0
      %v4724 = vadd.f32 0.0, %v4723
      %v4725 = vpop.f32.mrb[0].mxu0
      %v4726 = vadd.f32 0.0, %v4725
      %v4727 = vpop.f32.mrb[0].mxu0
      %v4728 = vadd.f32 0.0, %v4727
      %4729 = vmatprep.mubr.bf16.mxu0 0
      %4730 = vmatmul.mubr.bf16.gmra.mrb[0].mxu0 %v4042
      %v4731 = vpop.f32.mrb[0].mxu0
      %v4732 = vadd.f32 0.0, %v4731
      %v4733 = vpop.f32.mrb[0].mxu0
      %v4734 = vadd.f32 0.0, %v4733
      %v4735 = vpop.f32.mrb[0].mxu0
      %v4736 = vadd.f32 0.0, %v4735
      %v4737 = vpop.f32.mrb[0].mxu0
      %v4738 = vadd.f32 0.0, %v4737
      %4739 = vmatprep.mubr.bf16.mxu0 0
      %4740 = vmatmul.mubr.bf16.gmra.mrb[0].mxu0 %v4043
      %v4741 = vpop.f32.mrb[0].mxu0
      %v4742 = vadd.f32 0.0, %v4741
      %v4743 = vpop.f32.mrb[0].mxu0
      %v4744 = vadd.f32 0.0, %v4743
      %v4745 = vpop.f32.mrb[0].mxu0
      %v4746 = vadd.f32 0.0, %v4745
      %v4747 = vpop.f32.mrb[0].mxu0
      %v4748 = vadd.f32 0.0, %v4747
      %4749 = vmatprep.mubr.bf16.mxu0 0
      %4750 = vmatmul.mubr.bf16.gmra.mrb[0].mxu0 %v4044
      %v4751 = vpop.f32.mrb[0].mxu0
      %v4752 = vadd.f32 0.0, %v4751
      %v4753 = vpop.f32.mrb[0].mxu0
      %v4754 = vadd.f32 0.0, %v4753
      %v4755 = vpop.f32.mrb[0].mxu0
      %v4756 = vadd.f32 0.0, %v4755
      %v4757 = vpop.f32.mrb[0].mxu0
      %v4758 = vadd.f32 0.0, %v4757
      %4759 = vmatprep.mubr.bf16.mxu0 0
      %4760 = vmatmul.mubr.bf16.gmra.mrb[0].mxu0 %v4045
      %v4761 = vpop.f32.mrb[0].mxu0
      %v4762 = vadd.f32 0.0, %v4761
      %v4763 = vpop.f32.mrb[0].mxu0
      %v4764 = vadd.f32 0.0, %v4763
      %v4765 = vpop.f32.mrb[0].mxu0
      %v4766 = vadd.f32 0.0, %v4765
      %v4767 = vpop.f32.mrb[0].mxu0
      %v4768 = vadd.f32 0.0, %v4767
      %4769 = vmatprep.mubr.bf16.mxu0 0
      %4770 = vmatmul.mubr.bf16.gmra.mrb[0].mxu0 %v4046
      %v4771 = vpop.f32.mrb[0].mxu0
      %v4772 = vadd.f32 0.0, %v4771
      %v4773 = vpop.f32.mrb[0].mxu0
      %v4774 = vadd.f32 0.0, %v4773
      %v4775 = vpop.f32.mrb[0].mxu0
      %v4776 = vadd.f32 0.0, %v4775
      %v4777 = vpop.f32.mrb[0].mxu0
      %v4778 = vadd.f32 0.0, %v4777
      %4779 = vmatprep.mubr.bf16.mxu0 0
      %4780 = vmatmul.mubr.bf16.gmra.mrb[0].mxu0 %v4047
      %v4781 = vpop.f32.mrb[0].mxu0
      %v4782 = vadd.f32 0.0, %v4781
      %v4783 = vpop.f32.mrb[0].mxu0
      %v4784 = vadd.f32 0.0, %v4783
      %v4785 = vpop.f32.mrb[0].mxu0
      %v4786 = vadd.f32 0.0, %v4785
      %v4787 = vpop.f32.mrb[0].mxu0
      %v4788 = vadd.f32 0.0, %v4787
      %4789 = vmatprep.mubr.bf16.mxu0 0
      %4790 = vmatmul.mubr.bf16.gmra.mrb[0].mxu0 %v4048
      %v4791 = vpop.f32.mrb[0].mxu0
      %v4792 = vadd.f32 0.0, %v4791
      %v4793 = vpop.f32.mrb[0].mxu0
      %v4794 = vadd.f32 0.0, %v4793
      %v4795 = vpop.f32.mrb[0].mxu0
      %v4796 = vadd.f32 0.0, %v4795
      %v4797 = vpop.f32.mrb[0].mxu0
      %v4798 = vadd.f32 0.0, %v4797
      %4799 = vmatprep.mubr.bf16.mxu0 0
      %4800 = vmatmul.mubr.bf16.gmra.mrb[0].mxu0 %v4049
      %v4801 = vpop.f32.mrb[0].mxu0
      %v4802 = vadd.f32 0.0, %v4801
      %v4803 = vpop.f32.mrb[0].mxu0
      %v4804 = vadd.f32 0.0, %v4803
      %v4805 = vpop.f32.mrb[0].mxu0
      %v4806 = vadd.f32 0.0, %v4805
      %v4807 = vpop.f32.mrb[0].mxu0
      %v4808 = vadd.f32 0.0, %v4807
      %4809 = vmatprep.mubr.bf16.mxu0 0
      %4810 = vmatmul.mubr.bf16.gmra.mrb[0].mxu0 %v4050
      %v4811 = vpop.f32.mrb[0].mxu0
      %v4812 = vadd.f32 0.0, %v4811
      %v4813 = vpop.f32.mrb[0].mxu0
      %v4814 = vadd.f32 0.0, %v4813
      %v4815 = vpop.f32.mrb[0].mxu0
      %v4816 = vadd.f32 0.0, %v4815
      %v4817 = vpop.f32.mrb[0].mxu0
      %v4818 = vadd.f32 0.0, %v4817
      %4819 = vmatprep.mubr.bf16.mxu0 0
      %4820 = vmatmul.mubr.bf16.gmra.mrb[0].mxu0 %v4051
      %v4821 = vpop.f32.mrb[0].mxu0
      %v4822 = vadd.f32 0.0, %v4821
      %v4823 = vpop.f32.mrb[0].mxu0
      %v4824 = vadd.f32 0.0, %v4823
      %v4825 = vpop.f32.mrb[0].mxu0
      %v4826 = vadd.f32 0.0, %v4825
      %v4827 = vpop.f32.mrb[0].mxu0
      %v4828 = vadd.f32 0.0, %v4827
      %4829 = vmatprep.mubr.bf16.mxu0 0
      %4830 = vmatmul.mubr.bf16.gmra.mrb[0].mxu0 %v4052
      %v4831 = vpop.f32.mrb[0].mxu0
      %v4832 = vadd.f32 0.0, %v4831
      %v4833 = vpop.f32.mrb[0].mxu0
      %v4834 = vadd.f32 0.0, %v4833
      %v4835 = vpop.f32.mrb[0].mxu0
      %v4836 = vadd.f32 0.0, %v4835
      %v4837 = vpop.f32.mrb[0].mxu0
      %v4838 = vadd.f32 0.0, %v4837
      %4839 = vmatprep.mubr.bf16.mxu0 0
      %4840 = vmatmul.mubr.bf16.gmra.mrb[0].mxu0 %v4053
      %v4841 = vpop.f32.mrb[0].mxu0
      %v4842 = vadd.f32 0.0, %v4841
      %v4843 = vpop.f32.mrb[0].mxu0
      %v4844 = vadd.f32 0.0, %v4843
      %v4845 = vpop.f32.mrb[0].mxu0
      %v4846 = vadd.f32 0.0, %v4845
      %v4847 = vpop.f32.mrb[0].mxu0
      %v4848 = vadd.f32 0.0, %v4847
      %4849 = vmatprep.mubr.bf16.mxu0 0
      %4850 = vmatmul.mubr.bf16.gmra.mrb[0].mxu0 %v4054
      %v4851 = vpop.f32.mrb[0].mxu0
      %v4852 = vadd.f32 0.0, %v4851
      %v4853 = vpop.f32.mrb[0].mxu0
      %v4854 = vadd.f32 0.0, %v4853
      %v4855 = vpop.f32.mrb[0].mxu0
      %v4856 = vadd.f32 0.0, %v4855
      %v4857 = vpop.f32.mrb[0].mxu0
      %v4858 = vadd.f32 0.0, %v4857
      %4859 = vmatprep.mubr.bf16.mxu0 0
      %4860 = vmatmul.mubr.bf16.gmra.mrb[0].mxu0 %v4055
      %v4861 = vpop.f32.mrb[0].mxu0
      %v4862 = vadd.f32 0.0, %v4861
      %v4863 = vpop.f32.mrb[0].mxu0
      %v4864 = vadd.f32 0.0, %v4863
      %v4865 = vpop.f32.mrb[0].mxu0
      %v4866 = vadd.f32 0.0, %v4865
      %v4867 = vpop.f32.mrb[0].mxu0
      %v4868 = vadd.f32 0.0, %v4867
      %4869 = vmatprep.mubr.bf16.mxu0 0
      %4870 = vmatmul.mubr.bf16.gmra.mrb[0].mxu0 %v4056
      %v4871 = vpop.f32.mrb[0].mxu0
      %v4872 = vadd.f32 0.0, %v4871
      %v4873 = vpop.f32.mrb[0].mxu0
      %v4874 = vadd.f32 0.0, %v4873
      %v4875 = vpop.f32.mrb[0].mxu0
      %v4876 = vadd.f32 0.0, %v4875
      %v4877 = vpop.f32.mrb[0].mxu0
      %v4878 = vadd.f32 0.0, %v4877
      %4879 = vmatprep.mubr.bf16.mxu0 0
      %4880 = vmatmul.mubr.bf16.gmra.mrb[0].mxu0 %v4057
      %v4881 = vpop.f32.mrb[0].mxu0
      %v4882 = vadd.f32 0.0, %v4881
      %v4883 = vpop.f32.mrb[0].mxu0
      %v4884 = vadd.f32 0.0, %v4883
      %v4885 = vpop.f32.mrb[0].mxu0
      %v4886 = vadd.f32 0.0, %v4885
      %v4887 = vpop.f32.mrb[0].mxu0
      %v4888 = vadd.f32 0.0, %v4887
      %4889 = vmatprep.mubr.bf16.mxu0 0
      %4890 = vmatmul.mubr.bf16.gmra.mrb[0].mxu0 %v4058
      %v4891 = vpop.f32.mrb[0].mxu0
      %v4892 = vadd.f32 0.0, %v4891
      %v4893 = vpop.f32.mrb[0].mxu0
      %v4894 = vadd.f32 0.0, %v4893
      %v4895 = vpop.f32.mrb[0].mxu0
      %v4896 = vadd.f32 0.0, %v4895
      %v4897 = vpop.f32.mrb[0].mxu0
      %v4898 = vadd.f32 0.0, %v4897
      %4899 = vmatprep.mubr.bf16.mxu0 0
      %4900 = vmatmul.mubr.bf16.gmra.mrb[0].mxu0 %v4059
      %v4901 = vpop.f32.mrb[0].mxu0
      %v4902 = vadd.f32 0.0, %v4901
      %v4903 = vpop.f32.mrb[0].mxu0
      %v4904 = vadd.f32 0.0, %v4903
      %v4905 = vpop.f32.mrb[0].mxu0
      %v4906 = vadd.f32 0.0, %v4905
      %v4907 = vpop.f32.mrb[0].mxu0
      %v4908 = vadd.f32 0.0, %v4907
      %4909 = vmatprep.mubr.bf16.mxu0 0
      %4910 = vmatmul.mubr.bf16.gmra.mrb[0].mxu0 %v4060
      %v4911 = vpop.f32.mrb[0].mxu0
      %v4912 = vadd.f32 0.0, %v4911
      %v4913 = vpop.f32.mrb[0].mxu0
      %v4914 = vadd.f32 0.0, %v4913
      %v4915 = vpop.f32.mrb[0].mxu0
      %v4916 = vadd.f32 0.0, %v4915
      %v4917 = vpop.f32.mrb[0].mxu0
      %v4918 = vadd.f32 0.0, %v4917
      %4919 = vmatprep.mubr.bf16.mxu0 0
      %4920 = vmatmul.mubr.bf16.gmra.mrb[0].mxu0 %v4061
      %v4921 = vpop.f32.mrb[0].mxu0
      %v4922 = vadd.f32 0.0, %v4921
      %v4923 = vpop.f32.mrb[0].mxu0
      %v4924 = vadd.f32 0.0, %v4923
      %v4925 = vpop.f32.mrb[0].mxu0
      %v4926 = vadd.f32 0.0, %v4925
      %v4927 = vpop.f32.mrb[0].mxu0
      %v4928 = vadd.f32 0.0, %v4927
      %4929 = vmatprep.mubr.bf16.mxu0 0
      %4930 = vmatmul.mubr.bf16.gmra.mrb[0].mxu0 %v4062
      %v4931 = vpop.f32.mrb[0].mxu0
      %v4932 = vadd.f32 0.0, %v4931
      %v4933 = vpop.f32.mrb[0].mxu0
      %v4934 = vadd.f32 0.0, %v4933
      %v4935 = vpop.f32.mrb[0].mxu0
      %v4936 = vadd.f32 0.0, %v4935
      %v4937 = vpop.f32.mrb[0].mxu0
      %v4938 = vadd.f32 0.0, %v4937
      %4939 = vmatprep.mubr.bf16.mxu0 0
      %4940 = vmatmul.mubr.bf16.gmra.mrb[0].mxu0 %v4063
      %v4941 = vpop.f32.mrb[0].mxu0
      %v4942 = vadd.f32 0.0, %v4941
      %v4943 = vpop.f32.mrb[0].mxu0
      %v4944 = vadd.f32 0.0, %v4943
      %v4945 = vpop.f32.mrb[0].mxu0
      %v4946 = vadd.f32 0.0, %v4945
      %v4947 = vpop.f32.mrb[0].mxu0
      %v4948 = vadd.f32 0.0, %v4947
      %4949 = vmatprep.mubr.bf16.mxu0 0
      %4950 = vmatmul.mubr.bf16.gmra.mrb[0].mxu0 %v4064
      %v4951 = vpop.f32.mrb[0].mxu0
      %v4952 = vadd.f32 0.0, %v4951
      %v4953 = vpop.f32.mrb[0].mxu0
      %v4954 = vadd.f32 0.0, %v4953
      %v4955 = vpop.f32.mrb[0].mxu0
      %v4956 = vadd.f32 0.0, %v4955
      %v4957 = vpop.f32.mrb[0].mxu0
      %v4958 = vadd.f32 0.0, %v4957
      %4959 = vmatprep.mubr.bf16.mxu0 0
      %4960 = vmatmul.mubr.bf16.gmra.mrb[0].mxu0 %v4065
      %v4961 = vpop.f32.mrb[0].mxu0
      %v4962 = vadd.f32 0.0, %v4961
      %v4963 = vpop.f32.mrb[0].mxu0
      %v4964 = vadd.f32 0.0, %v4963
      %v4965 = vpop.f32.mrb[0].mxu0
      %v4966 = vadd.f32 0.0, %v4965
      %v4967 = vpop.f32.mrb[0].mxu0
      %v4968 = vadd.f32 0.0, %v4967
      %4969 = vmatprep.mubr.bf16.mxu0 0
      %4970 = vmatmul.mubr.bf16.gmra.mrb[0].mxu0 %v4066
      %v4971 = vpop.f32.mrb[0].mxu0
      %v4972 = vadd.f32 0.0, %v4971
      %v4973 = vpop.f32.mrb[0].mxu0
      %v4974 = vadd.f32 0.0, %v4973
      %v4975 = vpop.f32.mrb[0].mxu0
      %v4976 = vadd.f32 0.0, %v4975
      %v4977 = vpop.f32.mrb[0].mxu0
      %v4978 = vadd.f32 0.0, %v4977
      %4979 = vmatprep.mubr.bf16.mxu0 0
      %4980 = vmatmul.mubr.bf16.gmra.mrb[0].mxu0 %v4067
      %v4981 = vpop.f32.mrb[0].mxu0
      %v4982 = vadd.f32 0.0, %v4981
      %v4983 = vpop.f32.mrb[0].mxu0
      %v4984 = vadd.f32 0.0, %v4983
      %v4985 = vpop.f32.mrb[0].mxu0
      %v4986 = vadd.f32 0.0, %v4985
      %v4987 = vpop.f32.mrb[0].mxu0
      %v4988 = vadd.f32 0.0, %v4987
      %4989 = vmatprep.mubr.bf16.mxu0 0
      %4990 = vmatmul.mubr.bf16.gmra.mrb[0].mxu0 %v4068
      %v4991 = vpop.f32.mrb[0].mxu0
      %v4992 = vadd.f32 0.0, %v4991
      %v4993 = vpop.f32.mrb[0].mxu0
      %v4994 = vadd.f32 0.0, %v4993
      %v4995 = vpop.f32.mrb[0].mxu0
      %v4996 = vadd.f32 0.0, %v4995
      %v4997 = vpop.f32.mrb[0].mxu0
      %v4998 = vadd.f32 0.0, %v4997
      %4999 = vmatprep.mubr.bf16.mxu0 0
      %5000 = vmatmul.mubr.bf16.gmra.mrb[0].mxu0 %v4069
      %v5001 = vpop.f32.mrb[0].mxu0
      %v5002 = vadd.f32 0.0, %v5001
      %v5003 = vpop.f32.mrb[0].mxu0
      %v5004 = vadd.f32 0.0, %v5003
      %v5005 = vpop.f32.mrb[0].mxu0
      %v5006 = vadd.f32 0.0, %v5005
      %v5007 = vpop.f32.mrb[0].mxu0
      %v5008 = vadd.f32 0.0, %v5007
      %5009 = vmatprep.mubr.bf16.mxu0 0
      %5010 = vmatmul.mubr.bf16.gmra.mrb[0].mxu0 %v4070
      %v5011 = vpop.f32.mrb[0].mxu0
      %v5012 = vadd.f32 0.0, %v5011
      %v5013 = vpop.f32.mrb[0].mxu0
      %v5014 = vadd.f32 0.0, %v5013
      %v5015 = vpop.f32.mrb[0].mxu0
      %v5016 = vadd.f32 0.0, %v5015
      %v5017 = vpop.f32.mrb[0].mxu0
      %v5018 = vadd.f32 0.0, %v5017
      %5019 = vmatprep.mubr.bf16.mxu0 0
      %5020 = vmatmul.mubr.bf16.gmra.mrb[0].mxu0 %v4071
      %v5021 = vpop.f32.mrb[0].mxu0
      %v5022 = vadd.f32 0.0, %v5021
      %v5023 = vpop.f32.mrb[0].mxu0
      %v5024 = vadd.f32 0.0, %v5023
      %v5025 = vpop.f32.mrb[0].mxu0
      %v5026 = vadd.f32 0.0, %v5025
      %v5027 = vpop.f32.mrb[0].mxu0
      %v5028 = vadd.f32 0.0, %v5027
      %5029 = vmatprep.mubr.bf16.mxu0 0
      %5030 = vmatmul.mubr.bf16.gmra.mrb[0].mxu0 %v4072
      %v5031 = vpop.f32.mrb[0].mxu0
      %v5032 = vadd.f32 0.0, %v5031
      %v5033 = vpop.f32.mrb[0].mxu0
      %v5034 = vadd.f32 0.0, %v5033
      %v5035 = vpop.f32.mrb[0].mxu0
      %v5036 = vadd.f32 0.0, %v5035
      %v5037 = vpop.f32.mrb[0].mxu0
      %v5038 = vadd.f32 0.0, %v5037
      %5039 = vmatprep.mubr.bf16.mxu0 0
      %5040 = vmatmul.mubr.bf16.gmra.mrb[0].mxu0 %v4073
      %v5041 = vpop.f32.mrb[0].mxu0
      %v5042 = vadd.f32 0.0, %v5041
      %v5043 = vpop.f32.mrb[0].mxu0
      %v5044 = vadd.f32 0.0, %v5043
      %v5045 = vpop.f32.mrb[0].mxu0
      %v5046 = vadd.f32 0.0, %v5045
      %v5047 = vpop.f32.mrb[0].mxu0
      %v5048 = vadd.f32 0.0, %v5047
      %5049 = vmatprep.mubr.bf16.mxu0 0
      %5050 = vmatmul.mubr.bf16.gmra.mrb[0].mxu0 %v4074
      %v5051 = vpop.f32.mrb[0].mxu0
      %v5052 = vadd.f32 0.0, %v5051
      %v5053 = vpop.f32.mrb[0].mxu0
      %v5054 = vadd.f32 0.0, %v5053
      %v5055 = vpop.f32.mrb[0].mxu0
      %v5056 = vadd.f32 0.0, %v5055
      %v5057 = vpop.f32.mrb[0].mxu0
      %v5058 = vadd.f32 0.0, %v5057
      %5059 = vmatprep.mubr.bf16.mxu0 0
      %5060 = vmatmul.mubr.bf16.gmra.mrb[0].mxu0 %v4075
      %v5061 = vpop.f32.mrb[0].mxu0
      %v5062 = vadd.f32 0.0, %v5061
      %v5063 = vpop.f32.mrb[0].mxu0
      %v5064 = vadd.f32 0.0, %v5063
      %v5065 = vpop.f32.mrb[0].mxu0
      %v5066 = vadd.f32 0.0, %v5065
      %v5067 = vpop.f32.mrb[0].mxu0
      %v5068 = vadd.f32 0.0, %v5067
      %5069 = vmatprep.mubr.bf16.mxu0 0
      %5070 = vmatmul.mubr.bf16.gmra.mrb[0].mxu0 %v4076
      %v5071 = vpop.f32.mrb[0].mxu0
      %v5072 = vadd.f32 0.0, %v5071
      %v5073 = vpop.f32.mrb[0].mxu0
      %v5074 = vadd.f32 0.0, %v5073
      %v5075 = vpop.f32.mrb[0].mxu0
      %v5076 = vadd.f32 0.0, %v5075
      %v5077 = vpop.f32.mrb[0].mxu0
      %v5078 = vadd.f32 0.0, %v5077
      %5079 = vmatprep.mubr.bf16.mxu0 0
      %5080 = vmatmul.mubr.bf16.gmra.mrb[0].mxu0 %v4077
      %v5081 = vpop.f32.mrb[0].mxu0
      %v5082 = vadd.f32 0.0, %v5081
      %v5083 = vpop.f32.mrb[0].mxu0
      %v5084 = vadd.f32 0.0, %v5083
      %v5085 = vpop.f32.mrb[0].mxu0
      %v5086 = vadd.f32 0.0, %v5085
      %v5087 = vpop.f32.mrb[0].mxu0
      %v5088 = vadd.f32 0.0, %v5087
      %5089 = vmatprep.mubr.bf16.mxu0 0
      %5090 = vmatmul.mubr.bf16.gmra.mrb[0].mxu0 %v4078
      %v5091 = vpop.f32.mrb[0].mxu0
      %v5092 = vadd.f32 0.0, %v5091
      %v5093 = vpop.f32.mrb[0].mxu0
      %v5094 = vadd.f32 0.0, %v5093
      %v5095 = vpop.f32.mrb[0].mxu0
      %v5096 = vadd.f32 0.0, %v5095
      %v5097 = vpop.f32.mrb[0].mxu0
      %v5098 = vadd.f32 0.0, %v5097
      %5099 = vmatprep.mubr.bf16.mxu0 0
      %5100 = vmatmul.mubr.bf16.gmra.mrb[0].mxu0 %v4079
      %v5101 = vpop.f32.mrb[0].mxu0
      %v5102 = vadd.f32 0.0, %v5101
      %v5103 = vpop.f32.mrb[0].mxu0
      %v5104 = vadd.f32 0.0, %v5103
      %v5105 = vpop.f32.mrb[0].mxu0
      %v5106 = vadd.f32 0.0, %v5105
      %v5107 = vpop.f32.mrb[0].mxu0
      %v5108 = vadd.f32 0.0, %v5107
      %5109 = vmatprep.mubr.bf16.mxu0 0
      %5110 = vmatmul.mubr.bf16.gmra.mrb[0].mxu0 %v4080
      %v5111 = vpop.f32.mrb[0].mxu0
      %v5112 = vadd.f32 0.0, %v5111
      %v5113 = vpop.f32.mrb[0].mxu0
      %v5114 = vadd.f32 0.0, %v5113
      %v5115 = vpop.f32.mrb[0].mxu0
      %v5116 = vadd.f32 0.0, %v5115
      %v5117 = vpop.f32.mrb[0].mxu0
      %v5118 = vadd.f32 0.0, %v5117
      %5119 = vmatprep.mubr.bf16.mxu0 0
      %5120 = vmatmul.mubr.bf16.gmra.mrb[0].mxu0 %v4081
      %v5121 = vpop.f32.mrb[0].mxu0
      %v5122 = vadd.f32 0.0, %v5121
      %v5123 = vpop.f32.mrb[0].mxu0
      %v5124 = vadd.f32 0.0, %v5123
      %v5125 = vpop.f32.mrb[0].mxu0
      %v5126 = vadd.f32 0.0, %v5125
      %v5127 = vpop.f32.mrb[0].mxu0
      %v5128 = vadd.f32 0.0, %v5127
      %5129 = vmatprep.mubr.bf16.mxu0 0
      %5130 = vmatmul.mubr.bf16.gmra.mrb[0].mxu0 %v4082
      %v5131 = vpop.f32.mrb[0].mxu0
      %v5132 = vadd.f32 0.0, %v5131
      %v5133 = vpop.f32.mrb[0].mxu0
      %v5134 = vadd.f32 0.0, %v5133
      %v5135 = vpop.f32.mrb[0].mxu0
      %v5136 = vadd.f32 0.0, %v5135
      %v5137 = vpop.f32.mrb[0].mxu0
      %v5138 = vadd.f32 0.0, %v5137
      %5139 = vdwg.mxu0
      %5140 = vmatprep.subr.bf16.mxu0 %v4342
      %5141 = vmatpush1.bf16.msra.mxu0 %v4341
      %5142 = vmatprep.subr.bf16.mxu0 %v4350
      %5143 = vmatpush1.bf16.msra.mxu0 %v4349
      %5144 = vmatprep.subr.bf16.mxu0 %v4358
      %5145 = vmatpush1.bf16.msra.mxu0 %v4357
      %5146 = vmatprep.subr.bf16.mxu0 %v4366
      %5147 = vmatpush1.bf16.msra.mxu0 %v4365
      %5148 = vmatprep.subr.bf16.mxu0 %v4374
      %5149 = vmatpush1.bf16.msra.mxu0 %v4373
      %5150 = vmatprep.subr.bf16.mxu0 %v4382
      %5151 = vmatpush1.bf16.msra.mxu0 %v4381
      %5152 = vmatprep.subr.bf16.mxu0 %v4390
      %5153 = vmatpush1.bf16.msra.mxu0 %v4389
      %5154 = vmatprep.subr.bf16.mxu0 %v4398
      %5155 = vmatpush1.bf16.msra.mxu0 %v4397
      %5156 = vmatprep.subr.bf16.mxu0 0
      %5157 = vmatpush1.bf16.msra.mxu0 0
      %5158 = vmatprep.subr.bf16.mxu0 0
      %5159 = vmatpush1.bf16.msra.mxu0 0
      %5160 = vmatprep.subr.bf16.mxu0 0
      %5161 = vmatpush1.bf16.msra.mxu0 0
      %5162 = vmatprep.subr.bf16.mxu0 0
      %5163 = vmatpush1.bf16.msra.mxu0 0
      %5164 = vmatprep.subr.bf16.mxu0 0
      %5165 = vmatpush1.bf16.msra.mxu0 0
      %5166 = vmatprep.subr.bf16.mxu0 0
      %5167 = vmatpush1.bf16.msra.mxu0 0
      %5168 = vmatprep.subr.bf16.mxu0 0
      %5169 = vmatpush1.bf16.msra.mxu0 0
      %5170 = vmatprep.subr.bf16.mxu0 0
      %5171 = vmatpush1.bf16.msra.mxu0 0
      %5172 = vmatprep.mubr.bf16.mxu0 0
      %5173 = vmatmul.mubr.bf16.gmra.mrb[0].mxu0 %v4019
      %v5174 = vpop.f32.mrb[0].mxu0
      %v5175 = vadd.f32 0.0, %v5174
      %v5176 = vpop.f32.mrb[0].mxu0
      %v5177 = vadd.f32 0.0, %v5176
      %v5178 = vpop.f32.mrb[0].mxu0
      %v5179 = vadd.f32 0.0, %v5178
      %v5180 = vpop.f32.mrb[0].mxu0
      %v5181 = vadd.f32 0.0, %v5180
      %5182 = vmatprep.mubr.bf16.mxu0 0
      %5183 = vmatmul.mubr.bf16.gmra.mrb[0].mxu0 %v4020
      %v5184 = vpop.f32.mrb[0].mxu0
      %v5185 = vadd.f32 0.0, %v5184
      %v5186 = vpop.f32.mrb[0].mxu0
      %v5187 = vadd.f32 0.0, %v5186
      %v5188 = vpop.f32.mrb[0].mxu0
      %v5189 = vadd.f32 0.0, %v5188
      %v5190 = vpop.f32.mrb[0].mxu0
      %v5191 = vadd.f32 0.0, %v5190
      %5192 = vmatprep.mubr.bf16.mxu0 0
      %5193 = vmatmul.mubr.bf16.gmra.mrb[0].mxu0 %v4021
      %v5194 = vpop.f32.mrb[0].mxu0
      %v5195 = vadd.f32 0.0, %v5194
      %v5196 = vpop.f32.mrb[0].mxu0
      %v5197 = vadd.f32 0.0, %v5196
      %v5198 = vpop.f32.mrb[0].mxu0
      %v5199 = vadd.f32 0.0, %v5198
      %v5200 = vpop.f32.mrb[0].mxu0
      %v5201 = vadd.f32 0.0, %v5200
      %5202 = vmatprep.mubr.bf16.mxu0 0
      %5203 = vmatmul.mubr.bf16.gmra.mrb[0].mxu0 %v4022
      %v5204 = vpop.f32.mrb[0].mxu0
      %v5205 = vadd.f32 0.0, %v5204
      %v5206 = vpop.f32.mrb[0].mxu0
      %v5207 = vadd.f32 0.0, %v5206
      %v5208 = vpop.f32.mrb[0].mxu0
      %v5209 = vadd.f32 0.0, %v5208
      %v5210 = vpop.f32.mrb[0].mxu0
      %v5211 = vadd.f32 0.0, %v5210
      %5212 = vmatprep.mubr.bf16.mxu0 0
      %5213 = vmatmul.mubr.bf16.gmra.mrb[0].mxu0 %v4023
      %v5214 = vpop.f32.mrb[0].mxu0
      %v5215 = vadd.f32 0.0, %v5214
      %v5216 = vpop.f32.mrb[0].mxu0
      %v5217 = vadd.f32 0.0, %v5216
      %v5218 = vpop.f32.mrb[0].mxu0
      %v5219 = vadd.f32 0.0, %v5218
      %v5220 = vpop.f32.mrb[0].mxu0
      %v5221 = vadd.f32 0.0, %v5220
      %5222 = vmatprep.mubr.bf16.mxu0 0
      %5223 = vmatmul.mubr.bf16.gmra.mrb[0].mxu0 %v4024
      %v5224 = vpop.f32.mrb[0].mxu0
      %v5225 = vadd.f32 0.0, %v5224
      %v5226 = vpop.f32.mrb[0].mxu0
      %v5227 = vadd.f32 0.0, %v5226
      %v5228 = vpop.f32.mrb[0].mxu0
      %v5229 = vadd.f32 0.0, %v5228
      %v5230 = vpop.f32.mrb[0].mxu0
      %v5231 = vadd.f32 0.0, %v5230
      %5232 = vmatprep.mubr.bf16.mxu0 0
      %5233 = vmatmul.mubr.bf16.gmra.mrb[0].mxu0 %v4025
      %v5234 = vpop.f32.mrb[0].mxu0
      %v5235 = vadd.f32 0.0, %v5234
      %v5236 = vpop.f32.mrb[0].mxu0
      %v5237 = vadd.f32 0.0, %v5236
      %v5238 = vpop.f32.mrb[0].mxu0
      %v5239 = vadd.f32 0.0, %v5238
      %v5240 = vpop.f32.mrb[0].mxu0
      %v5241 = vadd.f32 0.0, %v5240
      %5242 = vmatprep.mubr.bf16.mxu0 0
      %5243 = vmatmul.mubr.bf16.gmra.mrb[0].mxu0 %v4026
      %v5244 = vpop.f32.mrb[0].mxu0
      %v5245 = vadd.f32 0.0, %v5244
      %v5246 = vpop.f32.mrb[0].mxu0
      %v5247 = vadd.f32 0.0, %v5246
      %v5248 = vpop.f32.mrb[0].mxu0
      %v5249 = vadd.f32 0.0, %v5248
      %v5250 = vpop.f32.mrb[0].mxu0
      %v5251 = vadd.f32 0.0, %v5250
      %5252 = vmatprep.mubr.bf16.mxu0 0
      %5253 = vmatmul.mubr.bf16.gmra.mrb[0].mxu0 %v4027
      %v5254 = vpop.f32.mrb[0].mxu0
      %v5255 = vadd.f32 0.0, %v5254
      %v5256 = vpop.f32.mrb[0].mxu0
      %v5257 = vadd.f32 0.0, %v5256
      %v5258 = vpop.f32.mrb[0].mxu0
      %v5259 = vadd.f32 0.0, %v5258
      %v5260 = vpop.f32.mrb[0].mxu0
      %v5261 = vadd.f32 0.0, %v5260
      %5262 = vmatprep.mubr.bf16.mxu0 0
      %5263 = vmatmul.mubr.bf16.gmra.mrb[0].mxu0 %v4028
      %v5264 = vpop.f32.mrb[0].mxu0
      %v5265 = vadd.f32 0.0, %v5264
      %v5266 = vpop.f32.mrb[0].mxu0
      %v5267 = vadd.f32 0.0, %v5266
      %v5268 = vpop.f32.mrb[0].mxu0
      %v5269 = vadd.f32 0.0, %v5268
      %v5270 = vpop.f32.mrb[0].mxu0
      %v5271 = vadd.f32 0.0, %v5270
      %5272 = vmatprep.mubr.bf16.mxu0 0
      %5273 = vmatmul.mubr.bf16.gmra.mrb[0].mxu0 %v4029
      %v5274 = vpop.f32.mrb[0].mxu0
      %v5275 = vadd.f32 0.0, %v5274
      %v5276 = vpop.f32.mrb[0].mxu0
      %v5277 = vadd.f32 0.0, %v5276
      %v5278 = vpop.f32.mrb[0].mxu0
      %v5279 = vadd.f32 0.0, %v5278
      %v5280 = vpop.f32.mrb[0].mxu0
      %v5281 = vadd.f32 0.0, %v5280
      %5282 = vmatprep.mubr.bf16.mxu0 0
      %5283 = vmatmul.mubr.bf16.gmra.mrb[0].mxu0 %v4030
      %v5284 = vpop.f32.mrb[0].mxu0
      %v5285 = vadd.f32 0.0, %v5284
      %v5286 = vpop.f32.mrb[0].mxu0
      %v5287 = vadd.f32 0.0, %v5286
      %v5288 = vpop.f32.mrb[0].mxu0
      %v5289 = vadd.f32 0.0, %v5288
      %v5290 = vpop.f32.mrb[0].mxu0
      %v5291 = vadd.f32 0.0, %v5290
      %5292 = vmatprep.mubr.bf16.mxu0 0
      %5293 = vmatmul.mubr.bf16.gmra.mrb[0].mxu0 %v4031
      %v5294 = vpop.f32.mrb[0].mxu0
      %v5295 = vadd.f32 0.0, %v5294
      %v5296 = vpop.f32.mrb[0].mxu0
      %v5297 = vadd.f32 0.0, %v5296
      %v5298 = vpop.f32.mrb[0].mxu0
      %v5299 = vadd.f32 0.0, %v5298
      %v5300 = vpop.f32.mrb[0].mxu0
      %v5301 = vadd.f32 0.0, %v5300
      %5302 = vmatprep.mubr.bf16.mxu0 0
      %5303 = vmatmul.mubr.bf16.gmra.mrb[0].mxu0 %v4032
      %v5304 = vpop.f32.mrb[0].mxu0
      %v5305 = vadd.f32 0.0, %v5304
      %v5306 = vpop.f32.mrb[0].mxu0
      %v5307 = vadd.f32 0.0, %v5306
      %v5308 = vpop.f32.mrb[0].mxu0
      %v5309 = vadd.f32 0.0, %v5308
      %v5310 = vpop.f32.mrb[0].mxu0
      %v5311 = vadd.f32 0.0, %v5310
      %5312 = vmatprep.mubr.bf16.mxu0 0
      %5313 = vmatmul.mubr.bf16.gmra.mrb[0].mxu0 %v4033
      %v5314 = vpop.f32.mrb[0].mxu0
      %v5315 = vadd.f32 0.0, %v5314
      %v5316 = vpop.f32.mrb[0].mxu0
      %v5317 = vadd.f32 0.0, %v5316
      %v5318 = vpop.f32.mrb[0].mxu0
      %v5319 = vadd.f32 0.0, %v5318
      %v5320 = vpop.f32.mrb[0].mxu0
      %v5321 = vadd.f32 0.0, %v5320
      %5322 = vmatprep.mubr.bf16.mxu0 0
      %5323 = vmatmul.mubr.bf16.gmra.mrb[0].mxu0 %v4034
      %v5324 = vpop.f32.mrb[0].mxu0
      %v5325 = vadd.f32 0.0, %v5324
      %v5326 = vpop.f32.mrb[0].mxu0
      %v5327 = vadd.f32 0.0, %v5326
      %v5328 = vpop.f32.mrb[0].mxu0
      %v5329 = vadd.f32 0.0, %v5328
      %v5330 = vpop.f32.mrb[0].mxu0
      %v5331 = vadd.f32 0.0, %v5330
      %5332 = vmatprep.mubr.bf16.mxu0 0
      %5333 = vmatmul.mubr.bf16.gmra.mrb[0].mxu0 %v4035
      %v5334 = vpop.f32.mrb[0].mxu0
      %v5335 = vadd.f32 0.0, %v5334
      %v5336 = vpop.f32.mrb[0].mxu0
      %v5337 = vadd.f32 0.0, %v5336
      %v5338 = vpop.f32.mrb[0].mxu0
      %v5339 = vadd.f32 0.0, %v5338
      %v5340 = vpop.f32.mrb[0].mxu0
      %v5341 = vadd.f32 0.0, %v5340
      %5342 = vmatprep.mubr.bf16.mxu0 0
      %5343 = vmatmul.mubr.bf16.gmra.mrb[0].mxu0 %v4036
      %v5344 = vpop.f32.mrb[0].mxu0
      %v5345 = vadd.f32 0.0, %v5344
      %v5346 = vpop.f32.mrb[0].mxu0
      %v5347 = vadd.f32 0.0, %v5346
      %v5348 = vpop.f32.mrb[0].mxu0
      %v5349 = vadd.f32 0.0, %v5348
      %v5350 = vpop.f32.mrb[0].mxu0
      %v5351 = vadd.f32 0.0, %v5350
      %5352 = vmatprep.mubr.bf16.mxu0 0
      %5353 = vmatmul.mubr.bf16.gmra.mrb[0].mxu0 %v4037
      %v5354 = vpop.f32.mrb[0].mxu0
      %v5355 = vadd.f32 0.0, %v5354
      %v5356 = vpop.f32.mrb[0].mxu0
      %v5357 = vadd.f32 0.0, %v5356
      %v5358 = vpop.f32.mrb[0].mxu0
      %v5359 = vadd.f32 0.0, %v5358
      %v5360 = vpop.f32.mrb[0].mxu0
      %v5361 = vadd.f32 0.0, %v5360
      %5362 = vmatprep.mubr.bf16.mxu0 0
      %5363 = vmatmul.mubr.bf16.gmra.mrb[0].mxu0 %v4038
      %v5364 = vpop.f32.mrb[0].mxu0
      %v5365 = vadd.f32 0.0, %v5364
      %v5366 = vpop.f32.mrb[0].mxu0
      %v5367 = vadd.f32 0.0, %v5366
      %v5368 = vpop.f32.mrb[0].mxu0
      %v5369 = vadd.f32 0.0, %v5368
      %v5370 = vpop.f32.mrb[0].mxu0
      %v5371 = vadd.f32 0.0, %v5370
      %5372 = vmatprep.mubr.bf16.mxu0 0
      %5373 = vmatmul.mubr.bf16.gmra.mrb[0].mxu0 %v4039
      %v5374 = vpop.f32.mrb[0].mxu0
      %v5375 = vadd.f32 0.0, %v5374
      %v5376 = vpop.f32.mrb[0].mxu0
      %v5377 = vadd.f32 0.0, %v5376
      %v5378 = vpop.f32.mrb[0].mxu0
      %v5379 = vadd.f32 0.0, %v5378
      %v5380 = vpop.f32.mrb[0].mxu0
      %v5381 = vadd.f32 0.0, %v5380
      %5382 = vmatprep.mubr.bf16.mxu0 0
      %5383 = vmatmul.mubr.bf16.gmra.mrb[0].mxu0 %v4040
      %v5384 = vpop.f32.mrb[0].mxu0
      %v5385 = vadd.f32 0.0, %v5384
      %v5386 = vpop.f32.mrb[0].mxu0
      %v5387 = vadd.f32 0.0, %v5386
      %v5388 = vpop.f32.mrb[0].mxu0
      %v5389 = vadd.f32 0.0, %v5388
      %v5390 = vpop.f32.mrb[0].mxu0
      %v5391 = vadd.f32 0.0, %v5390
      %5392 = vmatprep.mubr.bf16.mxu0 0
      %5393 = vmatmul.mubr.bf16.gmra.mrb[0].mxu0 %v4041
      %v5394 = vpop.f32.mrb[0].mxu0
      %v5395 = vadd.f32 0.0, %v5394
      %v5396 = vpop.f32.mrb[0].mxu0
      %v5397 = vadd.f32 0.0, %v5396
      %v5398 = vpop.f32.mrb[0].mxu0
      %v5399 = vadd.f32 0.0, %v5398
      %v5400 = vpop.f32.mrb[0].mxu0
      %v5401 = vadd.f32 0.0, %v5400
      %5402 = vmatprep.mubr.bf16.mxu0 0
      %5403 = vmatmul.mubr.bf16.gmra.mrb[0].mxu0 %v4042
      %v5404 = vpop.f32.mrb[0].mxu0
      %v5405 = vadd.f32 0.0, %v5404
      %v5406 = vpop.f32.mrb[0].mxu0
      %v5407 = vadd.f32 0.0, %v5406
      %v5408 = vpop.f32.mrb[0].mxu0
      %v5409 = vadd.f32 0.0, %v5408
      %v5410 = vpop.f32.mrb[0].mxu0
      %v5411 = vadd.f32 0.0, %v5410
      %5412 = vmatprep.mubr.bf16.mxu0 0
      %5413 = vmatmul.mubr.bf16.gmra.mrb[0].mxu0 %v4043
      %v5414 = vpop.f32.mrb[0].mxu0
      %v5415 = vadd.f32 0.0, %v5414
      %v5416 = vpop.f32.mrb[0].mxu0
      %v5417 = vadd.f32 0.0, %v5416
      %v5418 = vpop.f32.mrb[0].mxu0
      %v5419 = vadd.f32 0.0, %v5418
      %v5420 = vpop.f32.mrb[0].mxu0
      %v5421 = vadd.f32 0.0, %v5420
      %5422 = vmatprep.mubr.bf16.mxu0 0
      %5423 = vmatmul.mubr.bf16.gmra.mrb[0].mxu0 %v4044
      %v5424 = vpop.f32.mrb[0].mxu0
      %v5425 = vadd.f32 0.0, %v5424
      %v5426 = vpop.f32.mrb[0].mxu0
      %v5427 = vadd.f32 0.0, %v5426
      %v5428 = vpop.f32.mrb[0].mxu0
      %v5429 = vadd.f32 0.0, %v5428
      %v5430 = vpop.f32.mrb[0].mxu0
      %v5431 = vadd.f32 0.0, %v5430
      %5432 = vmatprep.mubr.bf16.mxu0 0
      %5433 = vmatmul.mubr.bf16.gmra.mrb[0].mxu0 %v4045
      %v5434 = vpop.f32.mrb[0].mxu0
      %v5435 = vadd.f32 0.0, %v5434
      %v5436 = vpop.f32.mrb[0].mxu0
      %v5437 = vadd.f32 0.0, %v5436
      %v5438 = vpop.f32.mrb[0].mxu0
      %v5439 = vadd.f32 0.0, %v5438
      %v5440 = vpop.f32.mrb[0].mxu0
      %v5441 = vadd.f32 0.0, %v5440
      %5442 = vmatprep.mubr.bf16.mxu0 0
      %5443 = vmatmul.mubr.bf16.gmra.mrb[0].mxu0 %v4046
      %v5444 = vpop.f32.mrb[0].mxu0
      %v5445 = vadd.f32 0.0, %v5444
      %v5446 = vpop.f32.mrb[0].mxu0
      %v5447 = vadd.f32 0.0, %v5446
      %v5448 = vpop.f32.mrb[0].mxu0
      %v5449 = vadd.f32 0.0, %v5448
      %v5450 = vpop.f32.mrb[0].mxu0
      %v5451 = vadd.f32 0.0, %v5450
      %5452 = vmatprep.mubr.bf16.mxu0 0
      %5453 = vmatmul.mubr.bf16.gmra.mrb[0].mxu0 %v4047
      %v5454 = vpop.f32.mrb[0].mxu0
      %v5455 = vadd.f32 0.0, %v5454
      %v5456 = vpop.f32.mrb[0].mxu0
      %v5457 = vadd.f32 0.0, %v5456
      %v5458 = vpop.f32.mrb[0].mxu0
      %v5459 = vadd.f32 0.0, %v5458
      %v5460 = vpop.f32.mrb[0].mxu0
      %v5461 = vadd.f32 0.0, %v5460
      %5462 = vmatprep.mubr.bf16.mxu0 0
      %5463 = vmatmul.mubr.bf16.gmra.mrb[0].mxu0 %v4048
      %v5464 = vpop.f32.mrb[0].mxu0
      %v5465 = vadd.f32 0.0, %v5464
      %v5466 = vpop.f32.mrb[0].mxu0
      %v5467 = vadd.f32 0.0, %v5466
      %v5468 = vpop.f32.mrb[0].mxu0
      %v5469 = vadd.f32 0.0, %v5468
      %v5470 = vpop.f32.mrb[0].mxu0
      %v5471 = vadd.f32 0.0, %v5470
      %5472 = vmatprep.mubr.bf16.mxu0 0
      %5473 = vmatmul.mubr.bf16.gmra.mrb[0].mxu0 %v4049
      %v5474 = vpop.f32.mrb[0].mxu0
      %v5475 = vadd.f32 0.0, %v5474
      %v5476 = vpop.f32.mrb[0].mxu0
      %v5477 = vadd.f32 0.0, %v5476
      %v5478 = vpop.f32.mrb[0].mxu0
      %v5479 = vadd.f32 0.0, %v5478
      %v5480 = vpop.f32.mrb[0].mxu0
      %v5481 = vadd.f32 0.0, %v5480
      %5482 = vmatprep.mubr.bf16.mxu0 0
      %5483 = vmatmul.mubr.bf16.gmra.mrb[0].mxu0 %v4050
      %v5484 = vpop.f32.mrb[0].mxu0
      %v5485 = vadd.f32 0.0, %v5484
      %v5486 = vpop.f32.mrb[0].mxu0
      %v5487 = vadd.f32 0.0, %v5486
      %v5488 = vpop.f32.mrb[0].mxu0
      %v5489 = vadd.f32 0.0, %v5488
      %v5490 = vpop.f32.mrb[0].mxu0
      %v5491 = vadd.f32 0.0, %v5490
      %5492 = vmatprep.mubr.bf16.mxu0 0
      %5493 = vmatmul.mubr.bf16.gmra.mrb[0].mxu0 %v4051
      %v5494 = vpop.f32.mrb[0].mxu0
      %v5495 = vadd.f32 0.0, %v5494
      %v5496 = vpop.f32.mrb[0].mxu0
      %v5497 = vadd.f32 0.0, %v5496
      %v5498 = vpop.f32.mrb[0].mxu0
      %v5499 = vadd.f32 0.0, %v5498
      %v5500 = vpop.f32.mrb[0].mxu0
      %v5501 = vadd.f32 0.0, %v5500
      %5502 = vmatprep.mubr.bf16.mxu0 0
      %5503 = vmatmul.mubr.bf16.gmra.mrb[0].mxu0 %v4052
      %v5504 = vpop.f32.mrb[0].mxu0
      %v5505 = vadd.f32 0.0, %v5504
      %v5506 = vpop.f32.mrb[0].mxu0
      %v5507 = vadd.f32 0.0, %v5506
      %v5508 = vpop.f32.mrb[0].mxu0
      %v5509 = vadd.f32 0.0, %v5508
      %v5510 = vpop.f32.mrb[0].mxu0
      %v5511 = vadd.f32 0.0, %v5510
      %5512 = vmatprep.mubr.bf16.mxu0 0
      %5513 = vmatmul.mubr.bf16.gmra.mrb[0].mxu0 %v4053
      %v5514 = vpop.f32.mrb[0].mxu0
      %v5515 = vadd.f32 0.0, %v5514
      %v5516 = vpop.f32.mrb[0].mxu0
      %v5517 = vadd.f32 0.0, %v5516
      %v5518 = vpop.f32.mrb[0].mxu0
      %v5519 = vadd.f32 0.0, %v5518
      %v5520 = vpop.f32.mrb[0].mxu0
      %v5521 = vadd.f32 0.0, %v5520
      %5522 = vmatprep.mubr.bf16.mxu0 0
      %5523 = vmatmul.mubr.bf16.gmra.mrb[0].mxu0 %v4054
      %v5524 = vpop.f32.mrb[0].mxu0
      %v5525 = vadd.f32 0.0, %v5524
      %v5526 = vpop.f32.mrb[0].mxu0
      %v5527 = vadd.f32 0.0, %v5526
      %v5528 = vpop.f32.mrb[0].mxu0
      %v5529 = vadd.f32 0.0, %v5528
      %v5530 = vpop.f32.mrb[0].mxu0
      %v5531 = vadd.f32 0.0, %v5530
      %5532 = vmatprep.mubr.bf16.mxu0 0
      %5533 = vmatmul.mubr.bf16.gmra.mrb[0].mxu0 %v4055
      %v5534 = vpop.f32.mrb[0].mxu0
      %v5535 = vadd.f32 0.0, %v5534
      %v5536 = vpop.f32.mrb[0].mxu0
      %v5537 = vadd.f32 0.0, %v5536
      %v5538 = vpop.f32.mrb[0].mxu0
      %v5539 = vadd.f32 0.0, %v5538
      %v5540 = vpop.f32.mrb[0].mxu0
      %v5541 = vadd.f32 0.0, %v5540
      %5542 = vmatprep.mubr.bf16.mxu0 0
      %5543 = vmatmul.mubr.bf16.gmra.mrb[0].mxu0 %v4056
      %v5544 = vpop.f32.mrb[0].mxu0
      %v5545 = vadd.f32 0.0, %v5544
      %v5546 = vpop.f32.mrb[0].mxu0
      %v5547 = vadd.f32 0.0, %v5546
      %v5548 = vpop.f32.mrb[0].mxu0
      %v5549 = vadd.f32 0.0, %v5548
      %v5550 = vpop.f32.mrb[0].mxu0
      %v5551 = vadd.f32 0.0, %v5550
      %5552 = vmatprep.mubr.bf16.mxu0 0
      %5553 = vmatmul.mubr.bf16.gmra.mrb[0].mxu0 %v4057
      %v5554 = vpop.f32.mrb[0].mxu0
      %v5555 = vadd.f32 0.0, %v5554
      %v5556 = vpop.f32.mrb[0].mxu0
      %v5557 = vadd.f32 0.0, %v5556
      %v5558 = vpop.f32.mrb[0].mxu0
      %v5559 = vadd.f32 0.0, %v5558
      %v5560 = vpop.f32.mrb[0].mxu0
      %v5561 = vadd.f32 0.0, %v5560
      %5562 = vmatprep.mubr.bf16.mxu0 0
      %5563 = vmatmul.mubr.bf16.gmra.mrb[0].mxu0 %v4058
      %v5564 = vpop.f32.mrb[0].mxu0
      %v5565 = vadd.f32 0.0, %v5564
      %v5566 = vpop.f32.mrb[0].mxu0
      %v5567 = vadd.f32 0.0, %v5566
      %v5568 = vpop.f32.mrb[0].mxu0
      %v5569 = vadd.f32 0.0, %v5568
      %v5570 = vpop.f32.mrb[0].mxu0
      %v5571 = vadd.f32 0.0, %v5570
      %5572 = vmatprep.mubr.bf16.mxu0 0
      %5573 = vmatmul.mubr.bf16.gmra.mrb[0].mxu0 %v4059
      %v5574 = vpop.f32.mrb[0].mxu0
      %v5575 = vadd.f32 0.0, %v5574
      %v5576 = vpop.f32.mrb[0].mxu0
      %v5577 = vadd.f32 0.0, %v5576
      %v5578 = vpop.f32.mrb[0].mxu0
      %v5579 = vadd.f32 0.0, %v5578
      %v5580 = vpop.f32.mrb[0].mxu0
      %v5581 = vadd.f32 0.0, %v5580
      %5582 = vmatprep.mubr.bf16.mxu0 0
      %5583 = vmatmul.mubr.bf16.gmra.mrb[0].mxu0 %v4060
      %v5584 = vpop.f32.mrb[0].mxu0
      %v5585 = vadd.f32 0.0, %v5584
      %v5586 = vpop.f32.mrb[0].mxu0
      %v5587 = vadd.f32 0.0, %v5586
      %v5588 = vpop.f32.mrb[0].mxu0
      %v5589 = vadd.f32 0.0, %v5588
      %v5590 = vpop.f32.mrb[0].mxu0
      %v5591 = vadd.f32 0.0, %v5590
      %5592 = vmatprep.mubr.bf16.mxu0 0
      %5593 = vmatmul.mubr.bf16.gmra.mrb[0].mxu0 %v4061
      %v5594 = vpop.f32.mrb[0].mxu0
      %v5595 = vadd.f32 0.0, %v5594
      %v5596 = vpop.f32.mrb[0].mxu0
      %v5597 = vadd.f32 0.0, %v5596
      %v5598 = vpop.f32.mrb[0].mxu0
      %v5599 = vadd.f32 0.0, %v5598
      %v5600 = vpop.f32.mrb[0].mxu0
      %v5601 = vadd.f32 0.0, %v5600
      %5602 = vmatprep.mubr.bf16.mxu0 0
      %5603 = vmatmul.mubr.bf16.gmra.mrb[0].mxu0 %v4062
      %v5604 = vpop.f32.mrb[0].mxu0
      %v5605 = vadd.f32 0.0, %v5604
      %v5606 = vpop.f32.mrb[0].mxu0
      %v5607 = vadd.f32 0.0, %v5606
      %v5608 = vpop.f32.mrb[0].mxu0
      %v5609 = vadd.f32 0.0, %v5608
      %v5610 = vpop.f32.mrb[0].mxu0
      %v5611 = vadd.f32 0.0, %v5610
      %5612 = vmatprep.mubr.bf16.mxu0 0
      %5613 = vmatmul.mubr.bf16.gmra.mrb[0].mxu0 %v4063
      %v5614 = vpop.f32.mrb[0].mxu0
      %v5615 = vadd.f32 0.0, %v5614
      %v5616 = vpop.f32.mrb[0].mxu0
      %v5617 = vadd.f32 0.0, %v5616
      %v5618 = vpop.f32.mrb[0].mxu0
      %v5619 = vadd.f32 0.0, %v5618
      %v5620 = vpop.f32.mrb[0].mxu0
      %v5621 = vadd.f32 0.0, %v5620
      %5622 = vmatprep.mubr.bf16.mxu0 0
      %5623 = vmatmul.mubr.bf16.gmra.mrb[0].mxu0 %v4064
      %v5624 = vpop.f32.mrb[0].mxu0
      %v5625 = vadd.f32 0.0, %v5624
      %v5626 = vpop.f32.mrb[0].mxu0
      %v5627 = vadd.f32 0.0, %v5626
      %v5628 = vpop.f32.mrb[0].mxu0
      %v5629 = vadd.f32 0.0, %v5628
      %v5630 = vpop.f32.mrb[0].mxu0
      %v5631 = vadd.f32 0.0, %v5630
      %5632 = vmatprep.mubr.bf16.mxu0 0
      %5633 = vmatmul.mubr.bf16.gmra.mrb[0].mxu0 %v4065
      %v5634 = vpop.f32.mrb[0].mxu0
      %v5635 = vadd.f32 0.0, %v5634
      %v5636 = vpop.f32.mrb[0].mxu0
      %v5637 = vadd.f32 0.0, %v5636
      %v5638 = vpop.f32.mrb[0].mxu0
      %v5639 = vadd.f32 0.0, %v5638
      %v5640 = vpop.f32.mrb[0].mxu0
      %v5641 = vadd.f32 0.0, %v5640
      %5642 = vmatprep.mubr.bf16.mxu0 0
      %5643 = vmatmul.mubr.bf16.gmra.mrb[0].mxu0 %v4066
      %v5644 = vpop.f32.mrb[0].mxu0
      %v5645 = vadd.f32 0.0, %v5644
      %v5646 = vpop.f32.mrb[0].mxu0
      %v5647 = vadd.f32 0.0, %v5646
      %v5648 = vpop.f32.mrb[0].mxu0
      %v5649 = vadd.f32 0.0, %v5648
      %v5650 = vpop.f32.mrb[0].mxu0
      %v5651 = vadd.f32 0.0, %v5650
      %5652 = vmatprep.mubr.bf16.mxu0 0
      %5653 = vmatmul.mubr.bf16.gmra.mrb[0].mxu0 %v4067
      %v5654 = vpop.f32.mrb[0].mxu0
      %v5655 = vadd.f32 0.0, %v5654
      %v5656 = vpop.f32.mrb[0].mxu0
      %v5657 = vadd.f32 0.0, %v5656
      %v5658 = vpop.f32.mrb[0].mxu0
      %v5659 = vadd.f32 0.0, %v5658
      %v5660 = vpop.f32.mrb[0].mxu0
      %v5661 = vadd.f32 0.0, %v5660
      %5662 = vmatprep.mubr.bf16.mxu0 0
      %5663 = vmatmul.mubr.bf16.gmra.mrb[0].mxu0 %v4068
      %v5664 = vpop.f32.mrb[0].mxu0
      %v5665 = vadd.f32 0.0, %v5664
      %v5666 = vpop.f32.mrb[0].mxu0
      %v5667 = vadd.f32 0.0, %v5666
      %v5668 = vpop.f32.mrb[0].mxu0
      %v5669 = vadd.f32 0.0, %v5668
      %v5670 = vpop.f32.mrb[0].mxu0
      %v5671 = vadd.f32 0.0, %v5670
      %5672 = vmatprep.mubr.bf16.mxu0 0
      %5673 = vmatmul.mubr.bf16.gmra.mrb[0].mxu0 %v4069
      %v5674 = vpop.f32.mrb[0].mxu0
      %v5675 = vadd.f32 0.0, %v5674
      %v5676 = vpop.f32.mrb[0].mxu0
      %v5677 = vadd.f32 0.0, %v5676
      %v5678 = vpop.f32.mrb[0].mxu0
      %v5679 = vadd.f32 0.0, %v5678
      %v5680 = vpop.f32.mrb[0].mxu0
      %v5681 = vadd.f32 0.0, %v5680
      %5682 = vmatprep.mubr.bf16.mxu0 0
      %5683 = vmatmul.mubr.bf16.gmra.mrb[0].mxu0 %v4070
      %v5684 = vpop.f32.mrb[0].mxu0
      %v5685 = vadd.f32 0.0, %v5684
      %v5686 = vpop.f32.mrb[0].mxu0
      %v5687 = vadd.f32 0.0, %v5686
      %v5688 = vpop.f32.mrb[0].mxu0
      %v5689 = vadd.f32 0.0, %v5688
      %v5690 = vpop.f32.mrb[0].mxu0
      %v5691 = vadd.f32 0.0, %v5690
      %5692 = vmatprep.mubr.bf16.mxu0 0
      %5693 = vmatmul.mubr.bf16.gmra.mrb[0].mxu0 %v4071
      %v5694 = vpop.f32.mrb[0].mxu0
      %v5695 = vadd.f32 0.0, %v5694
      %v5696 = vpop.f32.mrb[0].mxu0
      %v5697 = vadd.f32 0.0, %v5696
      %v5698 = vpop.f32.mrb[0].mxu0
      %v5699 = vadd.f32 0.0, %v5698
      %v5700 = vpop.f32.mrb[0].mxu0
      %v5701 = vadd.f32 0.0, %v5700
      %5702 = vmatprep.mubr.bf16.mxu0 0
      %5703 = vmatmul.mubr.bf16.gmra.mrb[0].mxu0 %v4072
      %v5704 = vpop.f32.mrb[0].mxu0
      %v5705 = vadd.f32 0.0, %v5704
      %v5706 = vpop.f32.mrb[0].mxu0
      %v5707 = vadd.f32 0.0, %v5706
      %v5708 = vpop.f32.mrb[0].mxu0
      %v5709 = vadd.f32 0.0, %v5708
      %v5710 = vpop.f32.mrb[0].mxu0
      %v5711 = vadd.f32 0.0, %v5710
      %5712 = vmatprep.mubr.bf16.mxu0 0
      %5713 = vmatmul.mubr.bf16.gmra.mrb[0].mxu0 %v4073
      %v5714 = vpop.f32.mrb[0].mxu0
      %v5715 = vadd.f32 0.0, %v5714
      %v5716 = vpop.f32.mrb[0].mxu0
      %v5717 = vadd.f32 0.0, %v5716
      %v5718 = vpop.f32.mrb[0].mxu0
      %v5719 = vadd.f32 0.0, %v5718
      %v5720 = vpop.f32.mrb[0].mxu0
      %v5721 = vadd.f32 0.0, %v5720
      %5722 = vmatprep.mubr.bf16.mxu0 0
      %5723 = vmatmul.mubr.bf16.gmra.mrb[0].mxu0 %v4074
      %v5724 = vpop.f32.mrb[0].mxu0
      %v5725 = vadd.f32 0.0, %v5724
      %v5726 = vpop.f32.mrb[0].mxu0
      %v5727 = vadd.f32 0.0, %v5726
      %v5728 = vpop.f32.mrb[0].mxu0
      %v5729 = vadd.f32 0.0, %v5728
      %v5730 = vpop.f32.mrb[0].mxu0
      %v5731 = vadd.f32 0.0, %v5730
      %5732 = vmatprep.mubr.bf16.mxu0 0
      %5733 = vmatmul.mubr.bf16.gmra.mrb[0].mxu0 %v4075
      %v5734 = vpop.f32.mrb[0].mxu0
      %v5735 = vadd.f32 0.0, %v5734
      %v5736 = vpop.f32.mrb[0].mxu0
      %v5737 = vadd.f32 0.0, %v5736
      %v5738 = vpop.f32.mrb[0].mxu0
      %v5739 = vadd.f32 0.0, %v5738
      %v5740 = vpop.f32.mrb[0].mxu0
      %v5741 = vadd.f32 0.0, %v5740
      %5742 = vmatprep.mubr.bf16.mxu0 0
      %5743 = vmatmul.mubr.bf16.gmra.mrb[0].mxu0 %v4076
      %v5744 = vpop.f32.mrb[0].mxu0
      %v5745 = vadd.f32 0.0, %v5744
      %v5746 = vpop.f32.mrb[0].mxu0
      %v5747 = vadd.f32 0.0, %v5746
      %v5748 = vpop.f32.mrb[0].mxu0
      %v5749 = vadd.f32 0.0, %v5748
      %v5750 = vpop.f32.mrb[0].mxu0
      %v5751 = vadd.f32 0.0, %v5750
      %5752 = vmatprep.mubr.bf16.mxu0 0
      %5753 = vmatmul.mubr.bf16.gmra.mrb[0].mxu0 %v4077
      %v5754 = vpop.f32.mrb[0].mxu0
      %v5755 = vadd.f32 0.0, %v5754
      %v5756 = vpop.f32.mrb[0].mxu0
      %v5757 = vadd.f32 0.0, %v5756
      %v5758 = vpop.f32.mrb[0].mxu0
      %v5759 = vadd.f32 0.0, %v5758
      %v5760 = vpop.f32.mrb[0].mxu0
      %v5761 = vadd.f32 0.0, %v5760
      %5762 = vmatprep.mubr.bf16.mxu0 0
      %5763 = vmatmul.mubr.bf16.gmra.mrb[0].mxu0 %v4078
      %v5764 = vpop.f32.mrb[0].mxu0
      %v5765 = vadd.f32 0.0, %v5764
      %v5766 = vpop.f32.mrb[0].mxu0
      %v5767 = vadd.f32 0.0, %v5766
      %v5768 = vpop.f32.mrb[0].mxu0
      %v5769 = vadd.f32 0.0, %v5768
      %v5770 = vpop.f32.mrb[0].mxu0
      %v5771 = vadd.f32 0.0, %v5770
      %5772 = vmatprep.mubr.bf16.mxu0 0
      %5773 = vmatmul.mubr.bf16.gmra.mrb[0].mxu0 %v4079
      %v5774 = vpop.f32.mrb[0].mxu0
      %v5775 = vadd.f32 0.0, %v5774
      %v5776 = vpop.f32.mrb[0].mxu0
      %v5777 = vadd.f32 0.0, %v5776
      %v5778 = vpop.f32.mrb[0].mxu0
      %v5779 = vadd.f32 0.0, %v5778
      %v5780 = vpop.f32.mrb[0].mxu0
      %v5781 = vadd.f32 0.0, %v5780
      %5782 = vmatprep.mubr.bf16.mxu0 0
      %5783 = vmatmul.mubr.bf16.gmra.mrb[0].mxu0 %v4080
      %v5784 = vpop.f32.mrb[0].mxu0
      %v5785 = vadd.f32 0.0, %v5784
      %v5786 = vpop.f32.mrb[0].mxu0
      %v5787 = vadd.f32 0.0, %v5786
      %v5788 = vpop.f32.mrb[0].mxu0
      %v5789 = vadd.f32 0.0, %v5788
      %v5790 = vpop.f32.mrb[0].mxu0
      %v5791 = vadd.f32 0.0, %v5790
      %5792 = vmatprep.mubr.bf16.mxu0 0
      %5793 = vmatmul.mubr.bf16.gmra.mrb[0].mxu0 %v4081
      %v5794 = vpop.f32.mrb[0].mxu0
      %v5795 = vadd.f32 0.0, %v5794
      %v5796 = vpop.f32.mrb[0].mxu0
      %v5797 = vadd.f32 0.0, %v5796
      %v5798 = vpop.f32.mrb[0].mxu0
      %v5799 = vadd.f32 0.0, %v5798
      %v5800 = vpop.f32.mrb[0].mxu0
      %v5801 = vadd.f32 0.0, %v5800
      %5802 = vmatprep.mubr.bf16.mxu0 0
      %5803 = vmatmul.mubr.bf16.gmra.mrb[0].mxu0 %v4082
      %v5804 = vpop.f32.mrb[0].mxu0
      %v5805 = vadd.f32 0.0, %v5804
      %v5806 = vpop.f32.mrb[0].mxu0
      %v5807 = vadd.f32 0.0, %v5806
      %v5808 = vpop.f32.mrb[0].mxu0
      %v5809 = vadd.f32 0.0, %v5808
      %v5810 = vpop.f32.mrb[0].mxu0
      %v5811 = vadd.f32 0.0, %v5810
      %5812 = vdwg.mxu0
      %5813 = vmatprep.subr.bf16.mxu0 %v4344
      %5814 = vmatpush1.bf16.msra.mxu0 %v4343
      %5815 = vmatprep.subr.bf16.mxu0 %v4352
      %5816 = vmatpush1.bf16.msra.mxu0 %v4351
      %5817 = vmatprep.subr.bf16.mxu0 %v4360
      %5818 = vmatpush1.bf16.msra.mxu0 %v4359
      %5819 = vmatprep.subr.bf16.mxu0 %v4368
      %5820 = vmatpush1.bf16.msra.mxu0 %v4367
      %5821 = vmatprep.subr.bf16.mxu0 %v4376
      %5822 = vmatpush1.bf16.msra.mxu0 %v4375
      %5823 = vmatprep.subr.bf16.mxu0 %v4384
      %5824 = vmatpush1.bf16.msra.mxu0 %v4383
      %5825 = vmatprep.subr.bf16.mxu0 %v4392
      %5826 = vmatpush1.bf16.msra.mxu0 %v4391
      %5827 = vmatprep.subr.bf16.mxu0 %v4400
      %5828 = vmatpush1.bf16.msra.mxu0 %v4399
      %5829 = vmatprep.subr.bf16.mxu0 0
      %5830 = vmatpush1.bf16.msra.mxu0 0
      %5831 = vmatprep.subr.bf16.mxu0 0
      %5832 = vmatpush1.bf16.msra.mxu0 0
      %5833 = vmatprep.subr.bf16.mxu0 0
      %5834 = vmatpush1.bf16.msra.mxu0 0
      %5835 = vmatprep.subr.bf16.mxu0 0
      %5836 = vmatpush1.bf16.msra.mxu0 0
      %5837 = vmatprep.subr.bf16.mxu0 0
      %5838 = vmatpush1.bf16.msra.mxu0 0
      %5839 = vmatprep.subr.bf16.mxu0 0
      %5840 = vmatpush1.bf16.msra.mxu0 0
      %5841 = vmatprep.subr.bf16.mxu0 0
      %5842 = vmatpush1.bf16.msra.mxu0 0
      %5843 = vmatprep.subr.bf16.mxu0 0
      %5844 = vmatpush1.bf16.msra.mxu0 0
      %5845 = vmatprep.mubr.bf16.mxu0 0
      %5846 = vmatmul.mubr.bf16.gmra.mrb[0].mxu0 %v4019
      %v5847 = vpop.f32.mrb[0].mxu0
      %v5848 = vadd.f32 0.0, %v5847
      %v5849 = vpop.f32.mrb[0].mxu0
      %v5850 = vadd.f32 0.0, %v5849
      %v5851 = vpop.f32.mrb[0].mxu0
      %v5852 = vadd.f32 0.0, %v5851
      %v5853 = vpop.f32.mrb[0].mxu0
      %v5854 = vadd.f32 0.0, %v5853
      %5855 = vmatprep.mubr.bf16.mxu0 0
      %5856 = vmatmul.mubr.bf16.gmra.mrb[0].mxu0 %v4020
      %v5857 = vpop.f32.mrb[0].mxu0
      %v5858 = vadd.f32 0.0, %v5857
      %v5859 = vpop.f32.mrb[0].mxu0
      %v5860 = vadd.f32 0.0, %v5859
      %v5861 = vpop.f32.mrb[0].mxu0
      %v5862 = vadd.f32 0.0, %v5861
      %v5863 = vpop.f32.mrb[0].mxu0
      %v5864 = vadd.f32 0.0, %v5863
      %5865 = vmatprep.mubr.bf16.mxu0 0
      %5866 = vmatmul.mubr.bf16.gmra.mrb[0].mxu0 %v4021
      %v5867 = vpop.f32.mrb[0].mxu0
      %v5868 = vadd.f32 0.0, %v5867
      %v5869 = vpop.f32.mrb[0].mxu0
      %v5870 = vadd.f32 0.0, %v5869
      %v5871 = vpop.f32.mrb[0].mxu0
      %v5872 = vadd.f32 0.0, %v5871
      %v5873 = vpop.f32.mrb[0].mxu0
      %v5874 = vadd.f32 0.0, %v5873
      %5875 = vmatprep.mubr.bf16.mxu0 0
      %5876 = vmatmul.mubr.bf16.gmra.mrb[0].mxu0 %v4022
      %v5877 = vpop.f32.mrb[0].mxu0
      %v5878 = vadd.f32 0.0, %v5877
      %v5879 = vpop.f32.mrb[0].mxu0
      %v5880 = vadd.f32 0.0, %v5879
      %v5881 = vpop.f32.mrb[0].mxu0
      %v5882 = vadd.f32 0.0, %v5881
      %v5883 = vpop.f32.mrb[0].mxu0
      %v5884 = vadd.f32 0.0, %v5883
      %5885 = vmatprep.mubr.bf16.mxu0 0
      %5886 = vmatmul.mubr.bf16.gmra.mrb[0].mxu0 %v4023
      %v5887 = vpop.f32.mrb[0].mxu0
      %v5888 = vadd.f32 0.0, %v5887
      %v5889 = vpop.f32.mrb[0].mxu0
      %v5890 = vadd.f32 0.0, %v5889
      %v5891 = vpop.f32.mrb[0].mxu0
      %v5892 = vadd.f32 0.0, %v5891
      %v5893 = vpop.f32.mrb[0].mxu0
      %v5894 = vadd.f32 0.0, %v5893
      %5895 = vmatprep.mubr.bf16.mxu0 0
      %5896 = vmatmul.mubr.bf16.gmra.mrb[0].mxu0 %v4024
      %v5897 = vpop.f32.mrb[0].mxu0
      %v5898 = vadd.f32 0.0, %v5897
      %v5899 = vpop.f32.mrb[0].mxu0
      %v5900 = vadd.f32 0.0, %v5899
      %v5901 = vpop.f32.mrb[0].mxu0
      %v5902 = vadd.f32 0.0, %v5901
      %v5903 = vpop.f32.mrb[0].mxu0
      %v5904 = vadd.f32 0.0, %v5903
      %5905 = vmatprep.mubr.bf16.mxu0 0
      %5906 = vmatmul.mubr.bf16.gmra.mrb[0].mxu0 %v4025
      %v5907 = vpop.f32.mrb[0].mxu0
      %v5908 = vadd.f32 0.0, %v5907
      %v5909 = vpop.f32.mrb[0].mxu0
      %v5910 = vadd.f32 0.0, %v5909
      %v5911 = vpop.f32.mrb[0].mxu0
      %v5912 = vadd.f32 0.0, %v5911
      %v5913 = vpop.f32.mrb[0].mxu0
      %v5914 = vadd.f32 0.0, %v5913
      %5915 = vmatprep.mubr.bf16.mxu0 0
      %5916 = vmatmul.mubr.bf16.gmra.mrb[0].mxu0 %v4026
      %v5917 = vpop.f32.mrb[0].mxu0
      %v5918 = vadd.f32 0.0, %v5917
      %v5919 = vpop.f32.mrb[0].mxu0
      %v5920 = vadd.f32 0.0, %v5919
      %v5921 = vpop.f32.mrb[0].mxu0
      %v5922 = vadd.f32 0.0, %v5921
      %v5923 = vpop.f32.mrb[0].mxu0
      %v5924 = vadd.f32 0.0, %v5923
      %5925 = vmatprep.mubr.bf16.mxu0 0
      %5926 = vmatmul.mubr.bf16.gmra.mrb[0].mxu0 %v4027
      %v5927 = vpop.f32.mrb[0].mxu0
      %v5928 = vadd.f32 0.0, %v5927
      %v5929 = vpop.f32.mrb[0].mxu0
      %v5930 = vadd.f32 0.0, %v5929
      %v5931 = vpop.f32.mrb[0].mxu0
      %v5932 = vadd.f32 0.0, %v5931
      %v5933 = vpop.f32.mrb[0].mxu0
      %v5934 = vadd.f32 0.0, %v5933
      %5935 = vmatprep.mubr.bf16.mxu0 0
      %5936 = vmatmul.mubr.bf16.gmra.mrb[0].mxu0 %v4028
      %v5937 = vpop.f32.mrb[0].mxu0
      %v5938 = vadd.f32 0.0, %v5937
      %v5939 = vpop.f32.mrb[0].mxu0
      %v5940 = vadd.f32 0.0, %v5939
      %v5941 = vpop.f32.mrb[0].mxu0
      %v5942 = vadd.f32 0.0, %v5941
      %v5943 = vpop.f32.mrb[0].mxu0
      %v5944 = vadd.f32 0.0, %v5943
      %5945 = vmatprep.mubr.bf16.mxu0 0
      %5946 = vmatmul.mubr.bf16.gmra.mrb[0].mxu0 %v4029
      %v5947 = vpop.f32.mrb[0].mxu0
      %v5948 = vadd.f32 0.0, %v5947
      %v5949 = vpop.f32.mrb[0].mxu0
      %v5950 = vadd.f32 0.0, %v5949
      %v5951 = vpop.f32.mrb[0].mxu0
      %v5952 = vadd.f32 0.0, %v5951
      %v5953 = vpop.f32.mrb[0].mxu0
      %v5954 = vadd.f32 0.0, %v5953
      %5955 = vmatprep.mubr.bf16.mxu0 0
      %5956 = vmatmul.mubr.bf16.gmra.mrb[0].mxu0 %v4030
      %v5957 = vpop.f32.mrb[0].mxu0
      %v5958 = vadd.f32 0.0, %v5957
      %v5959 = vpop.f32.mrb[0].mxu0
      %v5960 = vadd.f32 0.0, %v5959
      %v5961 = vpop.f32.mrb[0].mxu0
      %v5962 = vadd.f32 0.0, %v5961
      %v5963 = vpop.f32.mrb[0].mxu0
      %v5964 = vadd.f32 0.0, %v5963
      %5965 = vmatprep.mubr.bf16.mxu0 0
      %5966 = vmatmul.mubr.bf16.gmra.mrb[0].mxu0 %v4031
      %v5967 = vpop.f32.mrb[0].mxu0
      %v5968 = vadd.f32 0.0, %v5967
      %v5969 = vpop.f32.mrb[0].mxu0
      %v5970 = vadd.f32 0.0, %v5969
      %v5971 = vpop.f32.mrb[0].mxu0
      %v5972 = vadd.f32 0.0, %v5971
      %v5973 = vpop.f32.mrb[0].mxu0
      %v5974 = vadd.f32 0.0, %v5973
      %5975 = vmatprep.mubr.bf16.mxu0 0
      %5976 = vmatmul.mubr.bf16.gmra.mrb[0].mxu0 %v4032
      %v5977 = vpop.f32.mrb[0].mxu0
      %v5978 = vadd.f32 0.0, %v5977
      %v5979 = vpop.f32.mrb[0].mxu0
      %v5980 = vadd.f32 0.0, %v5979
      %v5981 = vpop.f32.mrb[0].mxu0
      %v5982 = vadd.f32 0.0, %v5981
      %v5983 = vpop.f32.mrb[0].mxu0
      %v5984 = vadd.f32 0.0, %v5983
      %5985 = vmatprep.mubr.bf16.mxu0 0
      %5986 = vmatmul.mubr.bf16.gmra.mrb[0].mxu0 %v4033
      %v5987 = vpop.f32.mrb[0].mxu0
      %v5988 = vadd.f32 0.0, %v5987
      %v5989 = vpop.f32.mrb[0].mxu0
      %v5990 = vadd.f32 0.0, %v5989
      %v5991 = vpop.f32.mrb[0].mxu0
      %v5992 = vadd.f32 0.0, %v5991
      %v5993 = vpop.f32.mrb[0].mxu0
      %v5994 = vadd.f32 0.0, %v5993
      %5995 = vmatprep.mubr.bf16.mxu0 0
      %5996 = vmatmul.mubr.bf16.gmra.mrb[0].mxu0 %v4034
      %v5997 = vpop.f32.mrb[0].mxu0
      %v5998 = vadd.f32 0.0, %v5997
      %v5999 = vpop.f32.mrb[0].mxu0
      %v6000 = vadd.f32 0.0, %v5999
      %v6001 = vpop.f32.mrb[0].mxu0
      %v6002 = vadd.f32 0.0, %v6001
      %v6003 = vpop.f32.mrb[0].mxu0
      %v6004 = vadd.f32 0.0, %v6003
      %6005 = vmatprep.mubr.bf16.mxu0 0
      %6006 = vmatmul.mubr.bf16.gmra.mrb[0].mxu0 %v4035
      %v6007 = vpop.f32.mrb[0].mxu0
      %v6008 = vadd.f32 0.0, %v6007
      %v6009 = vpop.f32.mrb[0].mxu0
      %v6010 = vadd.f32 0.0, %v6009
      %v6011 = vpop.f32.mrb[0].mxu0
      %v6012 = vadd.f32 0.0, %v6011
      %v6013 = vpop.f32.mrb[0].mxu0
      %v6014 = vadd.f32 0.0, %v6013
      %6015 = vmatprep.mubr.bf16.mxu0 0
      %6016 = vmatmul.mubr.bf16.gmra.mrb[0].mxu0 %v4036
      %v6017 = vpop.f32.mrb[0].mxu0
      %v6018 = vadd.f32 0.0, %v6017
      %v6019 = vpop.f32.mrb[0].mxu0
      %v6020 = vadd.f32 0.0, %v6019
      %v6021 = vpop.f32.mrb[0].mxu0
      %v6022 = vadd.f32 0.0, %v6021
      %v6023 = vpop.f32.mrb[0].mxu0
      %v6024 = vadd.f32 0.0, %v6023
      %6025 = vmatprep.mubr.bf16.mxu0 0
      %6026 = vmatmul.mubr.bf16.gmra.mrb[0].mxu0 %v4037
      %v6027 = vpop.f32.mrb[0].mxu0
      %v6028 = vadd.f32 0.0, %v6027
      %v6029 = vpop.f32.mrb[0].mxu0
      %v6030 = vadd.f32 0.0, %v6029
      %v6031 = vpop.f32.mrb[0].mxu0
      %v6032 = vadd.f32 0.0, %v6031
      %v6033 = vpop.f32.mrb[0].mxu0
      %v6034 = vadd.f32 0.0, %v6033
      %6035 = vmatprep.mubr.bf16.mxu0 0
      %6036 = vmatmul.mubr.bf16.gmra.mrb[0].mxu0 %v4038
      %v6037 = vpop.f32.mrb[0].mxu0
      %v6038 = vadd.f32 0.0, %v6037
      %v6039 = vpop.f32.mrb[0].mxu0
      %v6040 = vadd.f32 0.0, %v6039
      %v6041 = vpop.f32.mrb[0].mxu0
      %v6042 = vadd.f32 0.0, %v6041
      %v6043 = vpop.f32.mrb[0].mxu0
      %v6044 = vadd.f32 0.0, %v6043
      %6045 = vmatprep.mubr.bf16.mxu0 0
      %6046 = vmatmul.mubr.bf16.gmra.mrb[0].mxu0 %v4039
      %v6047 = vpop.f32.mrb[0].mxu0
      %v6048 = vadd.f32 0.0, %v6047
      %v6049 = vpop.f32.mrb[0].mxu0
      %v6050 = vadd.f32 0.0, %v6049
      %v6051 = vpop.f32.mrb[0].mxu0
      %v6052 = vadd.f32 0.0, %v6051
      %v6053 = vpop.f32.mrb[0].mxu0
      %v6054 = vadd.f32 0.0, %v6053
      %6055 = vmatprep.mubr.bf16.mxu0 0
      %6056 = vmatmul.mubr.bf16.gmra.mrb[0].mxu0 %v4040
      %v6057 = vpop.f32.mrb[0].mxu0
      %v6058 = vadd.f32 0.0, %v6057
      %v6059 = vpop.f32.mrb[0].mxu0
      %v6060 = vadd.f32 0.0, %v6059
      %v6061 = vpop.f32.mrb[0].mxu0
      %v6062 = vadd.f32 0.0, %v6061
      %v6063 = vpop.f32.mrb[0].mxu0
      %v6064 = vadd.f32 0.0, %v6063
      %6065 = vmatprep.mubr.bf16.mxu0 0
      %6066 = vmatmul.mubr.bf16.gmra.mrb[0].mxu0 %v4041
      %v6067 = vpop.f32.mrb[0].mxu0
      %v6068 = vadd.f32 0.0, %v6067
      %v6069 = vpop.f32.mrb[0].mxu0
      %v6070 = vadd.f32 0.0, %v6069
      %v6071 = vpop.f32.mrb[0].mxu0
      %v6072 = vadd.f32 0.0, %v6071
      %v6073 = vpop.f32.mrb[0].mxu0
      %v6074 = vadd.f32 0.0, %v6073
      %6075 = vmatprep.mubr.bf16.mxu0 0
      %6076 = vmatmul.mubr.bf16.gmra.mrb[0].mxu0 %v4042
      %v6077 = vpop.f32.mrb[0].mxu0
      %v6078 = vadd.f32 0.0, %v6077
      %v6079 = vpop.f32.mrb[0].mxu0
      %v6080 = vadd.f32 0.0, %v6079
      %v6081 = vpop.f32.mrb[0].mxu0
      %v6082 = vadd.f32 0.0, %v6081
      %v6083 = vpop.f32.mrb[0].mxu0
      %v6084 = vadd.f32 0.0, %v6083
      %6085 = vmatprep.mubr.bf16.mxu0 0
      %6086 = vmatmul.mubr.bf16.gmra.mrb[0].mxu0 %v4043
      %v6087 = vpop.f32.mrb[0].mxu0
      %v6088 = vadd.f32 0.0, %v6087
      %v6089 = vpop.f32.mrb[0].mxu0
      %v6090 = vadd.f32 0.0, %v6089
      %v6091 = vpop.f32.mrb[0].mxu0
      %v6092 = vadd.f32 0.0, %v6091
      %v6093 = vpop.f32.mrb[0].mxu0
      %v6094 = vadd.f32 0.0, %v6093
      %6095 = vmatprep.mubr.bf16.mxu0 0
      %6096 = vmatmul.mubr.bf16.gmra.mrb[0].mxu0 %v4044
      %v6097 = vpop.f32.mrb[0].mxu0
      %v6098 = vadd.f32 0.0, %v6097
      %v6099 = vpop.f32.mrb[0].mxu0
      %v6100 = vadd.f32 0.0, %v6099
      %v6101 = vpop.f32.mrb[0].mxu0
      %v6102 = vadd.f32 0.0, %v6101
      %v6103 = vpop.f32.mrb[0].mxu0
      %v6104 = vadd.f32 0.0, %v6103
      %6105 = vmatprep.mubr.bf16.mxu0 0
      %6106 = vmatmul.mubr.bf16.gmra.mrb[0].mxu0 %v4045
      %v6107 = vpop.f32.mrb[0].mxu0
      %v6108 = vadd.f32 0.0, %v6107
      %v6109 = vpop.f32.mrb[0].mxu0
      %v6110 = vadd.f32 0.0, %v6109
      %v6111 = vpop.f32.mrb[0].mxu0
      %v6112 = vadd.f32 0.0, %v6111
      %v6113 = vpop.f32.mrb[0].mxu0
      %v6114 = vadd.f32 0.0, %v6113
      %6115 = vmatprep.mubr.bf16.mxu0 0
      %6116 = vmatmul.mubr.bf16.gmra.mrb[0].mxu0 %v4046
      %v6117 = vpop.f32.mrb[0].mxu0
      %v6118 = vadd.f32 0.0, %v6117
      %v6119 = vpop.f32.mrb[0].mxu0
      %v6120 = vadd.f32 0.0, %v6119
      %v6121 = vpop.f32.mrb[0].mxu0
      %v6122 = vadd.f32 0.0, %v6121
      %v6123 = vpop.f32.mrb[0].mxu0
      %v6124 = vadd.f32 0.0, %v6123
      %6125 = vmatprep.mubr.bf16.mxu0 0
      %6126 = vmatmul.mubr.bf16.gmra.mrb[0].mxu0 %v4047
      %v6127 = vpop.f32.mrb[0].mxu0
      %v6128 = vadd.f32 0.0, %v6127
      %v6129 = vpop.f32.mrb[0].mxu0
      %v6130 = vadd.f32 0.0, %v6129
      %v6131 = vpop.f32.mrb[0].mxu0
      %v6132 = vadd.f32 0.0, %v6131
      %v6133 = vpop.f32.mrb[0].mxu0
      %v6134 = vadd.f32 0.0, %v6133
      %6135 = vmatprep.mubr.bf16.mxu0 0
      %6136 = vmatmul.mubr.bf16.gmra.mrb[0].mxu0 %v4048
      %v6137 = vpop.f32.mrb[0].mxu0
      %v6138 = vadd.f32 0.0, %v6137
      %v6139 = vpop.f32.mrb[0].mxu0
      %v6140 = vadd.f32 0.0, %v6139
      %v6141 = vpop.f32.mrb[0].mxu0
      %v6142 = vadd.f32 0.0, %v6141
      %v6143 = vpop.f32.mrb[0].mxu0
      %v6144 = vadd.f32 0.0, %v6143
      %6145 = vmatprep.mubr.bf16.mxu0 0
      %6146 = vmatmul.mubr.bf16.gmra.mrb[0].mxu0 %v4049
      %v6147 = vpop.f32.mrb[0].mxu0
      %v6148 = vadd.f32 0.0, %v6147
      %v6149 = vpop.f32.mrb[0].mxu0
      %v6150 = vadd.f32 0.0, %v6149
      %v6151 = vpop.f32.mrb[0].mxu0
      %v6152 = vadd.f32 0.0, %v6151
      %v6153 = vpop.f32.mrb[0].mxu0
      %v6154 = vadd.f32 0.0, %v6153
      %6155 = vmatprep.mubr.bf16.mxu0 0
      %6156 = vmatmul.mubr.bf16.gmra.mrb[0].mxu0 %v4050
      %v6157 = vpop.f32.mrb[0].mxu0
      %v6158 = vadd.f32 0.0, %v6157
      %v6159 = vpop.f32.mrb[0].mxu0
      %v6160 = vadd.f32 0.0, %v6159
      %v6161 = vpop.f32.mrb[0].mxu0
      %v6162 = vadd.f32 0.0, %v6161
      %v6163 = vpop.f32.mrb[0].mxu0
      %v6164 = vadd.f32 0.0, %v6163
      %6165 = vmatprep.mubr.bf16.mxu0 0
      %6166 = vmatmul.mubr.bf16.gmra.mrb[0].mxu0 %v4051
      %v6167 = vpop.f32.mrb[0].mxu0
      %v6168 = vadd.f32 0.0, %v6167
      %v6169 = vpop.f32.mrb[0].mxu0
      %v6170 = vadd.f32 0.0, %v6169
      %v6171 = vpop.f32.mrb[0].mxu0
      %v6172 = vadd.f32 0.0, %v6171
      %v6173 = vpop.f32.mrb[0].mxu0
      %v6174 = vadd.f32 0.0, %v6173
      %6175 = vmatprep.mubr.bf16.mxu0 0
      %6176 = vmatmul.mubr.bf16.gmra.mrb[0].mxu0 %v4052
      %v6177 = vpop.f32.mrb[0].mxu0
      %v6178 = vadd.f32 0.0, %v6177
      %v6179 = vpop.f32.mrb[0].mxu0
      %v6180 = vadd.f32 0.0, %v6179
      %v6181 = vpop.f32.mrb[0].mxu0
      %v6182 = vadd.f32 0.0, %v6181
      %v6183 = vpop.f32.mrb[0].mxu0
      %v6184 = vadd.f32 0.0, %v6183
      %6185 = vmatprep.mubr.bf16.mxu0 0
      %6186 = vmatmul.mubr.bf16.gmra.mrb[0].mxu0 %v4053
      %v6187 = vpop.f32.mrb[0].mxu0
      %v6188 = vadd.f32 0.0, %v6187
      %v6189 = vpop.f32.mrb[0].mxu0
      %v6190 = vadd.f32 0.0, %v6189
      %v6191 = vpop.f32.mrb[0].mxu0
      %v6192 = vadd.f32 0.0, %v6191
      %v6193 = vpop.f32.mrb[0].mxu0
      %v6194 = vadd.f32 0.0, %v6193
      %6195 = vmatprep.mubr.bf16.mxu0 0
      %6196 = vmatmul.mubr.bf16.gmra.mrb[0].mxu0 %v4054
      %v6197 = vpop.f32.mrb[0].mxu0
      %v6198 = vadd.f32 0.0, %v6197
      %v6199 = vpop.f32.mrb[0].mxu0
      %v6200 = vadd.f32 0.0, %v6199
      %v6201 = vpop.f32.mrb[0].mxu0
      %v6202 = vadd.f32 0.0, %v6201
      %v6203 = vpop.f32.mrb[0].mxu0
      %v6204 = vadd.f32 0.0, %v6203
      %6205 = vmatprep.mubr.bf16.mxu0 0
      %6206 = vmatmul.mubr.bf16.gmra.mrb[0].mxu0 %v4055
      %v6207 = vpop.f32.mrb[0].mxu0
      %v6208 = vadd.f32 0.0, %v6207
      %v6209 = vpop.f32.mrb[0].mxu0
      %v6210 = vadd.f32 0.0, %v6209
      %v6211 = vpop.f32.mrb[0].mxu0
      %v6212 = vadd.f32 0.0, %v6211
      %v6213 = vpop.f32.mrb[0].mxu0
      %v6214 = vadd.f32 0.0, %v6213
      %6215 = vmatprep.mubr.bf16.mxu0 0
      %6216 = vmatmul.mubr.bf16.gmra.mrb[0].mxu0 %v4056
      %v6217 = vpop.f32.mrb[0].mxu0
      %v6218 = vadd.f32 0.0, %v6217
      %v6219 = vpop.f32.mrb[0].mxu0
      %v6220 = vadd.f32 0.0, %v6219
      %v6221 = vpop.f32.mrb[0].mxu0
      %v6222 = vadd.f32 0.0, %v6221
      %v6223 = vpop.f32.mrb[0].mxu0
      %v6224 = vadd.f32 0.0, %v6223
      %6225 = vmatprep.mubr.bf16.mxu0 0
      %6226 = vmatmul.mubr.bf16.gmra.mrb[0].mxu0 %v4057
      %v6227 = vpop.f32.mrb[0].mxu0
      %v6228 = vadd.f32 0.0, %v6227
      %v6229 = vpop.f32.mrb[0].mxu0
      %v6230 = vadd.f32 0.0, %v6229
      %v6231 = vpop.f32.mrb[0].mxu0
      %v6232 = vadd.f32 0.0, %v6231
      %v6233 = vpop.f32.mrb[0].mxu0
      %v6234 = vadd.f32 0.0, %v6233
      %6235 = vmatprep.mubr.bf16.mxu0 0
      %6236 = vmatmul.mubr.bf16.gmra.mrb[0].mxu0 %v4058
      %v6237 = vpop.f32.mrb[0].mxu0
      %v6238 = vadd.f32 0.0, %v6237
      %v6239 = vpop.f32.mrb[0].mxu0
      %v6240 = vadd.f32 0.0, %v6239
      %v6241 = vpop.f32.mrb[0].mxu0
      %v6242 = vadd.f32 0.0, %v6241
      %v6243 = vpop.f32.mrb[0].mxu0
      %v6244 = vadd.f32 0.0, %v6243
      %6245 = vmatprep.mubr.bf16.mxu0 0
      %6246 = vmatmul.mubr.bf16.gmra.mrb[0].mxu0 %v4059
      %v6247 = vpop.f32.mrb[0].mxu0
      %v6248 = vadd.f32 0.0, %v6247
      %v6249 = vpop.f32.mrb[0].mxu0
      %v6250 = vadd.f32 0.0, %v6249
      %v6251 = vpop.f32.mrb[0].mxu0
      %v6252 = vadd.f32 0.0, %v6251
      %v6253 = vpop.f32.mrb[0].mxu0
      %v6254 = vadd.f32 0.0, %v6253
      %6255 = vmatprep.mubr.bf16.mxu0 0
      %6256 = vmatmul.mubr.bf16.gmra.mrb[0].mxu0 %v4060
      %v6257 = vpop.f32.mrb[0].mxu0
      %v6258 = vadd.f32 0.0, %v6257
      %v6259 = vpop.f32.mrb[0].mxu0
      %v6260 = vadd.f32 0.0, %v6259
      %v6261 = vpop.f32.mrb[0].mxu0
      %v6262 = vadd.f32 0.0, %v6261
      %v6263 = vpop.f32.mrb[0].mxu0
      %v6264 = vadd.f32 0.0, %v6263
      %6265 = vmatprep.mubr.bf16.mxu0 0
      %6266 = vmatmul.mubr.bf16.gmra.mrb[0].mxu0 %v4061
      %v6267 = vpop.f32.mrb[0].mxu0
      %v6268 = vadd.f32 0.0, %v6267
      %v6269 = vpop.f32.mrb[0].mxu0
      %v6270 = vadd.f32 0.0, %v6269
      %v6271 = vpop.f32.mrb[0].mxu0
      %v6272 = vadd.f32 0.0, %v6271
      %v6273 = vpop.f32.mrb[0].mxu0
      %v6274 = vadd.f32 0.0, %v6273
      %6275 = vmatprep.mubr.bf16.mxu0 0
      %6276 = vmatmul.mubr.bf16.gmra.mrb[0].mxu0 %v4062
      %v6277 = vpop.f32.mrb[0].mxu0
      %v6278 = vadd.f32 0.0, %v6277
      %v6279 = vpop.f32.mrb[0].mxu0
      %v6280 = vadd.f32 0.0, %v6279
      %v6281 = vpop.f32.mrb[0].mxu0
      %v6282 = vadd.f32 0.0, %v6281
      %v6283 = vpop.f32.mrb[0].mxu0
      %v6284 = vadd.f32 0.0, %v6283
      %6285 = vmatprep.mubr.bf16.mxu0 0
      %6286 = vmatmul.mubr.bf16.gmra.mrb[0].mxu0 %v4063
      %v6287 = vpop.f32.mrb[0].mxu0
      %v6288 = vadd.f32 0.0, %v6287
      %v6289 = vpop.f32.mrb[0].mxu0
      %v6290 = vadd.f32 0.0, %v6289
      %v6291 = vpop.f32.mrb[0].mxu0
      %v6292 = vadd.f32 0.0, %v6291
      %v6293 = vpop.f32.mrb[0].mxu0
      %v6294 = vadd.f32 0.0, %v6293
      %6295 = vmatprep.mubr.bf16.mxu0 0
      %6296 = vmatmul.mubr.bf16.gmra.mrb[0].mxu0 %v4064
      %v6297 = vpop.f32.mrb[0].mxu0
      %v6298 = vadd.f32 0.0, %v6297
      %v6299 = vpop.f32.mrb[0].mxu0
      %v6300 = vadd.f32 0.0, %v6299
      %v6301 = vpop.f32.mrb[0].mxu0
      %v6302 = vadd.f32 0.0, %v6301
      %v6303 = vpop.f32.mrb[0].mxu0
      %v6304 = vadd.f32 0.0, %v6303
      %6305 = vmatprep.mubr.bf16.mxu0 0
      %6306 = vmatmul.mubr.bf16.gmra.mrb[0].mxu0 %v4065
      %v6307 = vpop.f32.mrb[0].mxu0
      %v6308 = vadd.f32 0.0, %v6307
      %v6309 = vpop.f32.mrb[0].mxu0
      %v6310 = vadd.f32 0.0, %v6309
      %v6311 = vpop.f32.mrb[0].mxu0
      %v6312 = vadd.f32 0.0, %v6311
      %v6313 = vpop.f32.mrb[0].mxu0
      %v6314 = vadd.f32 0.0, %v6313
      %6315 = vmatprep.mubr.bf16.mxu0 0
      %6316 = vmatmul.mubr.bf16.gmra.mrb[0].mxu0 %v4066
      %v6317 = vpop.f32.mrb[0].mxu0
      %v6318 = vadd.f32 0.0, %v6317
      %v6319 = vpop.f32.mrb[0].mxu0
      %v6320 = vadd.f32 0.0, %v6319
      %v6321 = vpop.f32.mrb[0].mxu0
      %v6322 = vadd.f32 0.0, %v6321
      %v6323 = vpop.f32.mrb[0].mxu0
      %v6324 = vadd.f32 0.0, %v6323
      %6325 = vmatprep.mubr.bf16.mxu0 0
      %6326 = vmatmul.mubr.bf16.gmra.mrb[0].mxu0 %v4067
      %v6327 = vpop.f32.mrb[0].mxu0
      %v6328 = vadd.f32 0.0, %v6327
      %v6329 = vpop.f32.mrb[0].mxu0
      %v6330 = vadd.f32 0.0, %v6329
      %v6331 = vpop.f32.mrb[0].mxu0
      %v6332 = vadd.f32 0.0, %v6331
      %v6333 = vpop.f32.mrb[0].mxu0
      %v6334 = vadd.f32 0.0, %v6333
      %6335 = vmatprep.mubr.bf16.mxu0 0
      %6336 = vmatmul.mubr.bf16.gmra.mrb[0].mxu0 %v4068
      %v6337 = vpop.f32.mrb[0].mxu0
      %v6338 = vadd.f32 0.0, %v6337
      %v6339 = vpop.f32.mrb[0].mxu0
      %v6340 = vadd.f32 0.0, %v6339
      %v6341 = vpop.f32.mrb[0].mxu0
      %v6342 = vadd.f32 0.0, %v6341
      %v6343 = vpop.f32.mrb[0].mxu0
      %v6344 = vadd.f32 0.0, %v6343
      %6345 = vmatprep.mubr.bf16.mxu0 0
      %6346 = vmatmul.mubr.bf16.gmra.mrb[0].mxu0 %v4069
      %v6347 = vpop.f32.mrb[0].mxu0
      %v6348 = vadd.f32 0.0, %v6347
      %v6349 = vpop.f32.mrb[0].mxu0
      %v6350 = vadd.f32 0.0, %v6349
      %v6351 = vpop.f32.mrb[0].mxu0
      %v6352 = vadd.f32 0.0, %v6351
      %v6353 = vpop.f32.mrb[0].mxu0
      %v6354 = vadd.f32 0.0, %v6353
      %6355 = vmatprep.mubr.bf16.mxu0 0
      %6356 = vmatmul.mubr.bf16.gmra.mrb[0].mxu0 %v4070
      %v6357 = vpop.f32.mrb[0].mxu0
      %v6358 = vadd.f32 0.0, %v6357
      %v6359 = vpop.f32.mrb[0].mxu0
      %v6360 = vadd.f32 0.0, %v6359
      %v6361 = vpop.f32.mrb[0].mxu0
      %v6362 = vadd.f32 0.0, %v6361
      %v6363 = vpop.f32.mrb[0].mxu0
      %v6364 = vadd.f32 0.0, %v6363
      %6365 = vmatprep.mubr.bf16.mxu0 0
      %6366 = vmatmul.mubr.bf16.gmra.mrb[0].mxu0 %v4071
      %v6367 = vpop.f32.mrb[0].mxu0
      %v6368 = vadd.f32 0.0, %v6367
      %v6369 = vpop.f32.mrb[0].mxu0
      %v6370 = vadd.f32 0.0, %v6369
      %v6371 = vpop.f32.mrb[0].mxu0
      %v6372 = vadd.f32 0.0, %v6371
      %v6373 = vpop.f32.mrb[0].mxu0
      %v6374 = vadd.f32 0.0, %v6373
      %6375 = vmatprep.mubr.bf16.mxu0 0
      %6376 = vmatmul.mubr.bf16.gmra.mrb[0].mxu0 %v4072
      %v6377 = vpop.f32.mrb[0].mxu0
      %v6378 = vadd.f32 0.0, %v6377
      %v6379 = vpop.f32.mrb[0].mxu0
      %v6380 = vadd.f32 0.0, %v6379
      %v6381 = vpop.f32.mrb[0].mxu0
      %v6382 = vadd.f32 0.0, %v6381
      %v6383 = vpop.f32.mrb[0].mxu0
      %v6384 = vadd.f32 0.0, %v6383
      %6385 = vmatprep.mubr.bf16.mxu0 0
      %6386 = vmatmul.mubr.bf16.gmra.mrb[0].mxu0 %v4073
      %v6387 = vpop.f32.mrb[0].mxu0
      %v6388 = vadd.f32 0.0, %v6387
      %v6389 = vpop.f32.mrb[0].mxu0
      %v6390 = vadd.f32 0.0, %v6389
      %v6391 = vpop.f32.mrb[0].mxu0
      %v6392 = vadd.f32 0.0, %v6391
      %v6393 = vpop.f32.mrb[0].mxu0
      %v6394 = vadd.f32 0.0, %v6393
      %6395 = vmatprep.mubr.bf16.mxu0 0
      %6396 = vmatmul.mubr.bf16.gmra.mrb[0].mxu0 %v4074
      %v6397 = vpop.f32.mrb[0].mxu0
      %v6398 = vadd.f32 0.0, %v6397
      %v6399 = vpop.f32.mrb[0].mxu0
      %v6400 = vadd.f32 0.0, %v6399
      %v6401 = vpop.f32.mrb[0].mxu0
      %v6402 = vadd.f32 0.0, %v6401
      %v6403 = vpop.f32.mrb[0].mxu0
      %v6404 = vadd.f32 0.0, %v6403
      %6405 = vmatprep.mubr.bf16.mxu0 0
      %6406 = vmatmul.mubr.bf16.gmra.mrb[0].mxu0 %v4075
      %v6407 = vpop.f32.mrb[0].mxu0
      %v6408 = vadd.f32 0.0, %v6407
      %v6409 = vpop.f32.mrb[0].mxu0
      %v6410 = vadd.f32 0.0, %v6409
      %v6411 = vpop.f32.mrb[0].mxu0
      %v6412 = vadd.f32 0.0, %v6411
      %v6413 = vpop.f32.mrb[0].mxu0
      %v6414 = vadd.f32 0.0, %v6413
      %6415 = vmatprep.mubr.bf16.mxu0 0
      %6416 = vmatmul.mubr.bf16.gmra.mrb[0].mxu0 %v4076
      %v6417 = vpop.f32.mrb[0].mxu0
      %v6418 = vadd.f32 0.0, %v6417
      %v6419 = vpop.f32.mrb[0].mxu0
      %v6420 = vadd.f32 0.0, %v6419
      %v6421 = vpop.f32.mrb[0].mxu0
      %v6422 = vadd.f32 0.0, %v6421
      %v6423 = vpop.f32.mrb[0].mxu0
      %v6424 = vadd.f32 0.0, %v6423
      %6425 = vmatprep.mubr.bf16.mxu0 0
      %6426 = vmatmul.mubr.bf16.gmra.mrb[0].mxu0 %v4077
      %v6427 = vpop.f32.mrb[0].mxu0
      %v6428 = vadd.f32 0.0, %v6427
      %v6429 = vpop.f32.mrb[0].mxu0
      %v6430 = vadd.f32 0.0, %v6429
      %v6431 = vpop.f32.mrb[0].mxu0
      %v6432 = vadd.f32 0.0, %v6431
      %v6433 = vpop.f32.mrb[0].mxu0
      %v6434 = vadd.f32 0.0, %v6433
      %6435 = vmatprep.mubr.bf16.mxu0 0
      %6436 = vmatmul.mubr.bf16.gmra.mrb[0].mxu0 %v4078
      %v6437 = vpop.f32.mrb[0].mxu0
      %v6438 = vadd.f32 0.0, %v6437
      %v6439 = vpop.f32.mrb[0].mxu0
      %v6440 = vadd.f32 0.0, %v6439
      %v6441 = vpop.f32.mrb[0].mxu0
      %v6442 = vadd.f32 0.0, %v6441
      %v6443 = vpop.f32.mrb[0].mxu0
      %v6444 = vadd.f32 0.0, %v6443
      %6445 = vmatprep.mubr.bf16.mxu0 0
      %6446 = vmatmul.mubr.bf16.gmra.mrb[0].mxu0 %v4079
      %v6447 = vpop.f32.mrb[0].mxu0
      %v6448 = vadd.f32 0.0, %v6447
      %v6449 = vpop.f32.mrb[0].mxu0
      %v6450 = vadd.f32 0.0, %v6449
      %v6451 = vpop.f32.mrb[0].mxu0
      %v6452 = vadd.f32 0.0, %v6451
      %v6453 = vpop.f32.mrb[0].mxu0
      %v6454 = vadd.f32 0.0, %v6453
      %6455 = vmatprep.mubr.bf16.mxu0 0
      %6456 = vmatmul.mubr.bf16.gmra.mrb[0].mxu0 %v4080
      %v6457 = vpop.f32.mrb[0].mxu0
      %v6458 = vadd.f32 0.0, %v6457
      %v6459 = vpop.f32.mrb[0].mxu0
      %v6460 = vadd.f32 0.0, %v6459
      %v6461 = vpop.f32.mrb[0].mxu0
      %v6462 = vadd.f32 0.0, %v6461
      %v6463 = vpop.f32.mrb[0].mxu0
      %v6464 = vadd.f32 0.0, %v6463
      %6465 = vmatprep.mubr.bf16.mxu0 0
      %6466 = vmatmul.mubr.bf16.gmra.mrb[0].mxu0 %v4081
      %v6467 = vpop.f32.mrb[0].mxu0
      %v6468 = vadd.f32 0.0, %v6467
      %v6469 = vpop.f32.mrb[0].mxu0
      %v6470 = vadd.f32 0.0, %v6469
      %v6471 = vpop.f32.mrb[0].mxu0
      %v6472 = vadd.f32 0.0, %v6471
      %v6473 = vpop.f32.mrb[0].mxu0
      %v6474 = vadd.f32 0.0, %v6473
      %6475 = vmatprep.mubr.bf16.mxu0 0
      %6476 = vmatmul.mubr.bf16.gmra.mrb[0].mxu0 %v4082
      %v6477 = vpop.f32.mrb[0].mxu0
      %v6478 = vadd.f32 0.0, %v6477
      %v6479 = vpop.f32.mrb[0].mxu0
      %v6480 = vadd.f32 0.0, %v6479
      %v6481 = vpop.f32.mrb[0].mxu0
      %v6482 = vadd.f32 0.0, %v6481
      %v6483 = vpop.f32.mrb[0].mxu0
      %v6484 = vadd.f32 0.0, %v6483
      %6485 = vdwg.mxu0
      %6486 = vmatprep.subr.bf16.mxu0 %v4346
      %6487 = vmatpush1.bf16.msra.mxu0 %v4345
      %6488 = vmatprep.subr.bf16.mxu0 %v4354
      %6489 = vmatpush1.bf16.msra.mxu0 %v4353
      %6490 = vmatprep.subr.bf16.mxu0 %v4362
      %6491 = vmatpush1.bf16.msra.mxu0 %v4361
      %6492 = vmatprep.subr.bf16.mxu0 %v4370
      %6493 = vmatpush1.bf16.msra.mxu0 %v4369
      %6494 = vmatprep.subr.bf16.mxu0 %v4378
      %6495 = vmatpush1.bf16.msra.mxu0 %v4377
      %6496 = vmatprep.subr.bf16.mxu0 %v4386
      %6497 = vmatpush1.bf16.msra.mxu0 %v4385
      %6498 = vmatprep.subr.bf16.mxu0 %v4394
      %6499 = vmatpush1.bf16.msra.mxu0 %v4393
      %6500 = vmatprep.subr.bf16.mxu0 %v4402
      %6501 = vmatpush1.bf16.msra.mxu0 %v4401
      %6502 = vmatprep.subr.bf16.mxu0 0
      %6503 = vmatpush1.bf16.msra.mxu0 0
      %6504 = vmatprep.subr.bf16.mxu0 0
      %6505 = vmatpush1.bf16.msra.mxu0 0
      %6506 = vmatprep.subr.bf16.mxu0 0
      %6507 = vmatpush1.bf16.msra.mxu0 0
      %6508 = vmatprep.subr.bf16.mxu0 0
      %6509 = vmatpush1.bf16.msra.mxu0 0
      %6510 = vmatprep.subr.bf16.mxu0 0
      %6511 = vmatpush1.bf16.msra.mxu0 0
      %6512 = vmatprep.subr.bf16.mxu0 0
      %6513 = vmatpush1.bf16.msra.mxu0 0
      %6514 = vmatprep.subr.bf16.mxu0 0
      %6515 = vmatpush1.bf16.msra.mxu0 0
      %6516 = vmatprep.subr.bf16.mxu0 0
      %6517 = vmatpush1.bf16.msra.mxu0 0
      %6518 = vmatprep.mubr.bf16.mxu0 0
      %6519 = vmatmul.mubr.bf16.gmra.mrb[0].mxu0 %v4019
      %v6520 = vpop.f32.mrb[0].mxu0
      %v6521 = vadd.f32 0.0, %v6520
      %v6522 = vpop.f32.mrb[0].mxu0
      %v6523 = vadd.f32 0.0, %v6522
      %v6524 = vpop.f32.mrb[0].mxu0
      %v6525 = vadd.f32 0.0, %v6524
      %v6526 = vpop.f32.mrb[0].mxu0
      %v6527 = vadd.f32 0.0, %v6526
      %6528 = vmatprep.mubr.bf16.mxu0 0
      %6529 = vmatmul.mubr.bf16.gmra.mrb[0].mxu0 %v4020
      %v6530 = vpop.f32.mrb[0].mxu0
      %v6531 = vadd.f32 0.0, %v6530
      %v6532 = vpop.f32.mrb[0].mxu0
      %v6533 = vadd.f32 0.0, %v6532
      %v6534 = vpop.f32.mrb[0].mxu0
      %v6535 = vadd.f32 0.0, %v6534
      %v6536 = vpop.f32.mrb[0].mxu0
      %v6537 = vadd.f32 0.0, %v6536
      %6538 = vmatprep.mubr.bf16.mxu0 0
      %6539 = vmatmul.mubr.bf16.gmra.mrb[0].mxu0 %v4021
      %v6540 = vpop.f32.mrb[0].mxu0
      %v6541 = vadd.f32 0.0, %v6540
      %v6542 = vpop.f32.mrb[0].mxu0
      %v6543 = vadd.f32 0.0, %v6542
      %v6544 = vpop.f32.mrb[0].mxu0
      %v6545 = vadd.f32 0.0, %v6544
      %v6546 = vpop.f32.mrb[0].mxu0
      %v6547 = vadd.f32 0.0, %v6546
      %6548 = vmatprep.mubr.bf16.mxu0 0
      %6549 = vmatmul.mubr.bf16.gmra.mrb[0].mxu0 %v4022
      %v6550 = vpop.f32.mrb[0].mxu0
      %v6551 = vadd.f32 0.0, %v6550
      %v6552 = vpop.f32.mrb[0].mxu0
      %v6553 = vadd.f32 0.0, %v6552
      %v6554 = vpop.f32.mrb[0].mxu0
      %v6555 = vadd.f32 0.0, %v6554
      %v6556 = vpop.f32.mrb[0].mxu0
      %v6557 = vadd.f32 0.0, %v6556
      %6558 = vmatprep.mubr.bf16.mxu0 0
      %6559 = vmatmul.mubr.bf16.gmra.mrb[0].mxu0 %v4023
      %v6560 = vpop.f32.mrb[0].mxu0
      %v6561 = vadd.f32 0.0, %v6560
      %v6562 = vpop.f32.mrb[0].mxu0
      %v6563 = vadd.f32 0.0, %v6562
      %v6564 = vpop.f32.mrb[0].mxu0
      %v6565 = vadd.f32 0.0, %v6564
      %v6566 = vpop.f32.mrb[0].mxu0
      %v6567 = vadd.f32 0.0, %v6566
      %6568 = vmatprep.mubr.bf16.mxu0 0
      %6569 = vmatmul.mubr.bf16.gmra.mrb[0].mxu0 %v4024
      %v6570 = vpop.f32.mrb[0].mxu0
      %v6571 = vadd.f32 0.0, %v6570
      %v6572 = vpop.f32.mrb[0].mxu0
      %v6573 = vadd.f32 0.0, %v6572
      %v6574 = vpop.f32.mrb[0].mxu0
      %v6575 = vadd.f32 0.0, %v6574
      %v6576 = vpop.f32.mrb[0].mxu0
      %v6577 = vadd.f32 0.0, %v6576
      %6578 = vmatprep.mubr.bf16.mxu0 0
      %6579 = vmatmul.mubr.bf16.gmra.mrb[0].mxu0 %v4025
      %v6580 = vpop.f32.mrb[0].mxu0
      %v6581 = vadd.f32 0.0, %v6580
      %v6582 = vpop.f32.mrb[0].mxu0
      %v6583 = vadd.f32 0.0, %v6582
      %v6584 = vpop.f32.mrb[0].mxu0
      %v6585 = vadd.f32 0.0, %v6584
      %v6586 = vpop.f32.mrb[0].mxu0
      %v6587 = vadd.f32 0.0, %v6586
      %6588 = vmatprep.mubr.bf16.mxu0 0
      %6589 = vmatmul.mubr.bf16.gmra.mrb[0].mxu0 %v4026
      %v6590 = vpop.f32.mrb[0].mxu0
      %v6591 = vadd.f32 0.0, %v6590
      %v6592 = vpop.f32.mrb[0].mxu0
      %v6593 = vadd.f32 0.0, %v6592
      %v6594 = vpop.f32.mrb[0].mxu0
      %v6595 = vadd.f32 0.0, %v6594
      %v6596 = vpop.f32.mrb[0].mxu0
      %v6597 = vadd.f32 0.0, %v6596
      %6598 = vmatprep.mubr.bf16.mxu0 0
      %6599 = vmatmul.mubr.bf16.gmra.mrb[0].mxu0 %v4027
      %v6600 = vpop.f32.mrb[0].mxu0
      %v6601 = vadd.f32 0.0, %v6600
      %v6602 = vpop.f32.mrb[0].mxu0
      %v6603 = vadd.f32 0.0, %v6602
      %v6604 = vpop.f32.mrb[0].mxu0
      %v6605 = vadd.f32 0.0, %v6604
      %v6606 = vpop.f32.mrb[0].mxu0
      %v6607 = vadd.f32 0.0, %v6606
      %6608 = vmatprep.mubr.bf16.mxu0 0
      %6609 = vmatmul.mubr.bf16.gmra.mrb[0].mxu0 %v4028
      %v6610 = vpop.f32.mrb[0].mxu0
      %v6611 = vadd.f32 0.0, %v6610
      %v6612 = vpop.f32.mrb[0].mxu0
      %v6613 = vadd.f32 0.0, %v6612
      %v6614 = vpop.f32.mrb[0].mxu0
      %v6615 = vadd.f32 0.0, %v6614
      %v6616 = vpop.f32.mrb[0].mxu0
      %v6617 = vadd.f32 0.0, %v6616
      %6618 = vmatprep.mubr.bf16.mxu0 0
      %6619 = vmatmul.mubr.bf16.gmra.mrb[0].mxu0 %v4029
      %v6620 = vpop.f32.mrb[0].mxu0
      %v6621 = vadd.f32 0.0, %v6620
      %v6622 = vpop.f32.mrb[0].mxu0
      %v6623 = vadd.f32 0.0, %v6622
      %v6624 = vpop.f32.mrb[0].mxu0
      %v6625 = vadd.f32 0.0, %v6624
      %v6626 = vpop.f32.mrb[0].mxu0
      %v6627 = vadd.f32 0.0, %v6626
      %6628 = vmatprep.mubr.bf16.mxu0 0
      %6629 = vmatmul.mubr.bf16.gmra.mrb[0].mxu0 %v4030
      %v6630 = vpop.f32.mrb[0].mxu0
      %v6631 = vadd.f32 0.0, %v6630
      %v6632 = vpop.f32.mrb[0].mxu0
      %v6633 = vadd.f32 0.0, %v6632
      %v6634 = vpop.f32.mrb[0].mxu0
      %v6635 = vadd.f32 0.0, %v6634
      %v6636 = vpop.f32.mrb[0].mxu0
      %v6637 = vadd.f32 0.0, %v6636
      %6638 = vmatprep.mubr.bf16.mxu0 0
      %6639 = vmatmul.mubr.bf16.gmra.mrb[0].mxu0 %v4031
      %v6640 = vpop.f32.mrb[0].mxu0
      %v6641 = vadd.f32 0.0, %v6640
      %v6642 = vpop.f32.mrb[0].mxu0
      %v6643 = vadd.f32 0.0, %v6642
      %v6644 = vpop.f32.mrb[0].mxu0
      %v6645 = vadd.f32 0.0, %v6644
      %v6646 = vpop.f32.mrb[0].mxu0
      %v6647 = vadd.f32 0.0, %v6646
      %6648 = vmatprep.mubr.bf16.mxu0 0
      %6649 = vmatmul.mubr.bf16.gmra.mrb[0].mxu0 %v4032
      %v6650 = vpop.f32.mrb[0].mxu0
      %v6651 = vadd.f32 0.0, %v6650
      %v6652 = vpop.f32.mrb[0].mxu0
      %v6653 = vadd.f32 0.0, %v6652
      %v6654 = vpop.f32.mrb[0].mxu0
      %v6655 = vadd.f32 0.0, %v6654
      %v6656 = vpop.f32.mrb[0].mxu0
      %v6657 = vadd.f32 0.0, %v6656
      %6658 = vmatprep.mubr.bf16.mxu0 0
      %6659 = vmatmul.mubr.bf16.gmra.mrb[0].mxu0 %v4033
      %v6660 = vpop.f32.mrb[0].mxu0
      %v6661 = vadd.f32 0.0, %v6660
      %v6662 = vpop.f32.mrb[0].mxu0
      %v6663 = vadd.f32 0.0, %v6662
      %v6664 = vpop.f32.mrb[0].mxu0
      %v6665 = vadd.f32 0.0, %v6664
      %v6666 = vpop.f32.mrb[0].mxu0
      %v6667 = vadd.f32 0.0, %v6666
      %6668 = vmatprep.mubr.bf16.mxu0 0
      %6669 = vmatmul.mubr.bf16.gmra.mrb[0].mxu0 %v4034
      %v6670 = vpop.f32.mrb[0].mxu0
      %v6671 = vadd.f32 0.0, %v6670
      %v6672 = vpop.f32.mrb[0].mxu0
      %v6673 = vadd.f32 0.0, %v6672
      %v6674 = vpop.f32.mrb[0].mxu0
      %v6675 = vadd.f32 0.0, %v6674
      %v6676 = vpop.f32.mrb[0].mxu0
      %v6677 = vadd.f32 0.0, %v6676
      %6678 = vmatprep.mubr.bf16.mxu0 0
      %6679 = vmatmul.mubr.bf16.gmra.mrb[0].mxu0 %v4035
      %v6680 = vpop.f32.mrb[0].mxu0
      %v6681 = vadd.f32 0.0, %v6680
      %v6682 = vpop.f32.mrb[0].mxu0
      %v6683 = vadd.f32 0.0, %v6682
      %v6684 = vpop.f32.mrb[0].mxu0
      %v6685 = vadd.f32 0.0, %v6684
      %v6686 = vpop.f32.mrb[0].mxu0
      %v6687 = vadd.f32 0.0, %v6686
      %6688 = vmatprep.mubr.bf16.mxu0 0
      %6689 = vmatmul.mubr.bf16.gmra.mrb[0].mxu0 %v4036
      %v6690 = vpop.f32.mrb[0].mxu0
      %v6691 = vadd.f32 0.0, %v6690
      %v6692 = vpop.f32.mrb[0].mxu0
      %v6693 = vadd.f32 0.0, %v6692
      %v6694 = vpop.f32.mrb[0].mxu0
      %v6695 = vadd.f32 0.0, %v6694
      %v6696 = vpop.f32.mrb[0].mxu0
      %v6697 = vadd.f32 0.0, %v6696
      %6698 = vmatprep.mubr.bf16.mxu0 0
      %6699 = vmatmul.mubr.bf16.gmra.mrb[0].mxu0 %v4037
      %v6700 = vpop.f32.mrb[0].mxu0
      %v6701 = vadd.f32 0.0, %v6700
      %v6702 = vpop.f32.mrb[0].mxu0
      %v6703 = vadd.f32 0.0, %v6702
      %v6704 = vpop.f32.mrb[0].mxu0
      %v6705 = vadd.f32 0.0, %v6704
      %v6706 = vpop.f32.mrb[0].mxu0
      %v6707 = vadd.f32 0.0, %v6706
      %6708 = vmatprep.mubr.bf16.mxu0 0
      %6709 = vmatmul.mubr.bf16.gmra.mrb[0].mxu0 %v4038
      %v6710 = vpop.f32.mrb[0].mxu0
      %v6711 = vadd.f32 0.0, %v6710
      %v6712 = vpop.f32.mrb[0].mxu0
      %v6713 = vadd.f32 0.0, %v6712
      %v6714 = vpop.f32.mrb[0].mxu0
      %v6715 = vadd.f32 0.0, %v6714
      %v6716 = vpop.f32.mrb[0].mxu0
      %v6717 = vadd.f32 0.0, %v6716
      %6718 = vmatprep.mubr.bf16.mxu0 0
      %6719 = vmatmul.mubr.bf16.gmra.mrb[0].mxu0 %v4039
      %v6720 = vpop.f32.mrb[0].mxu0
      %v6721 = vadd.f32 0.0, %v6720
      %v6722 = vpop.f32.mrb[0].mxu0
      %v6723 = vadd.f32 0.0, %v6722
      %v6724 = vpop.f32.mrb[0].mxu0
      %v6725 = vadd.f32 0.0, %v6724
      %v6726 = vpop.f32.mrb[0].mxu0
      %v6727 = vadd.f32 0.0, %v6726
      %6728 = vmatprep.mubr.bf16.mxu0 0
      %6729 = vmatmul.mubr.bf16.gmra.mrb[0].mxu0 %v4040
      %v6730 = vpop.f32.mrb[0].mxu0
      %v6731 = vadd.f32 0.0, %v6730
      %v6732 = vpop.f32.mrb[0].mxu0
      %v6733 = vadd.f32 0.0, %v6732
      %v6734 = vpop.f32.mrb[0].mxu0
      %v6735 = vadd.f32 0.0, %v6734
      %v6736 = vpop.f32.mrb[0].mxu0
      %v6737 = vadd.f32 0.0, %v6736
      %6738 = vmatprep.mubr.bf16.mxu0 0
      %6739 = vmatmul.mubr.bf16.gmra.mrb[0].mxu0 %v4041
      %v6740 = vpop.f32.mrb[0].mxu0
      %v6741 = vadd.f32 0.0, %v6740
      %v6742 = vpop.f32.mrb[0].mxu0
      %v6743 = vadd.f32 0.0, %v6742
      %v6744 = vpop.f32.mrb[0].mxu0
      %v6745 = vadd.f32 0.0, %v6744
      %v6746 = vpop.f32.mrb[0].mxu0
      %v6747 = vadd.f32 0.0, %v6746
      %6748 = vmatprep.mubr.bf16.mxu0 0
      %6749 = vmatmul.mubr.bf16.gmra.mrb[0].mxu0 %v4042
      %v6750 = vpop.f32.mrb[0].mxu0
      %v6751 = vadd.f32 0.0, %v6750
      %v6752 = vpop.f32.mrb[0].mxu0
      %v6753 = vadd.f32 0.0, %v6752
      %v6754 = vpop.f32.mrb[0].mxu0
      %v6755 = vadd.f32 0.0, %v6754
      %v6756 = vpop.f32.mrb[0].mxu0
      %v6757 = vadd.f32 0.0, %v6756
      %6758 = vmatprep.mubr.bf16.mxu0 0
      %6759 = vmatmul.mubr.bf16.gmra.mrb[0].mxu0 %v4043
      %v6760 = vpop.f32.mrb[0].mxu0
      %v6761 = vadd.f32 0.0, %v6760
      %v6762 = vpop.f32.mrb[0].mxu0
      %v6763 = vadd.f32 0.0, %v6762
      %v6764 = vpop.f32.mrb[0].mxu0
      %v6765 = vadd.f32 0.0, %v6764
      %v6766 = vpop.f32.mrb[0].mxu0
      %v6767 = vadd.f32 0.0, %v6766
      %6768 = vmatprep.mubr.bf16.mxu0 0
      %6769 = vmatmul.mubr.bf16.gmra.mrb[0].mxu0 %v4044
      %v6770 = vpop.f32.mrb[0].mxu0
      %v6771 = vadd.f32 0.0, %v6770
      %v6772 = vpop.f32.mrb[0].mxu0
      %v6773 = vadd.f32 0.0, %v6772
      %v6774 = vpop.f32.mrb[0].mxu0
      %v6775 = vadd.f32 0.0, %v6774
      %v6776 = vpop.f32.mrb[0].mxu0
      %v6777 = vadd.f32 0.0, %v6776
      %6778 = vmatprep.mubr.bf16.mxu0 0
      %6779 = vmatmul.mubr.bf16.gmra.mrb[0].mxu0 %v4045
      %v6780 = vpop.f32.mrb[0].mxu0
      %v6781 = vadd.f32 0.0, %v6780
      %v6782 = vpop.f32.mrb[0].mxu0
      %v6783 = vadd.f32 0.0, %v6782
      %v6784 = vpop.f32.mrb[0].mxu0
      %v6785 = vadd.f32 0.0, %v6784
      %v6786 = vpop.f32.mrb[0].mxu0
      %v6787 = vadd.f32 0.0, %v6786
      %6788 = vmatprep.mubr.bf16.mxu0 0
      %6789 = vmatmul.mubr.bf16.gmra.mrb[0].mxu0 %v4046
      %v6790 = vpop.f32.mrb[0].mxu0
      %v6791 = vadd.f32 0.0, %v6790
      %v6792 = vpop.f32.mrb[0].mxu0
      %v6793 = vadd.f32 0.0, %v6792
      %v6794 = vpop.f32.mrb[0].mxu0
      %v6795 = vadd.f32 0.0, %v6794
      %v6796 = vpop.f32.mrb[0].mxu0
      %v6797 = vadd.f32 0.0, %v6796
      %6798 = vmatprep.mubr.bf16.mxu0 0
      %6799 = vmatmul.mubr.bf16.gmra.mrb[0].mxu0 %v4047
      %v6800 = vpop.f32.mrb[0].mxu0
      %v6801 = vadd.f32 0.0, %v6800
      %v6802 = vpop.f32.mrb[0].mxu0
      %v6803 = vadd.f32 0.0, %v6802
      %v6804 = vpop.f32.mrb[0].mxu0
      %v6805 = vadd.f32 0.0, %v6804
      %v6806 = vpop.f32.mrb[0].mxu0
      %v6807 = vadd.f32 0.0, %v6806
      %6808 = vmatprep.mubr.bf16.mxu0 0
      %6809 = vmatmul.mubr.bf16.gmra.mrb[0].mxu0 %v4048
      %v6810 = vpop.f32.mrb[0].mxu0
      %v6811 = vadd.f32 0.0, %v6810
      %v6812 = vpop.f32.mrb[0].mxu0
      %v6813 = vadd.f32 0.0, %v6812
      %v6814 = vpop.f32.mrb[0].mxu0
      %v6815 = vadd.f32 0.0, %v6814
      %v6816 = vpop.f32.mrb[0].mxu0
      %v6817 = vadd.f32 0.0, %v6816
      %6818 = vmatprep.mubr.bf16.mxu0 0
      %6819 = vmatmul.mubr.bf16.gmra.mrb[0].mxu0 %v4049
      %v6820 = vpop.f32.mrb[0].mxu0
      %v6821 = vadd.f32 0.0, %v6820
      %v6822 = vpop.f32.mrb[0].mxu0
      %v6823 = vadd.f32 0.0, %v6822
      %v6824 = vpop.f32.mrb[0].mxu0
      %v6825 = vadd.f32 0.0, %v6824
      %v6826 = vpop.f32.mrb[0].mxu0
      %v6827 = vadd.f32 0.0, %v6826
      %6828 = vmatprep.mubr.bf16.mxu0 0
      %6829 = vmatmul.mubr.bf16.gmra.mrb[0].mxu0 %v4050
      %v6830 = vpop.f32.mrb[0].mxu0
      %v6831 = vadd.f32 0.0, %v6830
      %v6832 = vpop.f32.mrb[0].mxu0
      %v6833 = vadd.f32 0.0, %v6832
      %v6834 = vpop.f32.mrb[0].mxu0
      %v6835 = vadd.f32 0.0, %v6834
      %v6836 = vpop.f32.mrb[0].mxu0
      %v6837 = vadd.f32 0.0, %v6836
      %6838 = vmatprep.mubr.bf16.mxu0 0
      %6839 = vmatmul.mubr.bf16.gmra.mrb[0].mxu0 %v4051
      %v6840 = vpop.f32.mrb[0].mxu0
      %v6841 = vadd.f32 0.0, %v6840
      %v6842 = vpop.f32.mrb[0].mxu0
      %v6843 = vadd.f32 0.0, %v6842
      %v6844 = vpop.f32.mrb[0].mxu0
      %v6845 = vadd.f32 0.0, %v6844
      %v6846 = vpop.f32.mrb[0].mxu0
      %v6847 = vadd.f32 0.0, %v6846
      %6848 = vmatprep.mubr.bf16.mxu0 0
      %6849 = vmatmul.mubr.bf16.gmra.mrb[0].mxu0 %v4052
      %v6850 = vpop.f32.mrb[0].mxu0
      %v6851 = vadd.f32 0.0, %v6850
      %v6852 = vpop.f32.mrb[0].mxu0
      %v6853 = vadd.f32 0.0, %v6852
      %v6854 = vpop.f32.mrb[0].mxu0
      %v6855 = vadd.f32 0.0, %v6854
      %v6856 = vpop.f32.mrb[0].mxu0
      %v6857 = vadd.f32 0.0, %v6856
      %6858 = vmatprep.mubr.bf16.mxu0 0
      %6859 = vmatmul.mubr.bf16.gmra.mrb[0].mxu0 %v4053
      %v6860 = vpop.f32.mrb[0].mxu0
      %v6861 = vadd.f32 0.0, %v6860
      %v6862 = vpop.f32.mrb[0].mxu0
      %v6863 = vadd.f32 0.0, %v6862
      %v6864 = vpop.f32.mrb[0].mxu0
      %v6865 = vadd.f32 0.0, %v6864
      %v6866 = vpop.f32.mrb[0].mxu0
      %v6867 = vadd.f32 0.0, %v6866
      %6868 = vmatprep.mubr.bf16.mxu0 0
      %6869 = vmatmul.mubr.bf16.gmra.mrb[0].mxu0 %v4054
      %v6870 = vpop.f32.mrb[0].mxu0
      %v6871 = vadd.f32 0.0, %v6870
      %v6872 = vpop.f32.mrb[0].mxu0
      %v6873 = vadd.f32 0.0, %v6872
      %v6874 = vpop.f32.mrb[0].mxu0
      %v6875 = vadd.f32 0.0, %v6874
      %v6876 = vpop.f32.mrb[0].mxu0
      %v6877 = vadd.f32 0.0, %v6876
      %6878 = vmatprep.mubr.bf16.mxu0 0
      %6879 = vmatmul.mubr.bf16.gmra.mrb[0].mxu0 %v4055
      %v6880 = vpop.f32.mrb[0].mxu0
      %v6881 = vadd.f32 0.0, %v6880
      %v6882 = vpop.f32.mrb[0].mxu0
      %v6883 = vadd.f32 0.0, %v6882
      %v6884 = vpop.f32.mrb[0].mxu0
      %v6885 = vadd.f32 0.0, %v6884
      %v6886 = vpop.f32.mrb[0].mxu0
      %v6887 = vadd.f32 0.0, %v6886
      %6888 = vmatprep.mubr.bf16.mxu0 0
      %6889 = vmatmul.mubr.bf16.gmra.mrb[0].mxu0 %v4056
      %v6890 = vpop.f32.mrb[0].mxu0
      %v6891 = vadd.f32 0.0, %v6890
      %v6892 = vpop.f32.mrb[0].mxu0
      %v6893 = vadd.f32 0.0, %v6892
      %v6894 = vpop.f32.mrb[0].mxu0
      %v6895 = vadd.f32 0.0, %v6894
      %v6896 = vpop.f32.mrb[0].mxu0
      %v6897 = vadd.f32 0.0, %v6896
      %6898 = vmatprep.mubr.bf16.mxu0 0
      %6899 = vmatmul.mubr.bf16.gmra.mrb[0].mxu0 %v4057
      %v6900 = vpop.f32.mrb[0].mxu0
      %v6901 = vadd.f32 0.0, %v6900
      %v6902 = vpop.f32.mrb[0].mxu0
      %v6903 = vadd.f32 0.0, %v6902
      %v6904 = vpop.f32.mrb[0].mxu0
      %v6905 = vadd.f32 0.0, %v6904
      %v6906 = vpop.f32.mrb[0].mxu0
      %v6907 = vadd.f32 0.0, %v6906
      %6908 = vmatprep.mubr.bf16.mxu0 0
      %6909 = vmatmul.mubr.bf16.gmra.mrb[0].mxu0 %v4058
      %v6910 = vpop.f32.mrb[0].mxu0
      %v6911 = vadd.f32 0.0, %v6910
      %v6912 = vpop.f32.mrb[0].mxu0
      %v6913 = vadd.f32 0.0, %v6912
      %v6914 = vpop.f32.mrb[0].mxu0
      %v6915 = vadd.f32 0.0, %v6914
      %v6916 = vpop.f32.mrb[0].mxu0
      %v6917 = vadd.f32 0.0, %v6916
      %6918 = vmatprep.mubr.bf16.mxu0 0
      %6919 = vmatmul.mubr.bf16.gmra.mrb[0].mxu0 %v4059
      %v6920 = vpop.f32.mrb[0].mxu0
      %v6921 = vadd.f32 0.0, %v6920
      %v6922 = vpop.f32.mrb[0].mxu0
      %v6923 = vadd.f32 0.0, %v6922
      %v6924 = vpop.f32.mrb[0].mxu0
      %v6925 = vadd.f32 0.0, %v6924
      %v6926 = vpop.f32.mrb[0].mxu0
      %v6927 = vadd.f32 0.0, %v6926
      %6928 = vmatprep.mubr.bf16.mxu0 0
      %6929 = vmatmul.mubr.bf16.gmra.mrb[0].mxu0 %v4060
      %v6930 = vpop.f32.mrb[0].mxu0
      %v6931 = vadd.f32 0.0, %v6930
      %v6932 = vpop.f32.mrb[0].mxu0
      %v6933 = vadd.f32 0.0, %v6932
      %v6934 = vpop.f32.mrb[0].mxu0
      %v6935 = vadd.f32 0.0, %v6934
      %v6936 = vpop.f32.mrb[0].mxu0
      %v6937 = vadd.f32 0.0, %v6936
      %6938 = vmatprep.mubr.bf16.mxu0 0
      %6939 = vmatmul.mubr.bf16.gmra.mrb[0].mxu0 %v4061
      %v6940 = vpop.f32.mrb[0].mxu0
      %v6941 = vadd.f32 0.0, %v6940
      %v6942 = vpop.f32.mrb[0].mxu0
      %v6943 = vadd.f32 0.0, %v6942
      %v6944 = vpop.f32.mrb[0].mxu0
      %v6945 = vadd.f32 0.0, %v6944
      %v6946 = vpop.f32.mrb[0].mxu0
      %v6947 = vadd.f32 0.0, %v6946
      %6948 = vmatprep.mubr.bf16.mxu0 0
      %6949 = vmatmul.mubr.bf16.gmra.mrb[0].mxu0 %v4062
      %v6950 = vpop.f32.mrb[0].mxu0
      %v6951 = vadd.f32 0.0, %v6950
      %v6952 = vpop.f32.mrb[0].mxu0
      %v6953 = vadd.f32 0.0, %v6952
      %v6954 = vpop.f32.mrb[0].mxu0
      %v6955 = vadd.f32 0.0, %v6954
      %v6956 = vpop.f32.mrb[0].mxu0
      %v6957 = vadd.f32 0.0, %v6956
      %6958 = vmatprep.mubr.bf16.mxu0 0
      %6959 = vmatmul.mubr.bf16.gmra.mrb[0].mxu0 %v4063
      %v6960 = vpop.f32.mrb[0].mxu0
      %v6961 = vadd.f32 0.0, %v6960
      %v6962 = vpop.f32.mrb[0].mxu0
      %v6963 = vadd.f32 0.0, %v6962
      %v6964 = vpop.f32.mrb[0].mxu0
      %v6965 = vadd.f32 0.0, %v6964
      %v6966 = vpop.f32.mrb[0].mxu0
      %v6967 = vadd.f32 0.0, %v6966
      %6968 = vmatprep.mubr.bf16.mxu0 0
      %6969 = vmatmul.mubr.bf16.gmra.mrb[0].mxu0 %v4064
      %v6970 = vpop.f32.mrb[0].mxu0
      %v6971 = vadd.f32 0.0, %v6970
      %v6972 = vpop.f32.mrb[0].mxu0
      %v6973 = vadd.f32 0.0, %v6972
      %v6974 = vpop.f32.mrb[0].mxu0
      %v6975 = vadd.f32 0.0, %v6974
      %v6976 = vpop.f32.mrb[0].mxu0
      %v6977 = vadd.f32 0.0, %v6976
      %6978 = vmatprep.mubr.bf16.mxu0 0
      %6979 = vmatmul.mubr.bf16.gmra.mrb[0].mxu0 %v4065
      %v6980 = vpop.f32.mrb[0].mxu0
      %v6981 = vadd.f32 0.0, %v6980
      %v6982 = vpop.f32.mrb[0].mxu0
      %v6983 = vadd.f32 0.0, %v6982
      %v6984 = vpop.f32.mrb[0].mxu0
      %v6985 = vadd.f32 0.0, %v6984
      %v6986 = vpop.f32.mrb[0].mxu0
      %v6987 = vadd.f32 0.0, %v6986
      %6988 = vmatprep.mubr.bf16.mxu0 0
      %6989 = vmatmul.mubr.bf16.gmra.mrb[0].mxu0 %v4066
      %v6990 = vpop.f32.mrb[0].mxu0
      %v6991 = vadd.f32 0.0, %v6990
      %v6992 = vpop.f32.mrb[0].mxu0
      %v6993 = vadd.f32 0.0, %v6992
      %v6994 = vpop.f32.mrb[0].mxu0
      %v6995 = vadd.f32 0.0, %v6994
      %v6996 = vpop.f32.mrb[0].mxu0
      %v6997 = vadd.f32 0.0, %v6996
      %6998 = vmatprep.mubr.bf16.mxu0 0
      %6999 = vmatmul.mubr.bf16.gmra.mrb[0].mxu0 %v4067
      %v7000 = vpop.f32.mrb[0].mxu0
      %v7001 = vadd.f32 0.0, %v7000
      %v7002 = vpop.f32.mrb[0].mxu0
      %v7003 = vadd.f32 0.0, %v7002
      %v7004 = vpop.f32.mrb[0].mxu0
      %v7005 = vadd.f32 0.0, %v7004
      %v7006 = vpop.f32.mrb[0].mxu0
      %v7007 = vadd.f32 0.0, %v7006
      %7008 = vmatprep.mubr.bf16.mxu0 0
      %7009 = vmatmul.mubr.bf16.gmra.mrb[0].mxu0 %v4068
      %v7010 = vpop.f32.mrb[0].mxu0
      %v7011 = vadd.f32 0.0, %v7010
      %v7012 = vpop.f32.mrb[0].mxu0
      %v7013 = vadd.f32 0.0, %v7012
      %v7014 = vpop.f32.mrb[0].mxu0
      %v7015 = vadd.f32 0.0, %v7014
      %v7016 = vpop.f32.mrb[0].mxu0
      %v7017 = vadd.f32 0.0, %v7016
      %7018 = vmatprep.mubr.bf16.mxu0 0
      %7019 = vmatmul.mubr.bf16.gmra.mrb[0].mxu0 %v4069
      %v7020 = vpop.f32.mrb[0].mxu0
      %v7021 = vadd.f32 0.0, %v7020
      %v7022 = vpop.f32.mrb[0].mxu0
      %v7023 = vadd.f32 0.0, %v7022
      %v7024 = vpop.f32.mrb[0].mxu0
      %v7025 = vadd.f32 0.0, %v7024
      %v7026 = vpop.f32.mrb[0].mxu0
      %v7027 = vadd.f32 0.0, %v7026
      %7028 = vmatprep.mubr.bf16.mxu0 0
      %7029 = vmatmul.mubr.bf16.gmra.mrb[0].mxu0 %v4070
      %v7030 = vpop.f32.mrb[0].mxu0
      %v7031 = vadd.f32 0.0, %v7030
      %v7032 = vpop.f32.mrb[0].mxu0
      %v7033 = vadd.f32 0.0, %v7032
      %v7034 = vpop.f32.mrb[0].mxu0
      %v7035 = vadd.f32 0.0, %v7034
      %v7036 = vpop.f32.mrb[0].mxu0
      %v7037 = vadd.f32 0.0, %v7036
      %7038 = vmatprep.mubr.bf16.mxu0 0
      %7039 = vmatmul.mubr.bf16.gmra.mrb[0].mxu0 %v4071
      %v7040 = vpop.f32.mrb[0].mxu0
      %v7041 = vadd.f32 0.0, %v7040
      %v7042 = vpop.f32.mrb[0].mxu0
      %v7043 = vadd.f32 0.0, %v7042
      %v7044 = vpop.f32.mrb[0].mxu0
      %v7045 = vadd.f32 0.0, %v7044
      %v7046 = vpop.f32.mrb[0].mxu0
      %v7047 = vadd.f32 0.0, %v7046
      %7048 = vmatprep.mubr.bf16.mxu0 0
      %7049 = vmatmul.mubr.bf16.gmra.mrb[0].mxu0 %v4072
      %v7050 = vpop.f32.mrb[0].mxu0
      %v7051 = vadd.f32 0.0, %v7050
      %v7052 = vpop.f32.mrb[0].mxu0
      %v7053 = vadd.f32 0.0, %v7052
      %v7054 = vpop.f32.mrb[0].mxu0
      %v7055 = vadd.f32 0.0, %v7054
      %v7056 = vpop.f32.mrb[0].mxu0
      %v7057 = vadd.f32 0.0, %v7056
      %7058 = vmatprep.mubr.bf16.mxu0 0
      %7059 = vmatmul.mubr.bf16.gmra.mrb[0].mxu0 %v4073
      %v7060 = vpop.f32.mrb[0].mxu0
      %v7061 = vadd.f32 0.0, %v7060
      %v7062 = vpop.f32.mrb[0].mxu0
      %v7063 = vadd.f32 0.0, %v7062
      %v7064 = vpop.f32.mrb[0].mxu0
      %v7065 = vadd.f32 0.0, %v7064
      %v7066 = vpop.f32.mrb[0].mxu0
      %v7067 = vadd.f32 0.0, %v7066
      %7068 = vmatprep.mubr.bf16.mxu0 0
      %7069 = vmatmul.mubr.bf16.gmra.mrb[0].mxu0 %v4074
      %v7070 = vpop.f32.mrb[0].mxu0
      %v7071 = vadd.f32 0.0, %v7070
      %v7072 = vpop.f32.mrb[0].mxu0
      %v7073 = vadd.f32 0.0, %v7072
      %v7074 = vpop.f32.mrb[0].mxu0
      %v7075 = vadd.f32 0.0, %v7074
      %v7076 = vpop.f32.mrb[0].mxu0
      %v7077 = vadd.f32 0.0, %v7076
      %7078 = vmatprep.mubr.bf16.mxu0 0
      %7079 = vmatmul.mubr.bf16.gmra.mrb[0].mxu0 %v4075
      %v7080 = vpop.f32.mrb[0].mxu0
      %v7081 = vadd.f32 0.0, %v7080
      %v7082 = vpop.f32.mrb[0].mxu0
      %v7083 = vadd.f32 0.0, %v7082
      %v7084 = vpop.f32.mrb[0].mxu0
      %v7085 = vadd.f32 0.0, %v7084
      %v7086 = vpop.f32.mrb[0].mxu0
      %v7087 = vadd.f32 0.0, %v7086
      %7088 = vmatprep.mubr.bf16.mxu0 0
      %7089 = vmatmul.mubr.bf16.gmra.mrb[0].mxu0 %v4076
      %v7090 = vpop.f32.mrb[0].mxu0
      %v7091 = vadd.f32 0.0, %v7090
      %v7092 = vpop.f32.mrb[0].mxu0
      %v7093 = vadd.f32 0.0, %v7092
      %v7094 = vpop.f32.mrb[0].mxu0
      %v7095 = vadd.f32 0.0, %v7094
      %v7096 = vpop.f32.mrb[0].mxu0
      %v7097 = vadd.f32 0.0, %v7096
      %7098 = vmatprep.mubr.bf16.mxu0 0
      %7099 = vmatmul.mubr.bf16.gmra.mrb[0].mxu0 %v4077
      %v7100 = vpop.f32.mrb[0].mxu0
      %v7101 = vadd.f32 0.0, %v7100
      %v7102 = vpop.f32.mrb[0].mxu0
      %v7103 = vadd.f32 0.0, %v7102
      %v7104 = vpop.f32.mrb[0].mxu0
      %v7105 = vadd.f32 0.0, %v7104
      %v7106 = vpop.f32.mrb[0].mxu0
      %v7107 = vadd.f32 0.0, %v7106
      %7108 = vmatprep.mubr.bf16.mxu0 0
      %7109 = vmatmul.mubr.bf16.gmra.mrb[0].mxu0 %v4078
      %v7110 = vpop.f32.mrb[0].mxu0
      %v7111 = vadd.f32 0.0, %v7110
      %v7112 = vpop.f32.mrb[0].mxu0
      %v7113 = vadd.f32 0.0, %v7112
      %v7114 = vpop.f32.mrb[0].mxu0
      %v7115 = vadd.f32 0.0, %v7114
      %v7116 = vpop.f32.mrb[0].mxu0
      %v7117 = vadd.f32 0.0, %v7116
      %7118 = vmatprep.mubr.bf16.mxu0 0
      %7119 = vmatmul.mubr.bf16.gmra.mrb[0].mxu0 %v4079
      %v7120 = vpop.f32.mrb[0].mxu0
      %v7121 = vadd.f32 0.0, %v7120
      %v7122 = vpop.f32.mrb[0].mxu0
      %v7123 = vadd.f32 0.0, %v7122
      %v7124 = vpop.f32.mrb[0].mxu0
      %v7125 = vadd.f32 0.0, %v7124
      %v7126 = vpop.f32.mrb[0].mxu0
      %v7127 = vadd.f32 0.0, %v7126
      %7128 = vmatprep.mubr.bf16.mxu0 0
      %7129 = vmatmul.mubr.bf16.gmra.mrb[0].mxu0 %v4080
      %v7130 = vpop.f32.mrb[0].mxu0
      %v7131 = vadd.f32 0.0, %v7130
      %v7132 = vpop.f32.mrb[0].mxu0
      %v7133 = vadd.f32 0.0, %v7132
      %v7134 = vpop.f32.mrb[0].mxu0
      %v7135 = vadd.f32 0.0, %v7134
      %v7136 = vpop.f32.mrb[0].mxu0
      %v7137 = vadd.f32 0.0, %v7136
      %7138 = vmatprep.mubr.bf16.mxu0 0
      %7139 = vmatmul.mubr.bf16.gmra.mrb[0].mxu0 %v4081
      %v7140 = vpop.f32.mrb[0].mxu0
      %v7141 = vadd.f32 0.0, %v7140
      %v7142 = vpop.f32.mrb[0].mxu0
      %v7143 = vadd.f32 0.0, %v7142
      %v7144 = vpop.f32.mrb[0].mxu0
      %v7145 = vadd.f32 0.0, %v7144
      %v7146 = vpop.f32.mrb[0].mxu0
      %v7147 = vadd.f32 0.0, %v7146
      %7148 = vmatprep.mubr.bf16.mxu0 0
      %7149 = vmatmul.mubr.bf16.gmra.mrb[0].mxu0 %v4082
      %v7150 = vpop.f32.mrb[0].mxu0
      %v7151 = vadd.f32 0.0, %v7150
      %v7152 = vpop.f32.mrb[0].mxu0
      %v7153 = vadd.f32 0.0, %v7152
      %v7154 = vpop.f32.mrb[0].mxu0
      %v7155 = vadd.f32 0.0, %v7154
      %v7156 = vpop.f32.mrb[0].mxu0
      %v7157 = vadd.f32 0.0, %v7156
      %7158 = vdwg.mxu0
      %v7159 = vmax.f32 %v4502, %v4506
      %v7160 = vmax.f32 %v7159, %v4512
      %v7161 = vmax.f32 %v7160, %v4516
      %v7162 = vmax.f32 %v7161, %v4522
      %v7163 = vmax.f32 %v7162, %v4526
      %v7164 = vmax.f32 %v7163, %v4532
      %v7165 = vmax.f32 %v7164, %v4536
      %v7166 = vmax.f32 %v7165, %v4542
      %v7167 = vmax.f32 %v7166, %v4546
      %v7168 = vmax.f32 %v7167, %v4552
      %v7169 = vmax.f32 %v7168, %v4556
      %v7170 = vmax.f32 %v7169, %v4562
      %v7171 = vmax.f32 %v7170, %v4566
      %v7172 = vmax.f32 %v7171, %v4572
      %v7173 = vmax.f32 %v7172, %v4576
      %v7174 = vmax.f32 %v7173, %v4582
      %v7175 = vmax.f32 %v7174, %v4586
      %v7176 = vmax.f32 %v7175, %v4592
      %v7177 = vmax.f32 %v7176, %v4596
      %v7178 = vmax.f32 %v7177, %v4602
      %v7179 = vmax.f32 %v7178, %v4606
      %v7180 = vmax.f32 %v7179, %v4612
      %v7181 = vmax.f32 %v7180, %v4616
      %v7182 = vmax.f32 %v7181, %v4622
      %v7183 = vmax.f32 %v7182, %v4626
      %v7184 = vmax.f32 %v7183, %v4632
      %v7185 = vmax.f32 %v7184, %v4636
      %v7186 = vmax.f32 %v7185, %v4642
      %v7187 = vmax.f32 %v7186, %v4646
      %v7188 = vmax.f32 %v7187, %v4652
      %v7189 = vmax.f32 %v7188, %v4656
      %v7190 = vmax.f32 %v7189, %v4662
      %v7191 = vmax.f32 %v7190, %v4666
      %v7192 = vmax.f32 %v7191, %v4672
      %v7193 = vmax.f32 %v7192, %v4676
      %v7194 = vmax.f32 %v7193, %v4682
      %v7195 = vmax.f32 %v7194, %v4686
      %v7196 = vmax.f32 %v7195, %v4692
      %v7197 = vmax.f32 %v7196, %v4696
      %v7198 = vmax.f32 %v7197, %v4702
      %v7199 = vmax.f32 %v7198, %v4706
      %v7200 = vmax.f32 %v7199, %v4712
      %v7201 = vmax.f32 %v7200, %v4716
      %v7202 = vmax.f32 %v7201, %v4722
      %v7203 = vmax.f32 %v7202, %v4726
      %v7204 = vmax.f32 %v7203, %v4732
      %v7205 = vmax.f32 %v7204, %v4736
      %v7206 = vmax.f32 %v7205, %v4742
      %v7207 = vmax.f32 %v7206, %v4746
      %v7208 = vmax.f32 %v7207, %v4752
      %v7209 = vmax.f32 %v7208, %v4756
      %v7210 = vmax.f32 %v7209, %v4762
      %v7211 = vmax.f32 %v7210, %v4766
      %v7212 = vmax.f32 %v7211, %v4772
      %v7213 = vmax.f32 %v7212, %v4776
      %v7214 = vmax.f32 %v7213, %v4782
      %v7215 = vmax.f32 %v7214, %v4786
      %v7216 = vmax.f32 %v7215, %v4792
      %v7217 = vmax.f32 %v7216, %v4796
      %v7218 = vmax.f32 %v7217, %v4802
      %v7219 = vmax.f32 %v7218, %v4806
      %v7220 = vmax.f32 %v7219, %v4812
      %v7221 = vmax.f32 %v7220, %v4816
      %v7222 = vmax.f32 %v7221, %v4822
      %v7223 = vmax.f32 %v7222, %v4826
      %v7224 = vmax.f32 %v7223, %v4832
      %v7225 = vmax.f32 %v7224, %v4836
      %v7226 = vmax.f32 %v7225, %v4842
      %v7227 = vmax.f32 %v7226, %v4846
      %v7228 = vmax.f32 %v7227, %v4852
      %v7229 = vmax.f32 %v7228, %v4856
      %v7230 = vmax.f32 %v7229, %v4862
      %v7231 = vmax.f32 %v7230, %v4866
      %v7232 = vmax.f32 %v7231, %v4872
      %v7233 = vmax.f32 %v7232, %v4876
      %v7234 = vmax.f32 %v7233, %v4882
      %v7235 = vmax.f32 %v7234, %v4886
      %v7236 = vmax.f32 %v7235, %v4892
      %v7237 = vmax.f32 %v7236, %v4896
      %v7238 = vmax.f32 %v7237, %v4902
      %v7239 = vmax.f32 %v7238, %v4906
      %v7240 = vmax.f32 %v7239, %v4912
      %v7241 = vmax.f32 %v7240, %v4916
      %v7242 = vmax.f32 %v7241, %v4922
      %v7243 = vmax.f32 %v7242, %v4926
      %v7244 = vmax.f32 %v7243, %v4932
      %v7245 = vmax.f32 %v7244, %v4936
      %v7246 = vmax.f32 %v7245, %v4942
      %v7247 = vmax.f32 %v7246, %v4946
      %v7248 = vmax.f32 %v7247, %v4952
      %v7249 = vmax.f32 %v7248, %v4956
      %v7250 = vmax.f32 %v7249, %v4962
      %v7251 = vmax.f32 %v7250, %v4966
      %v7252 = vmax.f32 %v7251, %v4972
      %v7253 = vmax.f32 %v7252, %v4976
      %v7254 = vmax.f32 %v7253, %v4982
      %v7255 = vmax.f32 %v7254, %v4986
      %v7256 = vmax.f32 %v7255, %v4992
      %v7257 = vmax.f32 %v7256, %v4996
      %v7258 = vmax.f32 %v7257, %v5002
      %v7259 = vmax.f32 %v7258, %v5006
      %v7260 = vmax.f32 %v7259, %v5012
      %v7261 = vmax.f32 %v7260, %v5016
      %v7262 = vmax.f32 %v7261, %v5022
      %v7263 = vmax.f32 %v7262, %v5026
      %v7264 = vmax.f32 %v7263, %v5032
      %v7265 = vmax.f32 %v7264, %v5036
      %v7266 = vmax.f32 %v7265, %v5042
      %v7267 = vmax.f32 %v7266, %v5046
      %v7268 = vmax.f32 %v7267, %v5052
      %v7269 = vmax.f32 %v7268, %v5056
      %v7270 = vmax.f32 %v7269, %v5062
      %v7271 = vmax.f32 %v7270, %v5066
      %v7272 = vmax.f32 %v7271, %v5072
      %v7273 = vmax.f32 %v7272, %v5076
      %v7274 = vmax.f32 %v7273, %v5082
      %v7275 = vmax.f32 %v7274, %v5086
      %v7276 = vmax.f32 %v7275, %v5092
      %v7277 = vmax.f32 %v7276, %v5096
      %v7278 = vmax.f32 %v7277, %v5102
      %v7279 = vmax.f32 %v7278, %v5106
      %v7280 = vmax.f32 %v7279, %v5112
      %v7281 = vmax.f32 %v7280, %v5116
      %v7282 = vmax.f32 %v7281, %v5122
      %v7283 = vmax.f32 %v7282, %v5126
      %v7284 = vmax.f32 %v7283, %v5132
      %v7285 = vmax.f32 %v7284, %v5136
      %v7286 = vrot.slane %v7285, 4
      %v7287 = vmax.f32 %v7285, %v7286
      %v7288 = vrot.slane %v7287, 2
      %v7289 = vmax.f32 %v7287, %v7288
      %v7290 = vrot.slane %v7289, 1
      %v7291 = vmax.f32 %v7289, %v7290
      %v7292 = vmax.f32 %v4504, %v4508
      %v7293 = vmax.f32 %v7292, %v4514
      %v7294 = vmax.f32 %v7293, %v4518
      %v7295 = vmax.f32 %v7294, %v4524
      %v7296 = vmax.f32 %v7295, %v4528
      %v7297 = vmax.f32 %v7296, %v4534
      %v7298 = vmax.f32 %v7297, %v4538
      %v7299 = vmax.f32 %v7298, %v4544
      %v7300 = vmax.f32 %v7299, %v4548
      %v7301 = vmax.f32 %v7300, %v4554
      %v7302 = vmax.f32 %v7301, %v4558
      %v7303 = vmax.f32 %v7302, %v4564
      %v7304 = vmax.f32 %v7303, %v4568
      %v7305 = vmax.f32 %v7304, %v4574
      %v7306 = vmax.f32 %v7305, %v4578
      %v7307 = vmax.f32 %v7306, %v4584
      %v7308 = vmax.f32 %v7307, %v4588
      %v7309 = vmax.f32 %v7308, %v4594
      %v7310 = vmax.f32 %v7309, %v4598
      %v7311 = vmax.f32 %v7310, %v4604
      %v7312 = vmax.f32 %v7311, %v4608
      %v7313 = vmax.f32 %v7312, %v4614
      %v7314 = vmax.f32 %v7313, %v4618
      %v7315 = vmax.f32 %v7314, %v4624
      %v7316 = vmax.f32 %v7315, %v4628
      %v7317 = vmax.f32 %v7316, %v4634
      %v7318 = vmax.f32 %v7317, %v4638
      %v7319 = vmax.f32 %v7318, %v4644
      %v7320 = vmax.f32 %v7319, %v4648
      %v7321 = vmax.f32 %v7320, %v4654
      %v7322 = vmax.f32 %v7321, %v4658
      %v7323 = vmax.f32 %v7322, %v4664
      %v7324 = vmax.f32 %v7323, %v4668
      %v7325 = vmax.f32 %v7324, %v4674
      %v7326 = vmax.f32 %v7325, %v4678
      %v7327 = vmax.f32 %v7326, %v4684
      %v7328 = vmax.f32 %v7327, %v4688
      %v7329 = vmax.f32 %v7328, %v4694
      %v7330 = vmax.f32 %v7329, %v4698
      %v7331 = vmax.f32 %v7330, %v4704
      %v7332 = vmax.f32 %v7331, %v4708
      %v7333 = vmax.f32 %v7332, %v4714
      %v7334 = vmax.f32 %v7333, %v4718
      %v7335 = vmax.f32 %v7334, %v4724
      %v7336 = vmax.f32 %v7335, %v4728
      %v7337 = vmax.f32 %v7336, %v4734
      %v7338 = vmax.f32 %v7337, %v4738
      %v7339 = vmax.f32 %v7338, %v4744
      %v7340 = vmax.f32 %v7339, %v4748
      %v7341 = vmax.f32 %v7340, %v4754
      %v7342 = vmax.f32 %v7341, %v4758
      %v7343 = vmax.f32 %v7342, %v4764
      %v7344 = vmax.f32 %v7343, %v4768
      %v7345 = vmax.f32 %v7344, %v4774
      %v7346 = vmax.f32 %v7345, %v4778
      %v7347 = vmax.f32 %v7346, %v4784
      %v7348 = vmax.f32 %v7347, %v4788
      %v7349 = vmax.f32 %v7348, %v4794
      %v7350 = vmax.f32 %v7349, %v4798
      %v7351 = vmax.f32 %v7350, %v4804
      %v7352 = vmax.f32 %v7351, %v4808
      %v7353 = vmax.f32 %v7352, %v4814
      %v7354 = vmax.f32 %v7353, %v4818
      %v7355 = vmax.f32 %v7354, %v4824
      %v7356 = vmax.f32 %v7355, %v4828
      %v7357 = vmax.f32 %v7356, %v4834
      %v7358 = vmax.f32 %v7357, %v4838
      %v7359 = vmax.f32 %v7358, %v4844
      %v7360 = vmax.f32 %v7359, %v4848
      %v7361 = vmax.f32 %v7360, %v4854
      %v7362 = vmax.f32 %v7361, %v4858
      %v7363 = vmax.f32 %v7362, %v4864
      %v7364 = vmax.f32 %v7363, %v4868
      %v7365 = vmax.f32 %v7364, %v4874
      %v7366 = vmax.f32 %v7365, %v4878
      %v7367 = vmax.f32 %v7366, %v4884
      %v7368 = vmax.f32 %v7367, %v4888
      %v7369 = vmax.f32 %v7368, %v4894
      %v7370 = vmax.f32 %v7369, %v4898
      %v7371 = vmax.f32 %v7370, %v4904
      %v7372 = vmax.f32 %v7371, %v4908
      %v7373 = vmax.f32 %v7372, %v4914
      %v7374 = vmax.f32 %v7373, %v4918
      %v7375 = vmax.f32 %v7374, %v4924
      %v7376 = vmax.f32 %v7375, %v4928
      %v7377 = vmax.f32 %v7376, %v4934
      %v7378 = vmax.f32 %v7377, %v4938
      %v7379 = vmax.f32 %v7378, %v4944
      %v7380 = vmax.f32 %v7379, %v4948
      %v7381 = vmax.f32 %v7380, %v4954
      %v7382 = vmax.f32 %v7381, %v4958
      %v7383 = vmax.f32 %v7382, %v4964
      %v7384 = vmax.f32 %v7383, %v4968
      %v7385 = vmax.f32 %v7384, %v4974
      %v7386 = vmax.f32 %v7385, %v4978
      %v7387 = vmax.f32 %v7386, %v4984
      %v7388 = vmax.f32 %v7387, %v4988
      %v7389 = vmax.f32 %v7388, %v4994
      %v7390 = vmax.f32 %v7389, %v4998
      %v7391 = vmax.f32 %v7390, %v5004
      %v7392 = vmax.f32 %v7391, %v5008
      %v7393 = vmax.f32 %v7392, %v5014
      %v7394 = vmax.f32 %v7393, %v5018
      %v7395 = vmax.f32 %v7394, %v5024
      %v7396 = vmax.f32 %v7395, %v5028
      %v7397 = vmax.f32 %v7396, %v5034
      %v7398 = vmax.f32 %v7397, %v5038
      %v7399 = vmax.f32 %v7398, %v5044
      %v7400 = vmax.f32 %v7399, %v5048
      %v7401 = vmax.f32 %v7400, %v5054
      %v7402 = vmax.f32 %v7401, %v5058
      %v7403 = vmax.f32 %v7402, %v5064
      %v7404 = vmax.f32 %v7403, %v5068
      %v7405 = vmax.f32 %v7404, %v5074
      %v7406 = vmax.f32 %v7405, %v5078
      %v7407 = vmax.f32 %v7406, %v5084
      %v7408 = vmax.f32 %v7407, %v5088
      %v7409 = vmax.f32 %v7408, %v5094
      %v7410 = vmax.f32 %v7409, %v5098
      %v7411 = vmax.f32 %v7410, %v5104
      %v7412 = vmax.f32 %v7411, %v5108
      %v7413 = vmax.f32 %v7412, %v5114
      %v7414 = vmax.f32 %v7413, %v5118
      %v7415 = vmax.f32 %v7414, %v5124
      %v7416 = vmax.f32 %v7415, %v5128
      %v7417 = vmax.f32 %v7416, %v5134
      %v7418 = vmax.f32 %v7417, %v5138
      %v7419 = vrot.slane %v7418, 4
      %v7420 = vmax.f32 %v7418, %v7419
      %v7421 = vrot.slane %v7420, 2
      %v7422 = vmax.f32 %v7420, %v7421
      %v7423 = vrot.slane %v7422, 1
      %v7424 = vmax.f32 %v7422, %v7423
      %v7425 = vmax.f32 %v5175, %v5179
      %v7426 = vmax.f32 %v7425, %v5185
      %v7427 = vmax.f32 %v7426, %v5189
      %v7428 = vmax.f32 %v7427, %v5195
      %v7429 = vmax.f32 %v7428, %v5199
      %v7430 = vmax.f32 %v7429, %v5205
      %v7431 = vmax.f32 %v7430, %v5209
      %v7432 = vmax.f32 %v7431, %v5215
      %v7433 = vmax.f32 %v7432, %v5219
      %v7434 = vmax.f32 %v7433, %v5225
      %v7435 = vmax.f32 %v7434, %v5229
      %v7436 = vmax.f32 %v7435, %v5235
      %v7437 = vmax.f32 %v7436, %v5239
      %v7438 = vmax.f32 %v7437, %v5245
      %v7439 = vmax.f32 %v7438, %v5249
      %v7440 = vmax.f32 %v7439, %v5255
      %v7441 = vmax.f32 %v7440, %v5259
      %v7442 = vmax.f32 %v7441, %v5265
      %v7443 = vmax.f32 %v7442, %v5269
      %v7444 = vmax.f32 %v7443, %v5275
      %v7445 = vmax.f32 %v7444, %v5279
      %v7446 = vmax.f32 %v7445, %v5285
      %v7447 = vmax.f32 %v7446, %v5289
      %v7448 = vmax.f32 %v7447, %v5295
      %v7449 = vmax.f32 %v7448, %v5299
      %v7450 = vmax.f32 %v7449, %v5305
      %v7451 = vmax.f32 %v7450, %v5309
      %v7452 = vmax.f32 %v7451, %v5315
      %v7453 = vmax.f32 %v7452, %v5319
      %v7454 = vmax.f32 %v7453, %v5325
      %v7455 = vmax.f32 %v7454, %v5329
      %v7456 = vmax.f32 %v7455, %v5335
      %v7457 = vmax.f32 %v7456, %v5339
      %v7458 = vmax.f32 %v7457, %v5345
      %v7459 = vmax.f32 %v7458, %v5349
      %v7460 = vmax.f32 %v7459, %v5355
      %v7461 = vmax.f32 %v7460, %v5359
      %v7462 = vmax.f32 %v7461, %v5365
      %v7463 = vmax.f32 %v7462, %v5369
      %v7464 = vmax.f32 %v7463, %v5375
      %v7465 = vmax.f32 %v7464, %v5379
      %v7466 = vmax.f32 %v7465, %v5385
      %v7467 = vmax.f32 %v7466, %v5389
      %v7468 = vmax.f32 %v7467, %v5395
      %v7469 = vmax.f32 %v7468, %v5399
      %v7470 = vmax.f32 %v7469, %v5405
      %v7471 = vmax.f32 %v7470, %v5409
      %v7472 = vmax.f32 %v7471, %v5415
      %v7473 = vmax.f32 %v7472, %v5419
      %v7474 = vmax.f32 %v7473, %v5425
      %v7475 = vmax.f32 %v7474, %v5429
      %v7476 = vmax.f32 %v7475, %v5435
      %v7477 = vmax.f32 %v7476, %v5439
      %v7478 = vmax.f32 %v7477, %v5445
      %v7479 = vmax.f32 %v7478, %v5449
      %v7480 = vmax.f32 %v7479, %v5455
      %v7481 = vmax.f32 %v7480, %v5459
      %v7482 = vmax.f32 %v7481, %v5465
      %v7483 = vmax.f32 %v7482, %v5469
      %v7484 = vmax.f32 %v7483, %v5475
      %v7485 = vmax.f32 %v7484, %v5479
      %v7486 = vmax.f32 %v7485, %v5485
      %v7487 = vmax.f32 %v7486, %v5489
      %v7488 = vmax.f32 %v7487, %v5495
      %v7489 = vmax.f32 %v7488, %v5499
      %v7490 = vmax.f32 %v7489, %v5505
      %v7491 = vmax.f32 %v7490, %v5509
      %v7492 = vmax.f32 %v7491, %v5515
      %v7493 = vmax.f32 %v7492, %v5519
      %v7494 = vmax.f32 %v7493, %v5525
      %v7495 = vmax.f32 %v7494, %v5529
      %v7496 = vmax.f32 %v7495, %v5535
      %v7497 = vmax.f32 %v7496, %v5539
      %v7498 = vmax.f32 %v7497, %v5545
      %v7499 = vmax.f32 %v7498, %v5549
      %v7500 = vmax.f32 %v7499, %v5555
      %v7501 = vmax.f32 %v7500, %v5559
      %v7502 = vmax.f32 %v7501, %v5565
      %v7503 = vmax.f32 %v7502, %v5569
      %v7504 = vmax.f32 %v7503, %v5575
      %v7505 = vmax.f32 %v7504, %v5579
      %v7506 = vmax.f32 %v7505, %v5585
      %v7507 = vmax.f32 %v7506, %v5589
      %v7508 = vmax.f32 %v7507, %v5595
      %v7509 = vmax.f32 %v7508, %v5599
      %v7510 = vmax.f32 %v7509, %v5605
      %v7511 = vmax.f32 %v7510, %v5609
      %v7512 = vmax.f32 %v7511, %v5615
      %v7513 = vmax.f32 %v7512, %v5619
      %v7514 = vmax.f32 %v7513, %v5625
      %v7515 = vmax.f32 %v7514, %v5629
      %v7516 = vmax.f32 %v7515, %v5635
      %v7517 = vmax.f32 %v7516, %v5639
      %v7518 = vmax.f32 %v7517, %v5645
      %v7519 = vmax.f32 %v7518, %v5649
      %v7520 = vmax.f32 %v7519, %v5655
      %v7521 = vmax.f32 %v7520, %v5659
      %v7522 = vmax.f32 %v7521, %v5665
      %v7523 = vmax.f32 %v7522, %v5669
      %v7524 = vmax.f32 %v7523, %v5675
      %v7525 = vmax.f32 %v7524, %v5679
      %v7526 = vmax.f32 %v7525, %v5685
      %v7527 = vmax.f32 %v7526, %v5689
      %v7528 = vmax.f32 %v7527, %v5695
      %v7529 = vmax.f32 %v7528, %v5699
      %v7530 = vmax.f32 %v7529, %v5705
      %v7531 = vmax.f32 %v7530, %v5709
      %v7532 = vmax.f32 %v7531, %v5715
      %v7533 = vmax.f32 %v7532, %v5719
      %v7534 = vmax.f32 %v7533, %v5725
      %v7535 = vmax.f32 %v7534, %v5729
      %v7536 = vmax.f32 %v7535, %v5735
      %v7537 = vmax.f32 %v7536, %v5739
      %v7538 = vmax.f32 %v7537, %v5745
      %v7539 = vmax.f32 %v7538, %v5749
      %v7540 = vmax.f32 %v7539, %v5755
      %v7541 = vmax.f32 %v7540, %v5759
      %v7542 = vmax.f32 %v7541, %v5765
      %v7543 = vmax.f32 %v7542, %v5769
      %v7544 = vmax.f32 %v7543, %v5775
      %v7545 = vmax.f32 %v7544, %v5779
      %v7546 = vmax.f32 %v7545, %v5785
      %v7547 = vmax.f32 %v7546, %v5789
      %v7548 = vmax.f32 %v7547, %v5795
      %v7549 = vmax.f32 %v7548, %v5799
      %v7550 = vmax.f32 %v7549, %v5805
      %v7551 = vmax.f32 %v7550, %v5809
      %v7552 = vrot.slane %v7551, 4
      %v7553 = vmax.f32 %v7551, %v7552
      %v7554 = vrot.slane %v7553, 2
      %v7555 = vmax.f32 %v7553, %v7554
      %v7556 = vrot.slane %v7555, 1
      %v7557 = vmax.f32 %v7555, %v7556
      %v7558 = vmax.f32 %v5177, %v5181
      %v7559 = vmax.f32 %v7558, %v5187
      %v7560 = vmax.f32 %v7559, %v5191
      %v7561 = vmax.f32 %v7560, %v5197
      %v7562 = vmax.f32 %v7561, %v5201
      %v7563 = vmax.f32 %v7562, %v5207
      %v7564 = vmax.f32 %v7563, %v5211
      %v7565 = vmax.f32 %v7564, %v5217
      %v7566 = vmax.f32 %v7565, %v5221
      %v7567 = vmax.f32 %v7566, %v5227
      %v7568 = vmax.f32 %v7567, %v5231
      %v7569 = vmax.f32 %v7568, %v5237
      %v7570 = vmax.f32 %v7569, %v5241
      %v7571 = vmax.f32 %v7570, %v5247
      %v7572 = vmax.f32 %v7571, %v5251
      %v7573 = vmax.f32 %v7572, %v5257
      %v7574 = vmax.f32 %v7573, %v5261
      %v7575 = vmax.f32 %v7574, %v5267
      %v7576 = vmax.f32 %v7575, %v5271
      %v7577 = vmax.f32 %v7576, %v5277
      %v7578 = vmax.f32 %v7577, %v5281
      %v7579 = vmax.f32 %v7578, %v5287
      %v7580 = vmax.f32 %v7579, %v5291
      %v7581 = vmax.f32 %v7580, %v5297
      %v7582 = vmax.f32 %v7581, %v5301
      %v7583 = vmax.f32 %v7582, %v5307
      %v7584 = vmax.f32 %v7583, %v5311
      %v7585 = vmax.f32 %v7584, %v5317
      %v7586 = vmax.f32 %v7585, %v5321
      %v7587 = vmax.f32 %v7586, %v5327
      %v7588 = vmax.f32 %v7587, %v5331
      %v7589 = vmax.f32 %v7588, %v5337
      %v7590 = vmax.f32 %v7589, %v5341
      %v7591 = vmax.f32 %v7590, %v5347
      %v7592 = vmax.f32 %v7591, %v5351
      %v7593 = vmax.f32 %v7592, %v5357
      %v7594 = vmax.f32 %v7593, %v5361
      %v7595 = vmax.f32 %v7594, %v5367
      %v7596 = vmax.f32 %v7595, %v5371
      %v7597 = vmax.f32 %v7596, %v5377
      %v7598 = vmax.f32 %v7597, %v5381
      %v7599 = vmax.f32 %v7598, %v5387
      %v7600 = vmax.f32 %v7599, %v5391
      %v7601 = vmax.f32 %v7600, %v5397
      %v7602 = vmax.f32 %v7601, %v5401
      %v7603 = vmax.f32 %v7602, %v5407
      %v7604 = vmax.f32 %v7603, %v5411
      %v7605 = vmax.f32 %v7604, %v5417
      %v7606 = vmax.f32 %v7605, %v5421
      %v7607 = vmax.f32 %v7606, %v5427
      %v7608 = vmax.f32 %v7607, %v5431
      %v7609 = vmax.f32 %v7608, %v5437
      %v7610 = vmax.f32 %v7609, %v5441
      %v7611 = vmax.f32 %v7610, %v5447
      %v7612 = vmax.f32 %v7611, %v5451
      %v7613 = vmax.f32 %v7612, %v5457
      %v7614 = vmax.f32 %v7613, %v5461
      %v7615 = vmax.f32 %v7614, %v5467
      %v7616 = vmax.f32 %v7615, %v5471
      %v7617 = vmax.f32 %v7616, %v5477
      %v7618 = vmax.f32 %v7617, %v5481
      %v7619 = vmax.f32 %v7618, %v5487
      %v7620 = vmax.f32 %v7619, %v5491
      %v7621 = vmax.f32 %v7620, %v5497
      %v7622 = vmax.f32 %v7621, %v5501
      %v7623 = vmax.f32 %v7622, %v5507
      %v7624 = vmax.f32 %v7623, %v5511
      %v7625 = vmax.f32 %v7624, %v5517
      %v7626 = vmax.f32 %v7625, %v5521
      %v7627 = vmax.f32 %v7626, %v5527
      %v7628 = vmax.f32 %v7627, %v5531
      %v7629 = vmax.f32 %v7628, %v5537
      %v7630 = vmax.f32 %v7629, %v5541
      %v7631 = vmax.f32 %v7630, %v5547
      %v7632 = vmax.f32 %v7631, %v5551
      %v7633 = vmax.f32 %v7632, %v5557
      %v7634 = vmax.f32 %v7633, %v5561
      %v7635 = vmax.f32 %v7634, %v5567
      %v7636 = vmax.f32 %v7635, %v5571
      %v7637 = vmax.f32 %v7636, %v5577
      %v7638 = vmax.f32 %v7637, %v5581
      %v7639 = vmax.f32 %v7638, %v5587
      %v7640 = vmax.f32 %v7639, %v5591
      %v7641 = vmax.f32 %v7640, %v5597
      %v7642 = vmax.f32 %v7641, %v5601
      %v7643 = vmax.f32 %v7642, %v5607
      %v7644 = vmax.f32 %v7643, %v5611
      %v7645 = vmax.f32 %v7644, %v5617
      %v7646 = vmax.f32 %v7645, %v5621
      %v7647 = vmax.f32 %v7646, %v5627
      %v7648 = vmax.f32 %v7647, %v5631
      %v7649 = vmax.f32 %v7648, %v5637
      %v7650 = vmax.f32 %v7649, %v5641
      %v7651 = vmax.f32 %v7650, %v5647
      %v7652 = vmax.f32 %v7651, %v5651
      %v7653 = vmax.f32 %v7652, %v5657
      %v7654 = vmax.f32 %v7653, %v5661
      %v7655 = vmax.f32 %v7654, %v5667
      %v7656 = vmax.f32 %v7655, %v5671
      %v7657 = vmax.f32 %v7656, %v5677
      %v7658 = vmax.f32 %v7657, %v5681
      %v7659 = vmax.f32 %v7658, %v5687
      %v7660 = vmax.f32 %v7659, %v5691
      %v7661 = vmax.f32 %v7660, %v5697
      %v7662 = vmax.f32 %v7661, %v5701
      %v7663 = vmax.f32 %v7662, %v5707
      %v7664 = vmax.f32 %v7663, %v5711
      %v7665 = vmax.f32 %v7664, %v5717
      %v7666 = vmax.f32 %v7665, %v5721
      %v7667 = vmax.f32 %v7666, %v5727
      %v7668 = vmax.f32 %v7667, %v5731
      %v7669 = vmax.f32 %v7668, %v5737
      %v7670 = vmax.f32 %v7669, %v5741
      %v7671 = vmax.f32 %v7670, %v5747
      %v7672 = vmax.f32 %v7671, %v5751
      %v7673 = vmax.f32 %v7672, %v5757
      %v7674 = vmax.f32 %v7673, %v5761
      %v7675 = vmax.f32 %v7674, %v5767
      %v7676 = vmax.f32 %v7675, %v5771
      %v7677 = vmax.f32 %v7676, %v5777
      %v7678 = vmax.f32 %v7677, %v5781
      %v7679 = vmax.f32 %v7678, %v5787
      %v7680 = vmax.f32 %v7679, %v5791
      %v7681 = vmax.f32 %v7680, %v5797
      %v7682 = vmax.f32 %v7681, %v5801
      %v7683 = vmax.f32 %v7682, %v5807
      %v7684 = vmax.f32 %v7683, %v5811
      %v7685 = vrot.slane %v7684, 4
      %v7686 = vmax.f32 %v7684, %v7685
      %v7687 = vrot.slane %v7686, 2
      %v7688 = vmax.f32 %v7686, %v7687
      %v7689 = vrot.slane %v7688, 1
      %v7690 = vmax.f32 %v7688, %v7689
      %v7691 = vmax.f32 %v5848, %v5852
      %v7692 = vmax.f32 %v7691, %v5858
      %v7693 = vmax.f32 %v7692, %v5862
      %v7694 = vmax.f32 %v7693, %v5868
      %v7695 = vmax.f32 %v7694, %v5872
      %v7696 = vmax.f32 %v7695, %v5878
      %v7697 = vmax.f32 %v7696, %v5882
      %v7698 = vmax.f32 %v7697, %v5888
      %v7699 = vmax.f32 %v7698, %v5892
      %v7700 = vmax.f32 %v7699, %v5898
      %v7701 = vmax.f32 %v7700, %v5902
      %v7702 = vmax.f32 %v7701, %v5908
      %v7703 = vmax.f32 %v7702, %v5912
      %v7704 = vmax.f32 %v7703, %v5918
      %v7705 = vmax.f32 %v7704, %v5922
      %v7706 = vmax.f32 %v7705, %v5928
      %v7707 = vmax.f32 %v7706, %v5932
      %v7708 = vmax.f32 %v7707, %v5938
      %v7709 = vmax.f32 %v7708, %v5942
      %v7710 = vmax.f32 %v7709, %v5948
      %v7711 = vmax.f32 %v7710, %v5952
      %v7712 = vmax.f32 %v7711, %v5958
      %v7713 = vmax.f32 %v7712, %v5962
      %v7714 = vmax.f32 %v7713, %v5968
      %v7715 = vmax.f32 %v7714, %v5972
      %v7716 = vmax.f32 %v7715, %v5978
      %v7717 = vmax.f32 %v7716, %v5982
      %v7718 = vmax.f32 %v7717, %v5988
      %v7719 = vmax.f32 %v7718, %v5992
      %v7720 = vmax.f32 %v7719, %v5998
      %v7721 = vmax.f32 %v7720, %v6002
      %v7722 = vmax.f32 %v7721, %v6008
      %v7723 = vmax.f32 %v7722, %v6012
      %v7724 = vmax.f32 %v7723, %v6018
      %v7725 = vmax.f32 %v7724, %v6022
      %v7726 = vmax.f32 %v7725, %v6028
      %v7727 = vmax.f32 %v7726, %v6032
      %v7728 = vmax.f32 %v7727, %v6038
      %v7729 = vmax.f32 %v7728, %v6042
      %v7730 = vmax.f32 %v7729, %v6048
      %v7731 = vmax.f32 %v7730, %v6052
      %v7732 = vmax.f32 %v7731, %v6058
      %v7733 = vmax.f32 %v7732, %v6062
      %v7734 = vmax.f32 %v7733, %v6068
      %v7735 = vmax.f32 %v7734, %v6072
      %v7736 = vmax.f32 %v7735, %v6078
      %v7737 = vmax.f32 %v7736, %v6082
      %v7738 = vmax.f32 %v7737, %v6088
      %v7739 = vmax.f32 %v7738, %v6092
      %v7740 = vmax.f32 %v7739, %v6098
      %v7741 = vmax.f32 %v7740, %v6102
      %v7742 = vmax.f32 %v7741, %v6108
      %v7743 = vmax.f32 %v7742, %v6112
      %v7744 = vmax.f32 %v7743, %v6118
      %v7745 = vmax.f32 %v7744, %v6122
      %v7746 = vmax.f32 %v7745, %v6128
      %v7747 = vmax.f32 %v7746, %v6132
      %v7748 = vmax.f32 %v7747, %v6138
      %v7749 = vmax.f32 %v7748, %v6142
      %v7750 = vmax.f32 %v7749, %v6148
      %v7751 = vmax.f32 %v7750, %v6152
      %v7752 = vmax.f32 %v7751, %v6158
      %v7753 = vmax.f32 %v7752, %v6162
      %v7754 = vmax.f32 %v7753, %v6168
      %v7755 = vmax.f32 %v7754, %v6172
      %v7756 = vmax.f32 %v7755, %v6178
      %v7757 = vmax.f32 %v7756, %v6182
      %v7758 = vmax.f32 %v7757, %v6188
      %v7759 = vmax.f32 %v7758, %v6192
      %v7760 = vmax.f32 %v7759, %v6198
      %v7761 = vmax.f32 %v7760, %v6202
      %v7762 = vmax.f32 %v7761, %v6208
      %v7763 = vmax.f32 %v7762, %v6212
      %v7764 = vmax.f32 %v7763, %v6218
      %v7765 = vmax.f32 %v7764, %v6222
      %v7766 = vmax.f32 %v7765, %v6228
      %v7767 = vmax.f32 %v7766, %v6232
      %v7768 = vmax.f32 %v7767, %v6238
      %v7769 = vmax.f32 %v7768, %v6242
      %v7770 = vmax.f32 %v7769, %v6248
      %v7771 = vmax.f32 %v7770, %v6252
      %v7772 = vmax.f32 %v7771, %v6258
      %v7773 = vmax.f32 %v7772, %v6262
      %v7774 = vmax.f32 %v7773, %v6268
      %v7775 = vmax.f32 %v7774, %v6272
      %v7776 = vmax.f32 %v7775, %v6278
      %v7777 = vmax.f32 %v7776, %v6282
      %v7778 = vmax.f32 %v7777, %v6288
      %v7779 = vmax.f32 %v7778, %v6292
      %v7780 = vmax.f32 %v7779, %v6298
      %v7781 = vmax.f32 %v7780, %v6302
      %v7782 = vmax.f32 %v7781, %v6308
      %v7783 = vmax.f32 %v7782, %v6312
      %v7784 = vmax.f32 %v7783, %v6318
      %v7785 = vmax.f32 %v7784, %v6322
      %v7786 = vmax.f32 %v7785, %v6328
      %v7787 = vmax.f32 %v7786, %v6332
      %v7788 = vmax.f32 %v7787, %v6338
      %v7789 = vmax.f32 %v7788, %v6342
      %v7790 = vmax.f32 %v7789, %v6348
      %v7791 = vmax.f32 %v7790, %v6352
      %v7792 = vmax.f32 %v7791, %v6358
      %v7793 = vmax.f32 %v7792, %v6362
      %v7794 = vmax.f32 %v7793, %v6368
      %v7795 = vmax.f32 %v7794, %v6372
      %v7796 = vmax.f32 %v7795, %v6378
      %v7797 = vmax.f32 %v7796, %v6382
      %v7798 = vmax.f32 %v7797, %v6388
      %v7799 = vmax.f32 %v7798, %v6392
      %v7800 = vmax.f32 %v7799, %v6398
      %v7801 = vmax.f32 %v7800, %v6402
      %v7802 = vmax.f32 %v7801, %v6408
      %v7803 = vmax.f32 %v7802, %v6412
      %v7804 = vmax.f32 %v7803, %v6418
      %v7805 = vmax.f32 %v7804, %v6422
      %v7806 = vmax.f32 %v7805, %v6428
      %v7807 = vmax.f32 %v7806, %v6432
      %v7808 = vmax.f32 %v7807, %v6438
      %v7809 = vmax.f32 %v7808, %v6442
      %v7810 = vmax.f32 %v7809, %v6448
      %v7811 = vmax.f32 %v7810, %v6452
      %v7812 = vmax.f32 %v7811, %v6458
      %v7813 = vmax.f32 %v7812, %v6462
      %v7814 = vmax.f32 %v7813, %v6468
      %v7815 = vmax.f32 %v7814, %v6472
      %v7816 = vmax.f32 %v7815, %v6478
      %v7817 = vmax.f32 %v7816, %v6482
      %v7818 = vrot.slane %v7817, 4
      %v7819 = vmax.f32 %v7817, %v7818
      %v7820 = vrot.slane %v7819, 2
      %v7821 = vmax.f32 %v7819, %v7820
      %v7822 = vrot.slane %v7821, 1
      %v7823 = vmax.f32 %v7821, %v7822
      %v7824 = vmax.f32 %v5850, %v5854
      %v7825 = vmax.f32 %v7824, %v5860
      %v7826 = vmax.f32 %v7825, %v5864
      %v7827 = vmax.f32 %v7826, %v5870
      %v7828 = vmax.f32 %v7827, %v5874
      %v7829 = vmax.f32 %v7828, %v5880
      %v7830 = vmax.f32 %v7829, %v5884
      %v7831 = vmax.f32 %v7830, %v5890
      %v7832 = vmax.f32 %v7831, %v5894
      %v7833 = vmax.f32 %v7832, %v5900
      %v7834 = vmax.f32 %v7833, %v5904
      %v7835 = vmax.f32 %v7834, %v5910
      %v7836 = vmax.f32 %v7835, %v5914
      %v7837 = vmax.f32 %v7836, %v5920
      %v7838 = vmax.f32 %v7837, %v5924
      %v7839 = vmax.f32 %v7838, %v5930
      %v7840 = vmax.f32 %v7839, %v5934
      %v7841 = vmax.f32 %v7840, %v5940
      %v7842 = vmax.f32 %v7841, %v5944
      %v7843 = vmax.f32 %v7842, %v5950
      %v7844 = vmax.f32 %v7843, %v5954
      %v7845 = vmax.f32 %v7844, %v5960
      %v7846 = vmax.f32 %v7845, %v5964
      %v7847 = vmax.f32 %v7846, %v5970
      %v7848 = vmax.f32 %v7847, %v5974
      %v7849 = vmax.f32 %v7848, %v5980
      %v7850 = vmax.f32 %v7849, %v5984
      %v7851 = vmax.f32 %v7850, %v5990
      %v7852 = vmax.f32 %v7851, %v5994
      %v7853 = vmax.f32 %v7852, %v6000
      %v7854 = vmax.f32 %v7853, %v6004
      %v7855 = vmax.f32 %v7854, %v6010
      %v7856 = vmax.f32 %v7855, %v6014
      %v7857 = vmax.f32 %v7856, %v6020
      %v7858 = vmax.f32 %v7857, %v6024
      %v7859 = vmax.f32 %v7858, %v6030
      %v7860 = vmax.f32 %v7859, %v6034
      %v7861 = vmax.f32 %v7860, %v6040
      %v7862 = vmax.f32 %v7861, %v6044
      %v7863 = vmax.f32 %v7862, %v6050
      %v7864 = vmax.f32 %v7863, %v6054
      %v7865 = vmax.f32 %v7864, %v6060
      %v7866 = vmax.f32 %v7865, %v6064
      %v7867 = vmax.f32 %v7866, %v6070
      %v7868 = vmax.f32 %v7867, %v6074
      %v7869 = vmax.f32 %v7868, %v6080
      %v7870 = vmax.f32 %v7869, %v6084
      %v7871 = vmax.f32 %v7870, %v6090
      %v7872 = vmax.f32 %v7871, %v6094
      %v7873 = vmax.f32 %v7872, %v6100
      %v7874 = vmax.f32 %v7873, %v6104
      %v7875 = vmax.f32 %v7874, %v6110
      %v7876 = vmax.f32 %v7875, %v6114
      %v7877 = vmax.f32 %v7876, %v6120
      %v7878 = vmax.f32 %v7877, %v6124
      %v7879 = vmax.f32 %v7878, %v6130
      %v7880 = vmax.f32 %v7879, %v6134
      %v7881 = vmax.f32 %v7880, %v6140
      %v7882 = vmax.f32 %v7881, %v6144
      %v7883 = vmax.f32 %v7882, %v6150
      %v7884 = vmax.f32 %v7883, %v6154
      %v7885 = vmax.f32 %v7884, %v6160
      %v7886 = vmax.f32 %v7885, %v6164
      %v7887 = vmax.f32 %v7886, %v6170
      %v7888 = vmax.f32 %v7887, %v6174
      %v7889 = vmax.f32 %v7888, %v6180
      %v7890 = vmax.f32 %v7889, %v6184
      %v7891 = vmax.f32 %v7890, %v6190
      %v7892 = vmax.f32 %v7891, %v6194
      %v7893 = vmax.f32 %v7892, %v6200
      %v7894 = vmax.f32 %v7893, %v6204
      %v7895 = vmax.f32 %v7894, %v6210
      %v7896 = vmax.f32 %v7895, %v6214
      %v7897 = vmax.f32 %v7896, %v6220
      %v7898 = vmax.f32 %v7897, %v6224
      %v7899 = vmax.f32 %v7898, %v6230
      %v7900 = vmax.f32 %v7899, %v6234
      %v7901 = vmax.f32 %v7900, %v6240
      %v7902 = vmax.f32 %v7901, %v6244
      %v7903 = vmax.f32 %v7902, %v6250
      %v7904 = vmax.f32 %v7903, %v6254
      %v7905 = vmax.f32 %v7904, %v6260
      %v7906 = vmax.f32 %v7905, %v6264
      %v7907 = vmax.f32 %v7906, %v6270
      %v7908 = vmax.f32 %v7907, %v6274
      %v7909 = vmax.f32 %v7908, %v6280
      %v7910 = vmax.f32 %v7909, %v6284
      %v7911 = vmax.f32 %v7910, %v6290
      %v7912 = vmax.f32 %v7911, %v6294
      %v7913 = vmax.f32 %v7912, %v6300
      %v7914 = vmax.f32 %v7913, %v6304
      %v7915 = vmax.f32 %v7914, %v6310
      %v7916 = vmax.f32 %v7915, %v6314
      %v7917 = vmax.f32 %v7916, %v6320
      %v7918 = vmax.f32 %v7917, %v6324
      %v7919 = vmax.f32 %v7918, %v6330
      %v7920 = vmax.f32 %v7919, %v6334
      %v7921 = vmax.f32 %v7920, %v6340
      %v7922 = vmax.f32 %v7921, %v6344
      %v7923 = vmax.f32 %v7922, %v6350
      %v7924 = vmax.f32 %v7923, %v6354
      %v7925 = vmax.f32 %v7924, %v6360
      %v7926 = vmax.f32 %v7925, %v6364
      %v7927 = vmax.f32 %v7926, %v6370
      %v7928 = vmax.f32 %v7927, %v6374
      %v7929 = vmax.f32 %v7928, %v6380
      %v7930 = vmax.f32 %v7929, %v6384
      %v7931 = vmax.f32 %v7930, %v6390
      %v7932 = vmax.f32 %v7931, %v6394
      %v7933 = vmax.f32 %v7932, %v6400
      %v7934 = vmax.f32 %v7933, %v6404
      %v7935 = vmax.f32 %v7934, %v6410
      %v7936 = vmax.f32 %v7935, %v6414
      %v7937 = vmax.f32 %v7936, %v6420
      %v7938 = vmax.f32 %v7937, %v6424
      %v7939 = vmax.f32 %v7938, %v6430
      %v7940 = vmax.f32 %v7939, %v6434
      %v7941 = vmax.f32 %v7940, %v6440
      %v7942 = vmax.f32 %v7941, %v6444
      %v7943 = vmax.f32 %v7942, %v6450
      %v7944 = vmax.f32 %v7943, %v6454
      %v7945 = vmax.f32 %v7944, %v6460
      %v7946 = vmax.f32 %v7945, %v6464
      %v7947 = vmax.f32 %v7946, %v6470
      %v7948 = vmax.f32 %v7947, %v6474
      %v7949 = vmax.f32 %v7948, %v6480
      %v7950 = vmax.f32 %v7949, %v6484
      %v7951 = vrot.slane %v7950, 4
      %v7952 = vmax.f32 %v7950, %v7951
      %v7953 = vrot.slane %v7952, 2
      %v7954 = vmax.f32 %v7952, %v7953
      %v7955 = vrot.slane %v7954, 1
      %v7956 = vmax.f32 %v7954, %v7955
      %v7957 = vmax.f32 %v6521, %v6525
      %v7958 = vmax.f32 %v7957, %v6531
      %v7959 = vmax.f32 %v7958, %v6535
      %v7960 = vmax.f32 %v7959, %v6541
      %v7961 = vmax.f32 %v7960, %v6545
      %v7962 = vmax.f32 %v7961, %v6551
      %v7963 = vmax.f32 %v7962, %v6555
      %v7964 = vmax.f32 %v7963, %v6561
      %v7965 = vmax.f32 %v7964, %v6565
      %v7966 = vmax.f32 %v7965, %v6571
      %v7967 = vmax.f32 %v7966, %v6575
      %v7968 = vmax.f32 %v7967, %v6581
      %v7969 = vmax.f32 %v7968, %v6585
      %v7970 = vmax.f32 %v7969, %v6591
      %v7971 = vmax.f32 %v7970, %v6595
      %v7972 = vmax.f32 %v7971, %v6601
      %v7973 = vmax.f32 %v7972, %v6605
      %v7974 = vmax.f32 %v7973, %v6611
      %v7975 = vmax.f32 %v7974, %v6615
      %v7976 = vmax.f32 %v7975, %v6621
      %v7977 = vmax.f32 %v7976, %v6625
      %v7978 = vmax.f32 %v7977, %v6631
      %v7979 = vmax.f32 %v7978, %v6635
      %v7980 = vmax.f32 %v7979, %v6641
      %v7981 = vmax.f32 %v7980, %v6645
      %v7982 = vmax.f32 %v7981, %v6651
      %v7983 = vmax.f32 %v7982, %v6655
      %v7984 = vmax.f32 %v7983, %v6661
      %v7985 = vmax.f32 %v7984, %v6665
      %v7986 = vmax.f32 %v7985, %v6671
      %v7987 = vmax.f32 %v7986, %v6675
      %v7988 = vmax.f32 %v7987, %v6681
      %v7989 = vmax.f32 %v7988, %v6685
      %v7990 = vmax.f32 %v7989, %v6691
      %v7991 = vmax.f32 %v7990, %v6695
      %v7992 = vmax.f32 %v7991, %v6701
      %v7993 = vmax.f32 %v7992, %v6705
      %v7994 = vmax.f32 %v7993, %v6711
      %v7995 = vmax.f32 %v7994, %v6715
      %v7996 = vmax.f32 %v7995, %v6721
      %v7997 = vmax.f32 %v7996, %v6725
      %v7998 = vmax.f32 %v7997, %v6731
      %v7999 = vmax.f32 %v7998, %v6735
      %v8000 = vmax.f32 %v7999, %v6741
      %v8001 = vmax.f32 %v8000, %v6745
      %v8002 = vmax.f32 %v8001, %v6751
      %v8003 = vmax.f32 %v8002, %v6755
      %v8004 = vmax.f32 %v8003, %v6761
      %v8005 = vmax.f32 %v8004, %v6765
      %v8006 = vmax.f32 %v8005, %v6771
      %v8007 = vmax.f32 %v8006, %v6775
      %v8008 = vmax.f32 %v8007, %v6781
      %v8009 = vmax.f32 %v8008, %v6785
      %v8010 = vmax.f32 %v8009, %v6791
      %v8011 = vmax.f32 %v8010, %v6795
      %v8012 = vmax.f32 %v8011, %v6801
      %v8013 = vmax.f32 %v8012, %v6805
      %v8014 = vmax.f32 %v8013, %v6811
      %v8015 = vmax.f32 %v8014, %v6815
      %v8016 = vmax.f32 %v8015, %v6821
      %v8017 = vmax.f32 %v8016, %v6825
      %v8018 = vmax.f32 %v8017, %v6831
      %v8019 = vmax.f32 %v8018, %v6835
      %v8020 = vmax.f32 %v8019, %v6841
      %v8021 = vmax.f32 %v8020, %v6845
      %v8022 = vmax.f32 %v8021, %v6851
      %v8023 = vmax.f32 %v8022, %v6855
      %v8024 = vmax.f32 %v8023, %v6861
      %v8025 = vmax.f32 %v8024, %v6865
      %v8026 = vmax.f32 %v8025, %v6871
      %v8027 = vmax.f32 %v8026, %v6875
      %v8028 = vmax.f32 %v8027, %v6881
      %v8029 = vmax.f32 %v8028, %v6885
      %v8030 = vmax.f32 %v8029, %v6891
      %v8031 = vmax.f32 %v8030, %v6895
      %v8032 = vmax.f32 %v8031, %v6901
      %v8033 = vmax.f32 %v8032, %v6905
      %v8034 = vmax.f32 %v8033, %v6911
      %v8035 = vmax.f32 %v8034, %v6915
      %v8036 = vmax.f32 %v8035, %v6921
      %v8037 = vmax.f32 %v8036, %v6925
      %v8038 = vmax.f32 %v8037, %v6931
      %v8039 = vmax.f32 %v8038, %v6935
      %v8040 = vmax.f32 %v8039, %v6941
      %v8041 = vmax.f32 %v8040, %v6945
      %v8042 = vmax.f32 %v8041, %v6951
      %v8043 = vmax.f32 %v8042, %v6955
      %v8044 = vmax.f32 %v8043, %v6961
      %v8045 = vmax.f32 %v8044, %v6965
      %v8046 = vmax.f32 %v8045, %v6971
      %v8047 = vmax.f32 %v8046, %v6975
      %v8048 = vmax.f32 %v8047, %v6981
      %v8049 = vmax.f32 %v8048, %v6985
      %v8050 = vmax.f32 %v8049, %v6991
      %v8051 = vmax.f32 %v8050, %v6995
      %v8052 = vmax.f32 %v8051, %v7001
      %v8053 = vmax.f32 %v8052, %v7005
      %v8054 = vmax.f32 %v8053, %v7011
      %v8055 = vmax.f32 %v8054, %v7015
      %v8056 = vmax.f32 %v8055, %v7021
      %v8057 = vmax.f32 %v8056, %v7025
      %v8058 = vmax.f32 %v8057, %v7031
      %v8059 = vmax.f32 %v8058, %v7035
      %v8060 = vmax.f32 %v8059, %v7041
      %v8061 = vmax.f32 %v8060, %v7045
      %v8062 = vmax.f32 %v8061, %v7051
      %v8063 = vmax.f32 %v8062, %v7055
      %v8064 = vmax.f32 %v8063, %v7061
      %v8065 = vmax.f32 %v8064, %v7065
      %v8066 = vmax.f32 %v8065, %v7071
      %v8067 = vmax.f32 %v8066, %v7075
      %v8068 = vmax.f32 %v8067, %v7081
      %v8069 = vmax.f32 %v8068, %v7085
      %v8070 = vmax.f32 %v8069, %v7091
      %v8071 = vmax.f32 %v8070, %v7095
      %v8072 = vmax.f32 %v8071, %v7101
      %v8073 = vmax.f32 %v8072, %v7105
      %v8074 = vmax.f32 %v8073, %v7111
      %v8075 = vmax.f32 %v8074, %v7115
      %v8076 = vmax.f32 %v8075, %v7121
      %v8077 = vmax.f32 %v8076, %v7125
      %v8078 = vmax.f32 %v8077, %v7131
      %v8079 = vmax.f32 %v8078, %v7135
      %v8080 = vmax.f32 %v8079, %v7141
      %v8081 = vmax.f32 %v8080, %v7145
      %v8082 = vmax.f32 %v8081, %v7151
      %v8083 = vmax.f32 %v8082, %v7155
      %v8084 = vrot.slane %v8083, 4
      %v8085 = vmax.f32 %v8083, %v8084
      %v8086 = vrot.slane %v8085, 2
      %v8087 = vmax.f32 %v8085, %v8086
      %v8088 = vrot.slane %v8087, 1
      %v8089 = vmax.f32 %v8087, %v8088
      %v8090 = vmax.f32 %v6523, %v6527
      %v8091 = vmax.f32 %v8090, %v6533
      %v8092 = vmax.f32 %v8091, %v6537
      %v8093 = vmax.f32 %v8092, %v6543
      %v8094 = vmax.f32 %v8093, %v6547
      %v8095 = vmax.f32 %v8094, %v6553
      %v8096 = vmax.f32 %v8095, %v6557
      %v8097 = vmax.f32 %v8096, %v6563
      %v8098 = vmax.f32 %v8097, %v6567
      %v8099 = vmax.f32 %v8098, %v6573
      %v8100 = vmax.f32 %v8099, %v6577
      %v8101 = vmax.f32 %v8100, %v6583
      %v8102 = vmax.f32 %v8101, %v6587
      %v8103 = vmax.f32 %v8102, %v6593
      %v8104 = vmax.f32 %v8103, %v6597
      %v8105 = vmax.f32 %v8104, %v6603
      %v8106 = vmax.f32 %v8105, %v6607
      %v8107 = vmax.f32 %v8106, %v6613
      %v8108 = vmax.f32 %v8107, %v6617
      %v8109 = vmax.f32 %v8108, %v6623
      %v8110 = vmax.f32 %v8109, %v6627
      %v8111 = vmax.f32 %v8110, %v6633
      %v8112 = vmax.f32 %v8111, %v6637
      %v8113 = vmax.f32 %v8112, %v6643
      %v8114 = vmax.f32 %v8113, %v6647
      %v8115 = vmax.f32 %v8114, %v6653
      %v8116 = vmax.f32 %v8115, %v6657
      %v8117 = vmax.f32 %v8116, %v6663
      %v8118 = vmax.f32 %v8117, %v6667
      %v8119 = vmax.f32 %v8118, %v6673
      %v8120 = vmax.f32 %v8119, %v6677
      %v8121 = vmax.f32 %v8120, %v6683
      %v8122 = vmax.f32 %v8121, %v6687
      %v8123 = vmax.f32 %v8122, %v6693
      %v8124 = vmax.f32 %v8123, %v6697
      %v8125 = vmax.f32 %v8124, %v6703
      %v8126 = vmax.f32 %v8125, %v6707
      %v8127 = vmax.f32 %v8126, %v6713
      %v8128 = vmax.f32 %v8127, %v6717
      %v8129 = vmax.f32 %v8128, %v6723
      %v8130 = vmax.f32 %v8129, %v6727
      %v8131 = vmax.f32 %v8130, %v6733
      %v8132 = vmax.f32 %v8131, %v6737
      %v8133 = vmax.f32 %v8132, %v6743
      %v8134 = vmax.f32 %v8133, %v6747
      %v8135 = vmax.f32 %v8134, %v6753
      %v8136 = vmax.f32 %v8135, %v6757
      %v8137 = vmax.f32 %v8136, %v6763
      %v8138 = vmax.f32 %v8137, %v6767
      %v8139 = vmax.f32 %v8138, %v6773
      %v8140 = vmax.f32 %v8139, %v6777
      %v8141 = vmax.f32 %v8140, %v6783
      %v8142 = vmax.f32 %v8141, %v6787
      %v8143 = vmax.f32 %v8142, %v6793
      %v8144 = vmax.f32 %v8143, %v6797
      %v8145 = vmax.f32 %v8144, %v6803
      %v8146 = vmax.f32 %v8145, %v6807
      %v8147 = vmax.f32 %v8146, %v6813
      %v8148 = vmax.f32 %v8147, %v6817
      %v8149 = vmax.f32 %v8148, %v6823
      %v8150 = vmax.f32 %v8149, %v6827
      %v8151 = vmax.f32 %v8150, %v6833
      %v8152 = vmax.f32 %v8151, %v6837
      %v8153 = vmax.f32 %v8152, %v6843
      %v8154 = vmax.f32 %v8153, %v6847
      %v8155 = vmax.f32 %v8154, %v6853
      %v8156 = vmax.f32 %v8155, %v6857
      %v8157 = vmax.f32 %v8156, %v6863
      %v8158 = vmax.f32 %v8157, %v6867
      %v8159 = vmax.f32 %v8158, %v6873
      %v8160 = vmax.f32 %v8159, %v6877
      %v8161 = vmax.f32 %v8160, %v6883
      %v8162 = vmax.f32 %v8161, %v6887
      %v8163 = vmax.f32 %v8162, %v6893
      %v8164 = vmax.f32 %v8163, %v6897
      %v8165 = vmax.f32 %v8164, %v6903
      %v8166 = vmax.f32 %v8165, %v6907
      %v8167 = vmax.f32 %v8166, %v6913
      %v8168 = vmax.f32 %v8167, %v6917
      %v8169 = vmax.f32 %v8168, %v6923
      %v8170 = vmax.f32 %v8169, %v6927
      %v8171 = vmax.f32 %v8170, %v6933
      %v8172 = vmax.f32 %v8171, %v6937
      %v8173 = vmax.f32 %v8172, %v6943
      %v8174 = vmax.f32 %v8173, %v6947
      %v8175 = vmax.f32 %v8174, %v6953
      %v8176 = vmax.f32 %v8175, %v6957
      %v8177 = vmax.f32 %v8176, %v6963
      %v8178 = vmax.f32 %v8177, %v6967
      %v8179 = vmax.f32 %v8178, %v6973
      %v8180 = vmax.f32 %v8179, %v6977
      %v8181 = vmax.f32 %v8180, %v6983
      %v8182 = vmax.f32 %v8181, %v6987
      %v8183 = vmax.f32 %v8182, %v6993
      %v8184 = vmax.f32 %v8183, %v6997
      %v8185 = vmax.f32 %v8184, %v7003
      %v8186 = vmax.f32 %v8185, %v7007
      %v8187 = vmax.f32 %v8186, %v7013
      %v8188 = vmax.f32 %v8187, %v7017
      %v8189 = vmax.f32 %v8188, %v7023
      %v8190 = vmax.f32 %v8189, %v7027
      %v8191 = vmax.f32 %v8190, %v7033
      %v8192 = vmax.f32 %v8191, %v7037
      %v8193 = vmax.f32 %v8192, %v7043
      %v8194 = vmax.f32 %v8193, %v7047
      %v8195 = vmax.f32 %v8194, %v7053
      %v8196 = vmax.f32 %v8195, %v7057
      %v8197 = vmax.f32 %v8196, %v7063
      %v8198 = vmax.f32 %v8197, %v7067
      %v8199 = vmax.f32 %v8198, %v7073
      %v8200 = vmax.f32 %v8199, %v7077
      %v8201 = vmax.f32 %v8200, %v7083
      %v8202 = vmax.f32 %v8201, %v7087
      %v8203 = vmax.f32 %v8202, %v7093
      %v8204 = vmax.f32 %v8203, %v7097
      %v8205 = vmax.f32 %v8204, %v7103
      %v8206 = vmax.f32 %v8205, %v7107
      %v8207 = vmax.f32 %v8206, %v7113
      %v8208 = vmax.f32 %v8207, %v7117
      %v8209 = vmax.f32 %v8208, %v7123
      %v8210 = vmax.f32 %v8209, %v7127
      %v8211 = vmax.f32 %v8210, %v7133
      %v8212 = vmax.f32 %v8211, %v7137
      %v8213 = vmax.f32 %v8212, %v7143
      %v8214 = vmax.f32 %v8213, %v7147
      %v8215 = vmax.f32 %v8214, %v7153
      %v8216 = vmax.f32 %v8215, %v7157
      %v8217 = vrot.slane %v8216, 4
      %v8218 = vmax.f32 %v8216, %v8217
      %v8219 = vrot.slane %v8218, 2
      %v8220 = vmax.f32 %v8218, %v8219
      %v8221 = vrot.slane %v8220, 1
      %v8222 = vmax.f32 %v8220, %v8221
      %v8223 = vld [vmem:[%s330] sm:$0xff]
      %v8225 = vlaneseq
      %v8226 = vshrl.u32 %v8225, 7
      %v8227 = vsub.s32 0, %v8226
      %v8228 = vrot.slane %v8223, %v8227
      %v8229 = vlaneseq
      %v8230 = vshrl.u32 %v8229, 7
      %v8231 = vsub.s32 1, %v8230
      %v8232 = vrot.slane %v8223, %v8231
      %v8233 = vlaneseq
      %v8234 = vshrl.u32 %v8233, 7
      %v8235 = vsub.s32 2, %v8234
      %v8236 = vrot.slane %v8223, %v8235
      %v8237 = vlaneseq
      %v8238 = vshrl.u32 %v8237, 7
      %v8239 = vsub.s32 3, %v8238
      %v8240 = vrot.slane %v8223, %v8239
      %v8241 = vlaneseq
      %v8242 = vshrl.u32 %v8241, 7
      %v8243 = vsub.s32 4, %v8242
      %v8244 = vrot.slane %v8223, %v8243
      %v8245 = vlaneseq
      %v8246 = vshrl.u32 %v8245, 7
      %v8247 = vsub.s32 5, %v8246
      %v8248 = vrot.slane %v8223, %v8247
      %v8249 = vlaneseq
      %v8250 = vshrl.u32 %v8249, 7
      %v8251 = vsub.s32 6, %v8250
      %v8252 = vrot.slane %v8223, %v8251
      %v8253 = vlaneseq
      %v8254 = vshrl.u32 %v8253, 7
      %v8255 = vsub.s32 7, %v8254
      %v8256 = vrot.slane %v8223, %v8255
      %v8265 = vadd.f32 %v7291, %v8228
      %v8266 = vadd.f32 %v7424, %v8232
      %v8267 = vadd.f32 %v7557, %v8236
      %v8268 = vadd.f32 %v7690, %v8240
      %v8269 = vadd.f32 %v7823, %v8244
      %v8270 = vadd.f32 %v7956, %v8248
      %v8271 = vadd.f32 %v8089, %v8252
      %v8272 = vadd.f32 %v8222, %v8256
      %v8273 = vmax.f32 %v8265, 0.0
      %v8274 = vmax.f32 %v8266, 0.0
      %v8275 = vmax.f32 %v8267, 0.0
      %v8276 = vmax.f32 %v8268, 0.0
      %v8277 = vmax.f32 %v8269, 0.0
      %v8278 = vmax.f32 %v8270, 0.0
      %v8279 = vmax.f32 %v8271, 0.0
      %v8280 = vmax.f32 %v8272, 0.0
      %v8281 = vpack.c.bf16 %v8273, %v8273
      %v8282 = vpack.c.bf16 %v8274, %v8274
      %v8283 = vpack.c.bf16 %v8275, %v8275
      %v8284 = vpack.c.bf16 %v8276, %v8276
      %v8285 = vpack.c.bf16 %v8277, %v8277
      %v8286 = vpack.c.bf16 %v8278, %v8278
      %v8287 = vpack.c.bf16 %v8279, %v8279
      %v8288 = vpack.c.bf16 %v8280, %v8280
      %v8297 = vcombine.low %v8281, %v8282
      %v8298 = vcombine.low %v8283, %v8284
      %v8299 = vcombine.low %v8285, %v8286
      %v8300 = vcombine.low %v8287, %v8288
      %v8302 = vunpack.c.l.s4 1966171168
      %v8303 = vunpack.c.0.s8 %v8302
      %v8304 = vlaneseq
      %v8305 = vshrl.u32 %v8304, 7
      %v8306 = vsub.s32 %v8303, %v8305
      %v8307 = vrot.slane %v8297, %v8306
      %v8309 = vunpack.c.l.s4 1966171168
      %v8310 = vunpack.c.0.s8 %v8309
      %v8311 = vlaneseq
      %v8312 = vshrl.u32 %v8311, 7
      %v8313 = vsub.s32 %v8310, %v8312
      %v8314 = vrot.slane %v8298, %v8313
      %v8316 = vunpack.c.l.s4 1966171168
      %v8317 = vunpack.c.0.s8 %v8316
      %v8318 = vlaneseq
      %v8319 = vshrl.u32 %v8318, 7
      %v8320 = vsub.s32 %v8317, %v8319
      %v8321 = vrot.slane %v8299, %v8320
      %v8323 = vunpack.c.l.s4 1966171168
      %v8324 = vunpack.c.0.s8 %v8323
      %v8325 = vlaneseq
      %v8326 = vshrl.u32 %v8325, 7
      %v8327 = vsub.s32 %v8324, %v8326
      %v8328 = vrot.slane %v8300, %v8327
      %v8329 = vcombine.low %v8307, %v8314
      %v8330 = vcombine.low %v8321, %v8328
      %v8332 = vunpack.c.l.s4 1966171168
      %v8333 = vunpack.c.0.s8 %v8332
      %v8334 = vlaneseq
      %v8335 = vshrl.u32 %v8334, 7
      %v8336 = vsub.s32 %v8333, %v8335
      %v8337 = vrot.slane %v8329, %v8336
      %v8339 = vunpack.c.l.s4 1966171168
      %v8340 = vunpack.c.0.s8 %v8339
      %v8341 = vlaneseq
      %v8342 = vshrl.u32 %v8341, 7
      %v8343 = vsub.s32 %v8340, %v8342
      %v8344 = vrot.slane %v8330, %v8343
      %v8345 = vcombine.low %v8337, %v8344
      %vm8347 = vcmask 1040384
      %vm8348 = vsmask.f32 256
      %vm8349 = vmand %vm8347, %vm8348
      %vm8350 = vcmask 1041409
      %vm8351 = vsmask.f32 1280
      %vm8352 = vmand %vm8350, %vm8351
      %vm8353 = vmor %vm8352, %vm8349
      %vm8354 = vcmask 1042434
      %vm8355 = vsmask.f32 2304
      %vm8356 = vmand %vm8354, %vm8355
      %vm8357 = vmor %vm8356, %vm8353
      %vm8358 = vcmask 1043459
      %vm8359 = vsmask.f32 3328
      %vm8360 = vmand %vm8358, %vm8359
      %vm8361 = vmor %vm8360, %vm8357
      %vm8362 = vcmask 1044484
      %vm8363 = vsmask.f32 4352
      %vm8364 = vmand %vm8362, %vm8363
      %vm8365 = vmor %vm8364, %vm8361
      %vm8366 = vcmask 1045509
      %vm8367 = vsmask.f32 5376
      %vm8368 = vmand %vm8366, %vm8367
      %vm8369 = vmor %vm8368, %vm8365
      %vm8370 = vcmask 1046534
      %vm8371 = vsmask.f32 6400
      %vm8372 = vmand %vm8370, %vm8371
      %vm8373 = vmor %vm8372, %vm8369
      %vm8374 = vcmask 1047559
      %vm8375 = vsmask.f32 7424
      %vm8376 = vmand %vm8374, %vm8375
      %vm8377 = vmor %vm8376, %vm8373
      %v8378 = vld [vmem:[%s339] sm:$0xff]
      %v8379 = vsel %vm8377, %v8345, %v8378
      %8380 = vst [vmem:[%s339] sm:$0xff] %v8379
      %s8381 = smul.u32 8, %s23
      %p8382 = scmp.lt.s32.totalorder %s22, 1
      %s8383 = scalar_select %p8382, %s22, 1
      %p8384 = scmp.lt.s32.totalorder %s8381, 7
      %s8385 = scalar_select %p8384, %s8381, 7
      %s8386 = smul.addr %s8383, 8
      %s8387 = sadd.s32 %s8385, %s8386
      %s8388 = scalar_lea.vmem %s7, %s8387
      // Predicated region
      $region49: #{tnet_forward.2} parent=47 // pred_check
        %p8389 = pneg %p212
      $region50: #{tnet_forward.2} parent=47 // pred_check_branch
        %8391 = sbr.rel (%p8389) target = $region52
      $region51: #{tnet_forward.2} parent=47 // pred_region
        %s8392 = smul.u32 8, %s23
      $region52: #{tnet_forward.2} parent=47 // pred_fallthru
        _
    $region48: #{tnet_forward.2} parent=5 // pred_fallthru
      _
    %p8393 = scmp.le.s32.totalorder 2, %s13
    // Predicated region
    $region53: #{tnet_forward.2} parent=5 // pred_check
      %p8394 = pneg %p8393
    $region54: #{tnet_forward.2} parent=5 // pred_check_branch
      %8396 = sbr.rel (%p8394) target = $region56
    $region55: #{tnet_forward.2} parent=5 // pred_region
      %s8397 = ssub.s32 %s13, 2
      // Predicated region
      $region57: #{tnet_forward.2} parent=55 // pred_check
        %p8398 = pneg %p218
      $region58: #{tnet_forward.2} parent=55 // pred_check_branch
        %8400 = sbr.rel (%p8398) target = $region60
      $region59: #{tnet_forward.2} parent=55 // pred_region
        %s8401 = smul.u32 8, %s25
        %p8402 = scmp.lt.s32.totalorder %s24, 1
        %s8403 = scalar_select %p8402, %s24, 1
        %p8404 = scmp.lt.s32.totalorder %s8401, 7
        %s8405 = scalar_select %p8404, %s8401, 7
        %s8406 = smul.addr %s8403, 8
        %s8407 = sadd.s32 %s8405, %s8406
        %s8408 = scalar_lea.vmem %s7, %s8407
      $region60: #{tnet_forward.2} parent=55 // pred_fallthru
        _
    $region56: #{tnet_forward.2} parent=5 // pred_fallthru
      _
  $region6: #{tnet_forward.2} parent=0 // loop_footer
    %s17 = sadd.s32 1, %s13
  $region7: #{tnet_forward.2} parent=0 // loop_footer_branch
    %12 = sbr.rel target = $region3
  $region8: #{tnet_forward.2} parent=0 // loop_exit
    _

</llo_original>
